<compile_context>
chip_gen: v6e
topology: v6e:2x2x1
jax: 0.10.0
libtpu: 0.0.40
codegen_flags: <defaults>
</compile_context>

<pallas_src>
import functools

import jax
import jax.numpy as jnp
from jax import lax
from jax.experimental import pallas as pl
from jax.experimental.pallas import tpu as pltpu

EPS = 1e-5
LANES = 128

_CPARAMS = pltpu.CompilerParams(dimension_semantics=("parallel",))


def _round_up(x, m):
    return (x + m - 1) // m * m


# ---------------------------------------------------------------------------
# In-kernel helpers
# ---------------------------------------------------------------------------
def _conv3x3_taps(src, w_ref, Ho, Wo, stride, cin_p, row0=0, col0=0):
    """3x3 conv (pad=1 already applied to `src`) as 9 shifted MXU matmuls.

    src   : (Hin, Win, cin_p) VMEM ref or array holding the zero-padded input.
    w_ref : (9*cin_p, cout_p) ref; rows k*cin_p:(k+1)*cin_p hold tap (dy, dx)
            with k = 3*dy + dx (HWIO reshape order).
    Returns (Ho*Wo, cout_p) float32 accumulator.
    """
    acc = None
    span_h = (Ho - 1) * stride + 1
    span_w = (Wo - 1) * stride + 1
    for dy in range(3):
        for dx in range(3):
            k = 3 * dy + dx
            tap = src[row0 + dy:row0 + dy + span_h,
                      col0 + dx:col0 + dx + span_w, :]
            if stride != 1:
                # TODO(synk): stride>1 tap subsampling is untested on-device.
                tap = tap[::stride, ::stride, :]
            tap = tap.reshape(Ho * Wo, cin_p)
            wk = w_ref[k * cin_p:(k + 1) * cin_p, :]
            part = jnp.dot(tap, wk, preferred_element_type=jnp.float32)
            acc = part if acc is None else acc + part
    return acc


# ---------------------------------------------------------------------------
# Kernels
# ---------------------------------------------------------------------------
def _conv1_kernel(x_ref, w_ref, y_ref, st_ref, *, Ho, Wo, stride, cin_p):
    # conv1 (raw, pre-BN) + per-image partial BN statistics.
    acc = _conv3x3_taps(x_ref, w_ref, Ho, Wo, stride, cin_p)      # (Ho*Wo, Cp) f32
    y_ref[...] = acc.reshape(Ho, Wo, -1)
    st_ref[0:1, :] = jnp.sum(acc, axis=0, keepdims=True)
    st_ref[1:2, :] = jnp.sum(acc * acc, axis=0, keepdims=True)


def _bn1_conv2_skip_kernel(y1_ref, sc1_ref, sh1_ref, w2_ref, xs_ref, wsk_ref,
                           y2_ref, r_ref, st2_ref, sts_ref, hpad_ref,
                           *, Ho, Wo, cp):
    # h = relu(bn1(conv1_raw)) computed in f32, downcast to bf16 for the MXU.
    y1 = y1_ref[...].reshape(Ho * Wo, cp)
    h = jnp.maximum(y1 * sc1_ref[...] + sh1_ref[...], 0.0).astype(hpad_ref.dtype)
    # Stage the zero-haloed activation for conv2 in VMEM scratch. Columns are
    # stored at offset 8 so the interior store stays sublane-aligned.
    hpad_ref[...] = jnp.zeros(hpad_ref.shape, hpad_ref.dtype)
    hpad_ref[1:Ho + 1, 8:8 + Wo, :] = h.reshape(Ho, Wo, cp)
    acc = _conv3x3_taps(hpad_ref, w2_ref, Ho, Wo, 1, cp, row0=0, col0=7)
    y2_ref[...] = acc.reshape(Ho, Wo, cp)
    st2_ref[0:1, :] = jnp.sum(acc, axis=0, keepdims=True)
    st2_ref[1:2, :] = jnp.sum(acc * acc, axis=0, keepdims=True)
    # 1x1 skip conv on the (strided) input, raw + partial BN stats.
    r = jnp.dot(xs_ref[...].reshape(Ho * Wo, -1), wsk_ref[...],
                preferred_element_type=jnp.float32)
    r_ref[...] = r.reshape(Ho, Wo, cp)
    sts_ref[0:1, :] = jnp.sum(r, axis=0, keepdims=True)
    sts_ref[1:2, :] = jnp.sum(r * r, axis=0, keepdims=True)


def _bn1_conv2_kernel(y1_ref, sc1_ref, sh1_ref, w2_ref,
                      y2_ref, st2_ref, hpad_ref, *, Ho, Wo, cp):
    # Identity-skip variant: same as above minus the 1x1 conv path.
    y1 = y1_ref[...].reshape(Ho * Wo, cp)
    h = jnp.maximum(y1 * sc1_ref[...] + sh1_ref[...], 0.0).astype(hpad_ref.dtype)
    hpad_ref[...] = jnp.zeros(hpad_ref.shape, hpad_ref.dtype)
    hpad_ref[1:Ho + 1, 8:8 + Wo, :] = h.reshape(Ho, Wo, cp)
    acc = _conv3x3_taps(hpad_ref, w2_ref, Ho, Wo, 1, cp, row0=0, col0=7)
    y2_ref[...] = acc.reshape(Ho, Wo, cp)
    st2_ref[0:1, :] = jnp.sum(acc, axis=0, keepdims=True)
    st2_ref[1:2, :] = jnp.sum(acc * acc, axis=0, keepdims=True)


def _finalize_skip_kernel(y2_ref, r_ref, sc2_ref, sh2_ref, scs_ref, shs_ref, o_ref):
    # out = relu(bn2(conv2) + bn_skip(conv1x1))
    y = y2_ref[...] * sc2_ref[...] + sh2_ref[...]
    r = r_ref[...] * scs_ref[...] + shs_ref[...]
    o_ref[...] = jnp.maximum(y + r, 0.0)


def _finalize_identity_kernel(y2_ref, res_ref, sc2_ref, sh2_ref, o_ref):
    # out = relu(bn2(conv2) + x)
    y = y2_ref[...] * sc2_ref[...] + sh2_ref[...]
    o_ref[...] = jnp.maximum(y + res_ref[...], 0.0)


# ---------------------------------------------------------------------------
# BlockSpec helpers (grid axis = image index)
# ---------------------------------------------------------------------------
def _img_spec(*dims):
    nd = len(dims)
    return pl.BlockSpec((None,) + tuple(dims), lambda n: (n,) + (0,) * nd)


def _const_spec(shape):
    nd = len(shape)
    return pl.BlockSpec(tuple(shape), lambda n: (0,) * nd)


def _stats_spec(cp):
    return pl.BlockSpec((None, 2, cp), lambda n: (n, 0, 0))


def _bn_scale_shift(stats, count, gamma, beta):
    """Fold global batch statistics into a per-channel scale/shift (f32).

    stats: (N, 2, Cp) per-image partial (sum, sum-of-squares).
    Training-mode BatchNorm: biased variance, eps=1e-5.
    """
    s = jnp.sum(stats[:, 0, :], axis=0)
    sq = jnp.sum(stats[:, 1, :], axis=0)
    mean = s / count
    var = jnp.maximum(sq / count - mean * mean, 0.0)
    rstd = lax.rsqrt(var + EPS)
    g = gamma.reshape(-1)
    scale = g * rstd
    shift = beta.reshape(-1) - mean * scale
    return scale.reshape(1, -1), shift.reshape(1, -1)


# ---------------------------------------------------------------------------
# Wrapper
# ---------------------------------------------------------------------------
def residual_block_forward(x_nchw, params, stride=1):
    """Forward pass of the PyTorch ResidualBlock (training-mode BatchNorm)."""
    # TODO(synk): when stacking many blocks, keep NHWC end-to-end and hoist the
    # NCHW<->NHWC transposes out of the per-block path.
    x = jnp.transpose(x_nchw, (0, 2, 3, 1)).astype(jnp.float32)   # NCHW -> NHWC
    N, H, W, Cin = x.shape
    Cout = params["w1"].shape[-1]
    Ho = (H + 2 - 3) // stride + 1
    Wo = (W + 2 - 3) // stride + 1
    M = N * Ho * Wo
    cin_p = _round_up(Cin, LANES)
    cp = _round_up(Cout, LANES)

    # ---- layout glue: channel-pad to full lanes, spatial pad, bf16 MXU inputs
    xcp = jnp.pad(x, ((0, 0), (0, 0), (0, 0), (0, cin_p - Cin)))
    x_pad = jnp.pad(xcp, ((0, 0), (1, 1), (1, 1), (0, 0))).astype(jnp.bfloat16)
    w1 = jnp.pad(params["w1"], ((0, 0), (0, 0), (0, cin_p - Cin), (0, cp - Cout)))
    w1 = w1.reshape(9 * cin_p, cp).astype(jnp.bfloat16)
    w2 = jnp.pad(params["w2"], ((0, 0), (0, 0), (0, cp - Cout), (0, cp - Cout)))
    w2 = w2.reshape(9 * cp, cp).astype(jnp.bfloat16)

    def _vec(v):
        v = v.reshape(1, -1).astype(jnp.float32)
        return jnp.pad(v, ((0, 0), (0, cp - v.shape[1])))

    # ---- kernel A: conv1 + partial BN1 stats ---------------------------------
    conv1 = functools.partial(_conv1_kernel, Ho=Ho, Wo=Wo, stride=stride, cin_p=cin_p)
    y1_raw, st1 = pl.pallas_call(
        conv1,
        grid=(N,),
        in_specs=[_img_spec(H + 2, W + 2, cin_p), _const_spec((9 * cin_p, cp))],
        out_specs=(_img_spec(Ho, Wo, cp), _stats_spec(cp)),
        out_shape=(jax.ShapeDtypeStruct((N, Ho, Wo, cp), jnp.float32),
                   jax.ShapeDtypeStruct((N, 2, cp), jnp.float32)),
        compiler_params=_CPARAMS,
        cost_estimate=pl.CostEstimate(
            flops=2 * M * 9 * cin_p * cp, transcendentals=0,
            bytes_accessed=int(x_pad.size * 2 + w1.size * 2 + M * cp * 4 + N * 2 * cp * 4)),
    )(x_pad, w1)
    sc1, sh1 = _bn_scale_shift(st1, M, _vec(params["g1"]), _vec(params["b1"]))

    has_skip = (stride != 1) or (Cin != Cout)
    xs = xcp[:, ::stride, ::stride, :]                       # (N, Ho, Wo, cin_p) f32
    scratch = [pltpu.VMEM((Ho + 2, Wo + 16, cp), jnp.bfloat16)]

    if has_skip:
        wsk = jnp.pad(params["wsk"],
                      ((0, cin_p - Cin), (0, cp - Cout))).astype(jnp.bfloat16)
        bc = functools.partial(_bn1_conv2_skip_kernel, Ho=Ho, Wo=Wo, cp=cp)
        y2_raw, r_raw, st2, sts = pl.pallas_call(
            bc,
            grid=(N,),
            in_specs=[_img_spec(Ho, Wo, cp), _const_spec((1, cp)), _const_spec((1, cp)),
                      _const_spec((9 * cp, cp)), _img_spec(Ho, Wo, cin_p),
                      _const_spec((cin_p, cp))],
            out_specs=(_img_spec(Ho, Wo, cp), _img_spec(Ho, Wo, cp),
                       _stats_spec(cp), _stats_spec(cp)),
            out_shape=(jax.ShapeDtypeStruct((N, Ho, Wo, cp), jnp.float32),
                       jax.ShapeDtypeStruct((N, Ho, Wo, cp), jnp.float32),
                       jax.ShapeDtypeStruct((N, 2, cp), jnp.float32),
                       jax.ShapeDtypeStruct((N, 2, cp), jnp.float32)),
            scratch_shapes=scratch,
            compiler_params=_CPARAMS,
            cost_estimate=pl.CostEstimate(
                flops=2 * M * 9 * cp * cp + 2 * M * cin_p * cp, transcendentals=0,
                bytes_accessed=int(3 * M * cp * 4 + w2.size * 2 + M * cin_p * 2 + wsk.size * 2)),
        )(y1_raw, sc1, sh1, w2, xs.astype(jnp.bfloat16), wsk)
        sc2, sh2 = _bn_scale_shift(st2, M, _vec(params["g2"]), _vec(params["b2"]))
        scs, shs = _bn_scale_shift(sts, M, _vec(params["gs"]), _vec(params["bs"]))
        out = pl.pallas_call(
            _finalize_skip_kernel,
            grid=(N,),
            in_specs=[_img_spec(Ho, Wo, cp), _img_spec(Ho, Wo, cp),
                      _const_spec((1, cp)), _const_spec((1, cp)),
                      _const_spec((1, cp)), _const_spec((1, cp))],
            out_specs=_img_spec(Ho, Wo, cp),
            out_shape=jax.ShapeDtypeStruct((N, Ho, Wo, cp), jnp.float32),
            compiler_params=_CPARAMS,
            cost_estimate=pl.CostEstimate(
                flops=8 * M * cp, transcendentals=0,
                bytes_accessed=int(3 * M * cp * 4)),
        )(y2_raw, r_raw, sc2, sh2, scs, shs)
    else:
        bc = functools.partial(_bn1_conv2_kernel, Ho=Ho, Wo=Wo, cp=cp)
        y2_raw, st2 = pl.pallas_call(
            bc,
            grid=(N,),
            in_specs=[_img_spec(Ho, Wo, cp), _const_spec((1, cp)), _const_spec((1, cp)),
                      _const_spec((9 * cp, cp))],
            out_specs=(_img_spec(Ho, Wo, cp), _stats_spec(cp)),
            out_shape=(jax.ShapeDtypeStruct((N, Ho, Wo, cp), jnp.float32),
                       jax.ShapeDtypeStruct((N, 2, cp), jnp.float32)),
            scratch_shapes=scratch,
            compiler_params=_CPARAMS,
            cost_estimate=pl.CostEstimate(
                flops=2 * M * 9 * cp * cp, transcendentals=0,
                bytes_accessed=int(2 * M * cp * 4 + w2.size * 2)),
        )(y1_raw, sc1, sh1, w2)
        sc2, sh2 = _bn_scale_shift(st2, M, _vec(params["g2"]), _vec(params["b2"]))
        out = pl.pallas_call(
            _finalize_identity_kernel,
            grid=(N,),
            in_specs=[_img_spec(Ho, Wo, cp), _img_spec(Ho, Wo, cp),
                      _const_spec((1, cp)), _const_spec((1, cp))],
            out_specs=_img_spec(Ho, Wo, cp),
            out_shape=jax.ShapeDtypeStruct((N, Ho, Wo, cp), jnp.float32),
            compiler_params=_CPARAMS,
            cost_estimate=pl.CostEstimate(
                flops=5 * M * cp, transcendentals=0,
                bytes_accessed=int(3 * M * cp * 4)),
        )(y2_raw, xs, sc2, sh2)   # identity skip: cin_p == cp, residual kept f32

    out = out[:, :, :, :Cout]                       # drop lane padding
    return jnp.transpose(out, (0, 3, 1, 2))          # NHWC -> NCHW


# ---------------------------------------------------------------------------
# Pure-XLA reference (for correctness check)
# ---------------------------------------------------------------------------
def ref_forward(x_nchw, params, stride=1, matmul_dtype=jnp.float32):
    """matmul_dtype=bfloat16 mimics the kernel's MXU input precision
    (f32 accumulation and f32 BN math either way)."""
    q = lambda a: a.astype(matmul_dtype).astype(jnp.float32)
    x = jnp.transpose(x_nchw, (0, 2, 3, 1)).astype(jnp.float32)
    Cin = x.shape[-1]
    Cout = params["w1"].shape[-1]

    def conv3(v, w, s):
        return lax.conv_general_dilated(q(v), q(w), (s, s), ((1, 1), (1, 1)),
                                        dimension_numbers=('NHWC', 'HWIO', 'NHWC'))

    def bn(y, g, b):
        m = jnp.mean(y, axis=(0, 1, 2), keepdims=True)
        v = jnp.mean(jnp.square(y - m), axis=(0, 1, 2), keepdims=True)
        return (y - m) * lax.rsqrt(v + EPS) * g.reshape(1, 1, 1, -1) + b.reshape(1, 1, 1, -1)

    out = jax.nn.relu(bn(conv3(x, params["w1"], stride), params["g1"], params["b1"]))
    out = bn(conv3(out, params["w2"], 1), params["g2"], params["b2"])
    if stride != 1 or Cin != Cout:
        wsk = params["wsk"].reshape(1, 1, Cin, Cout)
        r = lax.conv_general_dilated(q(x), q(wsk), (stride, stride), 'VALID',
                                     dimension_numbers=('NHWC', 'HWIO', 'NHWC'))
        r = bn(r, params["gs"], params["bs"])
    else:
        r = x
    out = jax.nn.relu(out + r)
    return jnp.transpose(out, (0, 3, 1, 2))


# ---------------------------------------------------------------------------
if __name__ == "__main__":
    key = jax.random.PRNGKey(0)
    ks = jax.random.split(key, 10)

    # Small shapes: batch=2, in_channels=4, out_channels=8, spatial=16, stride=1.
    # in != out  =>  the 1x1-conv + BN skip path is exercised.
    N, Cin, Cout, H, W, stride = 2, 4, 8, 16, 16, 1

    # Deterministic synthetic parameters. Conv weights HWIO; gamma/beta (1, C).
    params = {
        "w1": 0.2 * jax.random.normal(ks[0], (3, 3, Cin, Cout), jnp.float32),
        "g1": 1.0 + 0.1 * jax.random.normal(ks[1], (1, Cout), jnp.float32),
        "b1": 0.1 * jax.random.normal(ks[2], (1, Cout), jnp.float32),
        "w2": 0.2 * jax.random.normal(ks[3], (3, 3, Cout, Cout), jnp.float32),
        "g2": 1.0 + 0.1 * jax.random.normal(ks[4], (1, Cout), jnp.float32),
        "b2": 0.1 * jax.random.normal(ks[5], (1, Cout), jnp.float32),
        "wsk": 0.2 * jax.random.normal(ks[6], (Cin, Cout), jnp.float32),
        "gs": 1.0 + 0.1 * jax.random.normal(ks[7], (1, Cout), jnp.float32),
        "bs": 0.1 * jax.random.normal(ks[8], (1, Cout), jnp.float32),
    }
    x = jax.random.normal(ks[9], (N, Cin, H, W), jnp.float32)   # PyTorch NCHW layout

    fwd = jax.jit(functools.partial(residual_block_forward, stride=stride))
    out = jax.block_until_ready(fwd(x, params))
    assert out.shape == (N, Cout, H // stride, W // stride), out.shape

    # Precision-matched reference (bf16 MXU inputs, f32 accumulation / BN math).
    ref_q = ref_forward(x, params, stride, matmul_dtype=jnp.bfloat16)
    err = float(jnp.max(jnp.abs(out - ref_q)))
    if err > 1e-2:
        raise AssertionError(f"mismatch vs precision-matched reference: {err}")
    # Sanity bound vs the full-f32 reference (bf16 MXU inputs => ~1e-2 level).
    err32 = float(jnp.max(jnp.abs(out - ref_forward(x, params, stride))))
    if err32 > 1e-1:
        raise AssertionError(f"mismatch vs f32 reference: {err32}")
    # TODO(synk): BatchNorm running-stat (momentum) updates are training-side
    # state that does not affect this forward output, so they are not emitted.
    print("KERNEL_OK")
</pallas_src>

<mosaic_0001>
module attributes {stable_mosaic.version = 11 : i64} {
  func.func @_conv1_kernel(%arg0: i32, %arg1: memref<1x18x18x128xbf16, #tpu.memory_space<vmem>>, %arg2: memref<1152x128xbf16, #tpu.memory_space<vmem>>, %arg3: memref<1x16x16x128xf32, #tpu.memory_space<vmem>>, %arg4: memref<1x2x128xf32, #tpu.memory_space<vmem>>) attributes {dimension_semantics = [#tpu.dimension_semantics<parallel>], iteration_bounds = array<i64: 2>, scalar_prefetch = 0 : i64, scratch_operands = 0 : i64, tpu.core_type = #tpu.core_type<tc>, window_params = [{transform_indices = @transform_0, window_bounds = array<i64: 1, 18, 18, 128>}, {pipeline_mode = #tpu.pipeline_mode<synchronous>, transform_indices = @transform_1, window_bounds = array<i64: 1152, 128>}, {transform_indices = @transform_2, window_bounds = array<i64: 1, 16, 16, 128>}, {transform_indices = @transform_3, window_bounds = array<i64: 1, 2, 128>}]} {
    %c0 = arith.constant 0 : index
    %c0_0 = arith.constant 0 : index
    %c0_1 = arith.constant 0 : index
    %c0_2 = arith.constant 0 : index
    %0 = vector.load %arg1[%c0, %c0_0, %c0_1, %c0_2] : memref<1x18x18x128xbf16, #tpu.memory_space<vmem>>, vector<1x16x16x128xbf16>
    %1 = vector.shape_cast %0 : vector<1x16x16x128xbf16> to vector<16x16x128xbf16>
    %2 = vector.shape_cast %1 : vector<16x16x128xbf16> to vector<256x128xbf16>
    %c0_3 = arith.constant 0 : index
    %c0_4 = arith.constant 0 : index
    %3 = vector.load %arg2[%c0_3, %c0_4] : memref<1152x128xbf16, #tpu.memory_space<vmem>>, vector<128x128xbf16>
    %cst = arith.constant dense<0.000000e+00> : vector<256x128xf32>
    %4 = tpu.matmul %2, %3, %cst {dimension_numbers = #tpu.dot_dimension_numbers<[1], [0], [0], [1], [0, 0, 1, 1], [], []>} : vector<256x128xbf16>, vector<128x128xbf16>, vector<256x128xf32> -> vector<256x128xf32>
    %c0_5 = arith.constant 0 : index
    %c0_6 = arith.constant 0 : index
    %c1 = arith.constant 1 : index
    %c0_7 = arith.constant 0 : index
    %5 = vector.load %arg1[%c0_5, %c0_6, %c1, %c0_7] : memref<1x18x18x128xbf16, #tpu.memory_space<vmem>>, vector<1x16x16x128xbf16>
    %6 = vector.shape_cast %5 : vector<1x16x16x128xbf16> to vector<16x16x128xbf16>
    %7 = vector.shape_cast %6 : vector<16x16x128xbf16> to vector<256x128xbf16>
    %c128 = arith.constant 128 : index
    %c0_8 = arith.constant 0 : index
    %8 = vector.load %arg2[%c128, %c0_8] : memref<1152x128xbf16, #tpu.memory_space<vmem>>, vector<128x128xbf16>
    %cst_9 = arith.constant dense<0.000000e+00> : vector<256x128xf32>
    %9 = tpu.matmul %7, %8, %cst_9 {dimension_numbers = #tpu.dot_dimension_numbers<[1], [0], [0], [1], [0, 0, 1, 1], [], []>} : vector<256x128xbf16>, vector<128x128xbf16>, vector<256x128xf32> -> vector<256x128xf32>
    %10 = arith.addf %4, %9 : vector<256x128xf32>
    %c0_10 = arith.constant 0 : index
    %c0_11 = arith.constant 0 : index
    %c2 = arith.constant 2 : index
    %c0_12 = arith.constant 0 : index
    %11 = vector.load %arg1[%c0_10, %c0_11, %c2, %c0_12] : memref<1x18x18x128xbf16, #tpu.memory_space<vmem>>, vector<1x16x16x128xbf16>
    %12 = vector.shape_cast %11 : vector<1x16x16x128xbf16> to vector<16x16x128xbf16>
    %13 = vector.shape_cast %12 : vector<16x16x128xbf16> to vector<256x128xbf16>
    %c256 = arith.constant 256 : index
    %c0_13 = arith.constant 0 : index
    %14 = vector.load %arg2[%c256, %c0_13] : memref<1152x128xbf16, #tpu.memory_space<vmem>>, vector<128x128xbf16>
    %cst_14 = arith.constant dense<0.000000e+00> : vector<256x128xf32>
    %15 = tpu.matmul %13, %14, %cst_14 {dimension_numbers = #tpu.dot_dimension_numbers<[1], [0], [0], [1], [0, 0, 1, 1], [], []>} : vector<256x128xbf16>, vector<128x128xbf16>, vector<256x128xf32> -> vector<256x128xf32>
    %16 = arith.addf %10, %15 : vector<256x128xf32>
    %c0_15 = arith.constant 0 : index
    %c1_16 = arith.constant 1 : index
    %c0_17 = arith.constant 0 : index
    %c0_18 = arith.constant 0 : index
    %17 = vector.load %arg1[%c0_15, %c1_16, %c0_17, %c0_18] : memref<1x18x18x128xbf16, #tpu.memory_space<vmem>>, vector<1x16x16x128xbf16>
    %18 = vector.shape_cast %17 : vector<1x16x16x128xbf16> to vector<16x16x128xbf16>
    %19 = vector.shape_cast %18 : vector<16x16x128xbf16> to vector<256x128xbf16>
    %c384 = arith.constant 384 : index
    %c0_19 = arith.constant 0 : index
    %20 = vector.load %arg2[%c384, %c0_19] : memref<1152x128xbf16, #tpu.memory_space<vmem>>, vector<128x128xbf16>
    %cst_20 = arith.constant dense<0.000000e+00> : vector<256x128xf32>
    %21 = tpu.matmul %19, %20, %cst_20 {dimension_numbers = #tpu.dot_dimension_numbers<[1], [0], [0], [1], [0, 0, 1, 1], [], []>} : vector<256x128xbf16>, vector<128x128xbf16>, vector<256x128xf32> -> vector<256x128xf32>
    %22 = arith.addf %16, %21 : vector<256x128xf32>
    %c0_21 = arith.constant 0 : index
    %c1_22 = arith.constant 1 : index
    %c1_23 = arith.constant 1 : index
    %c0_24 = arith.constant 0 : index
    %23 = vector.load %arg1[%c0_21, %c1_22, %c1_23, %c0_24] : memref<1x18x18x128xbf16, #tpu.memory_space<vmem>>, vector<1x16x16x128xbf16>
    %24 = vector.shape_cast %23 : vector<1x16x16x128xbf16> to vector<16x16x128xbf16>
    %25 = vector.shape_cast %24 : vector<16x16x128xbf16> to vector<256x128xbf16>
    %c512 = arith.constant 512 : index
    %c0_25 = arith.constant 0 : index
    %26 = vector.load %arg2[%c512, %c0_25] : memref<1152x128xbf16, #tpu.memory_space<vmem>>, vector<128x128xbf16>
    %cst_26 = arith.constant dense<0.000000e+00> : vector<256x128xf32>
    %27 = tpu.matmul %25, %26, %cst_26 {dimension_numbers = #tpu.dot_dimension_numbers<[1], [0], [0], [1], [0, 0, 1, 1], [], []>} : vector<256x128xbf16>, vector<128x128xbf16>, vector<256x128xf32> -> vector<256x128xf32>
    %28 = arith.addf %22, %27 : vector<256x128xf32>
    %c0_27 = arith.constant 0 : index
    %c1_28 = arith.constant 1 : index
    %c2_29 = arith.constant 2 : index
    %c0_30 = arith.constant 0 : index
    %29 = vector.load %arg1[%c0_27, %c1_28, %c2_29, %c0_30] : memref<1x18x18x128xbf16, #tpu.memory_space<vmem>>, vector<1x16x16x128xbf16>
    %30 = vector.shape_cast %29 : vector<1x16x16x128xbf16> to vector<16x16x128xbf16>
    %31 = vector.shape_cast %30 : vector<16x16x128xbf16> to vector<256x128xbf16>
    %c640 = arith.constant 640 : index
    %c0_31 = arith.constant 0 : index
    %32 = vector.load %arg2[%c640, %c0_31] : memref<1152x128xbf16, #tpu.memory_space<vmem>>, vector<128x128xbf16>
    %cst_32 = arith.constant dense<0.000000e+00> : vector<256x128xf32>
    %33 = tpu.matmul %31, %32, %cst_32 {dimension_numbers = #tpu.dot_dimension_numbers<[1], [0], [0], [1], [0, 0, 1, 1], [], []>} : vector<256x128xbf16>, vector<128x128xbf16>, vector<256x128xf32> -> vector<256x128xf32>
    %34 = arith.addf %28, %33 : vector<256x128xf32>
    %c0_33 = arith.constant 0 : index
    %c2_34 = arith.constant 2 : index
    %c0_35 = arith.constant 0 : index
    %c0_36 = arith.constant 0 : index
    %35 = vector.load %arg1[%c0_33, %c2_34, %c0_35, %c0_36] : memref<1x18x18x128xbf16, #tpu.memory_space<vmem>>, vector<1x16x16x128xbf16>
    %36 = vector.shape_cast %35 : vector<1x16x16x128xbf16> to vector<16x16x128xbf16>
    %37 = vector.shape_cast %36 : vector<16x16x128xbf16> to vector<256x128xbf16>
    %c768 = arith.constant 768 : index
    %c0_37 = arith.constant 0 : index
    %38 = vector.load %arg2[%c768, %c0_37] : memref<1152x128xbf16, #tpu.memory_space<vmem>>, vector<128x128xbf16>
    %cst_38 = arith.constant dense<0.000000e+00> : vector<256x128xf32>
    %39 = tpu.matmul %37, %38, %cst_38 {dimension_numbers = #tpu.dot_dimension_numbers<[1], [0], [0], [1], [0, 0, 1, 1], [], []>} : vector<256x128xbf16>, vector<128x128xbf16>, vector<256x128xf32> -> vector<256x128xf32>
    %40 = arith.addf %34, %39 : vector<256x128xf32>
    %c0_39 = arith.constant 0 : index
    %c2_40 = arith.constant 2 : index
    %c1_41 = arith.constant 1 : index
    %c0_42 = arith.constant 0 : index
    %41 = vector.load %arg1[%c0_39, %c2_40, %c1_41, %c0_42] : memref<1x18x18x128xbf16, #tpu.memory_space<vmem>>, vector<1x16x16x128xbf16>
    %42 = vector.shape_cast %41 : vector<1x16x16x128xbf16> to vector<16x16x128xbf16>
    %43 = vector.shape_cast %42 : vector<16x16x128xbf16> to vector<256x128xbf16>
    %c896 = arith.constant 896 : index
    %c0_43 = arith.constant 0 : index
    %44 = vector.load %arg2[%c896, %c0_43] : memref<1152x128xbf16, #tpu.memory_space<vmem>>, vector<128x128xbf16>
    %cst_44 = arith.constant dense<0.000000e+00> : vector<256x128xf32>
    %45 = tpu.matmul %43, %44, %cst_44 {dimension_numbers = #tpu.dot_dimension_numbers<[1], [0], [0], [1], [0, 0, 1, 1], [], []>} : vector<256x128xbf16>, vector<128x128xbf16>, vector<256x128xf32> -> vector<256x128xf32>
    %46 = arith.addf %40, %45 : vector<256x128xf32>
    %c0_45 = arith.constant 0 : index
    %c2_46 = arith.constant 2 : index
    %c2_47 = arith.constant 2 : index
    %c0_48 = arith.constant 0 : index
    %47 = vector.load %arg1[%c0_45, %c2_46, %c2_47, %c0_48] : memref<1x18x18x128xbf16, #tpu.memory_space<vmem>>, vector<1x16x16x128xbf16>
    %48 = vector.shape_cast %47 : vector<1x16x16x128xbf16> to vector<16x16x128xbf16>
    %49 = vector.shape_cast %48 : vector<16x16x128xbf16> to vector<256x128xbf16>
    %c1024 = arith.constant 1024 : index
    %c0_49 = arith.constant 0 : index
    %50 = vector.load %arg2[%c1024, %c0_49] : memref<1152x128xbf16, #tpu.memory_space<vmem>>, vector<128x128xbf16>
    %cst_50 = arith.constant dense<0.000000e+00> : vector<256x128xf32>
    %51 = tpu.matmul %49, %50, %cst_50 {dimension_numbers = #tpu.dot_dimension_numbers<[1], [0], [0], [1], [0, 0, 1, 1], [], []>} : vector<256x128xbf16>, vector<128x128xbf16>, vector<256x128xf32> -> vector<256x128xf32>
    %52 = arith.addf %46, %51 : vector<256x128xf32>
    %53 = vector.shape_cast %52 : vector<256x128xf32> to vector<16x16x128xf32>
    %c0_51 = arith.constant 0 : index
    %c0_52 = arith.constant 0 : index
    %c0_53 = arith.constant 0 : index
    %c0_54 = arith.constant 0 : index
    %54 = vector.load %arg3[%c0_51, %c0_52, %c0_53, %c0_54] : memref<1x16x16x128xf32, #tpu.memory_space<vmem>>, vector<1x16x16x128xf32>
    %55 = vector.shape_cast %54 : vector<1x16x16x128xf32> to vector<16x16x128xf32>
    %56 = vector.shape_cast %53 : vector<16x16x128xf32> to vector<1x16x16x128xf32>
    tpu.vector_store %arg3[%c0_51, %c0_52, %c0_53, %c0_54], %56 {strides = array<i32>} : memref<1x16x16x128xf32, #tpu.memory_space<vmem>>, vector<1x16x16x128xf32>,
    %cst_55 = arith.constant dense<0.000000e+00> : vector<128xf32>
    %57 = vector.multi_reduction <add>, %52, %cst_55 [0] : vector<256x128xf32> to vector<128xf32>
    %58 = vector.shape_cast %57 : vector<128xf32> to vector<1x128xf32>
    %c0_56 = arith.constant 0 : index
    %c0_57 = arith.constant 0 : index
    %c0_58 = arith.constant 0 : index
    %59 = vector.load %arg4[%c0_56, %c0_57, %c0_58] : memref<1x2x128xf32, #tpu.memory_space<vmem>>, vector<1x1x128xf32>
    %60 = vector.shape_cast %59 : vector<1x1x128xf32> to vector<1x128xf32>
    %61 = vector.shape_cast %58 : vector<1x128xf32> to vector<1x1x128xf32>
    tpu.vector_store %arg4[%c0_56, %c0_57, %c0_58], %61 {strides = array<i32>} : memref<1x2x128xf32, #tpu.memory_space<vmem>>, vector<1x1x128xf32>,
    %62 = arith.mulf %52, %52 : vector<256x128xf32>
    %cst_59 = arith.constant dense<0.000000e+00> : vector<128xf32>
    %63 = vector.multi_reduction <add>, %62, %cst_59 [0] : vector<256x128xf32> to vector<128xf32>
    %64 = vector.shape_cast %63 : vector<128xf32> to vector<1x128xf32>
    %c0_60 = arith.constant 0 : index
    %c1_61 = arith.constant 1 : index
    %c0_62 = arith.constant 0 : index
    %65 = vector.load %arg4[%c0_60, %c1_61, %c0_62] : memref<1x2x128xf32, #tpu.memory_space<vmem>>, vector<1x1x128xf32>
    %66 = vector.shape_cast %65 : vector<1x1x128xf32> to vector<1x128xf32>
    %67 = vector.shape_cast %64 : vector<1x128xf32> to vector<1x1x128xf32>
    tpu.vector_store %arg4[%c0_60, %c1_61, %c0_62], %67 {strides = array<i32>} : memref<1x2x128xf32, #tpu.memory_space<vmem>>, vector<1x1x128xf32>,
    return
  }
  func.func @transform_0(%arg0: i32) -> (i32, i32, i32, i32) {
    %c0_i32 = arith.constant 0 : i32
    %c0_i32_0 = arith.constant 0 : i32
    %c0_i32_1 = arith.constant 0 : i32
    %c0_i32_2 = arith.constant 0 : i32
    return %arg0, %c0_i32, %c0_i32_0, %c0_i32_1 : i32, i32, i32, i32
  }
  func.func @transform_1(%arg0: i32) -> (i32, i32) {
    %c0_i32 = arith.constant 0 : i32
    %c0_i32_0 = arith.constant 0 : i32
    %c0_i32_1 = arith.constant 0 : i32
    return %c0_i32, %c0_i32_0 : i32, i32
  }
  func.func @transform_2(%arg0: i32) -> (i32, i32, i32, i32) {
    %c0_i32 = arith.constant 0 : i32
    %c0_i32_0 = arith.constant 0 : i32
    %c0_i32_1 = arith.constant 0 : i32
    %c0_i32_2 = arith.constant 0 : i32
    return %arg0, %c0_i32, %c0_i32_0, %c0_i32_1 : i32, i32, i32, i32
  }
  func.func @transform_3(%arg0: i32) -> (i32, i32, i32) {
    %c0_i32 = arith.constant 0 : i32
    %c0_i32_0 = arith.constant 0 : i32
    %c0_i32_1 = arith.constant 0 : i32
    return %arg0, %c0_i32, %c0_i32_0 : i32, i32, i32
  }
}

module attributes {stable_mosaic.version = 11 : i64} {
  func.func @_bn1_conv2_skip_kernel(%arg0: i32, %arg1: memref<1x16x16x128xf32, #tpu.memory_space<vmem>>, %arg2: memref<1x128xf32, #tpu.memory_space<vmem>>, %arg3: memref<1x128xf32, #tpu.memory_space<vmem>>, %arg4: memref<1152x128xbf16, #tpu.memory_space<vmem>>, %arg5: memref<1x16x16x128xbf16, #tpu.memory_space<vmem>>, %arg6: memref<128x128xbf16, #tpu.memory_space<vmem>>, %arg7: memref<1x16x16x128xf32, #tpu.memory_space<vmem>>, %arg8: memref<1x16x16x128xf32, #tpu.memory_space<vmem>>, %arg9: memref<1x2x128xf32, #tpu.memory_space<vmem>>, %arg10: memref<1x2x128xf32, #tpu.memory_space<vmem>>, %arg11: memref<18x32x128xbf16, #tpu.memory_space<vmem>>) attributes {dimension_semantics = [#tpu.dimension_semantics<parallel>], iteration_bounds = array<i64: 2>, scalar_prefetch = 0 : i64, scratch_operands = 1 : i64, tpu.core_type = #tpu.core_type<tc>, window_params = [{transform_indices = @transform_0, window_bounds = array<i64: 1, 16, 16, 128>}, {pipeline_mode = #tpu.pipeline_mode<synchronous>, transform_indices = @transform_1, window_bounds = array<i64: 1, 128>}, {pipeline_mode = #tpu.pipeline_mode<synchronous>, transform_indices = @transform_2, window_bounds = array<i64: 1, 128>}, {pipeline_mode = #tpu.pipeline_mode<synchronous>, transform_indices = @transform_3, window_bounds = array<i64: 1152, 128>}, {transform_indices = @transform_4, window_bounds = array<i64: 1, 16, 16, 128>}, {pipeline_mode = #tpu.pipeline_mode<synchronous>, transform_indices = @transform_5, window_bounds = array<i64: 128, 128>}, {transform_indices = @transform_6, window_bounds = array<i64: 1, 16, 16, 128>}, {transform_indices = @transform_7, window_bounds = array<i64: 1, 16, 16, 128>}, {transform_indices = @transform_8, window_bounds = array<i64: 1, 2, 128>}, {transform_indices = @transform_9, window_bounds = array<i64: 1, 2, 128>}]} {
    %c0 = arith.constant 0 : index
    %c0_0 = arith.constant 0 : index
    %c0_1 = arith.constant 0 : index
    %c0_2 = arith.constant 0 : index
    %0 = vector.load %arg1[%c0, %c0_0, %c0_1, %c0_2] : memref<1x16x16x128xf32, #tpu.memory_space<vmem>>, vector<1x16x16x128xf32>
    %1 = vector.shape_cast %0 : vector<1x16x16x128xf32> to vector<16x16x128xf32>
    %2 = vector.shape_cast %1 : vector<16x16x128xf32> to vector<256x128xf32>
    %c0_3 = arith.constant 0 : index
    %c0_4 = arith.constant 0 : index
    %3 = vector.load %arg2[%c0_3, %c0_4] : memref<1x128xf32, #tpu.memory_space<vmem>>, vector<1x128xf32>
    %4 = vector.broadcast %3 : vector<1x128xf32> to vector<256x128xf32>
    %5 = arith.mulf %2, %4 : vector<256x128xf32>
    %c0_5 = arith.constant 0 : index
    %c0_6 = arith.constant 0 : index
    %6 = vector.load %arg3[%c0_5, %c0_6] : memref<1x128xf32, #tpu.memory_space<vmem>>, vector<1x128xf32>
    %7 = vector.broadcast %6 : vector<1x128xf32> to vector<256x128xf32>
    %8 = arith.addf %5, %7 : vector<256x128xf32>
    %cst = arith.constant 0.000000e+00 : f32
    %9 = vector.broadcast %cst : f32 to vector<256x128xf32>
    %10 = arith.maximumf %8, %9 : vector<256x128xf32>
    %11 = arith.truncf %10 : vector<256x128xf32> to vector<256x128xbf16>
    %cst_7 = arith.constant 0.000000e+00 : bf16
    %12 = vector.broadcast %cst_7 : bf16 to vector<18x32x128xbf16>
    %c0_8 = arith.constant 0 : index
    %c0_9 = arith.constant 0 : index
    %c0_10 = arith.constant 0 : index
    %13 = vector.load %arg11[%c0_8, %c0_9, %c0_10] : memref<18x32x128xbf16, #tpu.memory_space<vmem>>, vector<18x32x128xbf16>
    tpu.vector_store %arg11[%c0_8, %c0_9, %c0_10], %12 {strides = array<i32>} : memref<18x32x128xbf16, #tpu.memory_space<vmem>>, vector<18x32x128xbf16>,
    %14 = vector.shape_cast %11 : vector<256x128xbf16> to vector<16x16x128xbf16>
    %c1 = arith.constant 1 : index
    %c8 = arith.constant 8 : index
    %c0_11 = arith.constant 0 : index
    %15 = vector.load %arg11[%c1, %c8, %c0_11] : memref<18x32x128xbf16, #tpu.memory_space<vmem>>, vector<16x16x128xbf16>
    tpu.vector_store %arg11[%c1, %c8, %c0_11], %14 {strides = array<i32>} : memref<18x32x128xbf16, #tpu.memory_space<vmem>>, vector<16x16x128xbf16>,
    %c0_12 = arith.constant 0 : index
    %c7 = arith.constant 7 : index
    %c0_13 = arith.constant 0 : index
    %16 = vector.load %arg11[%c0_12, %c7, %c0_13] : memref<18x32x128xbf16, #tpu.memory_space<vmem>>, vector<16x16x128xbf16>
    %17 = vector.shape_cast %16 : vector<16x16x128xbf16> to vector<256x128xbf16>
    %c0_14 = arith.constant 0 : index
    %c0_15 = arith.constant 0 : index
    %18 = vector.load %arg4[%c0_14, %c0_15] : memref<1152x128xbf16, #tpu.memory_space<vmem>>, vector<128x128xbf16>
    %cst_16 = arith.constant dense<0.000000e+00> : vector<256x128xf32>
    %19 = tpu.matmul %17, %18, %cst_16 {dimension_numbers = #tpu.dot_dimension_numbers<[1], [0], [0], [1], [0, 0, 1, 1], [], []>} : vector<256x128xbf16>, vector<128x128xbf16>, vector<256x128xf32> -> vector<256x128xf32>
    %c0_17 = arith.constant 0 : index
    %c8_18 = arith.constant 8 : index
    %c0_19 = arith.constant 0 : index
    %20 = vector.load %arg11[%c0_17, %c8_18, %c0_19] : memref<18x32x128xbf16, #tpu.memory_space<vmem>>, vector<16x16x128xbf16>
    %21 = vector.shape_cast %20 : vector<16x16x128xbf16> to vector<256x128xbf16>
    %c128 = arith.constant 128 : index
    %c0_20 = arith.constant 0 : index
    %22 = vector.load %arg4[%c128, %c0_20] : memref<1152x128xbf16, #tpu.memory_space<vmem>>, vector<128x128xbf16>
    %cst_21 = arith.constant dense<0.000000e+00> : vector<256x128xf32>
    %23 = tpu.matmul %21, %22, %cst_21 {dimension_numbers = #tpu.dot_dimension_numbers<[1], [0], [0], [1], [0, 0, 1, 1], [], []>} : vector<256x128xbf16>, vector<128x128xbf16>, vector<256x128xf32> -> vector<256x128xf32>
    %24 = arith.addf %19, %23 : vector<256x128xf32>
    %c0_22 = arith.constant 0 : index
    %c9 = arith.constant 9 : index
    %c0_23 = arith.constant 0 : index
    %25 = vector.load %arg11[%c0_22, %c9, %c0_23] : memref<18x32x128xbf16, #tpu.memory_space<vmem>>, vector<16x16x128xbf16>
    %26 = vector.shape_cast %25 : vector<16x16x128xbf16> to vector<256x128xbf16>
    %c256 = arith.constant 256 : index
    %c0_24 = arith.constant 0 : index
    %27 = vector.load %arg4[%c256, %c0_24] : memref<1152x128xbf16, #tpu.memory_space<vmem>>, vector<128x128xbf16>
    %cst_25 = arith.constant dense<0.000000e+00> : vector<256x128xf32>
    %28 = tpu.matmul %26, %27, %cst_25 {dimension_numbers = #tpu.dot_dimension_numbers<[1], [0], [0], [1], [0, 0, 1, 1], [], []>} : vector<256x128xbf16>, vector<128x128xbf16>, vector<256x128xf32> -> vector<256x128xf32>
    %29 = arith.addf %24, %28 : vector<256x128xf32>
    %c1_26 = arith.constant 1 : index
    %c7_27 = arith.constant 7 : index
    %c0_28 = arith.constant 0 : index
    %30 = vector.load %arg11[%c1_26, %c7_27, %c0_28] : memref<18x32x128xbf16, #tpu.memory_space<vmem>>, vector<16x16x128xbf16>
    %31 = vector.shape_cast %30 : vector<16x16x128xbf16> to vector<256x128xbf16>
    %c384 = arith.constant 384 : index
    %c0_29 = arith.constant 0 : index
    %32 = vector.load %arg4[%c384, %c0_29] : memref<1152x128xbf16, #tpu.memory_space<vmem>>, vector<128x128xbf16>
    %cst_30 = arith.constant dense<0.000000e+00> : vector<256x128xf32>
    %33 = tpu.matmul %31, %32, %cst_30 {dimension_numbers = #tpu.dot_dimension_numbers<[1], [0], [0], [1], [0, 0, 1, 1], [], []>} : vector<256x128xbf16>, vector<128x128xbf16>, vector<256x128xf32> -> vector<256x128xf32>
    %34 = arith.addf %29, %33 : vector<256x128xf32>
    %c1_31 = arith.constant 1 : index
    %c8_32 = arith.constant 8 : index
    %c0_33 = arith.constant 0 : index
    %35 = vector.load %arg11[%c1_31, %c8_32, %c0_33] : memref<18x32x128xbf16, #tpu.memory_space<vmem>>, vector<16x16x128xbf16>
    %36 = vector.shape_cast %35 : vector<16x16x128xbf16> to vector<256x128xbf16>
    %c512 = arith.constant 512 : index
    %c0_34 = arith.constant 0 : index
    %37 = vector.load %arg4[%c512, %c0_34] : memref<1152x128xbf16, #tpu.memory_space<vmem>>, vector<128x128xbf16>
    %cst_35 = arith.constant dense<0.000000e+00> : vector<256x128xf32>
    %38 = tpu.matmul %36, %37, %cst_35 {dimension_numbers = #tpu.dot_dimension_numbers<[1], [0], [0], [1], [0, 0, 1, 1], [], []>} : vector<256x128xbf16>, vector<128x128xbf16>, vector<256x128xf32> -> vector<256x128xf32>
    %39 = arith.addf %34, %38 : vector<256x128xf32>
    %c1_36 = arith.constant 1 : index
    %c9_37 = arith.constant 9 : index
    %c0_38 = arith.constant 0 : index
    %40 = vector.load %arg11[%c1_36, %c9_37, %c0_38] : memref<18x32x128xbf16, #tpu.memory_space<vmem>>, vector<16x16x128xbf16>
    %41 = vector.shape_cast %40 : vector<16x16x128xbf16> to vector<256x128xbf16>
    %c640 = arith.constant 640 : index
    %c0_39 = arith.constant 0 : index
    %42 = vector.load %arg4[%c640, %c0_39] : memref<1152x128xbf16, #tpu.memory_space<vmem>>, vector<128x128xbf16>
    %cst_40 = arith.constant dense<0.000000e+00> : vector<256x128xf32>
    %43 = tpu.matmul %41, %42, %cst_40 {dimension_numbers = #tpu.dot_dimension_numbers<[1], [0], [0], [1], [0, 0, 1, 1], [], []>} : vector<256x128xbf16>, vector<128x128xbf16>, vector<256x128xf32> -> vector<256x128xf32>
    %44 = arith.addf %39, %43 : vector<256x128xf32>
    %c2 = arith.constant 2 : index
    %c7_41 = arith.constant 7 : index
    %c0_42 = arith.constant 0 : index
    %45 = vector.load %arg11[%c2, %c7_41, %c0_42] : memref<18x32x128xbf16, #tpu.memory_space<vmem>>, vector<16x16x128xbf16>
    %46 = vector.shape_cast %45 : vector<16x16x128xbf16> to vector<256x128xbf16>
    %c768 = arith.constant 768 : index
    %c0_43 = arith.constant 0 : index
    %47 = vector.load %arg4[%c768, %c0_43] : memref<1152x128xbf16, #tpu.memory_space<vmem>>, vector<128x128xbf16>
    %cst_44 = arith.constant dense<0.000000e+00> : vector<256x128xf32>
    %48 = tpu.matmul %46, %47, %cst_44 {dimension_numbers = #tpu.dot_dimension_numbers<[1], [0], [0], [1], [0, 0, 1, 1], [], []>} : vector<256x128xbf16>, vector<128x128xbf16>, vector<256x128xf32> -> vector<256x128xf32>
    %49 = arith.addf %44, %48 : vector<256x128xf32>
    %c2_45 = arith.constant 2 : index
    %c8_46 = arith.constant 8 : index
    %c0_47 = arith.constant 0 : index
    %50 = vector.load %arg11[%c2_45, %c8_46, %c0_47] : memref<18x32x128xbf16, #tpu.memory_space<vmem>>, vector<16x16x128xbf16>
    %51 = vector.shape_cast %50 : vector<16x16x128xbf16> to vector<256x128xbf16>
    %c896 = arith.constant 896 : index
    %c0_48 = arith.constant 0 : index
    %52 = vector.load %arg4[%c896, %c0_48] : memref<1152x128xbf16, #tpu.memory_space<vmem>>, vector<128x128xbf16>
    %cst_49 = arith.constant dense<0.000000e+00> : vector<256x128xf32>
    %53 = tpu.matmul %51, %52, %cst_49 {dimension_numbers = #tpu.dot_dimension_numbers<[1], [0], [0], [1], [0, 0, 1, 1], [], []>} : vector<256x128xbf16>, vector<128x128xbf16>, vector<256x128xf32> -> vector<256x128xf32>
    %54 = arith.addf %49, %53 : vector<256x128xf32>
    %c2_50 = arith.constant 2 : index
    %c9_51 = arith.constant 9 : index
    %c0_52 = arith.constant 0 : index
    %55 = vector.load %arg11[%c2_50, %c9_51, %c0_52] : memref<18x32x128xbf16, #tpu.memory_space<vmem>>, vector<16x16x128xbf16>
    %56 = vector.shape_cast %55 : vector<16x16x128xbf16> to vector<256x128xbf16>
    %c1024 = arith.constant 1024 : index
    %c0_53 = arith.constant 0 : index
    %57 = vector.load %arg4[%c1024, %c0_53] : memref<1152x128xbf16, #tpu.memory_space<vmem>>, vector<128x128xbf16>
    %cst_54 = arith.constant dense<0.000000e+00> : vector<256x128xf32>
    %58 = tpu.matmul %56, %57, %cst_54 {dimension_numbers = #tpu.dot_dimension_numbers<[1], [0], [0], [1], [0, 0, 1, 1], [], []>} : vector<256x128xbf16>, vector<128x128xbf16>, vector<256x128xf32> -> vector<256x128xf32>
    %59 = arith.addf %54, %58 : vector<256x128xf32>
    %60 = vector.shape_cast %59 : vector<256x128xf32> to vector<16x16x128xf32>
    %c0_55 = arith.constant 0 : index
    %c0_56 = arith.constant 0 : index
    %c0_57 = arith.constant 0 : index
    %c0_58 = arith.constant 0 : index
    %61 = vector.load %arg7[%c0_55, %c0_56, %c0_57, %c0_58] : memref<1x16x16x128xf32, #tpu.memory_space<vmem>>, vector<1x16x16x128xf32>
    %62 = vector.shape_cast %61 : vector<1x16x16x128xf32> to vector<16x16x128xf32>
    %63 = vector.shape_cast %60 : vector<16x16x128xf32> to vector<1x16x16x128xf32>
    tpu.vector_store %arg7[%c0_55, %c0_56, %c0_57, %c0_58], %63 {strides = array<i32>} : memref<1x16x16x128xf32, #tpu.memory_space<vmem>>, vector<1x16x16x128xf32>,
    %cst_59 = arith.constant dense<0.000000e+00> : vector<128xf32>
    %64 = vector.multi_reduction <add>, %59, %cst_59 [0] : vector<256x128xf32> to vector<128xf32>
    %65 = vector.shape_cast %64 : vector<128xf32> to vector<1x128xf32>
    %c0_60 = arith.constant 0 : index
    %c0_61 = arith.constant 0 : index
    %c0_62 = arith.constant 0 : index
    %66 = vector.load %arg9[%c0_60, %c0_61, %c0_62] : memref<1x2x128xf32, #tpu.memory_space<vmem>>, vector<1x1x128xf32>
    %67 = vector.shape_cast %66 : vector<1x1x128xf32> to vector<1x128xf32>
    %68 = vector.shape_cast %65 : vector<1x128xf32> to vector<1x1x128xf32>
    tpu.vector_store %arg9[%c0_60, %c0_61, %c0_62], %68 {strides = array<i32>} : memref<1x2x128xf32, #tpu.memory_space<vmem>>, vector<1x1x128xf32>,
    %69 = arith.mulf %59, %59 : vector<256x128xf32>
    %cst_63 = arith.constant dense<0.000000e+00> : vector<128xf32>
    %70 = vector.multi_reduction <add>, %69, %cst_63 [0] : vector<256x128xf32> to vector<128xf32>
    %71 = vector.shape_cast %70 : vector<128xf32> to vector<1x128xf32>
    %c0_64 = arith.constant 0 : index
    %c1_65 = arith.constant 1 : index
    %c0_66 = arith.constant 0 : index
    %72 = vector.load %arg9[%c0_64, %c1_65, %c0_66] : memref<1x2x128xf32, #tpu.memory_space<vmem>>, vector<1x1x128xf32>
    %73 = vector.shape_cast %72 : vector<1x1x128xf32> to vector<1x128xf32>
    %74 = vector.shape_cast %71 : vector<1x128xf32> to vector<1x1x128xf32>
    tpu.vector_store %arg9[%c0_64, %c1_65, %c0_66], %74 {strides = array<i32>} : memref<1x2x128xf32, #tpu.memory_space<vmem>>, vector<1x1x128xf32>,
    %c0_67 = arith.constant 0 : index
    %c0_68 = arith.constant 0 : index
    %c0_69 = arith.constant 0 : index
    %c0_70 = arith.constant 0 : index
    %75 = vector.load %arg5[%c0_67, %c0_68, %c0_69, %c0_70] : memref<1x16x16x128xbf16, #tpu.memory_space<vmem>>, vector<1x16x16x128xbf16>
    %76 = vector.shape_cast %75 : vector<1x16x16x128xbf16> to vector<16x16x128xbf16>
    %77 = vector.shape_cast %76 : vector<16x16x128xbf16> to vector<256x128xbf16>
    %c0_71 = arith.constant 0 : index
    %c0_72 = arith.constant 0 : index
    %78 = vector.load %arg6[%c0_71, %c0_72] : memref<128x128xbf16, #tpu.memory_space<vmem>>, vector<128x128xbf16>
    %cst_73 = arith.constant dense<0.000000e+00> : vector<256x128xf32>
    %79 = tpu.matmul %77, %78, %cst_73 {dimension_numbers = #tpu.dot_dimension_numbers<[1], [0], [0], [1], [0, 0, 1, 1], [], []>} : vector<256x128xbf16>, vector<128x128xbf16>, vector<256x128xf32> -> vector<256x128xf32>
    %80 = vector.shape_cast %79 : vector<256x128xf32> to vector<16x16x128xf32>
    %c0_74 = arith.constant 0 : index
    %c0_75 = arith.constant 0 : index
    %c0_76 = arith.constant 0 : index
    %c0_77 = arith.constant 0 : index
    %81 = vector.load %arg8[%c0_74, %c0_75, %c0_76, %c0_77] : memref<1x16x16x128xf32, #tpu.memory_space<vmem>>, vector<1x16x16x128xf32>
    %82 = vector.shape_cast %81 : vector<1x16x16x128xf32> to vector<16x16x128xf32>
    %83 = vector.shape_cast %80 : vector<16x16x128xf32> to vector<1x16x16x128xf32>
    tpu.vector_store %arg8[%c0_74, %c0_75, %c0_76, %c0_77], %83 {strides = array<i32>} : memref<1x16x16x128xf32, #tpu.memory_space<vmem>>, vector<1x16x16x128xf32>,
    %cst_78 = arith.constant dense<0.000000e+00> : vector<128xf32>
    %84 = vector.multi_reduction <add>, %79, %cst_78 [0] : vector<256x128xf32> to vector<128xf32>
    %85 = vector.shape_cast %84 : vector<128xf32> to vector<1x128xf32>
    %c0_79 = arith.constant 0 : index
    %c0_80 = arith.constant 0 : index
    %c0_81 = arith.constant 0 : index
    %86 = vector.load %arg10[%c0_79, %c0_80, %c0_81] : memref<1x2x128xf32, #tpu.memory_space<vmem>>, vector<1x1x128xf32>
    %87 = vector.shape_cast %86 : vector<1x1x128xf32> to vector<1x128xf32>
    %88 = vector.shape_cast %85 : vector<1x128xf32> to vector<1x1x128xf32>
    tpu.vector_store %arg10[%c0_79, %c0_80, %c0_81], %88 {strides = array<i32>} : memref<1x2x128xf32, #tpu.memory_space<vmem>>, vector<1x1x128xf32>,
    %89 = arith.mulf %79, %79 : vector<256x128xf32>
    %cst_82 = arith.constant dense<0.000000e+00> : vector<128xf32>
    %90 = vector.multi_reduction <add>, %89, %cst_82 [0] : vector<256x128xf32> to vector<128xf32>
    %91 = vector.shape_cast %90 : vector<128xf32> to vector<1x128xf32>
    %c0_83 = arith.constant 0 : index
    %c1_84 = arith.constant 1 : index
    %c0_85 = arith.constant 0 : index
    %92 = vector.load %arg10[%c0_83, %c1_84, %c0_85] : memref<1x2x128xf32, #tpu.memory_space<vmem>>, vector<1x1x128xf32>
    %93 = vector.shape_cast %92 : vector<1x1x128xf32> to vector<1x128xf32>
    %94 = vector.shape_cast %91 : vector<1x128xf32> to vector<1x1x128xf32>
    tpu.vector_store %arg10[%c0_83, %c1_84, %c0_85], %94 {strides = array<i32>} : memref<1x2x128xf32, #tpu.memory_space<vmem>>, vector<1x1x128xf32>,
    return
  }
  func.func @transform_0(%arg0: i32) -> (i32, i32, i32, i32) {
    %c0_i32 = arith.constant 0 : i32
    %c0_i32_0 = arith.constant 0 : i32
    %c0_i32_1 = arith.constant 0 : i32
    %c0_i32_2 = arith.constant 0 : i32
    return %arg0, %c0_i32, %c0_i32_0, %c0_i32_1 : i32, i32, i32, i32
  }
  func.func @transform_1(%arg0: i32) -> (i32, i32) {
    %c0_i32 = arith.constant 0 : i32
    %c0_i32_0 = arith.constant 0 : i32
    %c0_i32_1 = arith.constant 0 : i32
    return %c0_i32, %c0_i32_0 : i32, i32
  }
  func.func @transform_2(%arg0: i32) -> (i32, i32) {
    %c0_i32 = arith.constant 0 : i32
    %c0_i32_0 = arith.constant 0 : i32
    %c0_i32_1 = arith.constant 0 : i32
    return %c0_i32, %c0_i32_0 : i32, i32
  }
  func.func @transform_3(%arg0: i32) -> (i32, i32) {
    %c0_i32 = arith.constant 0 : i32
    %c0_i32_0 = arith.constant 0 : i32
    %c0_i32_1 = arith.constant 0 : i32
    return %c0_i32, %c0_i32_0 : i32, i32
  }
  func.func @transform_4(%arg0: i32) -> (i32, i32, i32, i32) {
    %c0_i32 = arith.constant 0 : i32
    %c0_i32_0 = arith.constant 0 : i32
    %c0_i32_1 = arith.constant 0 : i32
    %c0_i32_2 = arith.constant 0 : i32
    return %arg0, %c0_i32, %c0_i32_0, %c0_i32_1 : i32, i32, i32, i32
  }
  func.func @transform_5(%arg0: i32) -> (i32, i32) {
    %c0_i32 = arith.constant 0 : i32
    %c0_i32_0 = arith.constant 0 : i32
    %c0_i32_1 = arith.constant 0 : i32
    return %c0_i32, %c0_i32_0 : i32, i32
  }
  func.func @transform_6(%arg0: i32) -> (i32, i32, i32, i32) {
    %c0_i32 = arith.constant 0 : i32
    %c0_i32_0 = arith.constant 0 : i32
    %c0_i32_1 = arith.constant 0 : i32
    %c0_i32_2 = arith.constant 0 : i32
    return %arg0, %c0_i32, %c0_i32_0, %c0_i32_1 : i32, i32, i32, i32
  }
  func.func @transform_7(%arg0: i32) -> (i32, i32, i32, i32) {
    %c0_i32 = arith.constant 0 : i32
    %c0_i32_0 = arith.constant 0 : i32
    %c0_i32_1 = arith.constant 0 : i32
    %c0_i32_2 = arith.constant 0 : i32
    return %arg0, %c0_i32, %c0_i32_0, %c0_i32_1 : i32, i32, i32, i32
  }
  func.func @transform_8(%arg0: i32) -> (i32, i32, i32) {
    %c0_i32 = arith.constant 0 : i32
    %c0_i32_0 = arith.constant 0 : i32
    %c0_i32_1 = arith.constant 0 : i32
    return %arg0, %c0_i32, %c0_i32_0 : i32, i32, i32
  }
  func.func @transform_9(%arg0: i32) -> (i32, i32, i32) {
    %c0_i32 = arith.constant 0 : i32
    %c0_i32_0 = arith.constant 0 : i32
    %c0_i32_1 = arith.constant 0 : i32
    return %arg0, %c0_i32, %c0_i32_0 : i32, i32, i32
  }
}

module attributes {stable_mosaic.version = 11 : i64} {
  func.func @_finalize_skip_kernel(%arg0: i32, %arg1: memref<1x16x16x128xf32, #tpu.memory_space<vmem>>, %arg2: memref<1x16x16x128xf32, #tpu.memory_space<vmem>>, %arg3: memref<1x128xf32, #tpu.memory_space<vmem>>, %arg4: memref<1x128xf32, #tpu.memory_space<vmem>>, %arg5: memref<1x128xf32, #tpu.memory_space<vmem>>, %arg6: memref<1x128xf32, #tpu.memory_space<vmem>>, %arg7: memref<1x16x16x128xf32, #tpu.memory_space<vmem>>) attributes {dimension_semantics = [#tpu.dimension_semantics<parallel>], iteration_bounds = array<i64: 2>, scalar_prefetch = 0 : i64, scratch_operands = 0 : i64, tpu.core_type = #tpu.core_type<tc>, window_params = [{transform_indices = @transform_0, window_bounds = array<i64: 1, 16, 16, 128>}, {transform_indices = @transform_1, window_bounds = array<i64: 1, 16, 16, 128>}, {pipeline_mode = #tpu.pipeline_mode<synchronous>, transform_indices = @transform_2, window_bounds = array<i64: 1, 128>}, {pipeline_mode = #tpu.pipeline_mode<synchronous>, transform_indices = @transform_3, window_bounds = array<i64: 1, 128>}, {pipeline_mode = #tpu.pipeline_mode<synchronous>, transform_indices = @transform_4, window_bounds = array<i64: 1, 128>}, {pipeline_mode = #tpu.pipeline_mode<synchronous>, transform_indices = @transform_5, window_bounds = array<i64: 1, 128>}, {transform_indices = @transform_6, window_bounds = array<i64: 1, 16, 16, 128>}]} {
    %c0 = arith.constant 0 : index
    %c0_0 = arith.constant 0 : index
    %c0_1 = arith.constant 0 : index
    %c0_2 = arith.constant 0 : index
    %0 = vector.load %arg1[%c0, %c0_0, %c0_1, %c0_2] : memref<1x16x16x128xf32, #tpu.memory_space<vmem>>, vector<1x16x16x128xf32>
    %1 = vector.shape_cast %0 : vector<1x16x16x128xf32> to vector<16x16x128xf32>
    %c0_3 = arith.constant 0 : index
    %c0_4 = arith.constant 0 : index
    %2 = vector.load %arg3[%c0_3, %c0_4] : memref<1x128xf32, #tpu.memory_space<vmem>>, vector<1x128xf32>
    %3 = vector.shape_cast %2 : vector<1x128xf32> to vector<1x1x128xf32>
    %4 = vector.broadcast %3 : vector<1x1x128xf32> to vector<16x16x128xf32>
    %5 = arith.mulf %1, %4 : vector<16x16x128xf32>
    %c0_5 = arith.constant 0 : index
    %c0_6 = arith.constant 0 : index
    %6 = vector.load %arg4[%c0_5, %c0_6] : memref<1x128xf32, #tpu.memory_space<vmem>>, vector<1x128xf32>
    %7 = vector.shape_cast %6 : vector<1x128xf32> to vector<1x1x128xf32>
    %8 = vector.broadcast %7 : vector<1x1x128xf32> to vector<16x16x128xf32>
    %9 = arith.addf %5, %8 : vector<16x16x128xf32>
    %c0_7 = arith.constant 0 : index
    %c0_8 = arith.constant 0 : index
    %c0_9 = arith.constant 0 : index
    %c0_10 = arith.constant 0 : index
    %10 = vector.load %arg2[%c0_7, %c0_8, %c0_9, %c0_10] : memref<1x16x16x128xf32, #tpu.memory_space<vmem>>, vector<1x16x16x128xf32>
    %11 = vector.shape_cast %10 : vector<1x16x16x128xf32> to vector<16x16x128xf32>
    %c0_11 = arith.constant 0 : index
    %c0_12 = arith.constant 0 : index
    %12 = vector.load %arg5[%c0_11, %c0_12] : memref<1x128xf32, #tpu.memory_space<vmem>>, vector<1x128xf32>
    %13 = vector.shape_cast %12 : vector<1x128xf32> to vector<1x1x128xf32>
    %14 = vector.broadcast %13 : vector<1x1x128xf32> to vector<16x16x128xf32>
    %15 = arith.mulf %11, %14 : vector<16x16x128xf32>
    %c0_13 = arith.constant 0 : index
    %c0_14 = arith.constant 0 : index
    %16 = vector.load %arg6[%c0_13, %c0_14] : memref<1x128xf32, #tpu.memory_space<vmem>>, vector<1x128xf32>
    %17 = vector.shape_cast %16 : vector<1x128xf32> to vector<1x1x128xf32>
    %18 = vector.broadcast %17 : vector<1x1x128xf32> to vector<16x16x128xf32>
    %19 = arith.addf %15, %18 : vector<16x16x128xf32>
    %20 = arith.addf %9, %19 : vector<16x16x128xf32>
    %cst = arith.constant 0.000000e+00 : f32
    %21 = vector.broadcast %cst : f32 to vector<16x16x128xf32>
    %22 = arith.maximumf %20, %21 : vector<16x16x128xf32>
    %c0_15 = arith.constant 0 : index
    %c0_16 = arith.constant 0 : index
    %c0_17 = arith.constant 0 : index
    %c0_18 = arith.constant 0 : index
    %23 = vector.load %arg7[%c0_15, %c0_16, %c0_17, %c0_18] : memref<1x16x16x128xf32, #tpu.memory_space<vmem>>, vector<1x16x16x128xf32>
    %24 = vector.shape_cast %23 : vector<1x16x16x128xf32> to vector<16x16x128xf32>
    %25 = vector.shape_cast %22 : vector<16x16x128xf32> to vector<1x16x16x128xf32>
    tpu.vector_store %arg7[%c0_15, %c0_16, %c0_17, %c0_18], %25 {strides = array<i32>} : memref<1x16x16x128xf32, #tpu.memory_space<vmem>>, vector<1x16x16x128xf32>,
    return
  }
  func.func @transform_0(%arg0: i32) -> (i32, i32, i32, i32) {
    %c0_i32 = arith.constant 0 : i32
    %c0_i32_0 = arith.constant 0 : i32
    %c0_i32_1 = arith.constant 0 : i32
    %c0_i32_2 = arith.constant 0 : i32
    return %arg0, %c0_i32, %c0_i32_0, %c0_i32_1 : i32, i32, i32, i32
  }
  func.func @transform_1(%arg0: i32) -> (i32, i32, i32, i32) {
    %c0_i32 = arith.constant 0 : i32
    %c0_i32_0 = arith.constant 0 : i32
    %c0_i32_1 = arith.constant 0 : i32
    %c0_i32_2 = arith.constant 0 : i32
    return %arg0, %c0_i32, %c0_i32_0, %c0_i32_1 : i32, i32, i32, i32
  }
  func.func @transform_2(%arg0: i32) -> (i32, i32) {
    %c0_i32 = arith.constant 0 : i32
    %c0_i32_0 = arith.constant 0 : i32
    %c0_i32_1 = arith.constant 0 : i32
    return %c0_i32, %c0_i32_0 : i32, i32
  }
  func.func @transform_3(%arg0: i32) -> (i32, i32) {
    %c0_i32 = arith.constant 0 : i32
    %c0_i32_0 = arith.constant 0 : i32
    %c0_i32_1 = arith.constant 0 : i32
    return %c0_i32, %c0_i32_0 : i32, i32
  }
  func.func @transform_4(%arg0: i32) -> (i32, i32) {
    %c0_i32 = arith.constant 0 : i32
    %c0_i32_0 = arith.constant 0 : i32
    %c0_i32_1 = arith.constant 0 : i32
    return %c0_i32, %c0_i32_0 : i32, i32
  }
  func.func @transform_5(%arg0: i32) -> (i32, i32) {
    %c0_i32 = arith.constant 0 : i32
    %c0_i32_0 = arith.constant 0 : i32
    %c0_i32_1 = arith.constant 0 : i32
    return %c0_i32, %c0_i32_0 : i32, i32
  }
  func.func @transform_6(%arg0: i32) -> (i32, i32, i32, i32) {
    %c0_i32 = arith.constant 0 : i32
    %c0_i32_0 = arith.constant 0 : i32
    %c0_i32_1 = arith.constant 0 : i32
    %c0_i32_2 = arith.constant 0 : i32
    return %arg0, %c0_i32, %c0_i32_0, %c0_i32_1 : i32, i32, i32, i32
  }
}

</mosaic_0001>

<llo_original>
// kernel: residual_block_forward.5
$region0: #{residual_block_forward.5}
  #allocation0 [shape = 'u32[]', space=smem, size = 0x4, offset = 0x4, fixed_abs, tag = 'smem constant byte address 0x4 - core index']
  #allocation1 [shape = 'u32[144,128]{1,0:T(1,128)}', space=vmem, size = 0x12000, scoped, tag = 'internal scratch']
  %s0 = inlined_call_operand.vmem [shape: f32[2,16,16,128], index: 0, kind: input, shape index: {}]
  %s1 = inlined_call_operand.vmem [shape: f32[2,16,16,128], index: 1, kind: input, shape index: {}]
  %s2 = inlined_call_operand.vmem [shape: f32[1,128], index: 2, kind: input, shape index: {}]
  %s3 = inlined_call_operand.vmem [shape: f32[1,128], index: 3, kind: input, shape index: {}]
  %s4 = inlined_call_operand.vmem [shape: f32[1,128], index: 4, kind: input, shape index: {}]
  %s5 = inlined_call_operand.vmem [shape: f32[1,128], index: 5, kind: input, shape index: {}]
  %s6 = inlined_call_operand.vmem [shape: f32[2,16,16,128], index: 6, kind: output, shape index: {}]
  %s7 = sld [smem:[#allocation0]]
  $region57: #{residual_block_forward.5} parent=0
    _
  %s9 = ssub.s32 1, %s7
  %s10 = scalar_select 0, %s9, %s7
  loop: start=0, step=1, limit=4
  $region2: #{residual_block_forward.5} parent=0 // loop_pre_header
    _
  $region3: #{residual_block_forward.5} parent=0 // loop_header
    %s12 = sphi 0, %s16
    %p13 = scmp.ge.s32.totalorder %s12, 4
    %s22 = sphi 0, %s24
    %s25 = sphi 0, %s22
    %s26 = sphi 0, %s25
    %s42 = sphi 0, %s26
    %s48 = sphi 0, %s50
    %s51 = sphi 0, %s48
    %s52 = sphi 0, %s51
    %s68 = sphi 0, %s52
    %s72 = sphi 0, %s72
    %s74 = sphi 0, %s72
    %s75 = sphi 0, %s74
    %s89 = sphi 0, %s75
    %s93 = sphi 0, %s93
    %s95 = sphi 0, %s93
    %s96 = sphi 0, %s95
    %s110 = sphi 0, %s96
    %s114 = sphi 0, %s114
    %s116 = sphi 0, %s114
    %s117 = sphi 0, %s116
    %s131 = sphi 0, %s117
    %s135 = sphi 0, %s135
    %s137 = sphi 0, %s135
    %s138 = sphi 0, %s137
    %s152 = sphi 0, %s138
    %s158 = sphi 0, %s160
    %s161 = sphi 0, %s158
    %s162 = sphi 0, %s161
    %s178 = sphi 0, %s162
  $region4: #{residual_block_forward.5} parent=0 // loop_header_branch
    %15 = sbr.rel (%p13) target = $region8
  $region5: #{residual_block_forward.5} parent=0 // loop_body
    %s17 = ssub.s32 %s12, 1
    %s18 = ssub.s32 %s12, 2
    %s19 = sadd.s32 %s12, 1
    %s20 = ssub.s32 %s12, %s19
    %p21 = scmp.eq.s32.totalorder %s20, 0
    %s23 = sadd.s32 %s22, 1
    %s24 = scalar_select %p21, %s22, %s23
    %p27 = pneg %p21
    %p28 = scmp.eq.s32.totalorder %s12, 1
    %p29 = por %p27, %p28
    %p30 = scmp.ne.s32.totalorder %s22, %s25
    %p31 = scmp.eq.s32.totalorder %s12, 0
    %p32 = por %p30, %p31
    %p33 = scmp.ne.s32.totalorder %s22, %s25
    %p34 = scmp.eq.s32.totalorder %s17, 1
    %p35 = por %p33, %p34
    %p36 = scmp.ne.s32.totalorder %s25, %s26
    %p37 = scmp.eq.s32.totalorder %s17, 0
    %p38 = por %p36, %p37
    %p39 = scmp.ne.s32.totalorder %s25, %s26
    %p40 = scmp.eq.s32.totalorder %s18, 1
    %p41 = por %p39, %p40
    %p43 = scmp.ne.s32.totalorder %s26, %s42
    %p44 = scmp.eq.s32.totalorder %s18, 0
    %p45 = por %p43, %p44
    %s46 = ssub.s32 %s12, %s19
    %p47 = scmp.eq.s32.totalorder %s46, 0
    %s49 = sadd.s32 %s48, 1
    %s50 = scalar_select %p47, %s48, %s49
    %p53 = pneg %p47
    %p54 = scmp.eq.s32.totalorder %s12, 1
    %p55 = por %p53, %p54
    %p56 = scmp.ne.s32.totalorder %s48, %s51
    %p57 = scmp.eq.s32.totalorder %s12, 0
    %p58 = por %p56, %p57
    %p59 = scmp.ne.s32.totalorder %s48, %s51
    %p60 = scmp.eq.s32.totalorder %s17, 1
    %p61 = por %p59, %p60
    %p62 = scmp.ne.s32.totalorder %s51, %s52
    %p63 = scmp.eq.s32.totalorder %s17, 0
    %p64 = por %p62, %p63
    %p65 = scmp.ne.s32.totalorder %s51, %s52
    %p66 = scmp.eq.s32.totalorder %s18, 1
    %p67 = por %p65, %p66
    %p69 = scmp.ne.s32.totalorder %s52, %s68
    %p70 = scmp.eq.s32.totalorder %s18, 0
    %p71 = por %p69, %p70
    %s73 = sadd.s32 %s72, 1
    %p76 = scmp.eq.s32.totalorder %s12, 1
    %p77 = scmp.ne.s32.totalorder %s72, %s74
    %p78 = scmp.eq.s32.totalorder %s12, 0
    %p79 = por %p77, %p78
    %p80 = scmp.ne.s32.totalorder %s72, %s74
    %p81 = scmp.eq.s32.totalorder %s17, 1
    %p82 = por %p80, %p81
    %p83 = scmp.ne.s32.totalorder %s74, %s75
    %p84 = scmp.eq.s32.totalorder %s17, 0
    %p85 = por %p83, %p84
    %p86 = scmp.ne.s32.totalorder %s74, %s75
    %p87 = scmp.eq.s32.totalorder %s18, 1
    %p88 = por %p86, %p87
    %p90 = scmp.ne.s32.totalorder %s75, %s89
    %p91 = scmp.eq.s32.totalorder %s18, 0
    %p92 = por %p90, %p91
    %s94 = sadd.s32 %s93, 1
    %p97 = scmp.eq.s32.totalorder %s12, 1
    %p98 = scmp.ne.s32.totalorder %s93, %s95
    %p99 = scmp.eq.s32.totalorder %s12, 0
    %p100 = por %p98, %p99
    %p101 = scmp.ne.s32.totalorder %s93, %s95
    %p102 = scmp.eq.s32.totalorder %s17, 1
    %p103 = por %p101, %p102
    %p104 = scmp.ne.s32.totalorder %s95, %s96
    %p105 = scmp.eq.s32.totalorder %s17, 0
    %p106 = por %p104, %p105
    %p107 = scmp.ne.s32.totalorder %s95, %s96
    %p108 = scmp.eq.s32.totalorder %s18, 1
    %p109 = por %p107, %p108
    %p111 = scmp.ne.s32.totalorder %s96, %s110
    %p112 = scmp.eq.s32.totalorder %s18, 0
    %p113 = por %p111, %p112
    %s115 = sadd.s32 %s114, 1
    %p118 = scmp.eq.s32.totalorder %s12, 1
    %p119 = scmp.ne.s32.totalorder %s114, %s116
    %p120 = scmp.eq.s32.totalorder %s12, 0
    %p121 = por %p119, %p120
    %p122 = scmp.ne.s32.totalorder %s114, %s116
    %p123 = scmp.eq.s32.totalorder %s17, 1
    %p124 = por %p122, %p123
    %p125 = scmp.ne.s32.totalorder %s116, %s117
    %p126 = scmp.eq.s32.totalorder %s17, 0
    %p127 = por %p125, %p126
    %p128 = scmp.ne.s32.totalorder %s116, %s117
    %p129 = scmp.eq.s32.totalorder %s18, 1
    %p130 = por %p128, %p129
    %p132 = scmp.ne.s32.totalorder %s117, %s131
    %p133 = scmp.eq.s32.totalorder %s18, 0
    %p134 = por %p132, %p133
    %s136 = sadd.s32 %s135, 1
    %p139 = scmp.eq.s32.totalorder %s12, 1
    %p140 = scmp.ne.s32.totalorder %s135, %s137
    %p141 = scmp.eq.s32.totalorder %s12, 0
    %p142 = por %p140, %p141
    %p143 = scmp.ne.s32.totalorder %s135, %s137
    %p144 = scmp.eq.s32.totalorder %s17, 1
    %p145 = por %p143, %p144
    %p146 = scmp.ne.s32.totalorder %s137, %s138
    %p147 = scmp.eq.s32.totalorder %s17, 0
    %p148 = por %p146, %p147
    %p149 = scmp.ne.s32.totalorder %s137, %s138
    %p150 = scmp.eq.s32.totalorder %s18, 1
    %p151 = por %p149, %p150
    %p153 = scmp.ne.s32.totalorder %s138, %s152
    %p154 = scmp.eq.s32.totalorder %s18, 0
    %p155 = por %p153, %p154
    %s156 = ssub.s32 %s12, %s19
    %p157 = scmp.eq.s32.totalorder %s156, 0
    %s159 = sadd.s32 %s158, 1
    %s160 = scalar_select %p157, %s158, %s159
    %p163 = pneg %p157
    %p164 = scmp.eq.s32.totalorder %s12, 1
    %p165 = por %p163, %p164
    %p166 = scmp.ne.s32.totalorder %s158, %s161
    %p167 = scmp.eq.s32.totalorder %s12, 0
    %p168 = por %p166, %p167
    %p169 = scmp.ne.s32.totalorder %s158, %s161
    %p170 = scmp.eq.s32.totalorder %s17, 1
    %p171 = por %p169, %p170
    %p172 = scmp.ne.s32.totalorder %s161, %s162
    %p173 = scmp.eq.s32.totalorder %s17, 0
    %p174 = por %p172, %p173
    %p175 = scmp.ne.s32.totalorder %s161, %s162
    %p176 = scmp.eq.s32.totalorder %s18, 1
    %p177 = por %p175, %p176
    %p179 = scmp.ne.s32.totalorder %s162, %s178
    %p180 = scmp.eq.s32.totalorder %s18, 0
    %p181 = por %p179, %p180
    %p182 = scmp.le.s32.totalorder 1, %s12
    %p183 = scmp.lt.s32.totalorder %s12, 3
    %p184 = pnand %p182, %p183
    %p185 = pneg %p184
    // Predicated region
    $region9: #{residual_block_forward.5} parent=5 // pred_check
      _
    $region10: #{residual_block_forward.5} parent=5 // pred_check_branch
      %187 = sbr.rel (%p184) target = $region12
    $region11: #{residual_block_forward.5} parent=5 // pred_region
      %s188 = ssub.s32 %s12, 1
      // Predicated region
      $region13: #{residual_block_forward.5} parent=11 // pred_check
        %p189 = pneg %p85
      $region14: #{residual_block_forward.5} parent=11 // pred_check_branch
        %191 = sbr.rel (%p189) target = $region16
      $region15: #{residual_block_forward.5} parent=11 // pred_region
        _
      $region16: #{residual_block_forward.5} parent=11 // pred_fallthru
        _
      // Predicated region
      $region17: #{residual_block_forward.5} parent=11 // pred_check
        %p192 = pneg %p106
      $region18: #{residual_block_forward.5} parent=11 // pred_check_branch
        %194 = sbr.rel (%p192) target = $region20
      $region19: #{residual_block_forward.5} parent=11 // pred_region
        _
      $region20: #{residual_block_forward.5} parent=11 // pred_fallthru
        _
      // Predicated region
      $region21: #{residual_block_forward.5} parent=11 // pred_check
        %p195 = pneg %p127
      $region22: #{residual_block_forward.5} parent=11 // pred_check_branch
        %197 = sbr.rel (%p195) target = $region24
      $region23: #{residual_block_forward.5} parent=11 // pred_region
        _
      $region24: #{residual_block_forward.5} parent=11 // pred_fallthru
        _
      // Predicated region
      $region25: #{residual_block_forward.5} parent=11 // pred_check
        %p198 = pneg %p148
      $region26: #{residual_block_forward.5} parent=11 // pred_check_branch
        %200 = sbr.rel (%p198) target = $region28
      $region27: #{residual_block_forward.5} parent=11 // pred_region
        _
      $region28: #{residual_block_forward.5} parent=11 // pred_fallthru
        _
    $region12: #{residual_block_forward.5} parent=5 // pred_fallthru
      _
    %p201 = scmp.lt.s32.totalorder %s12, 2
    // Predicated region
    $region29: #{residual_block_forward.5} parent=5 // pred_check
      %p202 = pneg %p201
    $region30: #{residual_block_forward.5} parent=5 // pred_check_branch
      %204 = sbr.rel (%p202) target = $region32
    $region31: #{residual_block_forward.5} parent=5 // pred_region
      // Predicated region
      $region33: #{residual_block_forward.5} parent=31 // pred_check
        %p205 = pneg %p32
      $region34: #{residual_block_forward.5} parent=31 // pred_check_branch
        %207 = sbr.rel (%p205) target = $region36
      $region35: #{residual_block_forward.5} parent=31 // pred_region
        %p208 = scmp.lt.s32.totalorder %s12, 1
        %s209 = scalar_select %p208, %s12, 1
        %s210 = smul.addr %s209, 32
        %s211 = smul.addr %s210, 8
        %s212 = scalar_lea.vmem %s0, %s211
      $region36: #{residual_block_forward.5} parent=31 // pred_fallthru
        _
      // Predicated region
      $region37: #{residual_block_forward.5} parent=31 // pred_check
        %p213 = pneg %p58
      $region38: #{residual_block_forward.5} parent=31 // pred_check_branch
        %215 = sbr.rel (%p213) target = $region40
      $region39: #{residual_block_forward.5} parent=31 // pred_region
        %p216 = scmp.lt.s32.totalorder %s12, 1
        %s217 = scalar_select %p216, %s12, 1
        %s218 = smul.addr %s217, 32
        %s219 = smul.addr %s218, 8
        %s220 = scalar_lea.vmem %s1, %s219
      $region40: #{residual_block_forward.5} parent=31 // pred_fallthru
        _
    $region32: #{residual_block_forward.5} parent=5 // pred_fallthru
      _
    %p221 = scmp.le.s32.totalorder 1, %s12
    %p222 = scmp.lt.s32.totalorder %s12, 3
    %p223 = pnand %p221, %p222
    %p224 = pneg %p223
    // Predicated region
    $region41: #{residual_block_forward.5} parent=5 // pred_check
      _
    $region42: #{residual_block_forward.5} parent=5 // pred_check_branch
      %226 = sbr.rel (%p223) target = $region44
    $region43: #{residual_block_forward.5} parent=5 // pred_region
      %s227 = ssub.s32 %s12, 1
      %p228 = scmp.lt.s32.totalorder %s17, 1
      %s229 = scalar_select %p228, %s17, 1
      %s230 = smul.addr %s229, 32
      %s231 = smul.addr %s230, 8
      %s232 = scalar_lea.vmem %s0, %s231
      %p233 = pneg %p38
      %p234 = pneg %p35
      %p235 = scmp.lt.s32.totalorder %s17, 1
      %s236 = scalar_select %p235, %s17, 1
      %s237 = smul.addr %s236, 32
      %s238 = smul.addr %s237, 8
      %s239 = scalar_lea.vmem %s1, %s238
      %p240 = pneg %p64
      %p241 = pneg %p61
      %p242 = pneg %p85
      %p243 = pneg %p82
      %p244 = pneg %p106
      %p245 = pneg %p103
      %p246 = pneg %p127
      %p247 = pneg %p124
      %p248 = pneg %p148
      %p249 = pneg %p145
      %p250 = pneg %p174
      %p251 = pneg %p171
      %p252 = scmp.lt.s32.totalorder %s17, 1
      %s253 = scalar_select %p252, %s17, 1
      %s254 = smul.addr %s253, 32
      %s255 = smul.addr %s254, 8
      %s256 = scalar_lea.vmem %s6, %s255
      %p257 = scmp.lt.s32.totalorder %s17, 1
      %s258 = scalar_select %p257, %s17, 1
      %s259 = smul.addr %s258, 32
      %s260 = smul.addr %s259, 8
      %s261 = scalar_lea.vmem %s0, %s260
      %p262 = scmp.lt.s32.totalorder %s17, 1
      %s263 = scalar_select %p262, %s17, 1
      %s264 = smul.addr %s263, 32
      %s265 = smul.addr %s264, 8
      %s266 = scalar_lea.vmem %s1, %s265
      %p267 = scmp.lt.s32.totalorder %s17, 1
      %s268 = scalar_select %p267, %s17, 1
      %s269 = smul.addr %s268, 32
      %s270 = smul.addr %s269, 8
      %s271 = scalar_lea.vmem %s6, %s270
      %v272 = vld [vmem:[%s261] sm:$0xff]
      %v273 = vld [vmem:[%s261 + $0x8] sm:$0xff]
      %v274 = vld [vmem:[%s261 + $0x10] sm:$0xff]
      %v275 = vld [vmem:[%s261 + $0x18] sm:$0xff]
      %v276 = vld [vmem:[%s261 + $0x20] sm:$0xff]
      %v277 = vld [vmem:[%s261 + $0x28] sm:$0xff]
      %v278 = vld [vmem:[%s261 + $0x30] sm:$0xff]
      %v279 = vld [vmem:[%s261 + $0x38] sm:$0xff]
      %v280 = vld [vmem:[%s261 + $0x40] sm:$0xff]
      %v281 = vld [vmem:[%s261 + $0x48] sm:$0xff]
      %v282 = vld [vmem:[%s261 + $0x50] sm:$0xff]
      %v283 = vld [vmem:[%s261 + $0x58] sm:$0xff]
      %v284 = vld [vmem:[%s261 + $0x60] sm:$0xff]
      %v285 = vld [vmem:[%s261 + $0x68] sm:$0xff]
      %v286 = vld [vmem:[%s261 + $0x70] sm:$0xff]
      %v287 = vld [vmem:[%s261 + $0x78] sm:$0xff]
      %v288 = vld [vmem:[%s261 + $0x80] sm:$0xff]
      %v289 = vld [vmem:[%s261 + $0x88] sm:$0xff]
      %v290 = vld [vmem:[%s261 + $0x90] sm:$0xff]
      %v291 = vld [vmem:[%s261 + $0x98] sm:$0xff]
      %v292 = vld [vmem:[%s261 + $0xa0] sm:$0xff]
      %v293 = vld [vmem:[%s261 + $0xa8] sm:$0xff]
      %v294 = vld [vmem:[%s261 + $0xb0] sm:$0xff]
      %v295 = vld [vmem:[%s261 + $0xb8] sm:$0xff]
      %v296 = vld [vmem:[%s261 + $0xc0] sm:$0xff]
      %v297 = vld [vmem:[%s261 + $0xc8] sm:$0xff]
      %v298 = vld [vmem:[%s261 + $0xd0] sm:$0xff]
      %v299 = vld [vmem:[%s261 + $0xd8] sm:$0xff]
      %v300 = vld [vmem:[%s261 + $0xe0] sm:$0xff]
      %v301 = vld [vmem:[%s261 + $0xe8] sm:$0xff]
      %v302 = vld [vmem:[%s261 + $0xf0] sm:$0xff]
      %v303 = vld [vmem:[%s261 + $0xf8] sm:$0xff]
      %v304 = vld [vmem:[%s2] sm:$0x1]
      %v306 = vlaneseq
      %v307 = vshrl.u32 %v306, 7
      %v308 = vsub.s32 0, %v307
      %v309 = vrot.slane %v304, %v308
      %v311 = vmul.f32 %v272, %v309
      %v312 = vmul.f32 %v273, %v309
      %v313 = vmul.f32 %v274, %v309
      %v314 = vmul.f32 %v275, %v309
      %v315 = vmul.f32 %v276, %v309
      %v316 = vmul.f32 %v277, %v309
      %v317 = vmul.f32 %v278, %v309
      %v318 = vmul.f32 %v279, %v309
      %v319 = vmul.f32 %v280, %v309
      %v320 = vmul.f32 %v281, %v309
      %v321 = vmul.f32 %v282, %v309
      %v322 = vmul.f32 %v283, %v309
      %v323 = vmul.f32 %v284, %v309
      %v324 = vmul.f32 %v285, %v309
      %v325 = vmul.f32 %v286, %v309
      %v326 = vmul.f32 %v287, %v309
      %v327 = vmul.f32 %v288, %v309
      %v328 = vmul.f32 %v289, %v309
      %v329 = vmul.f32 %v290, %v309
      %v330 = vmul.f32 %v291, %v309
      %v331 = vmul.f32 %v292, %v309
      %v332 = vmul.f32 %v293, %v309
      %v333 = vmul.f32 %v294, %v309
      %v334 = vmul.f32 %v295, %v309
      %v335 = vmul.f32 %v296, %v309
      %v336 = vmul.f32 %v297, %v309
      %v337 = vmul.f32 %v298, %v309
      %v338 = vmul.f32 %v299, %v309
      %v339 = vmul.f32 %v300, %v309
      %v340 = vmul.f32 %v301, %v309
      %v341 = vmul.f32 %v302, %v309
      %v342 = vmul.f32 %v303, %v309
      %v343 = vld [vmem:[%s3] sm:$0x1]
      %v345 = vlaneseq
      %v346 = vshrl.u32 %v345, 7
      %v347 = vsub.s32 0, %v346
      %v348 = vrot.slane %v343, %v347
      %v350 = vadd.f32 %v311, %v348
      %v351 = vadd.f32 %v312, %v348
      %v352 = vadd.f32 %v313, %v348
      %v353 = vadd.f32 %v314, %v348
      %v354 = vadd.f32 %v315, %v348
      %v355 = vadd.f32 %v316, %v348
      %v356 = vadd.f32 %v317, %v348
      %v357 = vadd.f32 %v318, %v348
      %v358 = vadd.f32 %v319, %v348
      %v359 = vadd.f32 %v320, %v348
      %v360 = vadd.f32 %v321, %v348
      %v361 = vadd.f32 %v322, %v348
      %v362 = vadd.f32 %v323, %v348
      %v363 = vadd.f32 %v324, %v348
      %v364 = vadd.f32 %v325, %v348
      %v365 = vadd.f32 %v326, %v348
      %v366 = vadd.f32 %v327, %v348
      %v367 = vadd.f32 %v328, %v348
      %v368 = vadd.f32 %v329, %v348
      %v369 = vadd.f32 %v330, %v348
      %v370 = vadd.f32 %v331, %v348
      %v371 = vadd.f32 %v332, %v348
      %v372 = vadd.f32 %v333, %v348
      %v373 = vadd.f32 %v334, %v348
      %v374 = vadd.f32 %v335, %v348
      %v375 = vadd.f32 %v336, %v348
      %v376 = vadd.f32 %v337, %v348
      %v377 = vadd.f32 %v338, %v348
      %v378 = vadd.f32 %v339, %v348
      %v379 = vadd.f32 %v340, %v348
      %v380 = vadd.f32 %v341, %v348
      %v381 = vadd.f32 %v342, %v348
      %v382 = vld [vmem:[%s266] sm:$0xff]
      %v383 = vld [vmem:[%s266 + $0x8] sm:$0xff]
      %v384 = vld [vmem:[%s266 + $0x10] sm:$0xff]
      %v385 = vld [vmem:[%s266 + $0x18] sm:$0xff]
      %v386 = vld [vmem:[%s266 + $0x20] sm:$0xff]
      %v387 = vld [vmem:[%s266 + $0x28] sm:$0xff]
      %v388 = vld [vmem:[%s266 + $0x30] sm:$0xff]
      %v389 = vld [vmem:[%s266 + $0x38] sm:$0xff]
      %v390 = vld [vmem:[%s266 + $0x40] sm:$0xff]
      %v391 = vld [vmem:[%s266 + $0x48] sm:$0xff]
      %v392 = vld [vmem:[%s266 + $0x50] sm:$0xff]
      %v393 = vld [vmem:[%s266 + $0x58] sm:$0xff]
      %v394 = vld [vmem:[%s266 + $0x60] sm:$0xff]
      %v395 = vld [vmem:[%s266 + $0x68] sm:$0xff]
      %v396 = vld [vmem:[%s266 + $0x70] sm:$0xff]
      %v397 = vld [vmem:[%s266 + $0x78] sm:$0xff]
      %v398 = vld [vmem:[%s266 + $0x80] sm:$0xff]
      %v399 = vld [vmem:[%s266 + $0x88] sm:$0xff]
      %v400 = vld [vmem:[%s266 + $0x90] sm:$0xff]
      %v401 = vld [vmem:[%s266 + $0x98] sm:$0xff]
      %v402 = vld [vmem:[%s266 + $0xa0] sm:$0xff]
      %v403 = vld [vmem:[%s266 + $0xa8] sm:$0xff]
      %v404 = vld [vmem:[%s266 + $0xb0] sm:$0xff]
      %v405 = vld [vmem:[%s266 + $0xb8] sm:$0xff]
      %v406 = vld [vmem:[%s266 + $0xc0] sm:$0xff]
      %v407 = vld [vmem:[%s266 + $0xc8] sm:$0xff]
      %v408 = vld [vmem:[%s266 + $0xd0] sm:$0xff]
      %v409 = vld [vmem:[%s266 + $0xd8] sm:$0xff]
      %v410 = vld [vmem:[%s266 + $0xe0] sm:$0xff]
      %v411 = vld [vmem:[%s266 + $0xe8] sm:$0xff]
      %v412 = vld [vmem:[%s266 + $0xf0] sm:$0xff]
      %v413 = vld [vmem:[%s266 + $0xf8] sm:$0xff]
      %v414 = vld [vmem:[%s4] sm:$0x1]
      %v416 = vlaneseq
      %v417 = vshrl.u32 %v416, 7
      %v418 = vsub.s32 0, %v417
      %v419 = vrot.slane %v414, %v418
      %v421 = vmul.f32 %v382, %v419
      %v422 = vmul.f32 %v383, %v419
      %v423 = vmul.f32 %v384, %v419
      %v424 = vmul.f32 %v385, %v419
      %v425 = vmul.f32 %v386, %v419
      %v426 = vmul.f32 %v387, %v419
      %v427 = vmul.f32 %v388, %v419
      %v428 = vmul.f32 %v389, %v419
      %v429 = vmul.f32 %v390, %v419
      %v430 = vmul.f32 %v391, %v419
      %v431 = vmul.f32 %v392, %v419
      %v432 = vmul.f32 %v393, %v419
      %v433 = vmul.f32 %v394, %v419
      %v434 = vmul.f32 %v395, %v419
      %v435 = vmul.f32 %v396, %v419
      %v436 = vmul.f32 %v397, %v419
      %v437 = vmul.f32 %v398, %v419
      %v438 = vmul.f32 %v399, %v419
      %v439 = vmul.f32 %v400, %v419
      %v440 = vmul.f32 %v401, %v419
      %v441 = vmul.f32 %v402, %v419
      %v442 = vmul.f32 %v403, %v419
      %v443 = vmul.f32 %v404, %v419
      %v444 = vmul.f32 %v405, %v419
      %v445 = vmul.f32 %v406, %v419
      %v446 = vmul.f32 %v407, %v419
      %v447 = vmul.f32 %v408, %v419
      %v448 = vmul.f32 %v409, %v419
      %v449 = vmul.f32 %v410, %v419
      %v450 = vmul.f32 %v411, %v419
      %v451 = vmul.f32 %v412, %v419
      %v452 = vmul.f32 %v413, %v419
      %v453 = vld [vmem:[%s5] sm:$0x1]
      %v455 = vlaneseq
      %v456 = vshrl.u32 %v455, 7
      %v457 = vsub.s32 0, %v456
      %v458 = vrot.slane %v453, %v457
      %v460 = vadd.f32 %v421, %v458
      %v461 = vadd.f32 %v422, %v458
      %v462 = vadd.f32 %v423, %v458
      %v463 = vadd.f32 %v424, %v458
      %v464 = vadd.f32 %v425, %v458
      %v465 = vadd.f32 %v426, %v458
      %v466 = vadd.f32 %v427, %v458
      %v467 = vadd.f32 %v428, %v458
      %v468 = vadd.f32 %v429, %v458
      %v469 = vadd.f32 %v430, %v458
      %v470 = vadd.f32 %v431, %v458
      %v471 = vadd.f32 %v432, %v458
      %v472 = vadd.f32 %v433, %v458
      %v473 = vadd.f32 %v434, %v458
      %v474 = vadd.f32 %v435, %v458
      %v475 = vadd.f32 %v436, %v458
      %v476 = vadd.f32 %v437, %v458
      %v477 = vadd.f32 %v438, %v458
      %v478 = vadd.f32 %v439, %v458
      %v479 = vadd.f32 %v440, %v458
      %v480 = vadd.f32 %v441, %v458
      %v481 = vadd.f32 %v442, %v458
      %v482 = vadd.f32 %v443, %v458
      %v483 = vadd.f32 %v444, %v458
      %v484 = vadd.f32 %v445, %v458
      %v485 = vadd.f32 %v446, %v458
      %v486 = vadd.f32 %v447, %v458
      %v487 = vadd.f32 %v448, %v458
      %v488 = vadd.f32 %v449, %v458
      %v489 = vadd.f32 %v450, %v458
      %v490 = vadd.f32 %v451, %v458
      %v491 = vadd.f32 %v452, %v458
      %v492 = vadd.f32 %v350, %v460
      %v493 = vadd.f32 %v351, %v461
      %v494 = vadd.f32 %v352, %v462
      %v495 = vadd.f32 %v353, %v463
      %v496 = vadd.f32 %v354, %v464
      %v497 = vadd.f32 %v355, %v465
      %v498 = vadd.f32 %v356, %v466
      %v499 = vadd.f32 %v357, %v467
      %v500 = vadd.f32 %v358, %v468
      %v501 = vadd.f32 %v359, %v469
      %v502 = vadd.f32 %v360, %v470
      %v503 = vadd.f32 %v361, %v471
      %v504 = vadd.f32 %v362, %v472
      %v505 = vadd.f32 %v363, %v473
      %v506 = vadd.f32 %v364, %v474
      %v507 = vadd.f32 %v365, %v475
      %v508 = vadd.f32 %v366, %v476
      %v509 = vadd.f32 %v367, %v477
      %v510 = vadd.f32 %v368, %v478
      %v511 = vadd.f32 %v369, %v479
      %v512 = vadd.f32 %v370, %v480
      %v513 = vadd.f32 %v371, %v481
      %v514 = vadd.f32 %v372, %v482
      %v515 = vadd.f32 %v373, %v483
      %v516 = vadd.f32 %v374, %v484
      %v517 = vadd.f32 %v375, %v485
      %v518 = vadd.f32 %v376, %v486
      %v519 = vadd.f32 %v377, %v487
      %v520 = vadd.f32 %v378, %v488
      %v521 = vadd.f32 %v379, %v489
      %v522 = vadd.f32 %v380, %v490
      %v523 = vadd.f32 %v381, %v491
      %v524 = vmax.f32 %v492, 0.0
      %v525 = vmax.f32 %v493, 0.0
      %v526 = vmax.f32 %v494, 0.0
      %v527 = vmax.f32 %v495, 0.0
      %v528 = vmax.f32 %v496, 0.0
      %v529 = vmax.f32 %v497, 0.0
      %v530 = vmax.f32 %v498, 0.0
      %v531 = vmax.f32 %v499, 0.0
      %v532 = vmax.f32 %v500, 0.0
      %v533 = vmax.f32 %v501, 0.0
      %v534 = vmax.f32 %v502, 0.0
      %v535 = vmax.f32 %v503, 0.0
      %v536 = vmax.f32 %v504, 0.0
      %v537 = vmax.f32 %v505, 0.0
      %v538 = vmax.f32 %v506, 0.0
      %v539 = vmax.f32 %v507, 0.0
      %v540 = vmax.f32 %v508, 0.0
      %v541 = vmax.f32 %v509, 0.0
      %v542 = vmax.f32 %v510, 0.0
      %v543 = vmax.f32 %v511, 0.0
      %v544 = vmax.f32 %v512, 0.0
      %v545 = vmax.f32 %v513, 0.0
      %v546 = vmax.f32 %v514, 0.0
      %v547 = vmax.f32 %v515, 0.0
      %v548 = vmax.f32 %v516, 0.0
      %v549 = vmax.f32 %v517, 0.0
      %v550 = vmax.f32 %v518, 0.0
      %v551 = vmax.f32 %v519, 0.0
      %v552 = vmax.f32 %v520, 0.0
      %v553 = vmax.f32 %v521, 0.0
      %v554 = vmax.f32 %v522, 0.0
      %v555 = vmax.f32 %v523, 0.0
      %556 = vst [vmem:[%s271] sm:$0xff] %v524
      %557 = vst [vmem:[%s271 + $0x8] sm:$0xff] %v525
      %558 = vst [vmem:[%s271 + $0x10] sm:$0xff] %v526
      %559 = vst [vmem:[%s271 + $0x18] sm:$0xff] %v527
      %560 = vst [vmem:[%s271 + $0x20] sm:$0xff] %v528
      %561 = vst [vmem:[%s271 + $0x28] sm:$0xff] %v529
      %562 = vst [vmem:[%s271 + $0x30] sm:$0xff] %v530
      %563 = vst [vmem:[%s271 + $0x38] sm:$0xff] %v531
      %564 = vst [vmem:[%s271 + $0x40] sm:$0xff] %v532
      %565 = vst [vmem:[%s271 + $0x48] sm:$0xff] %v533
      %566 = vst [vmem:[%s271 + $0x50] sm:$0xff] %v534
      %567 = vst [vmem:[%s271 + $0x58] sm:$0xff] %v535
      %568 = vst [vmem:[%s271 + $0x60] sm:$0xff] %v536
      %569 = vst [vmem:[%s271 + $0x68] sm:$0xff] %v537
      %570 = vst [vmem:[%s271 + $0x70] sm:$0xff] %v538
      %571 = vst [vmem:[%s271 + $0x78] sm:$0xff] %v539
      %572 = vst [vmem:[%s271 + $0x80] sm:$0xff] %v540
      %573 = vst [vmem:[%s271 + $0x88] sm:$0xff] %v541
      %574 = vst [vmem:[%s271 + $0x90] sm:$0xff] %v542
      %575 = vst [vmem:[%s271 + $0x98] sm:$0xff] %v543
      %576 = vst [vmem:[%s271 + $0xa0] sm:$0xff] %v544
      %577 = vst [vmem:[%s271 + $0xa8] sm:$0xff] %v545
      %578 = vst [vmem:[%s271 + $0xb0] sm:$0xff] %v546
      %579 = vst [vmem:[%s271 + $0xb8] sm:$0xff] %v547
      %580 = vst [vmem:[%s271 + $0xc0] sm:$0xff] %v548
      %581 = vst [vmem:[%s271 + $0xc8] sm:$0xff] %v549
      %582 = vst [vmem:[%s271 + $0xd0] sm:$0xff] %v550
      %583 = vst [vmem:[%s271 + $0xd8] sm:$0xff] %v551
      %584 = vst [vmem:[%s271 + $0xe0] sm:$0xff] %v552
      %585 = vst [vmem:[%s271 + $0xe8] sm:$0xff] %v553
      %586 = vst [vmem:[%s271 + $0xf0] sm:$0xff] %v554
      %587 = vst [vmem:[%s271 + $0xf8] sm:$0xff] %v555
      %p588 = scmp.lt.s32.totalorder %s17, 1
      %s589 = scalar_select %p588, %s17, 1
      %s590 = smul.addr %s589, 32
      %s591 = smul.addr %s590, 8
      %s592 = scalar_lea.vmem %s6, %s591
      // Predicated region
      $region45: #{residual_block_forward.5} parent=43 // pred_check
        %p593 = pneg %p171
      $region46: #{residual_block_forward.5} parent=43 // pred_check_branch
        %595 = sbr.rel (%p593) target = $region48
      $region47: #{residual_block_forward.5} parent=43 // pred_region
        _
      $region48: #{residual_block_forward.5} parent=43 // pred_fallthru
        _
    $region44: #{residual_block_forward.5} parent=5 // pred_fallthru
      _
    %p596 = scmp.le.s32.totalorder 2, %s12
    // Predicated region
    $region49: #{residual_block_forward.5} parent=5 // pred_check
      %p597 = pneg %p596
    $region50: #{residual_block_forward.5} parent=5 // pred_check_branch
      %599 = sbr.rel (%p597) target = $region52
    $region51: #{residual_block_forward.5} parent=5 // pred_region
      %s600 = ssub.s32 %s12, 2
      // Predicated region
      $region53: #{residual_block_forward.5} parent=51 // pred_check
        %p601 = pneg %p177
      $region54: #{residual_block_forward.5} parent=51 // pred_check_branch
        %603 = sbr.rel (%p601) target = $region56
      $region55: #{residual_block_forward.5} parent=51 // pred_region
        %p604 = scmp.lt.s32.totalorder %s18, 1
        %s605 = scalar_select %p604, %s18, 1
        %s606 = smul.addr %s605, 32
        %s607 = smul.addr %s606, 8
        %s608 = scalar_lea.vmem %s6, %s607
      $region56: #{residual_block_forward.5} parent=51 // pred_fallthru
        _
    $region52: #{residual_block_forward.5} parent=5 // pred_fallthru
      _
  $region6: #{residual_block_forward.5} parent=0 // loop_footer
    %s16 = sadd.s32 1, %s12
  $region7: #{residual_block_forward.5} parent=0 // loop_footer_branch
    %11 = sbr.rel target = $region3
  $region8: #{residual_block_forward.5} parent=0 // loop_exit
    _

// kernel: residual_block_forward.3
$region0: #{residual_block_forward.3}
  #allocation0 [shape = 'u32[]', space=smem, size = 0x4, offset = 0x4, fixed_abs, tag = 'smem constant byte address 0x4 - core index']
  #allocation1 [shape = 'u32[144,128]{1,0:T(1,128)}', space=vmem, size = 0x12000, scoped, tag = 'internal scratch']
  %s0 = inlined_call_operand.vmem [shape: bf16[2,18,18,128], index: 0, kind: input, shape index: {}]
  %s1 = inlined_call_operand.vmem [shape: bf16[1152,128], index: 1, kind: input, shape index: {}]
  %s2 = inlined_call_operand.vmem [shape: f32[2,16,16,128], index: 2, kind: output, shape index: {0}]
  %s3 = inlined_call_operand.vmem [shape: f32[2,2,128], index: 3, kind: output, shape index: {1}]
  %4 = xla_tuple %s2, %s3
  %s5 = sld [smem:[#allocation0]]
  $region49: #{residual_block_forward.3} parent=0
    _
  %s7 = ssub.s32 1, %s5
  %s8 = scalar_select 0, %s7, %s5
  loop: start=0, step=1, limit=4
  $region2: #{residual_block_forward.3} parent=0 // loop_pre_header
    _
  $region3: #{residual_block_forward.3} parent=0 // loop_header
    %s10 = sphi 0, %s14
    %p11 = scmp.ge.s32.totalorder %s10, 4
    %s20 = sphi 0, %s22
    %s23 = sphi 0, %s20
    %s24 = sphi 0, %s23
    %s40 = sphi 0, %s24
    %s44 = sphi 0, %s44
    %s46 = sphi 0, %s44
    %s47 = sphi 0, %s46
    %s61 = sphi 0, %s47
    %s67 = sphi 0, %s69
    %s70 = sphi 0, %s67
    %s71 = sphi 0, %s70
    %s87 = sphi 0, %s71
    %s93 = sphi 0, %s95
    %s96 = sphi 0, %s93
    %s97 = sphi 0, %s96
    %s113 = sphi 0, %s97
  $region4: #{residual_block_forward.3} parent=0 // loop_header_branch
    %13 = sbr.rel (%p11) target = $region8
  $region5: #{residual_block_forward.3} parent=0 // loop_body
    %s15 = ssub.s32 %s10, 1
    %s16 = ssub.s32 %s10, 2
    %s17 = sadd.s32 %s10, 1
    %s18 = ssub.s32 %s10, %s17
    %p19 = scmp.eq.s32.totalorder %s18, 0
    %s21 = sadd.s32 %s20, 1
    %s22 = scalar_select %p19, %s20, %s21
    %p25 = pneg %p19
    %p26 = scmp.eq.s32.totalorder %s10, 1
    %p27 = por %p25, %p26
    %p28 = scmp.ne.s32.totalorder %s20, %s23
    %p29 = scmp.eq.s32.totalorder %s10, 0
    %p30 = por %p28, %p29
    %p31 = scmp.ne.s32.totalorder %s20, %s23
    %p32 = scmp.eq.s32.totalorder %s15, 1
    %p33 = por %p31, %p32
    %p34 = scmp.ne.s32.totalorder %s23, %s24
    %p35 = scmp.eq.s32.totalorder %s15, 0
    %p36 = por %p34, %p35
    %p37 = scmp.ne.s32.totalorder %s23, %s24
    %p38 = scmp.eq.s32.totalorder %s16, 1
    %p39 = por %p37, %p38
    %p41 = scmp.ne.s32.totalorder %s24, %s40
    %p42 = scmp.eq.s32.totalorder %s16, 0
    %p43 = por %p41, %p42
    %s45 = sadd.s32 %s44, 1
    %p48 = scmp.eq.s32.totalorder %s10, 1
    %p49 = scmp.ne.s32.totalorder %s44, %s46
    %p50 = scmp.eq.s32.totalorder %s10, 0
    %p51 = por %p49, %p50
    %p52 = scmp.ne.s32.totalorder %s44, %s46
    %p53 = scmp.eq.s32.totalorder %s15, 1
    %p54 = por %p52, %p53
    %p55 = scmp.ne.s32.totalorder %s46, %s47
    %p56 = scmp.eq.s32.totalorder %s15, 0
    %p57 = por %p55, %p56
    %p58 = scmp.ne.s32.totalorder %s46, %s47
    %p59 = scmp.eq.s32.totalorder %s16, 1
    %p60 = por %p58, %p59
    %p62 = scmp.ne.s32.totalorder %s47, %s61
    %p63 = scmp.eq.s32.totalorder %s16, 0
    %p64 = por %p62, %p63
    %s65 = ssub.s32 %s10, %s17
    %p66 = scmp.eq.s32.totalorder %s65, 0
    %s68 = sadd.s32 %s67, 1
    %s69 = scalar_select %p66, %s67, %s68
    %p72 = pneg %p66
    %p73 = scmp.eq.s32.totalorder %s10, 1
    %p74 = por %p72, %p73
    %p75 = scmp.ne.s32.totalorder %s67, %s70
    %p76 = scmp.eq.s32.totalorder %s10, 0
    %p77 = por %p75, %p76
    %p78 = scmp.ne.s32.totalorder %s67, %s70
    %p79 = scmp.eq.s32.totalorder %s15, 1
    %p80 = por %p78, %p79
    %p81 = scmp.ne.s32.totalorder %s70, %s71
    %p82 = scmp.eq.s32.totalorder %s15, 0
    %p83 = por %p81, %p82
    %p84 = scmp.ne.s32.totalorder %s70, %s71
    %p85 = scmp.eq.s32.totalorder %s16, 1
    %p86 = por %p84, %p85
    %p88 = scmp.ne.s32.totalorder %s71, %s87
    %p89 = scmp.eq.s32.totalorder %s16, 0
    %p90 = por %p88, %p89
    %s91 = ssub.s32 %s10, %s17
    %p92 = scmp.eq.s32.totalorder %s91, 0
    %s94 = sadd.s32 %s93, 1
    %s95 = scalar_select %p92, %s93, %s94
    %p98 = pneg %p92
    %p99 = scmp.eq.s32.totalorder %s10, 1
    %p100 = por %p98, %p99
    %p101 = scmp.ne.s32.totalorder %s93, %s96
    %p102 = scmp.eq.s32.totalorder %s10, 0
    %p103 = por %p101, %p102
    %p104 = scmp.ne.s32.totalorder %s93, %s96
    %p105 = scmp.eq.s32.totalorder %s15, 1
    %p106 = por %p104, %p105
    %p107 = scmp.ne.s32.totalorder %s96, %s97
    %p108 = scmp.eq.s32.totalorder %s15, 0
    %p109 = por %p107, %p108
    %p110 = scmp.ne.s32.totalorder %s96, %s97
    %p111 = scmp.eq.s32.totalorder %s16, 1
    %p112 = por %p110, %p111
    %p114 = scmp.ne.s32.totalorder %s97, %s113
    %p115 = scmp.eq.s32.totalorder %s16, 0
    %p116 = por %p114, %p115
    %p117 = scmp.le.s32.totalorder 1, %s10
    %p118 = scmp.lt.s32.totalorder %s10, 3
    %p119 = pnand %p117, %p118
    %p120 = pneg %p119
    // Predicated region
    $region9: #{residual_block_forward.3} parent=5 // pred_check
      _
    $region10: #{residual_block_forward.3} parent=5 // pred_check_branch
      %122 = sbr.rel (%p119) target = $region12
    $region11: #{residual_block_forward.3} parent=5 // pred_region
      %s123 = ssub.s32 %s10, 1
      // Predicated region
      $region13: #{residual_block_forward.3} parent=11 // pred_check
        %p124 = pneg %p57
      $region14: #{residual_block_forward.3} parent=11 // pred_check_branch
        %126 = sbr.rel (%p124) target = $region16
      $region15: #{residual_block_forward.3} parent=11 // pred_region
        _
      $region16: #{residual_block_forward.3} parent=11 // pred_fallthru
        _
    $region12: #{residual_block_forward.3} parent=5 // pred_fallthru
      _
    %p127 = scmp.lt.s32.totalorder %s10, 2
    // Predicated region
    $region17: #{residual_block_forward.3} parent=5 // pred_check
      %p128 = pneg %p127
    $region18: #{residual_block_forward.3} parent=5 // pred_check_branch
      %130 = sbr.rel (%p128) target = $region20
    $region19: #{residual_block_forward.3} parent=5 // pred_region
      // Predicated region
      $region21: #{residual_block_forward.3} parent=19 // pred_check
        %p131 = pneg %p30
      $region22: #{residual_block_forward.3} parent=19 // pred_check_branch
        %133 = sbr.rel (%p131) target = $region24
      $region23: #{residual_block_forward.3} parent=19 // pred_region
        %p134 = scmp.lt.s32.totalorder %s10, 1
        %s135 = scalar_select %p134, %s10, 1
        %s136 = smul.addr %s135, 54
        %s137 = smul.addr %s136, 4
        %s138 = scalar_lea.vmem %s0, %s137
      $region24: #{residual_block_forward.3} parent=19 // pred_fallthru
        _
    $region20: #{residual_block_forward.3} parent=5 // pred_fallthru
      _
    %p139 = scmp.le.s32.totalorder 1, %s10
    %p140 = scmp.lt.s32.totalorder %s10, 3
    %p141 = pnand %p139, %p140
    %p142 = pneg %p141
    // Predicated region
    $region25: #{residual_block_forward.3} parent=5 // pred_check
      _
    $region26: #{residual_block_forward.3} parent=5 // pred_check_branch
      %144 = sbr.rel (%p141) target = $region28
    $region27: #{residual_block_forward.3} parent=5 // pred_region
      %s145 = ssub.s32 %s10, 1
      %p146 = scmp.lt.s32.totalorder %s15, 1
      %s147 = scalar_select %p146, %s15, 1
      %s148 = smul.addr %s147, 54
      %s149 = smul.addr %s148, 4
      %s150 = scalar_lea.vmem %s0, %s149
      %p151 = pneg %p36
      %p152 = pneg %p33
      %p153 = pneg %p57
      %p154 = pneg %p54
      %p155 = pneg %p83
      %p156 = pneg %p80
      %p157 = scmp.lt.s32.totalorder %s15, 1
      %s158 = scalar_select %p157, %s15, 1
      %s159 = smul.addr %s158, 32
      %s160 = smul.addr %s159, 8
      %s161 = scalar_lea.vmem %s2, %s160
      %p162 = pneg %p109
      %p163 = pneg %p106
      %p164 = scmp.lt.s32.totalorder %s15, 1
      %s165 = scalar_select %p164, %s15, 1
      %s166 = smul.addr %s165, 2
      %s167 = scalar_lea.vmem %s3, %s166
      %p168 = scmp.lt.s32.totalorder %s15, 1
      %s169 = scalar_select %p168, %s15, 1
      %s170 = smul.addr %s169, 54
      %s171 = smul.addr %s170, 4
      %s172 = scalar_lea.vmem %s0, %s171
      %p173 = scmp.lt.s32.totalorder %s15, 1
      %s174 = scalar_select %p173, %s15, 1
      %s175 = smul.addr %s174, 32
      %s176 = smul.addr %s175, 8
      %s177 = scalar_lea.vmem %s2, %s176
      %p178 = scmp.lt.s32.totalorder %s15, 1
      %s179 = scalar_select %p178, %s15, 1
      %s180 = smul.addr %s179, 2
      %s181 = scalar_lea.vmem %s3, %s180
      %v183 = vld [vmem:[%s172] sm:$0xf]
      %v184 = vld [vmem:[%s172 + $0x4] sm:$0xf]
      %v185 = vld [vmem:[%s172 + $0xc] sm:$0xf]
      %v186 = vld [vmem:[%s172 + $0x10] sm:$0xf]
      %v187 = vld [vmem:[%s172 + $0x18] sm:$0xf]
      %v188 = vld [vmem:[%s172 + $0x1c] sm:$0xf]
      %v189 = vld [vmem:[%s172 + $0x24] sm:$0xf]
      %v190 = vld [vmem:[%s172 + $0x28] sm:$0xf]
      %v191 = vld [vmem:[%s172 + $0x30] sm:$0xf]
      %v192 = vld [vmem:[%s172 + $0x34] sm:$0xf]
      %v193 = vld [vmem:[%s172 + $0x3c] sm:$0xf]
      %v194 = vld [vmem:[%s172 + $0x40] sm:$0xf]
      %v195 = vld [vmem:[%s172 + $0x48] sm:$0xf]
      %v196 = vld [vmem:[%s172 + $0x4c] sm:$0xf]
      %v197 = vld [vmem:[%s172 + $0x54] sm:$0xf]
      %v198 = vld [vmem:[%s172 + $0x58] sm:$0xf]
      %v199 = vld [vmem:[%s172 + $0x60] sm:$0xf]
      %v200 = vld [vmem:[%s172 + $0x64] sm:$0xf]
      %v201 = vld [vmem:[%s172 + $0x6c] sm:$0xf]
      %v202 = vld [vmem:[%s172 + $0x70] sm:$0xf]
      %v203 = vld [vmem:[%s172 + $0x78] sm:$0xf]
      %v204 = vld [vmem:[%s172 + $0x7c] sm:$0xf]
      %v205 = vld [vmem:[%s172 + $0x84] sm:$0xf]
      %v206 = vld [vmem:[%s172 + $0x88] sm:$0xf]
      %v207 = vld [vmem:[%s172 + $0x90] sm:$0xf]
      %v208 = vld [vmem:[%s172 + $0x94] sm:$0xf]
      %v209 = vld [vmem:[%s172 + $0x9c] sm:$0xf]
      %v210 = vld [vmem:[%s172 + $0xa0] sm:$0xf]
      %v211 = vld [vmem:[%s172 + $0xa8] sm:$0xf]
      %v212 = vld [vmem:[%s172 + $0xac] sm:$0xf]
      %v213 = vld [vmem:[%s172 + $0xb4] sm:$0xf]
      %v214 = vld [vmem:[%s172 + $0xb8] sm:$0xf]
      %v215 = vld [vmem:[%s1] sm:$0xf]
      %v216 = vld [vmem:[%s1 + $0x4] sm:$0xf]
      %v217 = vld [vmem:[%s1 + $0x8] sm:$0xf]
      %v218 = vld [vmem:[%s1 + $0xc] sm:$0xf]
      %v219 = vld [vmem:[%s1 + $0x10] sm:$0xf]
      %v220 = vld [vmem:[%s1 + $0x14] sm:$0xf]
      %v221 = vld [vmem:[%s1 + $0x18] sm:$0xf]
      %v222 = vld [vmem:[%s1 + $0x1c] sm:$0xf]
      %v223 = vld [vmem:[%s1 + $0x20] sm:$0xf]
      %v224 = vld [vmem:[%s1 + $0x24] sm:$0xf]
      %v225 = vld [vmem:[%s1 + $0x28] sm:$0xf]
      %v226 = vld [vmem:[%s1 + $0x2c] sm:$0xf]
      %v227 = vld [vmem:[%s1 + $0x30] sm:$0xf]
      %v228 = vld [vmem:[%s1 + $0x34] sm:$0xf]
      %v229 = vld [vmem:[%s1 + $0x38] sm:$0xf]
      %v230 = vld [vmem:[%s1 + $0x3c] sm:$0xf]
      %v231 = vld [vmem:[%s172 + $0x8] sm:$0x1]
      %v232 = vld [vmem:[%s172 + $0x14] sm:$0x1]
      %v233 = vld [vmem:[%s172 + $0x20] sm:$0x1]
      %v234 = vld [vmem:[%s172 + $0x2c] sm:$0x1]
      %v235 = vld [vmem:[%s172 + $0x38] sm:$0x1]
      %v236 = vld [vmem:[%s172 + $0x44] sm:$0x1]
      %v237 = vld [vmem:[%s172 + $0x50] sm:$0x1]
      %v238 = vld [vmem:[%s172 + $0x5c] sm:$0x1]
      %v239 = vld [vmem:[%s172 + $0x68] sm:$0x1]
      %v240 = vld [vmem:[%s172 + $0x74] sm:$0x1]
      %v241 = vld [vmem:[%s172 + $0x80] sm:$0x1]
      %v242 = vld [vmem:[%s172 + $0x8c] sm:$0x1]
      %v243 = vld [vmem:[%s172 + $0x98] sm:$0x1]
      %v244 = vld [vmem:[%s172 + $0xa4] sm:$0x1]
      %v245 = vld [vmem:[%s172 + $0xb0] sm:$0x1]
      %v246 = vld [vmem:[%s172 + $0xbc] sm:$0x1]
      %vm247 = vsmask.f32 3328
      %vm248 = vsmask.f32 7440
      %vm249 = vmor %vm247, %vm248
      %v251 = vshrl.u32 %v183, 16
      %v253 = vrot.slane %v251, 4
      %v254 = vshll.u32 %v183, 16
      %v256 = vrot.slane %v254, 5
      %v257 = vor.u32 %v253, %v256
      %v258 = vrot.slane %v257, 4
      %v260 = vshll.u32 %v184, 16
      %v262 = vrot.slane %v260, 5
      %v263 = vsel %vm249, %v258, %v262
      %v264 = vshrl.u32 %v184, 16
      %v266 = vrot.slane %v264, 4
      %v267 = vor.u32 %v266, %v262
      %v268 = vrot.slane %v267, 4
      %v270 = vshll.u32 %v231, 16
      %v272 = vrot.slane %v270, 5
      %v273 = vsel %vm249, %v268, %v272
      %v275 = vshrl.u32 %v185, 16
      %v277 = vrot.slane %v275, 4
      %v278 = vshll.u32 %v185, 16
      %v280 = vrot.slane %v278, 5
      %v281 = vor.u32 %v277, %v280
      %v282 = vrot.slane %v281, 4
      %v284 = vshll.u32 %v186, 16
      %v286 = vrot.slane %v284, 5
      %v287 = vsel %vm249, %v282, %v286
      %v288 = vshrl.u32 %v186, 16
      %v290 = vrot.slane %v288, 4
      %v291 = vor.u32 %v290, %v286
      %v292 = vrot.slane %v291, 4
      %v294 = vshll.u32 %v232, 16
      %v296 = vrot.slane %v294, 5
      %v297 = vsel %vm249, %v292, %v296
      %v299 = vshrl.u32 %v187, 16
      %v301 = vrot.slane %v299, 4
      %v302 = vshll.u32 %v187, 16
      %v304 = vrot.slane %v302, 5
      %v305 = vor.u32 %v301, %v304
      %v306 = vrot.slane %v305, 4
      %v308 = vshll.u32 %v188, 16
      %v310 = vrot.slane %v308, 5
      %v311 = vsel %vm249, %v306, %v310
      %v312 = vshrl.u32 %v188, 16
      %v314 = vrot.slane %v312, 4
      %v315 = vor.u32 %v314, %v310
      %v316 = vrot.slane %v315, 4
      %v318 = vshll.u32 %v233, 16
      %v320 = vrot.slane %v318, 5
      %v321 = vsel %vm249, %v316, %v320
      %v323 = vshrl.u32 %v189, 16
      %v325 = vrot.slane %v323, 4
      %v326 = vshll.u32 %v189, 16
      %v328 = vrot.slane %v326, 5
      %v329 = vor.u32 %v325, %v328
      %v330 = vrot.slane %v329, 4
      %v332 = vshll.u32 %v190, 16
      %v334 = vrot.slane %v332, 5
      %v335 = vsel %vm249, %v330, %v334
      %v336 = vshrl.u32 %v190, 16
      %v338 = vrot.slane %v336, 4
      %v339 = vor.u32 %v338, %v334
      %v340 = vrot.slane %v339, 4
      %v342 = vshll.u32 %v234, 16
      %v344 = vrot.slane %v342, 5
      %v345 = vsel %vm249, %v340, %v344
      %v347 = vshrl.u32 %v191, 16
      %v349 = vrot.slane %v347, 4
      %v350 = vshll.u32 %v191, 16
      %v352 = vrot.slane %v350, 5
      %v353 = vor.u32 %v349, %v352
      %v354 = vrot.slane %v353, 4
      %v356 = vshll.u32 %v192, 16
      %v358 = vrot.slane %v356, 5
      %v359 = vsel %vm249, %v354, %v358
      %v360 = vshrl.u32 %v192, 16
      %v362 = vrot.slane %v360, 4
      %v363 = vor.u32 %v362, %v358
      %v364 = vrot.slane %v363, 4
      %v366 = vshll.u32 %v235, 16
      %v368 = vrot.slane %v366, 5
      %v369 = vsel %vm249, %v364, %v368
      %v371 = vshrl.u32 %v193, 16
      %v373 = vrot.slane %v371, 4
      %v374 = vshll.u32 %v193, 16
      %v376 = vrot.slane %v374, 5
      %v377 = vor.u32 %v373, %v376
      %v378 = vrot.slane %v377, 4
      %v380 = vshll.u32 %v194, 16
      %v382 = vrot.slane %v380, 5
      %v383 = vsel %vm249, %v378, %v382
      %v384 = vshrl.u32 %v194, 16
      %v386 = vrot.slane %v384, 4
      %v387 = vor.u32 %v386, %v382
      %v388 = vrot.slane %v387, 4
      %v390 = vshll.u32 %v236, 16
      %v392 = vrot.slane %v390, 5
      %v393 = vsel %vm249, %v388, %v392
      %v395 = vshrl.u32 %v195, 16
      %v397 = vrot.slane %v395, 4
      %v398 = vshll.u32 %v195, 16
      %v400 = vrot.slane %v398, 5
      %v401 = vor.u32 %v397, %v400
      %v402 = vrot.slane %v401, 4
      %v404 = vshll.u32 %v196, 16
      %v406 = vrot.slane %v404, 5
      %v407 = vsel %vm249, %v402, %v406
      %v408 = vshrl.u32 %v196, 16
      %v410 = vrot.slane %v408, 4
      %v411 = vor.u32 %v410, %v406
      %v412 = vrot.slane %v411, 4
      %v414 = vshll.u32 %v237, 16
      %v416 = vrot.slane %v414, 5
      %v417 = vsel %vm249, %v412, %v416
      %v419 = vshrl.u32 %v197, 16
      %v421 = vrot.slane %v419, 4
      %v422 = vshll.u32 %v197, 16
      %v424 = vrot.slane %v422, 5
      %v425 = vor.u32 %v421, %v424
      %v426 = vrot.slane %v425, 4
      %v428 = vshll.u32 %v198, 16
      %v430 = vrot.slane %v428, 5
      %v431 = vsel %vm249, %v426, %v430
      %v432 = vshrl.u32 %v198, 16
      %v434 = vrot.slane %v432, 4
      %v435 = vor.u32 %v434, %v430
      %v436 = vrot.slane %v435, 4
      %v438 = vshll.u32 %v238, 16
      %v440 = vrot.slane %v438, 5
      %v441 = vsel %vm249, %v436, %v440
      %v443 = vshrl.u32 %v199, 16
      %v445 = vrot.slane %v443, 4
      %v446 = vshll.u32 %v199, 16
      %v448 = vrot.slane %v446, 5
      %v449 = vor.u32 %v445, %v448
      %v450 = vrot.slane %v449, 4
      %v452 = vshll.u32 %v200, 16
      %v454 = vrot.slane %v452, 5
      %v455 = vsel %vm249, %v450, %v454
      %v456 = vshrl.u32 %v200, 16
      %v458 = vrot.slane %v456, 4
      %v459 = vor.u32 %v458, %v454
      %v460 = vrot.slane %v459, 4
      %v462 = vshll.u32 %v239, 16
      %v464 = vrot.slane %v462, 5
      %v465 = vsel %vm249, %v460, %v464
      %v467 = vshrl.u32 %v201, 16
      %v469 = vrot.slane %v467, 4
      %v470 = vshll.u32 %v201, 16
      %v472 = vrot.slane %v470, 5
      %v473 = vor.u32 %v469, %v472
      %v474 = vrot.slane %v473, 4
      %v476 = vshll.u32 %v202, 16
      %v478 = vrot.slane %v476, 5
      %v479 = vsel %vm249, %v474, %v478
      %v480 = vshrl.u32 %v202, 16
      %v482 = vrot.slane %v480, 4
      %v483 = vor.u32 %v482, %v478
      %v484 = vrot.slane %v483, 4
      %v486 = vshll.u32 %v240, 16
      %v488 = vrot.slane %v486, 5
      %v489 = vsel %vm249, %v484, %v488
      %v491 = vshrl.u32 %v203, 16
      %v493 = vrot.slane %v491, 4
      %v494 = vshll.u32 %v203, 16
      %v496 = vrot.slane %v494, 5
      %v497 = vor.u32 %v493, %v496
      %v498 = vrot.slane %v497, 4
      %v500 = vshll.u32 %v204, 16
      %v502 = vrot.slane %v500, 5
      %v503 = vsel %vm249, %v498, %v502
      %v504 = vshrl.u32 %v204, 16
      %v506 = vrot.slane %v504, 4
      %v507 = vor.u32 %v506, %v502
      %v508 = vrot.slane %v507, 4
      %v510 = vshll.u32 %v241, 16
      %v512 = vrot.slane %v510, 5
      %v513 = vsel %vm249, %v508, %v512
      %v515 = vshrl.u32 %v205, 16
      %v517 = vrot.slane %v515, 4
      %v518 = vshll.u32 %v205, 16
      %v520 = vrot.slane %v518, 5
      %v521 = vor.u32 %v517, %v520
      %v522 = vrot.slane %v521, 4
      %v524 = vshll.u32 %v206, 16
      %v526 = vrot.slane %v524, 5
      %v527 = vsel %vm249, %v522, %v526
      %v528 = vshrl.u32 %v206, 16
      %v530 = vrot.slane %v528, 4
      %v531 = vor.u32 %v530, %v526
      %v532 = vrot.slane %v531, 4
      %v534 = vshll.u32 %v242, 16
      %v536 = vrot.slane %v534, 5
      %v537 = vsel %vm249, %v532, %v536
      %v539 = vshrl.u32 %v207, 16
      %v541 = vrot.slane %v539, 4
      %v542 = vshll.u32 %v207, 16
      %v544 = vrot.slane %v542, 5
      %v545 = vor.u32 %v541, %v544
      %v546 = vrot.slane %v545, 4
      %v548 = vshll.u32 %v208, 16
      %v550 = vrot.slane %v548, 5
      %v551 = vsel %vm249, %v546, %v550
      %v552 = vshrl.u32 %v208, 16
      %v554 = vrot.slane %v552, 4
      %v555 = vor.u32 %v554, %v550
      %v556 = vrot.slane %v555, 4
      %v558 = vshll.u32 %v243, 16
      %v560 = vrot.slane %v558, 5
      %v561 = vsel %vm249, %v556, %v560
      %v563 = vshrl.u32 %v209, 16
      %v565 = vrot.slane %v563, 4
      %v566 = vshll.u32 %v209, 16
      %v568 = vrot.slane %v566, 5
      %v569 = vor.u32 %v565, %v568
      %v570 = vrot.slane %v569, 4
      %v572 = vshll.u32 %v210, 16
      %v574 = vrot.slane %v572, 5
      %v575 = vsel %vm249, %v570, %v574
      %v576 = vshrl.u32 %v210, 16
      %v578 = vrot.slane %v576, 4
      %v579 = vor.u32 %v578, %v574
      %v580 = vrot.slane %v579, 4
      %v582 = vshll.u32 %v244, 16
      %v584 = vrot.slane %v582, 5
      %v585 = vsel %vm249, %v580, %v584
      %v587 = vshrl.u32 %v211, 16
      %v589 = vrot.slane %v587, 4
      %v590 = vshll.u32 %v211, 16
      %v592 = vrot.slane %v590, 5
      %v593 = vor.u32 %v589, %v592
      %v594 = vrot.slane %v593, 4
      %v596 = vshll.u32 %v212, 16
      %v598 = vrot.slane %v596, 5
      %v599 = vsel %vm249, %v594, %v598
      %v600 = vshrl.u32 %v212, 16
      %v602 = vrot.slane %v600, 4
      %v603 = vor.u32 %v602, %v598
      %v604 = vrot.slane %v603, 4
      %v606 = vshll.u32 %v245, 16
      %v608 = vrot.slane %v606, 5
      %v609 = vsel %vm249, %v604, %v608
      %v611 = vshrl.u32 %v213, 16
      %v613 = vrot.slane %v611, 4
      %v614 = vshll.u32 %v213, 16
      %v616 = vrot.slane %v614, 5
      %v617 = vor.u32 %v613, %v616
      %v618 = vrot.slane %v617, 4
      %v620 = vshll.u32 %v214, 16
      %v622 = vrot.slane %v620, 5
      %v623 = vsel %vm249, %v618, %v622
      %v624 = vshrl.u32 %v214, 16
      %v626 = vrot.slane %v624, 4
      %v627 = vor.u32 %v626, %v622
      %v628 = vrot.slane %v627, 4
      %v630 = vshll.u32 %v246, 16
      %v632 = vrot.slane %v630, 5
      %v633 = vsel %vm249, %v628, %v632
      %v634 = vld [vmem:[%s1 + $0x40] sm:$0xf]
      %v635 = vld [vmem:[%s1 + $0x44] sm:$0xf]
      %v636 = vld [vmem:[%s1 + $0x48] sm:$0xf]
      %v637 = vld [vmem:[%s1 + $0x4c] sm:$0xf]
      %v638 = vld [vmem:[%s1 + $0x50] sm:$0xf]
      %v639 = vld [vmem:[%s1 + $0x54] sm:$0xf]
      %v640 = vld [vmem:[%s1 + $0x58] sm:$0xf]
      %v641 = vld [vmem:[%s1 + $0x5c] sm:$0xf]
      %v642 = vld [vmem:[%s1 + $0x60] sm:$0xf]
      %v643 = vld [vmem:[%s1 + $0x64] sm:$0xf]
      %v644 = vld [vmem:[%s1 + $0x68] sm:$0xf]
      %v645 = vld [vmem:[%s1 + $0x6c] sm:$0xf]
      %v646 = vld [vmem:[%s1 + $0x70] sm:$0xf]
      %v647 = vld [vmem:[%s1 + $0x74] sm:$0xf]
      %v648 = vld [vmem:[%s1 + $0x78] sm:$0xf]
      %v649 = vld [vmem:[%s1 + $0x7c] sm:$0xf]
      %v650 = vunpack.c.l.b16 %v263
      %v651 = vunpack.c.l.b16 %v273
      %v652 = vunpack.c.l.b16 %v287
      %v653 = vunpack.c.l.b16 %v297
      %v654 = vunpack.c.l.b16 %v311
      %v655 = vunpack.c.l.b16 %v321
      %v656 = vunpack.c.l.b16 %v335
      %v657 = vunpack.c.l.b16 %v345
      %v658 = vunpack.c.l.b16 %v359
      %v659 = vunpack.c.l.b16 %v369
      %v660 = vunpack.c.l.b16 %v383
      %v661 = vunpack.c.l.b16 %v393
      %v662 = vunpack.c.l.b16 %v407
      %v663 = vunpack.c.l.b16 %v417
      %v664 = vunpack.c.l.b16 %v431
      %v665 = vunpack.c.l.b16 %v441
      %v666 = vunpack.c.l.b16 %v455
      %v667 = vunpack.c.l.b16 %v465
      %v668 = vunpack.c.l.b16 %v479
      %v669 = vunpack.c.l.b16 %v489
      %v670 = vunpack.c.l.b16 %v503
      %v671 = vunpack.c.l.b16 %v513
      %v672 = vunpack.c.l.b16 %v527
      %v673 = vunpack.c.l.b16 %v537
      %v674 = vunpack.c.l.b16 %v551
      %v675 = vunpack.c.l.b16 %v561
      %v676 = vunpack.c.l.b16 %v575
      %v677 = vunpack.c.l.b16 %v585
      %v678 = vunpack.c.l.b16 %v599
      %v679 = vunpack.c.l.b16 %v609
      %v680 = vunpack.c.l.b16 %v623
      %v681 = vunpack.c.l.b16 %v633
      %v682 = vpack.c.b16 %v651, %v650
      %v683 = vpack.c.b16 %v653, %v652
      %v684 = vpack.c.b16 %v655, %v654
      %v685 = vpack.c.b16 %v657, %v656
      %v686 = vpack.c.b16 %v659, %v658
      %v687 = vpack.c.b16 %v661, %v660
      %v688 = vpack.c.b16 %v663, %v662
      %v689 = vpack.c.b16 %v665, %v664
      %v690 = vpack.c.b16 %v667, %v666
      %v691 = vpack.c.b16 %v669, %v668
      %v692 = vpack.c.b16 %v671, %v670
      %v693 = vpack.c.b16 %v673, %v672
      %v694 = vpack.c.b16 %v675, %v674
      %v695 = vpack.c.b16 %v677, %v676
      %v696 = vpack.c.b16 %v679, %v678
      %v697 = vpack.c.b16 %v681, %v680
      %v730 = vunpack.c.l.b16 %v634
      %v731 = vunpack.c.l.b16 %v635
      %v732 = vunpack.c.l.b16 %v636
      %v733 = vunpack.c.l.b16 %v637
      %v734 = vunpack.c.l.b16 %v638
      %v735 = vunpack.c.l.b16 %v639
      %v736 = vunpack.c.l.b16 %v640
      %v737 = vunpack.c.l.b16 %v641
      %v738 = vunpack.c.l.b16 %v642
      %v739 = vunpack.c.l.b16 %v643
      %v740 = vunpack.c.l.b16 %v644
      %v741 = vunpack.c.l.b16 %v645
      %v742 = vunpack.c.l.b16 %v646
      %v743 = vunpack.c.l.b16 %v647
      %v744 = vunpack.c.l.b16 %v648
      %v745 = vunpack.c.l.b16 %v649
      %v746 = vpack.c.b16 %v731, %v730
      %v747 = vpack.c.b16 %v733, %v732
      %v748 = vpack.c.b16 %v735, %v734
      %v749 = vpack.c.b16 %v737, %v736
      %v750 = vpack.c.b16 %v739, %v738
      %v751 = vpack.c.b16 %v741, %v740
      %v752 = vpack.c.b16 %v743, %v742
      %v753 = vpack.c.b16 %v745, %v744
      %762 = vmatprep.subr.bf16.mxu0 0
      %763 = vmatpush1.bf16.msra.mxu0 %v753
      %764 = vmatprep.subr.bf16.mxu0 0
      %765 = vmatpush1.bf16.msra.mxu0 %v752
      %766 = vmatprep.subr.bf16.mxu0 0
      %767 = vmatpush1.bf16.msra.mxu0 %v751
      %768 = vmatprep.subr.bf16.mxu0 0
      %769 = vmatpush1.bf16.msra.mxu0 %v750
      %770 = vmatprep.subr.bf16.mxu0 0
      %771 = vmatpush1.bf16.msra.mxu0 %v749
      %772 = vmatprep.subr.bf16.mxu0 0
      %773 = vmatpush1.bf16.msra.mxu0 %v748
      %774 = vmatprep.subr.bf16.mxu0 0
      %775 = vmatpush1.bf16.msra.mxu0 %v747
      %776 = vmatprep.subr.bf16.mxu0 0
      %777 = vmatpush1.bf16.msra.mxu0 %v746
      %778 = vmatprep.subr.bf16.mxu0 0
      %779 = vmatpush2.bf16.msra.mxu0 0
      %780 = vmatprep.subr.bf16.mxu0 0
      %781 = vmatpush2.bf16.msra.mxu0 0
      %782 = vmatprep.subr.bf16.mxu0 0
      %783 = vmatpush2.bf16.msra.mxu0 0
      %784 = vmatprep.subr.bf16.mxu0 0
      %785 = vmatpush2.bf16.msra.mxu0 0
      %786 = vmatprep.subr.bf16.mxu0 0
      %787 = vmatpush2.bf16.msra.mxu0 0
      %788 = vmatprep.subr.bf16.mxu0 0
      %789 = vmatpush2.bf16.msra.mxu0 0
      %790 = vmatprep.subr.bf16.mxu0 0
      %791 = vmatpush2.bf16.msra.mxu0 0
      %792 = vmatprep.subr.bf16.mxu0 0
      %793 = vmatpush2.bf16.msra.mxu0 0
      %794 = vmatprep.mubr.bf16.mxu0 0
      %795 = vmatmul.mubr.bf16.gmra.mxu0 %v682
      %v796 = vpop.f32.mrf.mxu0
      %v797 = vadd.f32 0.0, %v796
      %v798 = vpop.f32.mrf.mxu0
      %v799 = vpop.f32.mrf.mxu0
      %v800 = vadd.f32 0.0, %v799
      %v801 = vpop.f32.mrf.mxu0
      %802 = vmatprep.mubr.bf16.mxu0 0
      %803 = vmatmul.mubr.bf16.gmra.mxu0 %v683
      %v804 = vpop.f32.mrf.mxu0
      %v805 = vadd.f32 0.0, %v804
      %v806 = vpop.f32.mrf.mxu0
      %v807 = vpop.f32.mrf.mxu0
      %v808 = vadd.f32 0.0, %v807
      %v809 = vpop.f32.mrf.mxu0
      %810 = vmatprep.mubr.bf16.mxu0 0
      %811 = vmatmul.mubr.bf16.gmra.mxu0 %v684
      %v812 = vpop.f32.mrf.mxu0
      %v813 = vadd.f32 0.0, %v812
      %v814 = vpop.f32.mrf.mxu0
      %v815 = vpop.f32.mrf.mxu0
      %v816 = vadd.f32 0.0, %v815
      %v817 = vpop.f32.mrf.mxu0
      %818 = vmatprep.mubr.bf16.mxu0 0
      %819 = vmatmul.mubr.bf16.gmra.mxu0 %v685
      %v820 = vpop.f32.mrf.mxu0
      %v821 = vadd.f32 0.0, %v820
      %v822 = vpop.f32.mrf.mxu0
      %v823 = vpop.f32.mrf.mxu0
      %v824 = vadd.f32 0.0, %v823
      %v825 = vpop.f32.mrf.mxu0
      %826 = vmatprep.mubr.bf16.mxu0 0
      %827 = vmatmul.mubr.bf16.gmra.mxu0 %v686
      %v828 = vpop.f32.mrf.mxu0
      %v829 = vadd.f32 0.0, %v828
      %v830 = vpop.f32.mrf.mxu0
      %v831 = vpop.f32.mrf.mxu0
      %v832 = vadd.f32 0.0, %v831
      %v833 = vpop.f32.mrf.mxu0
      %834 = vmatprep.mubr.bf16.mxu0 0
      %835 = vmatmul.mubr.bf16.gmra.mxu0 %v687
      %v836 = vpop.f32.mrf.mxu0
      %v837 = vadd.f32 0.0, %v836
      %v838 = vpop.f32.mrf.mxu0
      %v839 = vpop.f32.mrf.mxu0
      %v840 = vadd.f32 0.0, %v839
      %v841 = vpop.f32.mrf.mxu0
      %842 = vmatprep.mubr.bf16.mxu0 0
      %843 = vmatmul.mubr.bf16.gmra.mxu0 %v688
      %v844 = vpop.f32.mrf.mxu0
      %v845 = vadd.f32 0.0, %v844
      %v846 = vpop.f32.mrf.mxu0
      %v847 = vpop.f32.mrf.mxu0
      %v848 = vadd.f32 0.0, %v847
      %v849 = vpop.f32.mrf.mxu0
      %850 = vmatprep.mubr.bf16.mxu0 0
      %851 = vmatmul.mubr.bf16.gmra.mxu0 %v689
      %v852 = vpop.f32.mrf.mxu0
      %v853 = vadd.f32 0.0, %v852
      %v854 = vpop.f32.mrf.mxu0
      %v855 = vpop.f32.mrf.mxu0
      %v856 = vadd.f32 0.0, %v855
      %v857 = vpop.f32.mrf.mxu0
      %858 = vmatprep.mubr.bf16.mxu0 0
      %859 = vmatmul.mubr.bf16.gmra.mxu0 %v690
      %v860 = vpop.f32.mrf.mxu0
      %v861 = vadd.f32 0.0, %v860
      %v862 = vpop.f32.mrf.mxu0
      %v863 = vpop.f32.mrf.mxu0
      %v864 = vadd.f32 0.0, %v863
      %v865 = vpop.f32.mrf.mxu0
      %866 = vmatprep.mubr.bf16.mxu0 0
      %867 = vmatmul.mubr.bf16.gmra.mxu0 %v691
      %v868 = vpop.f32.mrf.mxu0
      %v869 = vadd.f32 0.0, %v868
      %v870 = vpop.f32.mrf.mxu0
      %v871 = vpop.f32.mrf.mxu0
      %v872 = vadd.f32 0.0, %v871
      %v873 = vpop.f32.mrf.mxu0
      %874 = vmatprep.mubr.bf16.mxu0 0
      %875 = vmatmul.mubr.bf16.gmra.mxu0 %v692
      %v876 = vpop.f32.mrf.mxu0
      %v877 = vadd.f32 0.0, %v876
      %v878 = vpop.f32.mrf.mxu0
      %v879 = vpop.f32.mrf.mxu0
      %v880 = vadd.f32 0.0, %v879
      %v881 = vpop.f32.mrf.mxu0
      %882 = vmatprep.mubr.bf16.mxu0 0
      %883 = vmatmul.mubr.bf16.gmra.mxu0 %v693
      %v884 = vpop.f32.mrf.mxu0
      %v885 = vadd.f32 0.0, %v884
      %v886 = vpop.f32.mrf.mxu0
      %v887 = vpop.f32.mrf.mxu0
      %v888 = vadd.f32 0.0, %v887
      %v889 = vpop.f32.mrf.mxu0
      %890 = vmatprep.mubr.bf16.mxu0 0
      %891 = vmatmul.mubr.bf16.gmra.mxu0 %v694
      %v892 = vpop.f32.mrf.mxu0
      %v893 = vadd.f32 0.0, %v892
      %v894 = vpop.f32.mrf.mxu0
      %v895 = vpop.f32.mrf.mxu0
      %v896 = vadd.f32 0.0, %v895
      %v897 = vpop.f32.mrf.mxu0
      %898 = vmatprep.mubr.bf16.mxu0 0
      %899 = vmatmul.mubr.bf16.gmra.mxu0 %v695
      %v900 = vpop.f32.mrf.mxu0
      %v901 = vadd.f32 0.0, %v900
      %v902 = vpop.f32.mrf.mxu0
      %v903 = vpop.f32.mrf.mxu0
      %v904 = vadd.f32 0.0, %v903
      %v905 = vpop.f32.mrf.mxu0
      %906 = vmatprep.mubr.bf16.mxu0 0
      %907 = vmatmul.mubr.bf16.gmra.mxu0 %v696
      %v908 = vpop.f32.mrf.mxu0
      %v909 = vadd.f32 0.0, %v908
      %v910 = vpop.f32.mrf.mxu0
      %v911 = vpop.f32.mrf.mxu0
      %v912 = vadd.f32 0.0, %v911
      %v913 = vpop.f32.mrf.mxu0
      %914 = vmatprep.mubr.bf16.mxu0 0
      %915 = vmatmul.mubr.bf16.gmra.mxu0 %v697
      %v916 = vpop.f32.mrf.mxu0
      %v917 = vadd.f32 0.0, %v916
      %v918 = vpop.f32.mrf.mxu0
      %v919 = vpop.f32.mrf.mxu0
      %v920 = vadd.f32 0.0, %v919
      %v921 = vpop.f32.mrf.mxu0
      %922 = vdwg.mxu0
      %v955 = vunpack.c.l.b16 %v183
      %v956 = vunpack.c.l.b16 %v184
      %v957 = vunpack.c.l.b16 %v185
      %v958 = vunpack.c.l.b16 %v186
      %v959 = vunpack.c.l.b16 %v187
      %v960 = vunpack.c.l.b16 %v188
      %v961 = vunpack.c.l.b16 %v189
      %v962 = vunpack.c.l.b16 %v190
      %v963 = vunpack.c.l.b16 %v191
      %v964 = vunpack.c.l.b16 %v192
      %v965 = vunpack.c.l.b16 %v193
      %v966 = vunpack.c.l.b16 %v194
      %v967 = vunpack.c.l.b16 %v195
      %v968 = vunpack.c.l.b16 %v196
      %v969 = vunpack.c.l.b16 %v197
      %v970 = vunpack.c.l.b16 %v198
      %v971 = vunpack.c.l.b16 %v199
      %v972 = vunpack.c.l.b16 %v200
      %v973 = vunpack.c.l.b16 %v201
      %v974 = vunpack.c.l.b16 %v202
      %v975 = vunpack.c.l.b16 %v203
      %v976 = vunpack.c.l.b16 %v204
      %v977 = vunpack.c.l.b16 %v205
      %v978 = vunpack.c.l.b16 %v206
      %v979 = vunpack.c.l.b16 %v207
      %v980 = vunpack.c.l.b16 %v208
      %v981 = vunpack.c.l.b16 %v209
      %v982 = vunpack.c.l.b16 %v210
      %v983 = vunpack.c.l.b16 %v211
      %v984 = vunpack.c.l.b16 %v212
      %v985 = vunpack.c.l.b16 %v213
      %v986 = vunpack.c.l.b16 %v214
      %v987 = vpack.c.b16 %v956, %v955
      %v988 = vpack.c.b16 %v958, %v957
      %v989 = vpack.c.b16 %v960, %v959
      %v990 = vpack.c.b16 %v962, %v961
      %v991 = vpack.c.b16 %v964, %v963
      %v992 = vpack.c.b16 %v966, %v965
      %v993 = vpack.c.b16 %v968, %v967
      %v994 = vpack.c.b16 %v970, %v969
      %v995 = vpack.c.b16 %v972, %v971
      %v996 = vpack.c.b16 %v974, %v973
      %v997 = vpack.c.b16 %v976, %v975
      %v998 = vpack.c.b16 %v978, %v977
      %v999 = vpack.c.b16 %v980, %v979
      %v1000 = vpack.c.b16 %v982, %v981
      %v1001 = vpack.c.b16 %v984, %v983
      %v1002 = vpack.c.b16 %v986, %v985
      %v1035 = vunpack.c.l.b16 %v215
      %v1036 = vunpack.c.l.b16 %v216
      %v1037 = vunpack.c.l.b16 %v217
      %v1038 = vunpack.c.l.b16 %v218
      %v1039 = vunpack.c.l.b16 %v219
      %v1040 = vunpack.c.l.b16 %v220
      %v1041 = vunpack.c.l.b16 %v221
      %v1042 = vunpack.c.l.b16 %v222
      %v1043 = vunpack.c.l.b16 %v223
      %v1044 = vunpack.c.l.b16 %v224
      %v1045 = vunpack.c.l.b16 %v225
      %v1046 = vunpack.c.l.b16 %v226
      %v1047 = vunpack.c.l.b16 %v227
      %v1048 = vunpack.c.l.b16 %v228
      %v1049 = vunpack.c.l.b16 %v229
      %v1050 = vunpack.c.l.b16 %v230
      %v1051 = vpack.c.b16 %v1036, %v1035
      %v1052 = vpack.c.b16 %v1038, %v1037
      %v1053 = vpack.c.b16 %v1040, %v1039
      %v1054 = vpack.c.b16 %v1042, %v1041
      %v1055 = vpack.c.b16 %v1044, %v1043
      %v1056 = vpack.c.b16 %v1046, %v1045
      %v1057 = vpack.c.b16 %v1048, %v1047
      %v1058 = vpack.c.b16 %v1050, %v1049
      %1067 = vmatprep.subr.bf16.mxu0 0
      %1068 = vmatpush1.bf16.msra.mxu0 %v1058
      %1069 = vmatprep.subr.bf16.mxu0 0
      %1070 = vmatpush1.bf16.msra.mxu0 %v1057
      %1071 = vmatprep.subr.bf16.mxu0 0
      %1072 = vmatpush1.bf16.msra.mxu0 %v1056
      %1073 = vmatprep.subr.bf16.mxu0 0
      %1074 = vmatpush1.bf16.msra.mxu0 %v1055
      %1075 = vmatprep.subr.bf16.mxu0 0
      %1076 = vmatpush1.bf16.msra.mxu0 %v1054
      %1077 = vmatprep.subr.bf16.mxu0 0
      %1078 = vmatpush1.bf16.msra.mxu0 %v1053
      %1079 = vmatprep.subr.bf16.mxu0 0
      %1080 = vmatpush1.bf16.msra.mxu0 %v1052
      %1081 = vmatprep.subr.bf16.mxu0 0
      %1082 = vmatpush1.bf16.msra.mxu0 %v1051
      %1083 = vmatprep.subr.bf16.mxu0 0
      %1084 = vmatpush2.bf16.msra.mxu0 0
      %1085 = vmatprep.subr.bf16.mxu0 0
      %1086 = vmatpush2.bf16.msra.mxu0 0
      %1087 = vmatprep.subr.bf16.mxu0 0
      %1088 = vmatpush2.bf16.msra.mxu0 0
      %1089 = vmatprep.subr.bf16.mxu0 0
      %1090 = vmatpush2.bf16.msra.mxu0 0
      %1091 = vmatprep.subr.bf16.mxu0 0
      %1092 = vmatpush2.bf16.msra.mxu0 0
      %1093 = vmatprep.subr.bf16.mxu0 0
      %1094 = vmatpush2.bf16.msra.mxu0 0
      %1095 = vmatprep.subr.bf16.mxu0 0
      %1096 = vmatpush2.bf16.msra.mxu0 0
      %1097 = vmatprep.subr.bf16.mxu0 0
      %1098 = vmatpush2.bf16.msra.mxu0 0
      %1099 = vmatprep.mubr.bf16.mxu0 0
      %1100 = vmatmul.mubr.bf16.gmra.mxu0 %v987
      %v1101 = vpop.f32.mrf.mxu0
      %v1102 = vadd.f32 %v797, %v1101
      %v1103 = vpop.f32.mrf.mxu0
      %v1104 = vpop.f32.mrf.mxu0
      %v1105 = vadd.f32 %v800, %v1104
      %v1106 = vpop.f32.mrf.mxu0
      %1107 = vmatprep.mubr.bf16.mxu0 0
      %1108 = vmatmul.mubr.bf16.gmra.mxu0 %v988
      %v1109 = vpop.f32.mrf.mxu0
      %v1110 = vadd.f32 %v805, %v1109
      %v1111 = vpop.f32.mrf.mxu0
      %v1112 = vpop.f32.mrf.mxu0
      %v1113 = vadd.f32 %v808, %v1112
      %v1114 = vpop.f32.mrf.mxu0
      %1115 = vmatprep.mubr.bf16.mxu0 0
      %1116 = vmatmul.mubr.bf16.gmra.mxu0 %v989
      %v1117 = vpop.f32.mrf.mxu0
      %v1118 = vadd.f32 %v813, %v1117
      %v1119 = vpop.f32.mrf.mxu0
      %v1120 = vpop.f32.mrf.mxu0
      %v1121 = vadd.f32 %v816, %v1120
      %v1122 = vpop.f32.mrf.mxu0
      %1123 = vmatprep.mubr.bf16.mxu0 0
      %1124 = vmatmul.mubr.bf16.gmra.mxu0 %v990
      %v1125 = vpop.f32.mrf.mxu0
      %v1126 = vadd.f32 %v821, %v1125
      %v1127 = vpop.f32.mrf.mxu0
      %v1128 = vpop.f32.mrf.mxu0
      %v1129 = vadd.f32 %v824, %v1128
      %v1130 = vpop.f32.mrf.mxu0
      %1131 = vmatprep.mubr.bf16.mxu0 0
      %1132 = vmatmul.mubr.bf16.gmra.mxu0 %v991
      %v1133 = vpop.f32.mrf.mxu0
      %v1134 = vadd.f32 %v829, %v1133
      %v1135 = vpop.f32.mrf.mxu0
      %v1136 = vpop.f32.mrf.mxu0
      %v1137 = vadd.f32 %v832, %v1136
      %v1138 = vpop.f32.mrf.mxu0
      %1139 = vmatprep.mubr.bf16.mxu0 0
      %1140 = vmatmul.mubr.bf16.gmra.mxu0 %v992
      %v1141 = vpop.f32.mrf.mxu0
      %v1142 = vadd.f32 %v837, %v1141
      %v1143 = vpop.f32.mrf.mxu0
      %v1144 = vpop.f32.mrf.mxu0
      %v1145 = vadd.f32 %v840, %v1144
      %v1146 = vpop.f32.mrf.mxu0
      %1147 = vmatprep.mubr.bf16.mxu0 0
      %1148 = vmatmul.mubr.bf16.gmra.mxu0 %v993
      %v1149 = vpop.f32.mrf.mxu0
      %v1150 = vadd.f32 %v845, %v1149
      %v1151 = vpop.f32.mrf.mxu0
      %v1152 = vpop.f32.mrf.mxu0
      %v1153 = vadd.f32 %v848, %v1152
      %v1154 = vpop.f32.mrf.mxu0
      %1155 = vmatprep.mubr.bf16.mxu0 0
      %1156 = vmatmul.mubr.bf16.gmra.mxu0 %v994
      %v1157 = vpop.f32.mrf.mxu0
      %v1158 = vadd.f32 %v853, %v1157
      %v1159 = vpop.f32.mrf.mxu0
      %v1160 = vpop.f32.mrf.mxu0
      %v1161 = vadd.f32 %v856, %v1160
      %v1162 = vpop.f32.mrf.mxu0
      %1163 = vmatprep.mubr.bf16.mxu0 0
      %1164 = vmatmul.mubr.bf16.gmra.mxu0 %v995
      %v1165 = vpop.f32.mrf.mxu0
      %v1166 = vadd.f32 %v861, %v1165
      %v1167 = vpop.f32.mrf.mxu0
      %v1168 = vpop.f32.mrf.mxu0
      %v1169 = vadd.f32 %v864, %v1168
      %v1170 = vpop.f32.mrf.mxu0
      %1171 = vmatprep.mubr.bf16.mxu0 0
      %1172 = vmatmul.mubr.bf16.gmra.mxu0 %v996
      %v1173 = vpop.f32.mrf.mxu0
      %v1174 = vadd.f32 %v869, %v1173
      %v1175 = vpop.f32.mrf.mxu0
      %v1176 = vpop.f32.mrf.mxu0
      %v1177 = vadd.f32 %v872, %v1176
      %v1178 = vpop.f32.mrf.mxu0
      %1179 = vmatprep.mubr.bf16.mxu0 0
      %1180 = vmatmul.mubr.bf16.gmra.mxu0 %v997
      %v1181 = vpop.f32.mrf.mxu0
      %v1182 = vadd.f32 %v877, %v1181
      %v1183 = vpop.f32.mrf.mxu0
      %v1184 = vpop.f32.mrf.mxu0
      %v1185 = vadd.f32 %v880, %v1184
      %v1186 = vpop.f32.mrf.mxu0
      %1187 = vmatprep.mubr.bf16.mxu0 0
      %1188 = vmatmul.mubr.bf16.gmra.mxu0 %v998
      %v1189 = vpop.f32.mrf.mxu0
      %v1190 = vadd.f32 %v885, %v1189
      %v1191 = vpop.f32.mrf.mxu0
      %v1192 = vpop.f32.mrf.mxu0
      %v1193 = vadd.f32 %v888, %v1192
      %v1194 = vpop.f32.mrf.mxu0
      %1195 = vmatprep.mubr.bf16.mxu0 0
      %1196 = vmatmul.mubr.bf16.gmra.mxu0 %v999
      %v1197 = vpop.f32.mrf.mxu0
      %v1198 = vadd.f32 %v893, %v1197
      %v1199 = vpop.f32.mrf.mxu0
      %v1200 = vpop.f32.mrf.mxu0
      %v1201 = vadd.f32 %v896, %v1200
      %v1202 = vpop.f32.mrf.mxu0
      %1203 = vmatprep.mubr.bf16.mxu0 0
      %1204 = vmatmul.mubr.bf16.gmra.mxu0 %v1000
      %v1205 = vpop.f32.mrf.mxu0
      %v1206 = vadd.f32 %v901, %v1205
      %v1207 = vpop.f32.mrf.mxu0
      %v1208 = vpop.f32.mrf.mxu0
      %v1209 = vadd.f32 %v904, %v1208
      %v1210 = vpop.f32.mrf.mxu0
      %1211 = vmatprep.mubr.bf16.mxu0 0
      %1212 = vmatmul.mubr.bf16.gmra.mxu0 %v1001
      %v1213 = vpop.f32.mrf.mxu0
      %v1214 = vadd.f32 %v909, %v1213
      %v1215 = vpop.f32.mrf.mxu0
      %v1216 = vpop.f32.mrf.mxu0
      %v1217 = vadd.f32 %v912, %v1216
      %v1218 = vpop.f32.mrf.mxu0
      %1219 = vmatprep.mubr.bf16.mxu0 0
      %1220 = vmatmul.mubr.bf16.gmra.mxu0 %v1002
      %v1221 = vpop.f32.mrf.mxu0
      %v1222 = vadd.f32 %v917, %v1221
      %v1223 = vpop.f32.mrf.mxu0
      %v1224 = vpop.f32.mrf.mxu0
      %v1225 = vadd.f32 %v920, %v1224
      %v1226 = vpop.f32.mrf.mxu0
      %1227 = vdwg.mxu0
      %v1228 = vld [vmem:[%s172] sm:$0xe]
      %v1229 = vld [vmem:[%s172 + $0xc] sm:$0xe]
      %v1230 = vld [vmem:[%s172 + $0x18] sm:$0xe]
      %v1231 = vld [vmem:[%s172 + $0x24] sm:$0xe]
      %v1232 = vld [vmem:[%s172 + $0x30] sm:$0xe]
      %v1233 = vld [vmem:[%s172 + $0x3c] sm:$0xe]
      %v1234 = vld [vmem:[%s172 + $0x48] sm:$0xe]
      %v1235 = vld [vmem:[%s172 + $0x54] sm:$0xe]
      %v1236 = vld [vmem:[%s172 + $0x60] sm:$0xe]
      %v1237 = vld [vmem:[%s172 + $0x6c] sm:$0xe]
      %v1238 = vld [vmem:[%s172 + $0x78] sm:$0xe]
      %v1239 = vld [vmem:[%s172 + $0x84] sm:$0xe]
      %v1240 = vld [vmem:[%s172 + $0x90] sm:$0xe]
      %v1241 = vld [vmem:[%s172 + $0x9c] sm:$0xe]
      %v1242 = vld [vmem:[%s172 + $0xa8] sm:$0xe]
      %v1243 = vld [vmem:[%s172 + $0xb4] sm:$0xe]
      %vm1276 = vcmask 1042432
      %vm1277 = vcmask 1046532
      %vm1278 = vmor %vm1276, %vm1277
      %v1279 = vrot.slane %v1228, 5
      %v1280 = vrot.slane %v1279, 4
      %v1281 = vrot.slane %v184, 5
      %v1282 = vsel %vm1278, %v1280, %v1281
      %v1283 = vrot.slane %v1281, 4
      %v1284 = vrot.slane %v231, 5
      %v1285 = vsel %vm1278, %v1283, %v1284
      %v1286 = vrot.slane %v1229, 5
      %v1287 = vrot.slane %v1286, 4
      %v1288 = vrot.slane %v186, 5
      %v1289 = vsel %vm1278, %v1287, %v1288
      %v1290 = vrot.slane %v1288, 4
      %v1291 = vrot.slane %v232, 5
      %v1292 = vsel %vm1278, %v1290, %v1291
      %v1293 = vrot.slane %v1230, 5
      %v1294 = vrot.slane %v1293, 4
      %v1295 = vrot.slane %v188, 5
      %v1296 = vsel %vm1278, %v1294, %v1295
      %v1297 = vrot.slane %v1295, 4
      %v1298 = vrot.slane %v233, 5
      %v1299 = vsel %vm1278, %v1297, %v1298
      %v1300 = vrot.slane %v1231, 5
      %v1301 = vrot.slane %v1300, 4
      %v1302 = vrot.slane %v190, 5
      %v1303 = vsel %vm1278, %v1301, %v1302
      %v1304 = vrot.slane %v1302, 4
      %v1305 = vrot.slane %v234, 5
      %v1306 = vsel %vm1278, %v1304, %v1305
      %v1307 = vrot.slane %v1232, 5
      %v1308 = vrot.slane %v1307, 4
      %v1309 = vrot.slane %v192, 5
      %v1310 = vsel %vm1278, %v1308, %v1309
      %v1311 = vrot.slane %v1309, 4
      %v1312 = vrot.slane %v235, 5
      %v1313 = vsel %vm1278, %v1311, %v1312
      %v1314 = vrot.slane %v1233, 5
      %v1315 = vrot.slane %v1314, 4
      %v1316 = vrot.slane %v194, 5
      %v1317 = vsel %vm1278, %v1315, %v1316
      %v1318 = vrot.slane %v1316, 4
      %v1319 = vrot.slane %v236, 5
      %v1320 = vsel %vm1278, %v1318, %v1319
      %v1321 = vrot.slane %v1234, 5
      %v1322 = vrot.slane %v1321, 4
      %v1323 = vrot.slane %v196, 5
      %v1324 = vsel %vm1278, %v1322, %v1323
      %v1325 = vrot.slane %v1323, 4
      %v1326 = vrot.slane %v237, 5
      %v1327 = vsel %vm1278, %v1325, %v1326
      %v1328 = vrot.slane %v1235, 5
      %v1329 = vrot.slane %v1328, 4
      %v1330 = vrot.slane %v198, 5
      %v1331 = vsel %vm1278, %v1329, %v1330
      %v1332 = vrot.slane %v1330, 4
      %v1333 = vrot.slane %v238, 5
      %v1334 = vsel %vm1278, %v1332, %v1333
      %v1335 = vrot.slane %v1236, 5
      %v1336 = vrot.slane %v1335, 4
      %v1337 = vrot.slane %v200, 5
      %v1338 = vsel %vm1278, %v1336, %v1337
      %v1339 = vrot.slane %v1337, 4
      %v1340 = vrot.slane %v239, 5
      %v1341 = vsel %vm1278, %v1339, %v1340
      %v1342 = vrot.slane %v1237, 5
      %v1343 = vrot.slane %v1342, 4
      %v1344 = vrot.slane %v202, 5
      %v1345 = vsel %vm1278, %v1343, %v1344
      %v1346 = vrot.slane %v1344, 4
      %v1347 = vrot.slane %v240, 5
      %v1348 = vsel %vm1278, %v1346, %v1347
      %v1349 = vrot.slane %v1238, 5
      %v1350 = vrot.slane %v1349, 4
      %v1351 = vrot.slane %v204, 5
      %v1352 = vsel %vm1278, %v1350, %v1351
      %v1353 = vrot.slane %v1351, 4
      %v1354 = vrot.slane %v241, 5
      %v1355 = vsel %vm1278, %v1353, %v1354
      %v1356 = vrot.slane %v1239, 5
      %v1357 = vrot.slane %v1356, 4
      %v1358 = vrot.slane %v206, 5
      %v1359 = vsel %vm1278, %v1357, %v1358
      %v1360 = vrot.slane %v1358, 4
      %v1361 = vrot.slane %v242, 5
      %v1362 = vsel %vm1278, %v1360, %v1361
      %v1363 = vrot.slane %v1240, 5
      %v1364 = vrot.slane %v1363, 4
      %v1365 = vrot.slane %v208, 5
      %v1366 = vsel %vm1278, %v1364, %v1365
      %v1367 = vrot.slane %v1365, 4
      %v1368 = vrot.slane %v243, 5
      %v1369 = vsel %vm1278, %v1367, %v1368
      %v1370 = vrot.slane %v1241, 5
      %v1371 = vrot.slane %v1370, 4
      %v1372 = vrot.slane %v210, 5
      %v1373 = vsel %vm1278, %v1371, %v1372
      %v1374 = vrot.slane %v1372, 4
      %v1375 = vrot.slane %v244, 5
      %v1376 = vsel %vm1278, %v1374, %v1375
      %v1377 = vrot.slane %v1242, 5
      %v1378 = vrot.slane %v1377, 4
      %v1379 = vrot.slane %v212, 5
      %v1380 = vsel %vm1278, %v1378, %v1379
      %v1381 = vrot.slane %v1379, 4
      %v1382 = vrot.slane %v245, 5
      %v1383 = vsel %vm1278, %v1381, %v1382
      %v1384 = vrot.slane %v1243, 5
      %v1385 = vrot.slane %v1384, 4
      %v1386 = vrot.slane %v214, 5
      %v1387 = vsel %vm1278, %v1385, %v1386
      %v1388 = vrot.slane %v1386, 4
      %v1389 = vrot.slane %v246, 5
      %v1390 = vsel %vm1278, %v1388, %v1389
      %v1391 = vld [vmem:[%s1 + $0x80] sm:$0xf]
      %v1392 = vld [vmem:[%s1 + $0x84] sm:$0xf]
      %v1393 = vld [vmem:[%s1 + $0x88] sm:$0xf]
      %v1394 = vld [vmem:[%s1 + $0x8c] sm:$0xf]
      %v1395 = vld [vmem:[%s1 + $0x90] sm:$0xf]
      %v1396 = vld [vmem:[%s1 + $0x94] sm:$0xf]
      %v1397 = vld [vmem:[%s1 + $0x98] sm:$0xf]
      %v1398 = vld [vmem:[%s1 + $0x9c] sm:$0xf]
      %v1399 = vld [vmem:[%s1 + $0xa0] sm:$0xf]
      %v1400 = vld [vmem:[%s1 + $0xa4] sm:$0xf]
      %v1401 = vld [vmem:[%s1 + $0xa8] sm:$0xf]
      %v1402 = vld [vmem:[%s1 + $0xac] sm:$0xf]
      %v1403 = vld [vmem:[%s1 + $0xb0] sm:$0xf]
      %v1404 = vld [vmem:[%s1 + $0xb4] sm:$0xf]
      %v1405 = vld [vmem:[%s1 + $0xb8] sm:$0xf]
      %v1406 = vld [vmem:[%s1 + $0xbc] sm:$0xf]
      %v1407 = vunpack.c.l.b16 %v1282
      %v1408 = vunpack.c.l.b16 %v1285
      %v1409 = vunpack.c.l.b16 %v1289
      %v1410 = vunpack.c.l.b16 %v1292
      %v1411 = vunpack.c.l.b16 %v1296
      %v1412 = vunpack.c.l.b16 %v1299
      %v1413 = vunpack.c.l.b16 %v1303
      %v1414 = vunpack.c.l.b16 %v1306
      %v1415 = vunpack.c.l.b16 %v1310
      %v1416 = vunpack.c.l.b16 %v1313
      %v1417 = vunpack.c.l.b16 %v1317
      %v1418 = vunpack.c.l.b16 %v1320
      %v1419 = vunpack.c.l.b16 %v1324
      %v1420 = vunpack.c.l.b16 %v1327
      %v1421 = vunpack.c.l.b16 %v1331
      %v1422 = vunpack.c.l.b16 %v1334
      %v1423 = vunpack.c.l.b16 %v1338
      %v1424 = vunpack.c.l.b16 %v1341
      %v1425 = vunpack.c.l.b16 %v1345
      %v1426 = vunpack.c.l.b16 %v1348
      %v1427 = vunpack.c.l.b16 %v1352
      %v1428 = vunpack.c.l.b16 %v1355
      %v1429 = vunpack.c.l.b16 %v1359
      %v1430 = vunpack.c.l.b16 %v1362
      %v1431 = vunpack.c.l.b16 %v1366
      %v1432 = vunpack.c.l.b16 %v1369
      %v1433 = vunpack.c.l.b16 %v1373
      %v1434 = vunpack.c.l.b16 %v1376
      %v1435 = vunpack.c.l.b16 %v1380
      %v1436 = vunpack.c.l.b16 %v1383
      %v1437 = vunpack.c.l.b16 %v1387
      %v1438 = vunpack.c.l.b16 %v1390
      %v1439 = vpack.c.b16 %v1408, %v1407
      %v1440 = vpack.c.b16 %v1410, %v1409
      %v1441 = vpack.c.b16 %v1412, %v1411
      %v1442 = vpack.c.b16 %v1414, %v1413
      %v1443 = vpack.c.b16 %v1416, %v1415
      %v1444 = vpack.c.b16 %v1418, %v1417
      %v1445 = vpack.c.b16 %v1420, %v1419
      %v1446 = vpack.c.b16 %v1422, %v1421
      %v1447 = vpack.c.b16 %v1424, %v1423
      %v1448 = vpack.c.b16 %v1426, %v1425
      %v1449 = vpack.c.b16 %v1428, %v1427
      %v1450 = vpack.c.b16 %v1430, %v1429
      %v1451 = vpack.c.b16 %v1432, %v1431
      %v1452 = vpack.c.b16 %v1434, %v1433
      %v1453 = vpack.c.b16 %v1436, %v1435
      %v1454 = vpack.c.b16 %v1438, %v1437
      %v1487 = vunpack.c.l.b16 %v1391
      %v1488 = vunpack.c.l.b16 %v1392
      %v1489 = vunpack.c.l.b16 %v1393
      %v1490 = vunpack.c.l.b16 %v1394
      %v1491 = vunpack.c.l.b16 %v1395
      %v1492 = vunpack.c.l.b16 %v1396
      %v1493 = vunpack.c.l.b16 %v1397
      %v1494 = vunpack.c.l.b16 %v1398
      %v1495 = vunpack.c.l.b16 %v1399
      %v1496 = vunpack.c.l.b16 %v1400
      %v1497 = vunpack.c.l.b16 %v1401
      %v1498 = vunpack.c.l.b16 %v1402
      %v1499 = vunpack.c.l.b16 %v1403
      %v1500 = vunpack.c.l.b16 %v1404
      %v1501 = vunpack.c.l.b16 %v1405
      %v1502 = vunpack.c.l.b16 %v1406
      %v1503 = vpack.c.b16 %v1488, %v1487
      %v1504 = vpack.c.b16 %v1490, %v1489
      %v1505 = vpack.c.b16 %v1492, %v1491
      %v1506 = vpack.c.b16 %v1494, %v1493
      %v1507 = vpack.c.b16 %v1496, %v1495
      %v1508 = vpack.c.b16 %v1498, %v1497
      %v1509 = vpack.c.b16 %v1500, %v1499
      %v1510 = vpack.c.b16 %v1502, %v1501
      %1519 = vmatprep.subr.bf16.mxu0 0
      %1520 = vmatpush1.bf16.msra.mxu0 %v1510
      %1521 = vmatprep.subr.bf16.mxu0 0
      %1522 = vmatpush1.bf16.msra.mxu0 %v1509
      %1523 = vmatprep.subr.bf16.mxu0 0
      %1524 = vmatpush1.bf16.msra.mxu0 %v1508
      %1525 = vmatprep.subr.bf16.mxu0 0
      %1526 = vmatpush1.bf16.msra.mxu0 %v1507
      %1527 = vmatprep.subr.bf16.mxu0 0
      %1528 = vmatpush1.bf16.msra.mxu0 %v1506
      %1529 = vmatprep.subr.bf16.mxu0 0
      %1530 = vmatpush1.bf16.msra.mxu0 %v1505
      %1531 = vmatprep.subr.bf16.mxu0 0
      %1532 = vmatpush1.bf16.msra.mxu0 %v1504
      %1533 = vmatprep.subr.bf16.mxu0 0
      %1534 = vmatpush1.bf16.msra.mxu0 %v1503
      %1535 = vmatprep.subr.bf16.mxu0 0
      %1536 = vmatpush2.bf16.msra.mxu0 0
      %1537 = vmatprep.subr.bf16.mxu0 0
      %1538 = vmatpush2.bf16.msra.mxu0 0
      %1539 = vmatprep.subr.bf16.mxu0 0
      %1540 = vmatpush2.bf16.msra.mxu0 0
      %1541 = vmatprep.subr.bf16.mxu0 0
      %1542 = vmatpush2.bf16.msra.mxu0 0
      %1543 = vmatprep.subr.bf16.mxu0 0
      %1544 = vmatpush2.bf16.msra.mxu0 0
      %1545 = vmatprep.subr.bf16.mxu0 0
      %1546 = vmatpush2.bf16.msra.mxu0 0
      %1547 = vmatprep.subr.bf16.mxu0 0
      %1548 = vmatpush2.bf16.msra.mxu0 0
      %1549 = vmatprep.subr.bf16.mxu0 0
      %1550 = vmatpush2.bf16.msra.mxu0 0
      %1551 = vmatprep.mubr.bf16.mxu0 0
      %1552 = vmatmul.mubr.bf16.gmra.mxu0 %v1439
      %v1553 = vpop.f32.mrf.mxu0
      %v1554 = vadd.f32 0.0, %v1553
      %v1555 = vpop.f32.mrf.mxu0
      %v1556 = vpop.f32.mrf.mxu0
      %v1557 = vadd.f32 0.0, %v1556
      %v1558 = vpop.f32.mrf.mxu0
      %1559 = vmatprep.mubr.bf16.mxu0 0
      %1560 = vmatmul.mubr.bf16.gmra.mxu0 %v1440
      %v1561 = vpop.f32.mrf.mxu0
      %v1562 = vadd.f32 0.0, %v1561
      %v1563 = vpop.f32.mrf.mxu0
      %v1564 = vpop.f32.mrf.mxu0
      %v1565 = vadd.f32 0.0, %v1564
      %v1566 = vpop.f32.mrf.mxu0
      %1567 = vmatprep.mubr.bf16.mxu0 0
      %1568 = vmatmul.mubr.bf16.gmra.mxu0 %v1441
      %v1569 = vpop.f32.mrf.mxu0
      %v1570 = vadd.f32 0.0, %v1569
      %v1571 = vpop.f32.mrf.mxu0
      %v1572 = vpop.f32.mrf.mxu0
      %v1573 = vadd.f32 0.0, %v1572
      %v1574 = vpop.f32.mrf.mxu0
      %1575 = vmatprep.mubr.bf16.mxu0 0
      %1576 = vmatmul.mubr.bf16.gmra.mxu0 %v1442
      %v1577 = vpop.f32.mrf.mxu0
      %v1578 = vadd.f32 0.0, %v1577
      %v1579 = vpop.f32.mrf.mxu0
      %v1580 = vpop.f32.mrf.mxu0
      %v1581 = vadd.f32 0.0, %v1580
      %v1582 = vpop.f32.mrf.mxu0
      %1583 = vmatprep.mubr.bf16.mxu0 0
      %1584 = vmatmul.mubr.bf16.gmra.mxu0 %v1443
      %v1585 = vpop.f32.mrf.mxu0
      %v1586 = vadd.f32 0.0, %v1585
      %v1587 = vpop.f32.mrf.mxu0
      %v1588 = vpop.f32.mrf.mxu0
      %v1589 = vadd.f32 0.0, %v1588
      %v1590 = vpop.f32.mrf.mxu0
      %1591 = vmatprep.mubr.bf16.mxu0 0
      %1592 = vmatmul.mubr.bf16.gmra.mxu0 %v1444
      %v1593 = vpop.f32.mrf.mxu0
      %v1594 = vadd.f32 0.0, %v1593
      %v1595 = vpop.f32.mrf.mxu0
      %v1596 = vpop.f32.mrf.mxu0
      %v1597 = vadd.f32 0.0, %v1596
      %v1598 = vpop.f32.mrf.mxu0
      %1599 = vmatprep.mubr.bf16.mxu0 0
      %1600 = vmatmul.mubr.bf16.gmra.mxu0 %v1445
      %v1601 = vpop.f32.mrf.mxu0
      %v1602 = vadd.f32 0.0, %v1601
      %v1603 = vpop.f32.mrf.mxu0
      %v1604 = vpop.f32.mrf.mxu0
      %v1605 = vadd.f32 0.0, %v1604
      %v1606 = vpop.f32.mrf.mxu0
      %1607 = vmatprep.mubr.bf16.mxu0 0
      %1608 = vmatmul.mubr.bf16.gmra.mxu0 %v1446
      %v1609 = vpop.f32.mrf.mxu0
      %v1610 = vadd.f32 0.0, %v1609
      %v1611 = vpop.f32.mrf.mxu0
      %v1612 = vpop.f32.mrf.mxu0
      %v1613 = vadd.f32 0.0, %v1612
      %v1614 = vpop.f32.mrf.mxu0
      %1615 = vmatprep.mubr.bf16.mxu0 0
      %1616 = vmatmul.mubr.bf16.gmra.mxu0 %v1447
      %v1617 = vpop.f32.mrf.mxu0
      %v1618 = vadd.f32 0.0, %v1617
      %v1619 = vpop.f32.mrf.mxu0
      %v1620 = vpop.f32.mrf.mxu0
      %v1621 = vadd.f32 0.0, %v1620
      %v1622 = vpop.f32.mrf.mxu0
      %1623 = vmatprep.mubr.bf16.mxu0 0
      %1624 = vmatmul.mubr.bf16.gmra.mxu0 %v1448
      %v1625 = vpop.f32.mrf.mxu0
      %v1626 = vadd.f32 0.0, %v1625
      %v1627 = vpop.f32.mrf.mxu0
      %v1628 = vpop.f32.mrf.mxu0
      %v1629 = vadd.f32 0.0, %v1628
      %v1630 = vpop.f32.mrf.mxu0
      %1631 = vmatprep.mubr.bf16.mxu0 0
      %1632 = vmatmul.mubr.bf16.gmra.mxu0 %v1449
      %v1633 = vpop.f32.mrf.mxu0
      %v1634 = vadd.f32 0.0, %v1633
      %v1635 = vpop.f32.mrf.mxu0
      %v1636 = vpop.f32.mrf.mxu0
      %v1637 = vadd.f32 0.0, %v1636
      %v1638 = vpop.f32.mrf.mxu0
      %1639 = vmatprep.mubr.bf16.mxu0 0
      %1640 = vmatmul.mubr.bf16.gmra.mxu0 %v1450
      %v1641 = vpop.f32.mrf.mxu0
      %v1642 = vadd.f32 0.0, %v1641
      %v1643 = vpop.f32.mrf.mxu0
      %v1644 = vpop.f32.mrf.mxu0
      %v1645 = vadd.f32 0.0, %v1644
      %v1646 = vpop.f32.mrf.mxu0
      %1647 = vmatprep.mubr.bf16.mxu0 0
      %1648 = vmatmul.mubr.bf16.gmra.mxu0 %v1451
      %v1649 = vpop.f32.mrf.mxu0
      %v1650 = vadd.f32 0.0, %v1649
      %v1651 = vpop.f32.mrf.mxu0
      %v1652 = vpop.f32.mrf.mxu0
      %v1653 = vadd.f32 0.0, %v1652
      %v1654 = vpop.f32.mrf.mxu0
      %1655 = vmatprep.mubr.bf16.mxu0 0
      %1656 = vmatmul.mubr.bf16.gmra.mxu0 %v1452
      %v1657 = vpop.f32.mrf.mxu0
      %v1658 = vadd.f32 0.0, %v1657
      %v1659 = vpop.f32.mrf.mxu0
      %v1660 = vpop.f32.mrf.mxu0
      %v1661 = vadd.f32 0.0, %v1660
      %v1662 = vpop.f32.mrf.mxu0
      %1663 = vmatprep.mubr.bf16.mxu0 0
      %1664 = vmatmul.mubr.bf16.gmra.mxu0 %v1453
      %v1665 = vpop.f32.mrf.mxu0
      %v1666 = vadd.f32 0.0, %v1665
      %v1667 = vpop.f32.mrf.mxu0
      %v1668 = vpop.f32.mrf.mxu0
      %v1669 = vadd.f32 0.0, %v1668
      %v1670 = vpop.f32.mrf.mxu0
      %1671 = vmatprep.mubr.bf16.mxu0 0
      %1672 = vmatmul.mubr.bf16.gmra.mxu0 %v1454
      %v1673 = vpop.f32.mrf.mxu0
      %v1674 = vadd.f32 0.0, %v1673
      %v1675 = vpop.f32.mrf.mxu0
      %v1676 = vpop.f32.mrf.mxu0
      %v1677 = vadd.f32 0.0, %v1676
      %v1678 = vpop.f32.mrf.mxu0
      %1679 = vdwg.mxu0
      %v1680 = vadd.f32 %v1102, %v1554
      %v1681 = vadd.f32 %v1105, %v1557
      %v1682 = vadd.f32 %v1110, %v1562
      %v1683 = vadd.f32 %v1113, %v1565
      %v1684 = vadd.f32 %v1118, %v1570
      %v1685 = vadd.f32 %v1121, %v1573
      %v1686 = vadd.f32 %v1126, %v1578
      %v1687 = vadd.f32 %v1129, %v1581
      %v1688 = vadd.f32 %v1134, %v1586
      %v1689 = vadd.f32 %v1137, %v1589
      %v1690 = vadd.f32 %v1142, %v1594
      %v1691 = vadd.f32 %v1145, %v1597
      %v1692 = vadd.f32 %v1150, %v1602
      %v1693 = vadd.f32 %v1153, %v1605
      %v1694 = vadd.f32 %v1158, %v1610
      %v1695 = vadd.f32 %v1161, %v1613
      %v1696 = vadd.f32 %v1166, %v1618
      %v1697 = vadd.f32 %v1169, %v1621
      %v1698 = vadd.f32 %v1174, %v1626
      %v1699 = vadd.f32 %v1177, %v1629
      %v1700 = vadd.f32 %v1182, %v1634
      %v1701 = vadd.f32 %v1185, %v1637
      %v1702 = vadd.f32 %v1190, %v1642
      %v1703 = vadd.f32 %v1193, %v1645
      %v1704 = vadd.f32 %v1198, %v1650
      %v1705 = vadd.f32 %v1201, %v1653
      %v1706 = vadd.f32 %v1206, %v1658
      %v1707 = vadd.f32 %v1209, %v1661
      %v1708 = vadd.f32 %v1214, %v1666
      %v1709 = vadd.f32 %v1217, %v1669
      %v1710 = vadd.f32 %v1222, %v1674
      %v1711 = vadd.f32 %v1225, %v1677
      %s1712 = scalar_lea.vmem %s172, 12
      %v1713 = vld [vmem:[%s1712] sm:$0xf]
      %v1714 = vld [vmem:[%s1712 + $0x4] sm:$0xf]
      %v1715 = vld [vmem:[%s1712 + $0xc] sm:$0xf]
      %v1716 = vld [vmem:[%s1712 + $0x10] sm:$0xf]
      %v1717 = vld [vmem:[%s1712 + $0x18] sm:$0xf]
      %v1718 = vld [vmem:[%s1712 + $0x1c] sm:$0xf]
      %v1719 = vld [vmem:[%s1712 + $0x24] sm:$0xf]
      %v1720 = vld [vmem:[%s1712 + $0x28] sm:$0xf]
      %v1721 = vld [vmem:[%s1712 + $0x30] sm:$0xf]
      %v1722 = vld [vmem:[%s1712 + $0x34] sm:$0xf]
      %v1723 = vld [vmem:[%s1712 + $0x3c] sm:$0xf]
      %v1724 = vld [vmem:[%s1712 + $0x40] sm:$0xf]
      %v1725 = vld [vmem:[%s1712 + $0x48] sm:$0xf]
      %v1726 = vld [vmem:[%s1712 + $0x4c] sm:$0xf]
      %v1727 = vld [vmem:[%s1712 + $0x54] sm:$0xf]
      %v1728 = vld [vmem:[%s1712 + $0x58] sm:$0xf]
      %v1729 = vld [vmem:[%s1712 + $0x60] sm:$0xf]
      %v1730 = vld [vmem:[%s1712 + $0x64] sm:$0xf]
      %v1731 = vld [vmem:[%s1712 + $0x6c] sm:$0xf]
      %v1732 = vld [vmem:[%s1712 + $0x70] sm:$0xf]
      %v1733 = vld [vmem:[%s1712 + $0x78] sm:$0xf]
      %v1734 = vld [vmem:[%s1712 + $0x7c] sm:$0xf]
      %v1735 = vld [vmem:[%s1712 + $0x84] sm:$0xf]
      %v1736 = vld [vmem:[%s1712 + $0x88] sm:$0xf]
      %v1737 = vld [vmem:[%s1712 + $0x90] sm:$0xf]
      %v1738 = vld [vmem:[%s1712 + $0x94] sm:$0xf]
      %v1739 = vld [vmem:[%s1712 + $0x9c] sm:$0xf]
      %v1740 = vld [vmem:[%s1712 + $0xa0] sm:$0xf]
      %v1741 = vld [vmem:[%s1712 + $0xa8] sm:$0xf]
      %v1742 = vld [vmem:[%s1712 + $0xac] sm:$0xf]
      %v1743 = vld [vmem:[%s1712 + $0xb4] sm:$0xf]
      %v1744 = vld [vmem:[%s1712 + $0xb8] sm:$0xf]
      %v1745 = vld [vmem:[%s1 + $0xc0] sm:$0xf]
      %v1746 = vld [vmem:[%s1 + $0xc4] sm:$0xf]
      %v1747 = vld [vmem:[%s1 + $0xc8] sm:$0xf]
      %v1748 = vld [vmem:[%s1 + $0xcc] sm:$0xf]
      %v1749 = vld [vmem:[%s1 + $0xd0] sm:$0xf]
      %v1750 = vld [vmem:[%s1 + $0xd4] sm:$0xf]
      %v1751 = vld [vmem:[%s1 + $0xd8] sm:$0xf]
      %v1752 = vld [vmem:[%s1 + $0xdc] sm:$0xf]
      %v1753 = vld [vmem:[%s1 + $0xe0] sm:$0xf]
      %v1754 = vld [vmem:[%s1 + $0xe4] sm:$0xf]
      %v1755 = vld [vmem:[%s1 + $0xe8] sm:$0xf]
      %v1756 = vld [vmem:[%s1 + $0xec] sm:$0xf]
      %v1757 = vld [vmem:[%s1 + $0xf0] sm:$0xf]
      %v1758 = vld [vmem:[%s1 + $0xf4] sm:$0xf]
      %v1759 = vld [vmem:[%s1 + $0xf8] sm:$0xf]
      %v1760 = vld [vmem:[%s1 + $0xfc] sm:$0xf]
      %v1793 = vunpack.c.l.b16 %v1713
      %v1794 = vunpack.c.l.b16 %v1714
      %v1795 = vunpack.c.l.b16 %v1715
      %v1796 = vunpack.c.l.b16 %v1716
      %v1797 = vunpack.c.l.b16 %v1717
      %v1798 = vunpack.c.l.b16 %v1718
      %v1799 = vunpack.c.l.b16 %v1719
      %v1800 = vunpack.c.l.b16 %v1720
      %v1801 = vunpack.c.l.b16 %v1721
      %v1802 = vunpack.c.l.b16 %v1722
      %v1803 = vunpack.c.l.b16 %v1723
      %v1804 = vunpack.c.l.b16 %v1724
      %v1805 = vunpack.c.l.b16 %v1725
      %v1806 = vunpack.c.l.b16 %v1726
      %v1807 = vunpack.c.l.b16 %v1727
      %v1808 = vunpack.c.l.b16 %v1728
      %v1809 = vunpack.c.l.b16 %v1729
      %v1810 = vunpack.c.l.b16 %v1730
      %v1811 = vunpack.c.l.b16 %v1731
      %v1812 = vunpack.c.l.b16 %v1732
      %v1813 = vunpack.c.l.b16 %v1733
      %v1814 = vunpack.c.l.b16 %v1734
      %v1815 = vunpack.c.l.b16 %v1735
      %v1816 = vunpack.c.l.b16 %v1736
      %v1817 = vunpack.c.l.b16 %v1737
      %v1818 = vunpack.c.l.b16 %v1738
      %v1819 = vunpack.c.l.b16 %v1739
      %v1820 = vunpack.c.l.b16 %v1740
      %v1821 = vunpack.c.l.b16 %v1741
      %v1822 = vunpack.c.l.b16 %v1742
      %v1823 = vunpack.c.l.b16 %v1743
      %v1824 = vunpack.c.l.b16 %v1744
      %v1825 = vpack.c.b16 %v1794, %v1793
      %v1826 = vpack.c.b16 %v1796, %v1795
      %v1827 = vpack.c.b16 %v1798, %v1797
      %v1828 = vpack.c.b16 %v1800, %v1799
      %v1829 = vpack.c.b16 %v1802, %v1801
      %v1830 = vpack.c.b16 %v1804, %v1803
      %v1831 = vpack.c.b16 %v1806, %v1805
      %v1832 = vpack.c.b16 %v1808, %v1807
      %v1833 = vpack.c.b16 %v1810, %v1809
      %v1834 = vpack.c.b16 %v1812, %v1811
      %v1835 = vpack.c.b16 %v1814, %v1813
      %v1836 = vpack.c.b16 %v1816, %v1815
      %v1837 = vpack.c.b16 %v1818, %v1817
      %v1838 = vpack.c.b16 %v1820, %v1819
      %v1839 = vpack.c.b16 %v1822, %v1821
      %v1840 = vpack.c.b16 %v1824, %v1823
      %v1873 = vunpack.c.l.b16 %v1745
      %v1874 = vunpack.c.l.b16 %v1746
      %v1875 = vunpack.c.l.b16 %v1747
      %v1876 = vunpack.c.l.b16 %v1748
      %v1877 = vunpack.c.l.b16 %v1749
      %v1878 = vunpack.c.l.b16 %v1750
      %v1879 = vunpack.c.l.b16 %v1751
      %v1880 = vunpack.c.l.b16 %v1752
      %v1881 = vunpack.c.l.b16 %v1753
      %v1882 = vunpack.c.l.b16 %v1754
      %v1883 = vunpack.c.l.b16 %v1755
      %v1884 = vunpack.c.l.b16 %v1756
      %v1885 = vunpack.c.l.b16 %v1757
      %v1886 = vunpack.c.l.b16 %v1758
      %v1887 = vunpack.c.l.b16 %v1759
      %v1888 = vunpack.c.l.b16 %v1760
      %v1889 = vpack.c.b16 %v1874, %v1873
      %v1890 = vpack.c.b16 %v1876, %v1875
      %v1891 = vpack.c.b16 %v1878, %v1877
      %v1892 = vpack.c.b16 %v1880, %v1879
      %v1893 = vpack.c.b16 %v1882, %v1881
      %v1894 = vpack.c.b16 %v1884, %v1883
      %v1895 = vpack.c.b16 %v1886, %v1885
      %v1896 = vpack.c.b16 %v1888, %v1887
      %1905 = vmatprep.subr.bf16.mxu0 0
      %1906 = vmatpush1.bf16.msra.mxu0 %v1896
      %1907 = vmatprep.subr.bf16.mxu0 0
      %1908 = vmatpush1.bf16.msra.mxu0 %v1895
      %1909 = vmatprep.subr.bf16.mxu0 0
      %1910 = vmatpush1.bf16.msra.mxu0 %v1894
      %1911 = vmatprep.subr.bf16.mxu0 0
      %1912 = vmatpush1.bf16.msra.mxu0 %v1893
      %1913 = vmatprep.subr.bf16.mxu0 0
      %1914 = vmatpush1.bf16.msra.mxu0 %v1892
      %1915 = vmatprep.subr.bf16.mxu0 0
      %1916 = vmatpush1.bf16.msra.mxu0 %v1891
      %1917 = vmatprep.subr.bf16.mxu0 0
      %1918 = vmatpush1.bf16.msra.mxu0 %v1890
      %1919 = vmatprep.subr.bf16.mxu0 0
      %1920 = vmatpush1.bf16.msra.mxu0 %v1889
      %1921 = vmatprep.subr.bf16.mxu0 0
      %1922 = vmatpush2.bf16.msra.mxu0 0
      %1923 = vmatprep.subr.bf16.mxu0 0
      %1924 = vmatpush2.bf16.msra.mxu0 0
      %1925 = vmatprep.subr.bf16.mxu0 0
      %1926 = vmatpush2.bf16.msra.mxu0 0
      %1927 = vmatprep.subr.bf16.mxu0 0
      %1928 = vmatpush2.bf16.msra.mxu0 0
      %1929 = vmatprep.subr.bf16.mxu0 0
      %1930 = vmatpush2.bf16.msra.mxu0 0
      %1931 = vmatprep.subr.bf16.mxu0 0
      %1932 = vmatpush2.bf16.msra.mxu0 0
      %1933 = vmatprep.subr.bf16.mxu0 0
      %1934 = vmatpush2.bf16.msra.mxu0 0
      %1935 = vmatprep.subr.bf16.mxu0 0
      %1936 = vmatpush2.bf16.msra.mxu0 0
      %1937 = vmatprep.mubr.bf16.mxu0 0
      %1938 = vmatmul.mubr.bf16.gmra.mxu0 %v1825
      %v1939 = vpop.f32.mrf.mxu0
      %v1940 = vadd.f32 0.0, %v1939
      %v1941 = vpop.f32.mrf.mxu0
      %v1942 = vpop.f32.mrf.mxu0
      %v1943 = vadd.f32 0.0, %v1942
      %v1944 = vpop.f32.mrf.mxu0
      %1945 = vmatprep.mubr.bf16.mxu0 0
      %1946 = vmatmul.mubr.bf16.gmra.mxu0 %v1826
      %v1947 = vpop.f32.mrf.mxu0
      %v1948 = vadd.f32 0.0, %v1947
      %v1949 = vpop.f32.mrf.mxu0
      %v1950 = vpop.f32.mrf.mxu0
      %v1951 = vadd.f32 0.0, %v1950
      %v1952 = vpop.f32.mrf.mxu0
      %1953 = vmatprep.mubr.bf16.mxu0 0
      %1954 = vmatmul.mubr.bf16.gmra.mxu0 %v1827
      %v1955 = vpop.f32.mrf.mxu0
      %v1956 = vadd.f32 0.0, %v1955
      %v1957 = vpop.f32.mrf.mxu0
      %v1958 = vpop.f32.mrf.mxu0
      %v1959 = vadd.f32 0.0, %v1958
      %v1960 = vpop.f32.mrf.mxu0
      %1961 = vmatprep.mubr.bf16.mxu0 0
      %1962 = vmatmul.mubr.bf16.gmra.mxu0 %v1828
      %v1963 = vpop.f32.mrf.mxu0
      %v1964 = vadd.f32 0.0, %v1963
      %v1965 = vpop.f32.mrf.mxu0
      %v1966 = vpop.f32.mrf.mxu0
      %v1967 = vadd.f32 0.0, %v1966
      %v1968 = vpop.f32.mrf.mxu0
      %1969 = vmatprep.mubr.bf16.mxu0 0
      %1970 = vmatmul.mubr.bf16.gmra.mxu0 %v1829
      %v1971 = vpop.f32.mrf.mxu0
      %v1972 = vadd.f32 0.0, %v1971
      %v1973 = vpop.f32.mrf.mxu0
      %v1974 = vpop.f32.mrf.mxu0
      %v1975 = vadd.f32 0.0, %v1974
      %v1976 = vpop.f32.mrf.mxu0
      %1977 = vmatprep.mubr.bf16.mxu0 0
      %1978 = vmatmul.mubr.bf16.gmra.mxu0 %v1830
      %v1979 = vpop.f32.mrf.mxu0
      %v1980 = vadd.f32 0.0, %v1979
      %v1981 = vpop.f32.mrf.mxu0
      %v1982 = vpop.f32.mrf.mxu0
      %v1983 = vadd.f32 0.0, %v1982
      %v1984 = vpop.f32.mrf.mxu0
      %1985 = vmatprep.mubr.bf16.mxu0 0
      %1986 = vmatmul.mubr.bf16.gmra.mxu0 %v1831
      %v1987 = vpop.f32.mrf.mxu0
      %v1988 = vadd.f32 0.0, %v1987
      %v1989 = vpop.f32.mrf.mxu0
      %v1990 = vpop.f32.mrf.mxu0
      %v1991 = vadd.f32 0.0, %v1990
      %v1992 = vpop.f32.mrf.mxu0
      %1993 = vmatprep.mubr.bf16.mxu0 0
      %1994 = vmatmul.mubr.bf16.gmra.mxu0 %v1832
      %v1995 = vpop.f32.mrf.mxu0
      %v1996 = vadd.f32 0.0, %v1995
      %v1997 = vpop.f32.mrf.mxu0
      %v1998 = vpop.f32.mrf.mxu0
      %v1999 = vadd.f32 0.0, %v1998
      %v2000 = vpop.f32.mrf.mxu0
      %2001 = vmatprep.mubr.bf16.mxu0 0
      %2002 = vmatmul.mubr.bf16.gmra.mxu0 %v1833
      %v2003 = vpop.f32.mrf.mxu0
      %v2004 = vadd.f32 0.0, %v2003
      %v2005 = vpop.f32.mrf.mxu0
      %v2006 = vpop.f32.mrf.mxu0
      %v2007 = vadd.f32 0.0, %v2006
      %v2008 = vpop.f32.mrf.mxu0
      %2009 = vmatprep.mubr.bf16.mxu0 0
      %2010 = vmatmul.mubr.bf16.gmra.mxu0 %v1834
      %v2011 = vpop.f32.mrf.mxu0
      %v2012 = vadd.f32 0.0, %v2011
      %v2013 = vpop.f32.mrf.mxu0
      %v2014 = vpop.f32.mrf.mxu0
      %v2015 = vadd.f32 0.0, %v2014
      %v2016 = vpop.f32.mrf.mxu0
      %2017 = vmatprep.mubr.bf16.mxu0 0
      %2018 = vmatmul.mubr.bf16.gmra.mxu0 %v1835
      %v2019 = vpop.f32.mrf.mxu0
      %v2020 = vadd.f32 0.0, %v2019
      %v2021 = vpop.f32.mrf.mxu0
      %v2022 = vpop.f32.mrf.mxu0
      %v2023 = vadd.f32 0.0, %v2022
      %v2024 = vpop.f32.mrf.mxu0
      %2025 = vmatprep.mubr.bf16.mxu0 0
      %2026 = vmatmul.mubr.bf16.gmra.mxu0 %v1836
      %v2027 = vpop.f32.mrf.mxu0
      %v2028 = vadd.f32 0.0, %v2027
      %v2029 = vpop.f32.mrf.mxu0
      %v2030 = vpop.f32.mrf.mxu0
      %v2031 = vadd.f32 0.0, %v2030
      %v2032 = vpop.f32.mrf.mxu0
      %2033 = vmatprep.mubr.bf16.mxu0 0
      %2034 = vmatmul.mubr.bf16.gmra.mxu0 %v1837
      %v2035 = vpop.f32.mrf.mxu0
      %v2036 = vadd.f32 0.0, %v2035
      %v2037 = vpop.f32.mrf.mxu0
      %v2038 = vpop.f32.mrf.mxu0
      %v2039 = vadd.f32 0.0, %v2038
      %v2040 = vpop.f32.mrf.mxu0
      %2041 = vmatprep.mubr.bf16.mxu0 0
      %2042 = vmatmul.mubr.bf16.gmra.mxu0 %v1838
      %v2043 = vpop.f32.mrf.mxu0
      %v2044 = vadd.f32 0.0, %v2043
      %v2045 = vpop.f32.mrf.mxu0
      %v2046 = vpop.f32.mrf.mxu0
      %v2047 = vadd.f32 0.0, %v2046
      %v2048 = vpop.f32.mrf.mxu0
      %2049 = vmatprep.mubr.bf16.mxu0 0
      %2050 = vmatmul.mubr.bf16.gmra.mxu0 %v1839
      %v2051 = vpop.f32.mrf.mxu0
      %v2052 = vadd.f32 0.0, %v2051
      %v2053 = vpop.f32.mrf.mxu0
      %v2054 = vpop.f32.mrf.mxu0
      %v2055 = vadd.f32 0.0, %v2054
      %v2056 = vpop.f32.mrf.mxu0
      %2057 = vmatprep.mubr.bf16.mxu0 0
      %2058 = vmatmul.mubr.bf16.gmra.mxu0 %v1840
      %v2059 = vpop.f32.mrf.mxu0
      %v2060 = vadd.f32 0.0, %v2059
      %v2061 = vpop.f32.mrf.mxu0
      %v2062 = vpop.f32.mrf.mxu0
      %v2063 = vadd.f32 0.0, %v2062
      %v2064 = vpop.f32.mrf.mxu0
      %2065 = vdwg.mxu0
      %v2066 = vadd.f32 %v1680, %v1940
      %v2067 = vadd.f32 %v1681, %v1943
      %v2068 = vadd.f32 %v1682, %v1948
      %v2069 = vadd.f32 %v1683, %v1951
      %v2070 = vadd.f32 %v1684, %v1956
      %v2071 = vadd.f32 %v1685, %v1959
      %v2072 = vadd.f32 %v1686, %v1964
      %v2073 = vadd.f32 %v1687, %v1967
      %v2074 = vadd.f32 %v1688, %v1972
      %v2075 = vadd.f32 %v1689, %v1975
      %v2076 = vadd.f32 %v1690, %v1980
      %v2077 = vadd.f32 %v1691, %v1983
      %v2078 = vadd.f32 %v1692, %v1988
      %v2079 = vadd.f32 %v1693, %v1991
      %v2080 = vadd.f32 %v1694, %v1996
      %v2081 = vadd.f32 %v1695, %v1999
      %v2082 = vadd.f32 %v1696, %v2004
      %v2083 = vadd.f32 %v1697, %v2007
      %v2084 = vadd.f32 %v1698, %v2012
      %v2085 = vadd.f32 %v1699, %v2015
      %v2086 = vadd.f32 %v1700, %v2020
      %v2087 = vadd.f32 %v1701, %v2023
      %v2088 = vadd.f32 %v1702, %v2028
      %v2089 = vadd.f32 %v1703, %v2031
      %v2090 = vadd.f32 %v1704, %v2036
      %v2091 = vadd.f32 %v1705, %v2039
      %v2092 = vadd.f32 %v1706, %v2044
      %v2093 = vadd.f32 %v1707, %v2047
      %v2094 = vadd.f32 %v1708, %v2052
      %v2095 = vadd.f32 %v1709, %v2055
      %v2096 = vadd.f32 %v1710, %v2060
      %v2097 = vadd.f32 %v1711, %v2063
      %v2098 = vld [vmem:[%s1712] sm:$0xf]
      %v2099 = vld [vmem:[%s1712 + $0x4] sm:$0xf]
      %v2100 = vld [vmem:[%s1712 + $0x8] sm:$0x1]
      %v2101 = vld [vmem:[%s1712 + $0xc] sm:$0xf]
      %v2102 = vld [vmem:[%s1712 + $0x10] sm:$0xf]
      %v2103 = vld [vmem:[%s1712 + $0x14] sm:$0x1]
      %v2104 = vld [vmem:[%s1712 + $0x18] sm:$0xf]
      %v2105 = vld [vmem:[%s1712 + $0x1c] sm:$0xf]
      %v2106 = vld [vmem:[%s1712 + $0x20] sm:$0x1]
      %v2107 = vld [vmem:[%s1712 + $0x24] sm:$0xf]
      %v2108 = vld [vmem:[%s1712 + $0x28] sm:$0xf]
      %v2109 = vld [vmem:[%s1712 + $0x2c] sm:$0x1]
      %v2110 = vld [vmem:[%s1712 + $0x30] sm:$0xf]
      %v2111 = vld [vmem:[%s1712 + $0x34] sm:$0xf]
      %v2112 = vld [vmem:[%s1712 + $0x38] sm:$0x1]
      %v2113 = vld [vmem:[%s1712 + $0x3c] sm:$0xf]
      %v2114 = vld [vmem:[%s1712 + $0x40] sm:$0xf]
      %v2115 = vld [vmem:[%s1712 + $0x44] sm:$0x1]
      %v2116 = vld [vmem:[%s1712 + $0x48] sm:$0xf]
      %v2117 = vld [vmem:[%s1712 + $0x4c] sm:$0xf]
      %v2118 = vld [vmem:[%s1712 + $0x50] sm:$0x1]
      %v2119 = vld [vmem:[%s1712 + $0x54] sm:$0xf]
      %v2120 = vld [vmem:[%s1712 + $0x58] sm:$0xf]
      %v2121 = vld [vmem:[%s1712 + $0x5c] sm:$0x1]
      %v2122 = vld [vmem:[%s1712 + $0x60] sm:$0xf]
      %v2123 = vld [vmem:[%s1712 + $0x64] sm:$0xf]
      %v2124 = vld [vmem:[%s1712 + $0x68] sm:$0x1]
      %v2125 = vld [vmem:[%s1712 + $0x6c] sm:$0xf]
      %v2126 = vld [vmem:[%s1712 + $0x70] sm:$0xf]
      %v2127 = vld [vmem:[%s1712 + $0x74] sm:$0x1]
      %v2128 = vld [vmem:[%s1712 + $0x78] sm:$0xf]
      %v2129 = vld [vmem:[%s1712 + $0x7c] sm:$0xf]
      %v2130 = vld [vmem:[%s1712 + $0x80] sm:$0x1]
      %v2131 = vld [vmem:[%s1712 + $0x84] sm:$0xf]
      %v2132 = vld [vmem:[%s1712 + $0x88] sm:$0xf]
      %v2133 = vld [vmem:[%s1712 + $0x8c] sm:$0x1]
      %v2134 = vld [vmem:[%s1712 + $0x90] sm:$0xf]
      %v2135 = vld [vmem:[%s1712 + $0x94] sm:$0xf]
      %v2136 = vld [vmem:[%s1712 + $0x98] sm:$0x1]
      %v2137 = vld [vmem:[%s1712 + $0x9c] sm:$0xf]
      %v2138 = vld [vmem:[%s1712 + $0xa0] sm:$0xf]
      %v2139 = vld [vmem:[%s1712 + $0xa4] sm:$0x1]
      %v2140 = vld [vmem:[%s1712 + $0xa8] sm:$0xf]
      %v2141 = vld [vmem:[%s1712 + $0xac] sm:$0xf]
      %v2142 = vld [vmem:[%s1712 + $0xb0] sm:$0x1]
      %v2143 = vld [vmem:[%s1712 + $0xb4] sm:$0xf]
      %v2144 = vld [vmem:[%s1712 + $0xb8] sm:$0xf]
      %v2145 = vld [vmem:[%s1712 + $0xbc] sm:$0x1]
      %v2147 = vshrl.u32 %v2098, 16
      %v2149 = vrot.slane %v2147, 4
      %v2150 = vshll.u32 %v2098, 16
      %v2152 = vrot.slane %v2150, 5
      %v2153 = vor.u32 %v2149, %v2152
      %v2154 = vrot.slane %v2153, 4
      %v2156 = vshll.u32 %v2099, 16
      %v2158 = vrot.slane %v2156, 5
      %v2159 = vsel %vm249, %v2154, %v2158
      %v2160 = vshrl.u32 %v2099, 16
      %v2162 = vrot.slane %v2160, 4
      %v2163 = vor.u32 %v2162, %v2158
      %v2164 = vrot.slane %v2163, 4
      %v2166 = vshll.u32 %v2100, 16
      %v2168 = vrot.slane %v2166, 5
      %v2169 = vsel %vm249, %v2164, %v2168
      %v2171 = vshrl.u32 %v2101, 16
      %v2173 = vrot.slane %v2171, 4
      %v2174 = vshll.u32 %v2101, 16
      %v2176 = vrot.slane %v2174, 5
      %v2177 = vor.u32 %v2173, %v2176
      %v2178 = vrot.slane %v2177, 4
      %v2180 = vshll.u32 %v2102, 16
      %v2182 = vrot.slane %v2180, 5
      %v2183 = vsel %vm249, %v2178, %v2182
      %v2184 = vshrl.u32 %v2102, 16
      %v2186 = vrot.slane %v2184, 4
      %v2187 = vor.u32 %v2186, %v2182
      %v2188 = vrot.slane %v2187, 4
      %v2190 = vshll.u32 %v2103, 16
      %v2192 = vrot.slane %v2190, 5
      %v2193 = vsel %vm249, %v2188, %v2192
      %v2195 = vshrl.u32 %v2104, 16
      %v2197 = vrot.slane %v2195, 4
      %v2198 = vshll.u32 %v2104, 16
      %v2200 = vrot.slane %v2198, 5
      %v2201 = vor.u32 %v2197, %v2200
      %v2202 = vrot.slane %v2201, 4
      %v2204 = vshll.u32 %v2105, 16
      %v2206 = vrot.slane %v2204, 5
      %v2207 = vsel %vm249, %v2202, %v2206
      %v2208 = vshrl.u32 %v2105, 16
      %v2210 = vrot.slane %v2208, 4
      %v2211 = vor.u32 %v2210, %v2206
      %v2212 = vrot.slane %v2211, 4
      %v2214 = vshll.u32 %v2106, 16
      %v2216 = vrot.slane %v2214, 5
      %v2217 = vsel %vm249, %v2212, %v2216
      %v2219 = vshrl.u32 %v2107, 16
      %v2221 = vrot.slane %v2219, 4
      %v2222 = vshll.u32 %v2107, 16
      %v2224 = vrot.slane %v2222, 5
      %v2225 = vor.u32 %v2221, %v2224
      %v2226 = vrot.slane %v2225, 4
      %v2228 = vshll.u32 %v2108, 16
      %v2230 = vrot.slane %v2228, 5
      %v2231 = vsel %vm249, %v2226, %v2230
      %v2232 = vshrl.u32 %v2108, 16
      %v2234 = vrot.slane %v2232, 4
      %v2235 = vor.u32 %v2234, %v2230
      %v2236 = vrot.slane %v2235, 4
      %v2238 = vshll.u32 %v2109, 16
      %v2240 = vrot.slane %v2238, 5
      %v2241 = vsel %vm249, %v2236, %v2240
      %v2243 = vshrl.u32 %v2110, 16
      %v2245 = vrot.slane %v2243, 4
      %v2246 = vshll.u32 %v2110, 16
      %v2248 = vrot.slane %v2246, 5
      %v2249 = vor.u32 %v2245, %v2248
      %v2250 = vrot.slane %v2249, 4
      %v2252 = vshll.u32 %v2111, 16
      %v2254 = vrot.slane %v2252, 5
      %v2255 = vsel %vm249, %v2250, %v2254
      %v2256 = vshrl.u32 %v2111, 16
      %v2258 = vrot.slane %v2256, 4
      %v2259 = vor.u32 %v2258, %v2254
      %v2260 = vrot.slane %v2259, 4
      %v2262 = vshll.u32 %v2112, 16
      %v2264 = vrot.slane %v2262, 5
      %v2265 = vsel %vm249, %v2260, %v2264
      %v2267 = vshrl.u32 %v2113, 16
      %v2269 = vrot.slane %v2267, 4
      %v2270 = vshll.u32 %v2113, 16
      %v2272 = vrot.slane %v2270, 5
      %v2273 = vor.u32 %v2269, %v2272
      %v2274 = vrot.slane %v2273, 4
      %v2276 = vshll.u32 %v2114, 16
      %v2278 = vrot.slane %v2276, 5
      %v2279 = vsel %vm249, %v2274, %v2278
      %v2280 = vshrl.u32 %v2114, 16
      %v2282 = vrot.slane %v2280, 4
      %v2283 = vor.u32 %v2282, %v2278
      %v2284 = vrot.slane %v2283, 4
      %v2286 = vshll.u32 %v2115, 16
      %v2288 = vrot.slane %v2286, 5
      %v2289 = vsel %vm249, %v2284, %v2288
      %v2291 = vshrl.u32 %v2116, 16
      %v2293 = vrot.slane %v2291, 4
      %v2294 = vshll.u32 %v2116, 16
      %v2296 = vrot.slane %v2294, 5
      %v2297 = vor.u32 %v2293, %v2296
      %v2298 = vrot.slane %v2297, 4
      %v2300 = vshll.u32 %v2117, 16
      %v2302 = vrot.slane %v2300, 5
      %v2303 = vsel %vm249, %v2298, %v2302
      %v2304 = vshrl.u32 %v2117, 16
      %v2306 = vrot.slane %v2304, 4
      %v2307 = vor.u32 %v2306, %v2302
      %v2308 = vrot.slane %v2307, 4
      %v2310 = vshll.u32 %v2118, 16
      %v2312 = vrot.slane %v2310, 5
      %v2313 = vsel %vm249, %v2308, %v2312
      %v2315 = vshrl.u32 %v2119, 16
      %v2317 = vrot.slane %v2315, 4
      %v2318 = vshll.u32 %v2119, 16
      %v2320 = vrot.slane %v2318, 5
      %v2321 = vor.u32 %v2317, %v2320
      %v2322 = vrot.slane %v2321, 4
      %v2324 = vshll.u32 %v2120, 16
      %v2326 = vrot.slane %v2324, 5
      %v2327 = vsel %vm249, %v2322, %v2326
      %v2328 = vshrl.u32 %v2120, 16
      %v2330 = vrot.slane %v2328, 4
      %v2331 = vor.u32 %v2330, %v2326
      %v2332 = vrot.slane %v2331, 4
      %v2334 = vshll.u32 %v2121, 16
      %v2336 = vrot.slane %v2334, 5
      %v2337 = vsel %vm249, %v2332, %v2336
      %v2339 = vshrl.u32 %v2122, 16
      %v2341 = vrot.slane %v2339, 4
      %v2342 = vshll.u32 %v2122, 16
      %v2344 = vrot.slane %v2342, 5
      %v2345 = vor.u32 %v2341, %v2344
      %v2346 = vrot.slane %v2345, 4
      %v2348 = vshll.u32 %v2123, 16
      %v2350 = vrot.slane %v2348, 5
      %v2351 = vsel %vm249, %v2346, %v2350
      %v2352 = vshrl.u32 %v2123, 16
      %v2354 = vrot.slane %v2352, 4
      %v2355 = vor.u32 %v2354, %v2350
      %v2356 = vrot.slane %v2355, 4
      %v2358 = vshll.u32 %v2124, 16
      %v2360 = vrot.slane %v2358, 5
      %v2361 = vsel %vm249, %v2356, %v2360
      %v2363 = vshrl.u32 %v2125, 16
      %v2365 = vrot.slane %v2363, 4
      %v2366 = vshll.u32 %v2125, 16
      %v2368 = vrot.slane %v2366, 5
      %v2369 = vor.u32 %v2365, %v2368
      %v2370 = vrot.slane %v2369, 4
      %v2372 = vshll.u32 %v2126, 16
      %v2374 = vrot.slane %v2372, 5
      %v2375 = vsel %vm249, %v2370, %v2374
      %v2376 = vshrl.u32 %v2126, 16
      %v2378 = vrot.slane %v2376, 4
      %v2379 = vor.u32 %v2378, %v2374
      %v2380 = vrot.slane %v2379, 4
      %v2382 = vshll.u32 %v2127, 16
      %v2384 = vrot.slane %v2382, 5
      %v2385 = vsel %vm249, %v2380, %v2384
      %v2387 = vshrl.u32 %v2128, 16
      %v2389 = vrot.slane %v2387, 4
      %v2390 = vshll.u32 %v2128, 16
      %v2392 = vrot.slane %v2390, 5
      %v2393 = vor.u32 %v2389, %v2392
      %v2394 = vrot.slane %v2393, 4
      %v2396 = vshll.u32 %v2129, 16
      %v2398 = vrot.slane %v2396, 5
      %v2399 = vsel %vm249, %v2394, %v2398
      %v2400 = vshrl.u32 %v2129, 16
      %v2402 = vrot.slane %v2400, 4
      %v2403 = vor.u32 %v2402, %v2398
      %v2404 = vrot.slane %v2403, 4
      %v2406 = vshll.u32 %v2130, 16
      %v2408 = vrot.slane %v2406, 5
      %v2409 = vsel %vm249, %v2404, %v2408
      %v2411 = vshrl.u32 %v2131, 16
      %v2413 = vrot.slane %v2411, 4
      %v2414 = vshll.u32 %v2131, 16
      %v2416 = vrot.slane %v2414, 5
      %v2417 = vor.u32 %v2413, %v2416
      %v2418 = vrot.slane %v2417, 4
      %v2420 = vshll.u32 %v2132, 16
      %v2422 = vrot.slane %v2420, 5
      %v2423 = vsel %vm249, %v2418, %v2422
      %v2424 = vshrl.u32 %v2132, 16
      %v2426 = vrot.slane %v2424, 4
      %v2427 = vor.u32 %v2426, %v2422
      %v2428 = vrot.slane %v2427, 4
      %v2430 = vshll.u32 %v2133, 16
      %v2432 = vrot.slane %v2430, 5
      %v2433 = vsel %vm249, %v2428, %v2432
      %v2435 = vshrl.u32 %v2134, 16
      %v2437 = vrot.slane %v2435, 4
      %v2438 = vshll.u32 %v2134, 16
      %v2440 = vrot.slane %v2438, 5
      %v2441 = vor.u32 %v2437, %v2440
      %v2442 = vrot.slane %v2441, 4
      %v2444 = vshll.u32 %v2135, 16
      %v2446 = vrot.slane %v2444, 5
      %v2447 = vsel %vm249, %v2442, %v2446
      %v2448 = vshrl.u32 %v2135, 16
      %v2450 = vrot.slane %v2448, 4
      %v2451 = vor.u32 %v2450, %v2446
      %v2452 = vrot.slane %v2451, 4
      %v2454 = vshll.u32 %v2136, 16
      %v2456 = vrot.slane %v2454, 5
      %v2457 = vsel %vm249, %v2452, %v2456
      %v2459 = vshrl.u32 %v2137, 16
      %v2461 = vrot.slane %v2459, 4
      %v2462 = vshll.u32 %v2137, 16
      %v2464 = vrot.slane %v2462, 5
      %v2465 = vor.u32 %v2461, %v2464
      %v2466 = vrot.slane %v2465, 4
      %v2468 = vshll.u32 %v2138, 16
      %v2470 = vrot.slane %v2468, 5
      %v2471 = vsel %vm249, %v2466, %v2470
      %v2472 = vshrl.u32 %v2138, 16
      %v2474 = vrot.slane %v2472, 4
      %v2475 = vor.u32 %v2474, %v2470
      %v2476 = vrot.slane %v2475, 4
      %v2478 = vshll.u32 %v2139, 16
      %v2480 = vrot.slane %v2478, 5
      %v2481 = vsel %vm249, %v2476, %v2480
      %v2483 = vshrl.u32 %v2140, 16
      %v2485 = vrot.slane %v2483, 4
      %v2486 = vshll.u32 %v2140, 16
      %v2488 = vrot.slane %v2486, 5
      %v2489 = vor.u32 %v2485, %v2488
      %v2490 = vrot.slane %v2489, 4
      %v2492 = vshll.u32 %v2141, 16
      %v2494 = vrot.slane %v2492, 5
      %v2495 = vsel %vm249, %v2490, %v2494
      %v2496 = vshrl.u32 %v2141, 16
      %v2498 = vrot.slane %v2496, 4
      %v2499 = vor.u32 %v2498, %v2494
      %v2500 = vrot.slane %v2499, 4
      %v2502 = vshll.u32 %v2142, 16
      %v2504 = vrot.slane %v2502, 5
      %v2505 = vsel %vm249, %v2500, %v2504
      %v2507 = vshrl.u32 %v2143, 16
      %v2509 = vrot.slane %v2507, 4
      %v2510 = vshll.u32 %v2143, 16
      %v2512 = vrot.slane %v2510, 5
      %v2513 = vor.u32 %v2509, %v2512
      %v2514 = vrot.slane %v2513, 4
      %v2516 = vshll.u32 %v2144, 16
      %v2518 = vrot.slane %v2516, 5
      %v2519 = vsel %vm249, %v2514, %v2518
      %v2520 = vshrl.u32 %v2144, 16
      %v2522 = vrot.slane %v2520, 4
      %v2523 = vor.u32 %v2522, %v2518
      %v2524 = vrot.slane %v2523, 4
      %v2526 = vshll.u32 %v2145, 16
      %v2528 = vrot.slane %v2526, 5
      %v2529 = vsel %vm249, %v2524, %v2528
      %v2530 = vld [vmem:[%s1 + $0x100] sm:$0xf]
      %v2531 = vld [vmem:[%s1 + $0x104] sm:$0xf]
      %v2532 = vld [vmem:[%s1 + $0x108] sm:$0xf]
      %v2533 = vld [vmem:[%s1 + $0x10c] sm:$0xf]
      %v2534 = vld [vmem:[%s1 + $0x110] sm:$0xf]
      %v2535 = vld [vmem:[%s1 + $0x114] sm:$0xf]
      %v2536 = vld [vmem:[%s1 + $0x118] sm:$0xf]
      %v2537 = vld [vmem:[%s1 + $0x11c] sm:$0xf]
      %v2538 = vld [vmem:[%s1 + $0x120] sm:$0xf]
      %v2539 = vld [vmem:[%s1 + $0x124] sm:$0xf]
      %v2540 = vld [vmem:[%s1 + $0x128] sm:$0xf]
      %v2541 = vld [vmem:[%s1 + $0x12c] sm:$0xf]
      %v2542 = vld [vmem:[%s1 + $0x130] sm:$0xf]
      %v2543 = vld [vmem:[%s1 + $0x134] sm:$0xf]
      %v2544 = vld [vmem:[%s1 + $0x138] sm:$0xf]
      %v2545 = vld [vmem:[%s1 + $0x13c] sm:$0xf]
      %v2546 = vunpack.c.l.b16 %v2159
      %v2547 = vunpack.c.l.b16 %v2169
      %v2548 = vunpack.c.l.b16 %v2183
      %v2549 = vunpack.c.l.b16 %v2193
      %v2550 = vunpack.c.l.b16 %v2207
      %v2551 = vunpack.c.l.b16 %v2217
      %v2552 = vunpack.c.l.b16 %v2231
      %v2553 = vunpack.c.l.b16 %v2241
      %v2554 = vunpack.c.l.b16 %v2255
      %v2555 = vunpack.c.l.b16 %v2265
      %v2556 = vunpack.c.l.b16 %v2279
      %v2557 = vunpack.c.l.b16 %v2289
      %v2558 = vunpack.c.l.b16 %v2303
      %v2559 = vunpack.c.l.b16 %v2313
      %v2560 = vunpack.c.l.b16 %v2327
      %v2561 = vunpack.c.l.b16 %v2337
      %v2562 = vunpack.c.l.b16 %v2351
      %v2563 = vunpack.c.l.b16 %v2361
      %v2564 = vunpack.c.l.b16 %v2375
      %v2565 = vunpack.c.l.b16 %v2385
      %v2566 = vunpack.c.l.b16 %v2399
      %v2567 = vunpack.c.l.b16 %v2409
      %v2568 = vunpack.c.l.b16 %v2423
      %v2569 = vunpack.c.l.b16 %v2433
      %v2570 = vunpack.c.l.b16 %v2447
      %v2571 = vunpack.c.l.b16 %v2457
      %v2572 = vunpack.c.l.b16 %v2471
      %v2573 = vunpack.c.l.b16 %v2481
      %v2574 = vunpack.c.l.b16 %v2495
      %v2575 = vunpack.c.l.b16 %v2505
      %v2576 = vunpack.c.l.b16 %v2519
      %v2577 = vunpack.c.l.b16 %v2529
      %v2578 = vpack.c.b16 %v2547, %v2546
      %v2579 = vpack.c.b16 %v2549, %v2548
      %v2580 = vpack.c.b16 %v2551, %v2550
      %v2581 = vpack.c.b16 %v2553, %v2552
      %v2582 = vpack.c.b16 %v2555, %v2554
      %v2583 = vpack.c.b16 %v2557, %v2556
      %v2584 = vpack.c.b16 %v2559, %v2558
      %v2585 = vpack.c.b16 %v2561, %v2560
      %v2586 = vpack.c.b16 %v2563, %v2562
      %v2587 = vpack.c.b16 %v2565, %v2564
      %v2588 = vpack.c.b16 %v2567, %v2566
      %v2589 = vpack.c.b16 %v2569, %v2568
      %v2590 = vpack.c.b16 %v2571, %v2570
      %v2591 = vpack.c.b16 %v2573, %v2572
      %v2592 = vpack.c.b16 %v2575, %v2574
      %v2593 = vpack.c.b16 %v2577, %v2576
      %v2626 = vunpack.c.l.b16 %v2530
      %v2627 = vunpack.c.l.b16 %v2531
      %v2628 = vunpack.c.l.b16 %v2532
      %v2629 = vunpack.c.l.b16 %v2533
      %v2630 = vunpack.c.l.b16 %v2534
      %v2631 = vunpack.c.l.b16 %v2535
      %v2632 = vunpack.c.l.b16 %v2536
      %v2633 = vunpack.c.l.b16 %v2537
      %v2634 = vunpack.c.l.b16 %v2538
      %v2635 = vunpack.c.l.b16 %v2539
      %v2636 = vunpack.c.l.b16 %v2540
      %v2637 = vunpack.c.l.b16 %v2541
      %v2638 = vunpack.c.l.b16 %v2542
      %v2639 = vunpack.c.l.b16 %v2543
      %v2640 = vunpack.c.l.b16 %v2544
      %v2641 = vunpack.c.l.b16 %v2545
      %v2642 = vpack.c.b16 %v2627, %v2626
      %v2643 = vpack.c.b16 %v2629, %v2628
      %v2644 = vpack.c.b16 %v2631, %v2630
      %v2645 = vpack.c.b16 %v2633, %v2632
      %v2646 = vpack.c.b16 %v2635, %v2634
      %v2647 = vpack.c.b16 %v2637, %v2636
      %v2648 = vpack.c.b16 %v2639, %v2638
      %v2649 = vpack.c.b16 %v2641, %v2640
      %2658 = vmatprep.subr.bf16.mxu0 0
      %2659 = vmatpush1.bf16.msra.mxu0 %v2649
      %2660 = vmatprep.subr.bf16.mxu0 0
      %2661 = vmatpush1.bf16.msra.mxu0 %v2648
      %2662 = vmatprep.subr.bf16.mxu0 0
      %2663 = vmatpush1.bf16.msra.mxu0 %v2647
      %2664 = vmatprep.subr.bf16.mxu0 0
      %2665 = vmatpush1.bf16.msra.mxu0 %v2646
      %2666 = vmatprep.subr.bf16.mxu0 0
      %2667 = vmatpush1.bf16.msra.mxu0 %v2645
      %2668 = vmatprep.subr.bf16.mxu0 0
      %2669 = vmatpush1.bf16.msra.mxu0 %v2644
      %2670 = vmatprep.subr.bf16.mxu0 0
      %2671 = vmatpush1.bf16.msra.mxu0 %v2643
      %2672 = vmatprep.subr.bf16.mxu0 0
      %2673 = vmatpush1.bf16.msra.mxu0 %v2642
      %2674 = vmatprep.subr.bf16.mxu0 0
      %2675 = vmatpush2.bf16.msra.mxu0 0
      %2676 = vmatprep.subr.bf16.mxu0 0
      %2677 = vmatpush2.bf16.msra.mxu0 0
      %2678 = vmatprep.subr.bf16.mxu0 0
      %2679 = vmatpush2.bf16.msra.mxu0 0
      %2680 = vmatprep.subr.bf16.mxu0 0
      %2681 = vmatpush2.bf16.msra.mxu0 0
      %2682 = vmatprep.subr.bf16.mxu0 0
      %2683 = vmatpush2.bf16.msra.mxu0 0
      %2684 = vmatprep.subr.bf16.mxu0 0
      %2685 = vmatpush2.bf16.msra.mxu0 0
      %2686 = vmatprep.subr.bf16.mxu0 0
      %2687 = vmatpush2.bf16.msra.mxu0 0
      %2688 = vmatprep.subr.bf16.mxu0 0
      %2689 = vmatpush2.bf16.msra.mxu0 0
      %2690 = vmatprep.mubr.bf16.mxu0 0
      %2691 = vmatmul.mubr.bf16.gmra.mxu0 %v2578
      %v2692 = vpop.f32.mrf.mxu0
      %v2693 = vadd.f32 0.0, %v2692
      %v2694 = vpop.f32.mrf.mxu0
      %v2695 = vpop.f32.mrf.mxu0
      %v2696 = vadd.f32 0.0, %v2695
      %v2697 = vpop.f32.mrf.mxu0
      %2698 = vmatprep.mubr.bf16.mxu0 0
      %2699 = vmatmul.mubr.bf16.gmra.mxu0 %v2579
      %v2700 = vpop.f32.mrf.mxu0
      %v2701 = vadd.f32 0.0, %v2700
      %v2702 = vpop.f32.mrf.mxu0
      %v2703 = vpop.f32.mrf.mxu0
      %v2704 = vadd.f32 0.0, %v2703
      %v2705 = vpop.f32.mrf.mxu0
      %2706 = vmatprep.mubr.bf16.mxu0 0
      %2707 = vmatmul.mubr.bf16.gmra.mxu0 %v2580
      %v2708 = vpop.f32.mrf.mxu0
      %v2709 = vadd.f32 0.0, %v2708
      %v2710 = vpop.f32.mrf.mxu0
      %v2711 = vpop.f32.mrf.mxu0
      %v2712 = vadd.f32 0.0, %v2711
      %v2713 = vpop.f32.mrf.mxu0
      %2714 = vmatprep.mubr.bf16.mxu0 0
      %2715 = vmatmul.mubr.bf16.gmra.mxu0 %v2581
      %v2716 = vpop.f32.mrf.mxu0
      %v2717 = vadd.f32 0.0, %v2716
      %v2718 = vpop.f32.mrf.mxu0
      %v2719 = vpop.f32.mrf.mxu0
      %v2720 = vadd.f32 0.0, %v2719
      %v2721 = vpop.f32.mrf.mxu0
      %2722 = vmatprep.mubr.bf16.mxu0 0
      %2723 = vmatmul.mubr.bf16.gmra.mxu0 %v2582
      %v2724 = vpop.f32.mrf.mxu0
      %v2725 = vadd.f32 0.0, %v2724
      %v2726 = vpop.f32.mrf.mxu0
      %v2727 = vpop.f32.mrf.mxu0
      %v2728 = vadd.f32 0.0, %v2727
      %v2729 = vpop.f32.mrf.mxu0
      %2730 = vmatprep.mubr.bf16.mxu0 0
      %2731 = vmatmul.mubr.bf16.gmra.mxu0 %v2583
      %v2732 = vpop.f32.mrf.mxu0
      %v2733 = vadd.f32 0.0, %v2732
      %v2734 = vpop.f32.mrf.mxu0
      %v2735 = vpop.f32.mrf.mxu0
      %v2736 = vadd.f32 0.0, %v2735
      %v2737 = vpop.f32.mrf.mxu0
      %2738 = vmatprep.mubr.bf16.mxu0 0
      %2739 = vmatmul.mubr.bf16.gmra.mxu0 %v2584
      %v2740 = vpop.f32.mrf.mxu0
      %v2741 = vadd.f32 0.0, %v2740
      %v2742 = vpop.f32.mrf.mxu0
      %v2743 = vpop.f32.mrf.mxu0
      %v2744 = vadd.f32 0.0, %v2743
      %v2745 = vpop.f32.mrf.mxu0
      %2746 = vmatprep.mubr.bf16.mxu0 0
      %2747 = vmatmul.mubr.bf16.gmra.mxu0 %v2585
      %v2748 = vpop.f32.mrf.mxu0
      %v2749 = vadd.f32 0.0, %v2748
      %v2750 = vpop.f32.mrf.mxu0
      %v2751 = vpop.f32.mrf.mxu0
      %v2752 = vadd.f32 0.0, %v2751
      %v2753 = vpop.f32.mrf.mxu0
      %2754 = vmatprep.mubr.bf16.mxu0 0
      %2755 = vmatmul.mubr.bf16.gmra.mxu0 %v2586
      %v2756 = vpop.f32.mrf.mxu0
      %v2757 = vadd.f32 0.0, %v2756
      %v2758 = vpop.f32.mrf.mxu0
      %v2759 = vpop.f32.mrf.mxu0
      %v2760 = vadd.f32 0.0, %v2759
      %v2761 = vpop.f32.mrf.mxu0
      %2762 = vmatprep.mubr.bf16.mxu0 0
      %2763 = vmatmul.mubr.bf16.gmra.mxu0 %v2587
      %v2764 = vpop.f32.mrf.mxu0
      %v2765 = vadd.f32 0.0, %v2764
      %v2766 = vpop.f32.mrf.mxu0
      %v2767 = vpop.f32.mrf.mxu0
      %v2768 = vadd.f32 0.0, %v2767
      %v2769 = vpop.f32.mrf.mxu0
      %2770 = vmatprep.mubr.bf16.mxu0 0
      %2771 = vmatmul.mubr.bf16.gmra.mxu0 %v2588
      %v2772 = vpop.f32.mrf.mxu0
      %v2773 = vadd.f32 0.0, %v2772
      %v2774 = vpop.f32.mrf.mxu0
      %v2775 = vpop.f32.mrf.mxu0
      %v2776 = vadd.f32 0.0, %v2775
      %v2777 = vpop.f32.mrf.mxu0
      %2778 = vmatprep.mubr.bf16.mxu0 0
      %2779 = vmatmul.mubr.bf16.gmra.mxu0 %v2589
      %v2780 = vpop.f32.mrf.mxu0
      %v2781 = vadd.f32 0.0, %v2780
      %v2782 = vpop.f32.mrf.mxu0
      %v2783 = vpop.f32.mrf.mxu0
      %v2784 = vadd.f32 0.0, %v2783
      %v2785 = vpop.f32.mrf.mxu0
      %2786 = vmatprep.mubr.bf16.mxu0 0
      %2787 = vmatmul.mubr.bf16.gmra.mxu0 %v2590
      %v2788 = vpop.f32.mrf.mxu0
      %v2789 = vadd.f32 0.0, %v2788
      %v2790 = vpop.f32.mrf.mxu0
      %v2791 = vpop.f32.mrf.mxu0
      %v2792 = vadd.f32 0.0, %v2791
      %v2793 = vpop.f32.mrf.mxu0
      %2794 = vmatprep.mubr.bf16.mxu0 0
      %2795 = vmatmul.mubr.bf16.gmra.mxu0 %v2591
      %v2796 = vpop.f32.mrf.mxu0
      %v2797 = vadd.f32 0.0, %v2796
      %v2798 = vpop.f32.mrf.mxu0
      %v2799 = vpop.f32.mrf.mxu0
      %v2800 = vadd.f32 0.0, %v2799
      %v2801 = vpop.f32.mrf.mxu0
      %2802 = vmatprep.mubr.bf16.mxu0 0
      %2803 = vmatmul.mubr.bf16.gmra.mxu0 %v2592
      %v2804 = vpop.f32.mrf.mxu0
      %v2805 = vadd.f32 0.0, %v2804
      %v2806 = vpop.f32.mrf.mxu0
      %v2807 = vpop.f32.mrf.mxu0
      %v2808 = vadd.f32 0.0, %v2807
      %v2809 = vpop.f32.mrf.mxu0
      %2810 = vmatprep.mubr.bf16.mxu0 0
      %2811 = vmatmul.mubr.bf16.gmra.mxu0 %v2593
      %v2812 = vpop.f32.mrf.mxu0
      %v2813 = vadd.f32 0.0, %v2812
      %v2814 = vpop.f32.mrf.mxu0
      %v2815 = vpop.f32.mrf.mxu0
      %v2816 = vadd.f32 0.0, %v2815
      %v2817 = vpop.f32.mrf.mxu0
      %2818 = vdwg.mxu0
      %v2819 = vadd.f32 %v2066, %v2693
      %v2820 = vadd.f32 %v2067, %v2696
      %v2821 = vadd.f32 %v2068, %v2701
      %v2822 = vadd.f32 %v2069, %v2704
      %v2823 = vadd.f32 %v2070, %v2709
      %v2824 = vadd.f32 %v2071, %v2712
      %v2825 = vadd.f32 %v2072, %v2717
      %v2826 = vadd.f32 %v2073, %v2720
      %v2827 = vadd.f32 %v2074, %v2725
      %v2828 = vadd.f32 %v2075, %v2728
      %v2829 = vadd.f32 %v2076, %v2733
      %v2830 = vadd.f32 %v2077, %v2736
      %v2831 = vadd.f32 %v2078, %v2741
      %v2832 = vadd.f32 %v2079, %v2744
      %v2833 = vadd.f32 %v2080, %v2749
      %v2834 = vadd.f32 %v2081, %v2752
      %v2835 = vadd.f32 %v2082, %v2757
      %v2836 = vadd.f32 %v2083, %v2760
      %v2837 = vadd.f32 %v2084, %v2765
      %v2838 = vadd.f32 %v2085, %v2768
      %v2839 = vadd.f32 %v2086, %v2773
      %v2840 = vadd.f32 %v2087, %v2776
      %v2841 = vadd.f32 %v2088, %v2781
      %v2842 = vadd.f32 %v2089, %v2784
      %v2843 = vadd.f32 %v2090, %v2789
      %v2844 = vadd.f32 %v2091, %v2792
      %v2845 = vadd.f32 %v2092, %v2797
      %v2846 = vadd.f32 %v2093, %v2800
      %v2847 = vadd.f32 %v2094, %v2805
      %v2848 = vadd.f32 %v2095, %v2808
      %v2849 = vadd.f32 %v2096, %v2813
      %v2850 = vadd.f32 %v2097, %v2816
      %v2851 = vld [vmem:[%s1712] sm:$0xe]
      %v2852 = vld [vmem:[%s1712 + $0xc] sm:$0xe]
      %v2853 = vld [vmem:[%s1712 + $0x18] sm:$0xe]
      %v2854 = vld [vmem:[%s1712 + $0x24] sm:$0xe]
      %v2855 = vld [vmem:[%s1712 + $0x30] sm:$0xe]
      %v2856 = vld [vmem:[%s1712 + $0x3c] sm:$0xe]
      %v2857 = vld [vmem:[%s1712 + $0x48] sm:$0xe]
      %v2858 = vld [vmem:[%s1712 + $0x54] sm:$0xe]
      %v2859 = vld [vmem:[%s1712 + $0x60] sm:$0xe]
      %v2860 = vld [vmem:[%s1712 + $0x6c] sm:$0xe]
      %v2861 = vld [vmem:[%s1712 + $0x78] sm:$0xe]
      %v2862 = vld [vmem:[%s1712 + $0x84] sm:$0xe]
      %v2863 = vld [vmem:[%s1712 + $0x90] sm:$0xe]
      %v2864 = vld [vmem:[%s1712 + $0x9c] sm:$0xe]
      %v2865 = vld [vmem:[%s1712 + $0xa8] sm:$0xe]
      %v2866 = vld [vmem:[%s1712 + $0xb4] sm:$0xe]
      %v2915 = vrot.slane %v2851, 5
      %v2916 = vrot.slane %v2915, 4
      %v2917 = vrot.slane %v2099, 5
      %v2918 = vsel %vm1278, %v2916, %v2917
      %v2919 = vrot.slane %v2917, 4
      %v2920 = vrot.slane %v2100, 5
      %v2921 = vsel %vm1278, %v2919, %v2920
      %v2922 = vrot.slane %v2852, 5
      %v2923 = vrot.slane %v2922, 4
      %v2924 = vrot.slane %v2102, 5
      %v2925 = vsel %vm1278, %v2923, %v2924
      %v2926 = vrot.slane %v2924, 4
      %v2927 = vrot.slane %v2103, 5
      %v2928 = vsel %vm1278, %v2926, %v2927
      %v2929 = vrot.slane %v2853, 5
      %v2930 = vrot.slane %v2929, 4
      %v2931 = vrot.slane %v2105, 5
      %v2932 = vsel %vm1278, %v2930, %v2931
      %v2933 = vrot.slane %v2931, 4
      %v2934 = vrot.slane %v2106, 5
      %v2935 = vsel %vm1278, %v2933, %v2934
      %v2936 = vrot.slane %v2854, 5
      %v2937 = vrot.slane %v2936, 4
      %v2938 = vrot.slane %v2108, 5
      %v2939 = vsel %vm1278, %v2937, %v2938
      %v2940 = vrot.slane %v2938, 4
      %v2941 = vrot.slane %v2109, 5
      %v2942 = vsel %vm1278, %v2940, %v2941
      %v2943 = vrot.slane %v2855, 5
      %v2944 = vrot.slane %v2943, 4
      %v2945 = vrot.slane %v2111, 5
      %v2946 = vsel %vm1278, %v2944, %v2945
      %v2947 = vrot.slane %v2945, 4
      %v2948 = vrot.slane %v2112, 5
      %v2949 = vsel %vm1278, %v2947, %v2948
      %v2950 = vrot.slane %v2856, 5
      %v2951 = vrot.slane %v2950, 4
      %v2952 = vrot.slane %v2114, 5
      %v2953 = vsel %vm1278, %v2951, %v2952
      %v2954 = vrot.slane %v2952, 4
      %v2955 = vrot.slane %v2115, 5
      %v2956 = vsel %vm1278, %v2954, %v2955
      %v2957 = vrot.slane %v2857, 5
      %v2958 = vrot.slane %v2957, 4
      %v2959 = vrot.slane %v2117, 5
      %v2960 = vsel %vm1278, %v2958, %v2959
      %v2961 = vrot.slane %v2959, 4
      %v2962 = vrot.slane %v2118, 5
      %v2963 = vsel %vm1278, %v2961, %v2962
      %v2964 = vrot.slane %v2858, 5
      %v2965 = vrot.slane %v2964, 4
      %v2966 = vrot.slane %v2120, 5
      %v2967 = vsel %vm1278, %v2965, %v2966
      %v2968 = vrot.slane %v2966, 4
      %v2969 = vrot.slane %v2121, 5
      %v2970 = vsel %vm1278, %v2968, %v2969
      %v2971 = vrot.slane %v2859, 5
      %v2972 = vrot.slane %v2971, 4
      %v2973 = vrot.slane %v2123, 5
      %v2974 = vsel %vm1278, %v2972, %v2973
      %v2975 = vrot.slane %v2973, 4
      %v2976 = vrot.slane %v2124, 5
      %v2977 = vsel %vm1278, %v2975, %v2976
      %v2978 = vrot.slane %v2860, 5
      %v2979 = vrot.slane %v2978, 4
      %v2980 = vrot.slane %v2126, 5
      %v2981 = vsel %vm1278, %v2979, %v2980
      %v2982 = vrot.slane %v2980, 4
      %v2983 = vrot.slane %v2127, 5
      %v2984 = vsel %vm1278, %v2982, %v2983
      %v2985 = vrot.slane %v2861, 5
      %v2986 = vrot.slane %v2985, 4
      %v2987 = vrot.slane %v2129, 5
      %v2988 = vsel %vm1278, %v2986, %v2987
      %v2989 = vrot.slane %v2987, 4
      %v2990 = vrot.slane %v2130, 5
      %v2991 = vsel %vm1278, %v2989, %v2990
      %v2992 = vrot.slane %v2862, 5
      %v2993 = vrot.slane %v2992, 4
      %v2994 = vrot.slane %v2132, 5
      %v2995 = vsel %vm1278, %v2993, %v2994
      %v2996 = vrot.slane %v2994, 4
      %v2997 = vrot.slane %v2133, 5
      %v2998 = vsel %vm1278, %v2996, %v2997
      %v2999 = vrot.slane %v2863, 5
      %v3000 = vrot.slane %v2999, 4
      %v3001 = vrot.slane %v2135, 5
      %v3002 = vsel %vm1278, %v3000, %v3001
      %v3003 = vrot.slane %v3001, 4
      %v3004 = vrot.slane %v2136, 5
      %v3005 = vsel %vm1278, %v3003, %v3004
      %v3006 = vrot.slane %v2864, 5
      %v3007 = vrot.slane %v3006, 4
      %v3008 = vrot.slane %v2138, 5
      %v3009 = vsel %vm1278, %v3007, %v3008
      %v3010 = vrot.slane %v3008, 4
      %v3011 = vrot.slane %v2139, 5
      %v3012 = vsel %vm1278, %v3010, %v3011
      %v3013 = vrot.slane %v2865, 5
      %v3014 = vrot.slane %v3013, 4
      %v3015 = vrot.slane %v2141, 5
      %v3016 = vsel %vm1278, %v3014, %v3015
      %v3017 = vrot.slane %v3015, 4
      %v3018 = vrot.slane %v2142, 5
      %v3019 = vsel %vm1278, %v3017, %v3018
      %v3020 = vrot.slane %v2866, 5
      %v3021 = vrot.slane %v3020, 4
      %v3022 = vrot.slane %v2144, 5
      %v3023 = vsel %vm1278, %v3021, %v3022
      %v3024 = vrot.slane %v3022, 4
      %v3025 = vrot.slane %v2145, 5
      %v3026 = vsel %vm1278, %v3024, %v3025
      %v3027 = vld [vmem:[%s1 + $0x140] sm:$0xf]
      %v3028 = vld [vmem:[%s1 + $0x144] sm:$0xf]
      %v3029 = vld [vmem:[%s1 + $0x148] sm:$0xf]
      %v3030 = vld [vmem:[%s1 + $0x14c] sm:$0xf]
      %v3031 = vld [vmem:[%s1 + $0x150] sm:$0xf]
      %v3032 = vld [vmem:[%s1 + $0x154] sm:$0xf]
      %v3033 = vld [vmem:[%s1 + $0x158] sm:$0xf]
      %v3034 = vld [vmem:[%s1 + $0x15c] sm:$0xf]
      %v3035 = vld [vmem:[%s1 + $0x160] sm:$0xf]
      %v3036 = vld [vmem:[%s1 + $0x164] sm:$0xf]
      %v3037 = vld [vmem:[%s1 + $0x168] sm:$0xf]
      %v3038 = vld [vmem:[%s1 + $0x16c] sm:$0xf]
      %v3039 = vld [vmem:[%s1 + $0x170] sm:$0xf]
      %v3040 = vld [vmem:[%s1 + $0x174] sm:$0xf]
      %v3041 = vld [vmem:[%s1 + $0x178] sm:$0xf]
      %v3042 = vld [vmem:[%s1 + $0x17c] sm:$0xf]
      %v3043 = vunpack.c.l.b16 %v2918
      %v3044 = vunpack.c.l.b16 %v2921
      %v3045 = vunpack.c.l.b16 %v2925
      %v3046 = vunpack.c.l.b16 %v2928
      %v3047 = vunpack.c.l.b16 %v2932
      %v3048 = vunpack.c.l.b16 %v2935
      %v3049 = vunpack.c.l.b16 %v2939
      %v3050 = vunpack.c.l.b16 %v2942
      %v3051 = vunpack.c.l.b16 %v2946
      %v3052 = vunpack.c.l.b16 %v2949
      %v3053 = vunpack.c.l.b16 %v2953
      %v3054 = vunpack.c.l.b16 %v2956
      %v3055 = vunpack.c.l.b16 %v2960
      %v3056 = vunpack.c.l.b16 %v2963
      %v3057 = vunpack.c.l.b16 %v2967
      %v3058 = vunpack.c.l.b16 %v2970
      %v3059 = vunpack.c.l.b16 %v2974
      %v3060 = vunpack.c.l.b16 %v2977
      %v3061 = vunpack.c.l.b16 %v2981
      %v3062 = vunpack.c.l.b16 %v2984
      %v3063 = vunpack.c.l.b16 %v2988
      %v3064 = vunpack.c.l.b16 %v2991
      %v3065 = vunpack.c.l.b16 %v2995
      %v3066 = vunpack.c.l.b16 %v2998
      %v3067 = vunpack.c.l.b16 %v3002
      %v3068 = vunpack.c.l.b16 %v3005
      %v3069 = vunpack.c.l.b16 %v3009
      %v3070 = vunpack.c.l.b16 %v3012
      %v3071 = vunpack.c.l.b16 %v3016
      %v3072 = vunpack.c.l.b16 %v3019
      %v3073 = vunpack.c.l.b16 %v3023
      %v3074 = vunpack.c.l.b16 %v3026
      %v3075 = vpack.c.b16 %v3044, %v3043
      %v3076 = vpack.c.b16 %v3046, %v3045
      %v3077 = vpack.c.b16 %v3048, %v3047
      %v3078 = vpack.c.b16 %v3050, %v3049
      %v3079 = vpack.c.b16 %v3052, %v3051
      %v3080 = vpack.c.b16 %v3054, %v3053
      %v3081 = vpack.c.b16 %v3056, %v3055
      %v3082 = vpack.c.b16 %v3058, %v3057
      %v3083 = vpack.c.b16 %v3060, %v3059
      %v3084 = vpack.c.b16 %v3062, %v3061
      %v3085 = vpack.c.b16 %v3064, %v3063
      %v3086 = vpack.c.b16 %v3066, %v3065
      %v3087 = vpack.c.b16 %v3068, %v3067
      %v3088 = vpack.c.b16 %v3070, %v3069
      %v3089 = vpack.c.b16 %v3072, %v3071
      %v3090 = vpack.c.b16 %v3074, %v3073
      %v3123 = vunpack.c.l.b16 %v3027
      %v3124 = vunpack.c.l.b16 %v3028
      %v3125 = vunpack.c.l.b16 %v3029
      %v3126 = vunpack.c.l.b16 %v3030
      %v3127 = vunpack.c.l.b16 %v3031
      %v3128 = vunpack.c.l.b16 %v3032
      %v3129 = vunpack.c.l.b16 %v3033
      %v3130 = vunpack.c.l.b16 %v3034
      %v3131 = vunpack.c.l.b16 %v3035
      %v3132 = vunpack.c.l.b16 %v3036
      %v3133 = vunpack.c.l.b16 %v3037
      %v3134 = vunpack.c.l.b16 %v3038
      %v3135 = vunpack.c.l.b16 %v3039
      %v3136 = vunpack.c.l.b16 %v3040
      %v3137 = vunpack.c.l.b16 %v3041
      %v3138 = vunpack.c.l.b16 %v3042
      %v3139 = vpack.c.b16 %v3124, %v3123
      %v3140 = vpack.c.b16 %v3126, %v3125
      %v3141 = vpack.c.b16 %v3128, %v3127
      %v3142 = vpack.c.b16 %v3130, %v3129
      %v3143 = vpack.c.b16 %v3132, %v3131
      %v3144 = vpack.c.b16 %v3134, %v3133
      %v3145 = vpack.c.b16 %v3136, %v3135
      %v3146 = vpack.c.b16 %v3138, %v3137
      %3155 = vmatprep.subr.bf16.mxu0 0
      %3156 = vmatpush1.bf16.msra.mxu0 %v3146
      %3157 = vmatprep.subr.bf16.mxu0 0
      %3158 = vmatpush1.bf16.msra.mxu0 %v3145
      %3159 = vmatprep.subr.bf16.mxu0 0
      %3160 = vmatpush1.bf16.msra.mxu0 %v3144
      %3161 = vmatprep.subr.bf16.mxu0 0
      %3162 = vmatpush1.bf16.msra.mxu0 %v3143
      %3163 = vmatprep.subr.bf16.mxu0 0
      %3164 = vmatpush1.bf16.msra.mxu0 %v3142
      %3165 = vmatprep.subr.bf16.mxu0 0
      %3166 = vmatpush1.bf16.msra.mxu0 %v3141
      %3167 = vmatprep.subr.bf16.mxu0 0
      %3168 = vmatpush1.bf16.msra.mxu0 %v3140
      %3169 = vmatprep.subr.bf16.mxu0 0
      %3170 = vmatpush1.bf16.msra.mxu0 %v3139
      %3171 = vmatprep.subr.bf16.mxu0 0
      %3172 = vmatpush2.bf16.msra.mxu0 0
      %3173 = vmatprep.subr.bf16.mxu0 0
      %3174 = vmatpush2.bf16.msra.mxu0 0
      %3175 = vmatprep.subr.bf16.mxu0 0
      %3176 = vmatpush2.bf16.msra.mxu0 0
      %3177 = vmatprep.subr.bf16.mxu0 0
      %3178 = vmatpush2.bf16.msra.mxu0 0
      %3179 = vmatprep.subr.bf16.mxu0 0
      %3180 = vmatpush2.bf16.msra.mxu0 0
      %3181 = vmatprep.subr.bf16.mxu0 0
      %3182 = vmatpush2.bf16.msra.mxu0 0
      %3183 = vmatprep.subr.bf16.mxu0 0
      %3184 = vmatpush2.bf16.msra.mxu0 0
      %3185 = vmatprep.subr.bf16.mxu0 0
      %3186 = vmatpush2.bf16.msra.mxu0 0
      %3187 = vmatprep.mubr.bf16.mxu0 0
      %3188 = vmatmul.mubr.bf16.gmra.mxu0 %v3075
      %v3189 = vpop.f32.mrf.mxu0
      %v3190 = vadd.f32 0.0, %v3189
      %v3191 = vpop.f32.mrf.mxu0
      %v3192 = vpop.f32.mrf.mxu0
      %v3193 = vadd.f32 0.0, %v3192
      %v3194 = vpop.f32.mrf.mxu0
      %3195 = vmatprep.mubr.bf16.mxu0 0
      %3196 = vmatmul.mubr.bf16.gmra.mxu0 %v3076
      %v3197 = vpop.f32.mrf.mxu0
      %v3198 = vadd.f32 0.0, %v3197
      %v3199 = vpop.f32.mrf.mxu0
      %v3200 = vpop.f32.mrf.mxu0
      %v3201 = vadd.f32 0.0, %v3200
      %v3202 = vpop.f32.mrf.mxu0
      %3203 = vmatprep.mubr.bf16.mxu0 0
      %3204 = vmatmul.mubr.bf16.gmra.mxu0 %v3077
      %v3205 = vpop.f32.mrf.mxu0
      %v3206 = vadd.f32 0.0, %v3205
      %v3207 = vpop.f32.mrf.mxu0
      %v3208 = vpop.f32.mrf.mxu0
      %v3209 = vadd.f32 0.0, %v3208
      %v3210 = vpop.f32.mrf.mxu0
      %3211 = vmatprep.mubr.bf16.mxu0 0
      %3212 = vmatmul.mubr.bf16.gmra.mxu0 %v3078
      %v3213 = vpop.f32.mrf.mxu0
      %v3214 = vadd.f32 0.0, %v3213
      %v3215 = vpop.f32.mrf.mxu0
      %v3216 = vpop.f32.mrf.mxu0
      %v3217 = vadd.f32 0.0, %v3216
      %v3218 = vpop.f32.mrf.mxu0
      %3219 = vmatprep.mubr.bf16.mxu0 0
      %3220 = vmatmul.mubr.bf16.gmra.mxu0 %v3079
      %v3221 = vpop.f32.mrf.mxu0
      %v3222 = vadd.f32 0.0, %v3221
      %v3223 = vpop.f32.mrf.mxu0
      %v3224 = vpop.f32.mrf.mxu0
      %v3225 = vadd.f32 0.0, %v3224
      %v3226 = vpop.f32.mrf.mxu0
      %3227 = vmatprep.mubr.bf16.mxu0 0
      %3228 = vmatmul.mubr.bf16.gmra.mxu0 %v3080
      %v3229 = vpop.f32.mrf.mxu0
      %v3230 = vadd.f32 0.0, %v3229
      %v3231 = vpop.f32.mrf.mxu0
      %v3232 = vpop.f32.mrf.mxu0
      %v3233 = vadd.f32 0.0, %v3232
      %v3234 = vpop.f32.mrf.mxu0
      %3235 = vmatprep.mubr.bf16.mxu0 0
      %3236 = vmatmul.mubr.bf16.gmra.mxu0 %v3081
      %v3237 = vpop.f32.mrf.mxu0
      %v3238 = vadd.f32 0.0, %v3237
      %v3239 = vpop.f32.mrf.mxu0
      %v3240 = vpop.f32.mrf.mxu0
      %v3241 = vadd.f32 0.0, %v3240
      %v3242 = vpop.f32.mrf.mxu0
      %3243 = vmatprep.mubr.bf16.mxu0 0
      %3244 = vmatmul.mubr.bf16.gmra.mxu0 %v3082
      %v3245 = vpop.f32.mrf.mxu0
      %v3246 = vadd.f32 0.0, %v3245
      %v3247 = vpop.f32.mrf.mxu0
      %v3248 = vpop.f32.mrf.mxu0
      %v3249 = vadd.f32 0.0, %v3248
      %v3250 = vpop.f32.mrf.mxu0
      %3251 = vmatprep.mubr.bf16.mxu0 0
      %3252 = vmatmul.mubr.bf16.gmra.mxu0 %v3083
      %v3253 = vpop.f32.mrf.mxu0
      %v3254 = vadd.f32 0.0, %v3253
      %v3255 = vpop.f32.mrf.mxu0
      %v3256 = vpop.f32.mrf.mxu0
      %v3257 = vadd.f32 0.0, %v3256
      %v3258 = vpop.f32.mrf.mxu0
      %3259 = vmatprep.mubr.bf16.mxu0 0
      %3260 = vmatmul.mubr.bf16.gmra.mxu0 %v3084
      %v3261 = vpop.f32.mrf.mxu0
      %v3262 = vadd.f32 0.0, %v3261
      %v3263 = vpop.f32.mrf.mxu0
      %v3264 = vpop.f32.mrf.mxu0
      %v3265 = vadd.f32 0.0, %v3264
      %v3266 = vpop.f32.mrf.mxu0
      %3267 = vmatprep.mubr.bf16.mxu0 0
      %3268 = vmatmul.mubr.bf16.gmra.mxu0 %v3085
      %v3269 = vpop.f32.mrf.mxu0
      %v3270 = vadd.f32 0.0, %v3269
      %v3271 = vpop.f32.mrf.mxu0
      %v3272 = vpop.f32.mrf.mxu0
      %v3273 = vadd.f32 0.0, %v3272
      %v3274 = vpop.f32.mrf.mxu0
      %3275 = vmatprep.mubr.bf16.mxu0 0
      %3276 = vmatmul.mubr.bf16.gmra.mxu0 %v3086
      %v3277 = vpop.f32.mrf.mxu0
      %v3278 = vadd.f32 0.0, %v3277
      %v3279 = vpop.f32.mrf.mxu0
      %v3280 = vpop.f32.mrf.mxu0
      %v3281 = vadd.f32 0.0, %v3280
      %v3282 = vpop.f32.mrf.mxu0
      %3283 = vmatprep.mubr.bf16.mxu0 0
      %3284 = vmatmul.mubr.bf16.gmra.mxu0 %v3087
      %v3285 = vpop.f32.mrf.mxu0
      %v3286 = vadd.f32 0.0, %v3285
      %v3287 = vpop.f32.mrf.mxu0
      %v3288 = vpop.f32.mrf.mxu0
      %v3289 = vadd.f32 0.0, %v3288
      %v3290 = vpop.f32.mrf.mxu0
      %3291 = vmatprep.mubr.bf16.mxu0 0
      %3292 = vmatmul.mubr.bf16.gmra.mxu0 %v3088
      %v3293 = vpop.f32.mrf.mxu0
      %v3294 = vadd.f32 0.0, %v3293
      %v3295 = vpop.f32.mrf.mxu0
      %v3296 = vpop.f32.mrf.mxu0
      %v3297 = vadd.f32 0.0, %v3296
      %v3298 = vpop.f32.mrf.mxu0
      %3299 = vmatprep.mubr.bf16.mxu0 0
      %3300 = vmatmul.mubr.bf16.gmra.mxu0 %v3089
      %v3301 = vpop.f32.mrf.mxu0
      %v3302 = vadd.f32 0.0, %v3301
      %v3303 = vpop.f32.mrf.mxu0
      %v3304 = vpop.f32.mrf.mxu0
      %v3305 = vadd.f32 0.0, %v3304
      %v3306 = vpop.f32.mrf.mxu0
      %3307 = vmatprep.mubr.bf16.mxu0 0
      %3308 = vmatmul.mubr.bf16.gmra.mxu0 %v3090
      %v3309 = vpop.f32.mrf.mxu0
      %v3310 = vadd.f32 0.0, %v3309
      %v3311 = vpop.f32.mrf.mxu0
      %v3312 = vpop.f32.mrf.mxu0
      %v3313 = vadd.f32 0.0, %v3312
      %v3314 = vpop.f32.mrf.mxu0
      %3315 = vdwg.mxu0
      %v3316 = vadd.f32 %v2819, %v3190
      %v3317 = vadd.f32 %v2820, %v3193
      %v3318 = vadd.f32 %v2821, %v3198
      %v3319 = vadd.f32 %v2822, %v3201
      %v3320 = vadd.f32 %v2823, %v3206
      %v3321 = vadd.f32 %v2824, %v3209
      %v3322 = vadd.f32 %v2825, %v3214
      %v3323 = vadd.f32 %v2826, %v3217
      %v3324 = vadd.f32 %v2827, %v3222
      %v3325 = vadd.f32 %v2828, %v3225
      %v3326 = vadd.f32 %v2829, %v3230
      %v3327 = vadd.f32 %v2830, %v3233
      %v3328 = vadd.f32 %v2831, %v3238
      %v3329 = vadd.f32 %v2832, %v3241
      %v3330 = vadd.f32 %v2833, %v3246
      %v3331 = vadd.f32 %v2834, %v3249
      %v3332 = vadd.f32 %v2835, %v3254
      %v3333 = vadd.f32 %v2836, %v3257
      %v3334 = vadd.f32 %v2837, %v3262
      %v3335 = vadd.f32 %v2838, %v3265
      %v3336 = vadd.f32 %v2839, %v3270
      %v3337 = vadd.f32 %v2840, %v3273
      %v3338 = vadd.f32 %v2841, %v3278
      %v3339 = vadd.f32 %v2842, %v3281
      %v3340 = vadd.f32 %v2843, %v3286
      %v3341 = vadd.f32 %v2844, %v3289
      %v3342 = vadd.f32 %v2845, %v3294
      %v3343 = vadd.f32 %v2846, %v3297
      %v3344 = vadd.f32 %v2847, %v3302
      %v3345 = vadd.f32 %v2848, %v3305
      %v3346 = vadd.f32 %v2849, %v3310
      %v3347 = vadd.f32 %v2850, %v3313
      %s3348 = scalar_lea.vmem %s172, 24
      %v3349 = vld [vmem:[%s3348] sm:$0xf]
      %v3350 = vld [vmem:[%s3348 + $0x4] sm:$0xf]
      %v3351 = vld [vmem:[%s3348 + $0xc] sm:$0xf]
      %v3352 = vld [vmem:[%s3348 + $0x10] sm:$0xf]
      %v3353 = vld [vmem:[%s3348 + $0x18] sm:$0xf]
      %v3354 = vld [vmem:[%s3348 + $0x1c] sm:$0xf]
      %v3355 = vld [vmem:[%s3348 + $0x24] sm:$0xf]
      %v3356 = vld [vmem:[%s3348 + $0x28] sm:$0xf]
      %v3357 = vld [vmem:[%s3348 + $0x30] sm:$0xf]
      %v3358 = vld [vmem:[%s3348 + $0x34] sm:$0xf]
      %v3359 = vld [vmem:[%s3348 + $0x3c] sm:$0xf]
      %v3360 = vld [vmem:[%s3348 + $0x40] sm:$0xf]
      %v3361 = vld [vmem:[%s3348 + $0x48] sm:$0xf]
      %v3362 = vld [vmem:[%s3348 + $0x4c] sm:$0xf]
      %v3363 = vld [vmem:[%s3348 + $0x54] sm:$0xf]
      %v3364 = vld [vmem:[%s3348 + $0x58] sm:$0xf]
      %v3365 = vld [vmem:[%s3348 + $0x60] sm:$0xf]
      %v3366 = vld [vmem:[%s3348 + $0x64] sm:$0xf]
      %v3367 = vld [vmem:[%s3348 + $0x6c] sm:$0xf]
      %v3368 = vld [vmem:[%s3348 + $0x70] sm:$0xf]
      %v3369 = vld [vmem:[%s3348 + $0x78] sm:$0xf]
      %v3370 = vld [vmem:[%s3348 + $0x7c] sm:$0xf]
      %v3371 = vld [vmem:[%s3348 + $0x84] sm:$0xf]
      %v3372 = vld [vmem:[%s3348 + $0x88] sm:$0xf]
      %v3373 = vld [vmem:[%s3348 + $0x90] sm:$0xf]
      %v3374 = vld [vmem:[%s3348 + $0x94] sm:$0xf]
      %v3375 = vld [vmem:[%s3348 + $0x9c] sm:$0xf]
      %v3376 = vld [vmem:[%s3348 + $0xa0] sm:$0xf]
      %v3377 = vld [vmem:[%s3348 + $0xa8] sm:$0xf]
      %v3378 = vld [vmem:[%s3348 + $0xac] sm:$0xf]
      %v3379 = vld [vmem:[%s3348 + $0xb4] sm:$0xf]
      %v3380 = vld [vmem:[%s3348 + $0xb8] sm:$0xf]
      %v3381 = vld [vmem:[%s1 + $0x180] sm:$0xf]
      %v3382 = vld [vmem:[%s1 + $0x184] sm:$0xf]
      %v3383 = vld [vmem:[%s1 + $0x188] sm:$0xf]
      %v3384 = vld [vmem:[%s1 + $0x18c] sm:$0xf]
      %v3385 = vld [vmem:[%s1 + $0x190] sm:$0xf]
      %v3386 = vld [vmem:[%s1 + $0x194] sm:$0xf]
      %v3387 = vld [vmem:[%s1 + $0x198] sm:$0xf]
      %v3388 = vld [vmem:[%s1 + $0x19c] sm:$0xf]
      %v3389 = vld [vmem:[%s1 + $0x1a0] sm:$0xf]
      %v3390 = vld [vmem:[%s1 + $0x1a4] sm:$0xf]
      %v3391 = vld [vmem:[%s1 + $0x1a8] sm:$0xf]
      %v3392 = vld [vmem:[%s1 + $0x1ac] sm:$0xf]
      %v3393 = vld [vmem:[%s1 + $0x1b0] sm:$0xf]
      %v3394 = vld [vmem:[%s1 + $0x1b4] sm:$0xf]
      %v3395 = vld [vmem:[%s1 + $0x1b8] sm:$0xf]
      %v3396 = vld [vmem:[%s1 + $0x1bc] sm:$0xf]
      %v3429 = vunpack.c.l.b16 %v3349
      %v3430 = vunpack.c.l.b16 %v3350
      %v3431 = vunpack.c.l.b16 %v3351
      %v3432 = vunpack.c.l.b16 %v3352
      %v3433 = vunpack.c.l.b16 %v3353
      %v3434 = vunpack.c.l.b16 %v3354
      %v3435 = vunpack.c.l.b16 %v3355
      %v3436 = vunpack.c.l.b16 %v3356
      %v3437 = vunpack.c.l.b16 %v3357
      %v3438 = vunpack.c.l.b16 %v3358
      %v3439 = vunpack.c.l.b16 %v3359
      %v3440 = vunpack.c.l.b16 %v3360
      %v3441 = vunpack.c.l.b16 %v3361
      %v3442 = vunpack.c.l.b16 %v3362
      %v3443 = vunpack.c.l.b16 %v3363
      %v3444 = vunpack.c.l.b16 %v3364
      %v3445 = vunpack.c.l.b16 %v3365
      %v3446 = vunpack.c.l.b16 %v3366
      %v3447 = vunpack.c.l.b16 %v3367
      %v3448 = vunpack.c.l.b16 %v3368
      %v3449 = vunpack.c.l.b16 %v3369
      %v3450 = vunpack.c.l.b16 %v3370
      %v3451 = vunpack.c.l.b16 %v3371
      %v3452 = vunpack.c.l.b16 %v3372
      %v3453 = vunpack.c.l.b16 %v3373
      %v3454 = vunpack.c.l.b16 %v3374
      %v3455 = vunpack.c.l.b16 %v3375
      %v3456 = vunpack.c.l.b16 %v3376
      %v3457 = vunpack.c.l.b16 %v3377
      %v3458 = vunpack.c.l.b16 %v3378
      %v3459 = vunpack.c.l.b16 %v3379
      %v3460 = vunpack.c.l.b16 %v3380
      %v3461 = vpack.c.b16 %v3430, %v3429
      %v3462 = vpack.c.b16 %v3432, %v3431
      %v3463 = vpack.c.b16 %v3434, %v3433
      %v3464 = vpack.c.b16 %v3436, %v3435
      %v3465 = vpack.c.b16 %v3438, %v3437
      %v3466 = vpack.c.b16 %v3440, %v3439
      %v3467 = vpack.c.b16 %v3442, %v3441
      %v3468 = vpack.c.b16 %v3444, %v3443
      %v3469 = vpack.c.b16 %v3446, %v3445
      %v3470 = vpack.c.b16 %v3448, %v3447
      %v3471 = vpack.c.b16 %v3450, %v3449
      %v3472 = vpack.c.b16 %v3452, %v3451
      %v3473 = vpack.c.b16 %v3454, %v3453
      %v3474 = vpack.c.b16 %v3456, %v3455
      %v3475 = vpack.c.b16 %v3458, %v3457
      %v3476 = vpack.c.b16 %v3460, %v3459
      %v3509 = vunpack.c.l.b16 %v3381
      %v3510 = vunpack.c.l.b16 %v3382
      %v3511 = vunpack.c.l.b16 %v3383
      %v3512 = vunpack.c.l.b16 %v3384
      %v3513 = vunpack.c.l.b16 %v3385
      %v3514 = vunpack.c.l.b16 %v3386
      %v3515 = vunpack.c.l.b16 %v3387
      %v3516 = vunpack.c.l.b16 %v3388
      %v3517 = vunpack.c.l.b16 %v3389
      %v3518 = vunpack.c.l.b16 %v3390
      %v3519 = vunpack.c.l.b16 %v3391
      %v3520 = vunpack.c.l.b16 %v3392
      %v3521 = vunpack.c.l.b16 %v3393
      %v3522 = vunpack.c.l.b16 %v3394
      %v3523 = vunpack.c.l.b16 %v3395
      %v3524 = vunpack.c.l.b16 %v3396
      %v3525 = vpack.c.b16 %v3510, %v3509
      %v3526 = vpack.c.b16 %v3512, %v3511
      %v3527 = vpack.c.b16 %v3514, %v3513
      %v3528 = vpack.c.b16 %v3516, %v3515
      %v3529 = vpack.c.b16 %v3518, %v3517
      %v3530 = vpack.c.b16 %v3520, %v3519
      %v3531 = vpack.c.b16 %v3522, %v3521
      %v3532 = vpack.c.b16 %v3524, %v3523
      %3541 = vmatprep.subr.bf16.mxu0 0
      %3542 = vmatpush1.bf16.msra.mxu0 %v3532
      %3543 = vmatprep.subr.bf16.mxu0 0
      %3544 = vmatpush1.bf16.msra.mxu0 %v3531
      %3545 = vmatprep.subr.bf16.mxu0 0
      %3546 = vmatpush1.bf16.msra.mxu0 %v3530
      %3547 = vmatprep.subr.bf16.mxu0 0
      %3548 = vmatpush1.bf16.msra.mxu0 %v3529
      %3549 = vmatprep.subr.bf16.mxu0 0
      %3550 = vmatpush1.bf16.msra.mxu0 %v3528
      %3551 = vmatprep.subr.bf16.mxu0 0
      %3552 = vmatpush1.bf16.msra.mxu0 %v3527
      %3553 = vmatprep.subr.bf16.mxu0 0
      %3554 = vmatpush1.bf16.msra.mxu0 %v3526
      %3555 = vmatprep.subr.bf16.mxu0 0
      %3556 = vmatpush1.bf16.msra.mxu0 %v3525
      %3557 = vmatprep.subr.bf16.mxu0 0
      %3558 = vmatpush2.bf16.msra.mxu0 0
      %3559 = vmatprep.subr.bf16.mxu0 0
      %3560 = vmatpush2.bf16.msra.mxu0 0
      %3561 = vmatprep.subr.bf16.mxu0 0
      %3562 = vmatpush2.bf16.msra.mxu0 0
      %3563 = vmatprep.subr.bf16.mxu0 0
      %3564 = vmatpush2.bf16.msra.mxu0 0
      %3565 = vmatprep.subr.bf16.mxu0 0
      %3566 = vmatpush2.bf16.msra.mxu0 0
      %3567 = vmatprep.subr.bf16.mxu0 0
      %3568 = vmatpush2.bf16.msra.mxu0 0
      %3569 = vmatprep.subr.bf16.mxu0 0
      %3570 = vmatpush2.bf16.msra.mxu0 0
      %3571 = vmatprep.subr.bf16.mxu0 0
      %3572 = vmatpush2.bf16.msra.mxu0 0
      %3573 = vmatprep.mubr.bf16.mxu0 0
      %3574 = vmatmul.mubr.bf16.gmra.mxu0 %v3461
      %v3575 = vpop.f32.mrf.mxu0
      %v3576 = vadd.f32 0.0, %v3575
      %v3577 = vpop.f32.mrf.mxu0
      %v3578 = vpop.f32.mrf.mxu0
      %v3579 = vadd.f32 0.0, %v3578
      %v3580 = vpop.f32.mrf.mxu0
      %3581 = vmatprep.mubr.bf16.mxu0 0
      %3582 = vmatmul.mubr.bf16.gmra.mxu0 %v3462
      %v3583 = vpop.f32.mrf.mxu0
      %v3584 = vadd.f32 0.0, %v3583
      %v3585 = vpop.f32.mrf.mxu0
      %v3586 = vpop.f32.mrf.mxu0
      %v3587 = vadd.f32 0.0, %v3586
      %v3588 = vpop.f32.mrf.mxu0
      %3589 = vmatprep.mubr.bf16.mxu0 0
      %3590 = vmatmul.mubr.bf16.gmra.mxu0 %v3463
      %v3591 = vpop.f32.mrf.mxu0
      %v3592 = vadd.f32 0.0, %v3591
      %v3593 = vpop.f32.mrf.mxu0
      %v3594 = vpop.f32.mrf.mxu0
      %v3595 = vadd.f32 0.0, %v3594
      %v3596 = vpop.f32.mrf.mxu0
      %3597 = vmatprep.mubr.bf16.mxu0 0
      %3598 = vmatmul.mubr.bf16.gmra.mxu0 %v3464
      %v3599 = vpop.f32.mrf.mxu0
      %v3600 = vadd.f32 0.0, %v3599
      %v3601 = vpop.f32.mrf.mxu0
      %v3602 = vpop.f32.mrf.mxu0
      %v3603 = vadd.f32 0.0, %v3602
      %v3604 = vpop.f32.mrf.mxu0
      %3605 = vmatprep.mubr.bf16.mxu0 0
      %3606 = vmatmul.mubr.bf16.gmra.mxu0 %v3465
      %v3607 = vpop.f32.mrf.mxu0
      %v3608 = vadd.f32 0.0, %v3607
      %v3609 = vpop.f32.mrf.mxu0
      %v3610 = vpop.f32.mrf.mxu0
      %v3611 = vadd.f32 0.0, %v3610
      %v3612 = vpop.f32.mrf.mxu0
      %3613 = vmatprep.mubr.bf16.mxu0 0
      %3614 = vmatmul.mubr.bf16.gmra.mxu0 %v3466
      %v3615 = vpop.f32.mrf.mxu0
      %v3616 = vadd.f32 0.0, %v3615
      %v3617 = vpop.f32.mrf.mxu0
      %v3618 = vpop.f32.mrf.mxu0
      %v3619 = vadd.f32 0.0, %v3618
      %v3620 = vpop.f32.mrf.mxu0
      %3621 = vmatprep.mubr.bf16.mxu0 0
      %3622 = vmatmul.mubr.bf16.gmra.mxu0 %v3467
      %v3623 = vpop.f32.mrf.mxu0
      %v3624 = vadd.f32 0.0, %v3623
      %v3625 = vpop.f32.mrf.mxu0
      %v3626 = vpop.f32.mrf.mxu0
      %v3627 = vadd.f32 0.0, %v3626
      %v3628 = vpop.f32.mrf.mxu0
      %3629 = vmatprep.mubr.bf16.mxu0 0
      %3630 = vmatmul.mubr.bf16.gmra.mxu0 %v3468
      %v3631 = vpop.f32.mrf.mxu0
      %v3632 = vadd.f32 0.0, %v3631
      %v3633 = vpop.f32.mrf.mxu0
      %v3634 = vpop.f32.mrf.mxu0
      %v3635 = vadd.f32 0.0, %v3634
      %v3636 = vpop.f32.mrf.mxu0
      %3637 = vmatprep.mubr.bf16.mxu0 0
      %3638 = vmatmul.mubr.bf16.gmra.mxu0 %v3469
      %v3639 = vpop.f32.mrf.mxu0
      %v3640 = vadd.f32 0.0, %v3639
      %v3641 = vpop.f32.mrf.mxu0
      %v3642 = vpop.f32.mrf.mxu0
      %v3643 = vadd.f32 0.0, %v3642
      %v3644 = vpop.f32.mrf.mxu0
      %3645 = vmatprep.mubr.bf16.mxu0 0
      %3646 = vmatmul.mubr.bf16.gmra.mxu0 %v3470
      %v3647 = vpop.f32.mrf.mxu0
      %v3648 = vadd.f32 0.0, %v3647
      %v3649 = vpop.f32.mrf.mxu0
      %v3650 = vpop.f32.mrf.mxu0
      %v3651 = vadd.f32 0.0, %v3650
      %v3652 = vpop.f32.mrf.mxu0
      %3653 = vmatprep.mubr.bf16.mxu0 0
      %3654 = vmatmul.mubr.bf16.gmra.mxu0 %v3471
      %v3655 = vpop.f32.mrf.mxu0
      %v3656 = vadd.f32 0.0, %v3655
      %v3657 = vpop.f32.mrf.mxu0
      %v3658 = vpop.f32.mrf.mxu0
      %v3659 = vadd.f32 0.0, %v3658
      %v3660 = vpop.f32.mrf.mxu0
      %3661 = vmatprep.mubr.bf16.mxu0 0
      %3662 = vmatmul.mubr.bf16.gmra.mxu0 %v3472
      %v3663 = vpop.f32.mrf.mxu0
      %v3664 = vadd.f32 0.0, %v3663
      %v3665 = vpop.f32.mrf.mxu0
      %v3666 = vpop.f32.mrf.mxu0
      %v3667 = vadd.f32 0.0, %v3666
      %v3668 = vpop.f32.mrf.mxu0
      %3669 = vmatprep.mubr.bf16.mxu0 0
      %3670 = vmatmul.mubr.bf16.gmra.mxu0 %v3473
      %v3671 = vpop.f32.mrf.mxu0
      %v3672 = vadd.f32 0.0, %v3671
      %v3673 = vpop.f32.mrf.mxu0
      %v3674 = vpop.f32.mrf.mxu0
      %v3675 = vadd.f32 0.0, %v3674
      %v3676 = vpop.f32.mrf.mxu0
      %3677 = vmatprep.mubr.bf16.mxu0 0
      %3678 = vmatmul.mubr.bf16.gmra.mxu0 %v3474
      %v3679 = vpop.f32.mrf.mxu0
      %v3680 = vadd.f32 0.0, %v3679
      %v3681 = vpop.f32.mrf.mxu0
      %v3682 = vpop.f32.mrf.mxu0
      %v3683 = vadd.f32 0.0, %v3682
      %v3684 = vpop.f32.mrf.mxu0
      %3685 = vmatprep.mubr.bf16.mxu0 0
      %3686 = vmatmul.mubr.bf16.gmra.mxu0 %v3475
      %v3687 = vpop.f32.mrf.mxu0
      %v3688 = vadd.f32 0.0, %v3687
      %v3689 = vpop.f32.mrf.mxu0
      %v3690 = vpop.f32.mrf.mxu0
      %v3691 = vadd.f32 0.0, %v3690
      %v3692 = vpop.f32.mrf.mxu0
      %3693 = vmatprep.mubr.bf16.mxu0 0
      %3694 = vmatmul.mubr.bf16.gmra.mxu0 %v3476
      %v3695 = vpop.f32.mrf.mxu0
      %v3696 = vadd.f32 0.0, %v3695
      %v3697 = vpop.f32.mrf.mxu0
      %v3698 = vpop.f32.mrf.mxu0
      %v3699 = vadd.f32 0.0, %v3698
      %v3700 = vpop.f32.mrf.mxu0
      %3701 = vdwg.mxu0
      %v3702 = vadd.f32 %v3316, %v3576
      %v3703 = vadd.f32 %v3317, %v3579
      %v3704 = vadd.f32 %v3318, %v3584
      %v3705 = vadd.f32 %v3319, %v3587
      %v3706 = vadd.f32 %v3320, %v3592
      %v3707 = vadd.f32 %v3321, %v3595
      %v3708 = vadd.f32 %v3322, %v3600
      %v3709 = vadd.f32 %v3323, %v3603
      %v3710 = vadd.f32 %v3324, %v3608
      %v3711 = vadd.f32 %v3325, %v3611
      %v3712 = vadd.f32 %v3326, %v3616
      %v3713 = vadd.f32 %v3327, %v3619
      %v3714 = vadd.f32 %v3328, %v3624
      %v3715 = vadd.f32 %v3329, %v3627
      %v3716 = vadd.f32 %v3330, %v3632
      %v3717 = vadd.f32 %v3331, %v3635
      %v3718 = vadd.f32 %v3332, %v3640
      %v3719 = vadd.f32 %v3333, %v3643
      %v3720 = vadd.f32 %v3334, %v3648
      %v3721 = vadd.f32 %v3335, %v3651
      %v3722 = vadd.f32 %v3336, %v3656
      %v3723 = vadd.f32 %v3337, %v3659
      %v3724 = vadd.f32 %v3338, %v3664
      %v3725 = vadd.f32 %v3339, %v3667
      %v3726 = vadd.f32 %v3340, %v3672
      %v3727 = vadd.f32 %v3341, %v3675
      %v3728 = vadd.f32 %v3342, %v3680
      %v3729 = vadd.f32 %v3343, %v3683
      %v3730 = vadd.f32 %v3344, %v3688
      %v3731 = vadd.f32 %v3345, %v3691
      %v3732 = vadd.f32 %v3346, %v3696
      %v3733 = vadd.f32 %v3347, %v3699
      %v3734 = vld [vmem:[%s3348] sm:$0xf]
      %v3735 = vld [vmem:[%s3348 + $0x4] sm:$0xf]
      %v3736 = vld [vmem:[%s3348 + $0x8] sm:$0x1]
      %v3737 = vld [vmem:[%s3348 + $0xc] sm:$0xf]
      %v3738 = vld [vmem:[%s3348 + $0x10] sm:$0xf]
      %v3739 = vld [vmem:[%s3348 + $0x14] sm:$0x1]
      %v3740 = vld [vmem:[%s3348 + $0x18] sm:$0xf]
      %v3741 = vld [vmem:[%s3348 + $0x1c] sm:$0xf]
      %v3742 = vld [vmem:[%s3348 + $0x20] sm:$0x1]
      %v3743 = vld [vmem:[%s3348 + $0x24] sm:$0xf]
      %v3744 = vld [vmem:[%s3348 + $0x28] sm:$0xf]
      %v3745 = vld [vmem:[%s3348 + $0x2c] sm:$0x1]
      %v3746 = vld [vmem:[%s3348 + $0x30] sm:$0xf]
      %v3747 = vld [vmem:[%s3348 + $0x34] sm:$0xf]
      %v3748 = vld [vmem:[%s3348 + $0x38] sm:$0x1]
      %v3749 = vld [vmem:[%s3348 + $0x3c] sm:$0xf]
      %v3750 = vld [vmem:[%s3348 + $0x40] sm:$0xf]
      %v3751 = vld [vmem:[%s3348 + $0x44] sm:$0x1]
      %v3752 = vld [vmem:[%s3348 + $0x48] sm:$0xf]
      %v3753 = vld [vmem:[%s3348 + $0x4c] sm:$0xf]
      %v3754 = vld [vmem:[%s3348 + $0x50] sm:$0x1]
      %v3755 = vld [vmem:[%s3348 + $0x54] sm:$0xf]
      %v3756 = vld [vmem:[%s3348 + $0x58] sm:$0xf]
      %v3757 = vld [vmem:[%s3348 + $0x5c] sm:$0x1]
      %v3758 = vld [vmem:[%s3348 + $0x60] sm:$0xf]
      %v3759 = vld [vmem:[%s3348 + $0x64] sm:$0xf]
      %v3760 = vld [vmem:[%s3348 + $0x68] sm:$0x1]
      %v3761 = vld [vmem:[%s3348 + $0x6c] sm:$0xf]
      %v3762 = vld [vmem:[%s3348 + $0x70] sm:$0xf]
      %v3763 = vld [vmem:[%s3348 + $0x74] sm:$0x1]
      %v3764 = vld [vmem:[%s3348 + $0x78] sm:$0xf]
      %v3765 = vld [vmem:[%s3348 + $0x7c] sm:$0xf]
      %v3766 = vld [vmem:[%s3348 + $0x80] sm:$0x1]
      %v3767 = vld [vmem:[%s3348 + $0x84] sm:$0xf]
      %v3768 = vld [vmem:[%s3348 + $0x88] sm:$0xf]
      %v3769 = vld [vmem:[%s3348 + $0x8c] sm:$0x1]
      %v3770 = vld [vmem:[%s3348 + $0x90] sm:$0xf]
      %v3771 = vld [vmem:[%s3348 + $0x94] sm:$0xf]
      %v3772 = vld [vmem:[%s3348 + $0x98] sm:$0x1]
      %v3773 = vld [vmem:[%s3348 + $0x9c] sm:$0xf]
      %v3774 = vld [vmem:[%s3348 + $0xa0] sm:$0xf]
      %v3775 = vld [vmem:[%s3348 + $0xa4] sm:$0x1]
      %v3776 = vld [vmem:[%s3348 + $0xa8] sm:$0xf]
      %v3777 = vld [vmem:[%s3348 + $0xac] sm:$0xf]
      %v3778 = vld [vmem:[%s3348 + $0xb0] sm:$0x1]
      %v3779 = vld [vmem:[%s3348 + $0xb4] sm:$0xf]
      %v3780 = vld [vmem:[%s3348 + $0xb8] sm:$0xf]
      %v3781 = vld [vmem:[%s3348 + $0xbc] sm:$0x1]
      %v3783 = vshrl.u32 %v3734, 16
      %v3785 = vrot.slane %v3783, 4
      %v3786 = vshll.u32 %v3734, 16
      %v3788 = vrot.slane %v3786, 5
      %v3789 = vor.u32 %v3785, %v3788
      %v3790 = vrot.slane %v3789, 4
      %v3792 = vshll.u32 %v3735, 16
      %v3794 = vrot.slane %v3792, 5
      %v3795 = vsel %vm249, %v3790, %v3794
      %v3796 = vshrl.u32 %v3735, 16
      %v3798 = vrot.slane %v3796, 4
      %v3799 = vor.u32 %v3798, %v3794
      %v3800 = vrot.slane %v3799, 4
      %v3802 = vshll.u32 %v3736, 16
      %v3804 = vrot.slane %v3802, 5
      %v3805 = vsel %vm249, %v3800, %v3804
      %v3807 = vshrl.u32 %v3737, 16
      %v3809 = vrot.slane %v3807, 4
      %v3810 = vshll.u32 %v3737, 16
      %v3812 = vrot.slane %v3810, 5
      %v3813 = vor.u32 %v3809, %v3812
      %v3814 = vrot.slane %v3813, 4
      %v3816 = vshll.u32 %v3738, 16
      %v3818 = vrot.slane %v3816, 5
      %v3819 = vsel %vm249, %v3814, %v3818
      %v3820 = vshrl.u32 %v3738, 16
      %v3822 = vrot.slane %v3820, 4
      %v3823 = vor.u32 %v3822, %v3818
      %v3824 = vrot.slane %v3823, 4
      %v3826 = vshll.u32 %v3739, 16
      %v3828 = vrot.slane %v3826, 5
      %v3829 = vsel %vm249, %v3824, %v3828
      %v3831 = vshrl.u32 %v3740, 16
      %v3833 = vrot.slane %v3831, 4
      %v3834 = vshll.u32 %v3740, 16
      %v3836 = vrot.slane %v3834, 5
      %v3837 = vor.u32 %v3833, %v3836
      %v3838 = vrot.slane %v3837, 4
      %v3840 = vshll.u32 %v3741, 16
      %v3842 = vrot.slane %v3840, 5
      %v3843 = vsel %vm249, %v3838, %v3842
      %v3844 = vshrl.u32 %v3741, 16
      %v3846 = vrot.slane %v3844, 4
      %v3847 = vor.u32 %v3846, %v3842
      %v3848 = vrot.slane %v3847, 4
      %v3850 = vshll.u32 %v3742, 16
      %v3852 = vrot.slane %v3850, 5
      %v3853 = vsel %vm249, %v3848, %v3852
      %v3855 = vshrl.u32 %v3743, 16
      %v3857 = vrot.slane %v3855, 4
      %v3858 = vshll.u32 %v3743, 16
      %v3860 = vrot.slane %v3858, 5
      %v3861 = vor.u32 %v3857, %v3860
      %v3862 = vrot.slane %v3861, 4
      %v3864 = vshll.u32 %v3744, 16
      %v3866 = vrot.slane %v3864, 5
      %v3867 = vsel %vm249, %v3862, %v3866
      %v3868 = vshrl.u32 %v3744, 16
      %v3870 = vrot.slane %v3868, 4
      %v3871 = vor.u32 %v3870, %v3866
      %v3872 = vrot.slane %v3871, 4
      %v3874 = vshll.u32 %v3745, 16
      %v3876 = vrot.slane %v3874, 5
      %v3877 = vsel %vm249, %v3872, %v3876
      %v3879 = vshrl.u32 %v3746, 16
      %v3881 = vrot.slane %v3879, 4
      %v3882 = vshll.u32 %v3746, 16
      %v3884 = vrot.slane %v3882, 5
      %v3885 = vor.u32 %v3881, %v3884
      %v3886 = vrot.slane %v3885, 4
      %v3888 = vshll.u32 %v3747, 16
      %v3890 = vrot.slane %v3888, 5
      %v3891 = vsel %vm249, %v3886, %v3890
      %v3892 = vshrl.u32 %v3747, 16
      %v3894 = vrot.slane %v3892, 4
      %v3895 = vor.u32 %v3894, %v3890
      %v3896 = vrot.slane %v3895, 4
      %v3898 = vshll.u32 %v3748, 16
      %v3900 = vrot.slane %v3898, 5
      %v3901 = vsel %vm249, %v3896, %v3900
      %v3903 = vshrl.u32 %v3749, 16
      %v3905 = vrot.slane %v3903, 4
      %v3906 = vshll.u32 %v3749, 16
      %v3908 = vrot.slane %v3906, 5
      %v3909 = vor.u32 %v3905, %v3908
      %v3910 = vrot.slane %v3909, 4
      %v3912 = vshll.u32 %v3750, 16
      %v3914 = vrot.slane %v3912, 5
      %v3915 = vsel %vm249, %v3910, %v3914
      %v3916 = vshrl.u32 %v3750, 16
      %v3918 = vrot.slane %v3916, 4
      %v3919 = vor.u32 %v3918, %v3914
      %v3920 = vrot.slane %v3919, 4
      %v3922 = vshll.u32 %v3751, 16
      %v3924 = vrot.slane %v3922, 5
      %v3925 = vsel %vm249, %v3920, %v3924
      %v3927 = vshrl.u32 %v3752, 16
      %v3929 = vrot.slane %v3927, 4
      %v3930 = vshll.u32 %v3752, 16
      %v3932 = vrot.slane %v3930, 5
      %v3933 = vor.u32 %v3929, %v3932
      %v3934 = vrot.slane %v3933, 4
      %v3936 = vshll.u32 %v3753, 16
      %v3938 = vrot.slane %v3936, 5
      %v3939 = vsel %vm249, %v3934, %v3938
      %v3940 = vshrl.u32 %v3753, 16
      %v3942 = vrot.slane %v3940, 4
      %v3943 = vor.u32 %v3942, %v3938
      %v3944 = vrot.slane %v3943, 4
      %v3946 = vshll.u32 %v3754, 16
      %v3948 = vrot.slane %v3946, 5
      %v3949 = vsel %vm249, %v3944, %v3948
      %v3951 = vshrl.u32 %v3755, 16
      %v3953 = vrot.slane %v3951, 4
      %v3954 = vshll.u32 %v3755, 16
      %v3956 = vrot.slane %v3954, 5
      %v3957 = vor.u32 %v3953, %v3956
      %v3958 = vrot.slane %v3957, 4
      %v3960 = vshll.u32 %v3756, 16
      %v3962 = vrot.slane %v3960, 5
      %v3963 = vsel %vm249, %v3958, %v3962
      %v3964 = vshrl.u32 %v3756, 16
      %v3966 = vrot.slane %v3964, 4
      %v3967 = vor.u32 %v3966, %v3962
      %v3968 = vrot.slane %v3967, 4
      %v3970 = vshll.u32 %v3757, 16
      %v3972 = vrot.slane %v3970, 5
      %v3973 = vsel %vm249, %v3968, %v3972
      %v3975 = vshrl.u32 %v3758, 16
      %v3977 = vrot.slane %v3975, 4
      %v3978 = vshll.u32 %v3758, 16
      %v3980 = vrot.slane %v3978, 5
      %v3981 = vor.u32 %v3977, %v3980
      %v3982 = vrot.slane %v3981, 4
      %v3984 = vshll.u32 %v3759, 16
      %v3986 = vrot.slane %v3984, 5
      %v3987 = vsel %vm249, %v3982, %v3986
      %v3988 = vshrl.u32 %v3759, 16
      %v3990 = vrot.slane %v3988, 4
      %v3991 = vor.u32 %v3990, %v3986
      %v3992 = vrot.slane %v3991, 4
      %v3994 = vshll.u32 %v3760, 16
      %v3996 = vrot.slane %v3994, 5
      %v3997 = vsel %vm249, %v3992, %v3996
      %v3999 = vshrl.u32 %v3761, 16
      %v4001 = vrot.slane %v3999, 4
      %v4002 = vshll.u32 %v3761, 16
      %v4004 = vrot.slane %v4002, 5
      %v4005 = vor.u32 %v4001, %v4004
      %v4006 = vrot.slane %v4005, 4
      %v4008 = vshll.u32 %v3762, 16
      %v4010 = vrot.slane %v4008, 5
      %v4011 = vsel %vm249, %v4006, %v4010
      %v4012 = vshrl.u32 %v3762, 16
      %v4014 = vrot.slane %v4012, 4
      %v4015 = vor.u32 %v4014, %v4010
      %v4016 = vrot.slane %v4015, 4
      %v4018 = vshll.u32 %v3763, 16
      %v4020 = vrot.slane %v4018, 5
      %v4021 = vsel %vm249, %v4016, %v4020
      %v4023 = vshrl.u32 %v3764, 16
      %v4025 = vrot.slane %v4023, 4
      %v4026 = vshll.u32 %v3764, 16
      %v4028 = vrot.slane %v4026, 5
      %v4029 = vor.u32 %v4025, %v4028
      %v4030 = vrot.slane %v4029, 4
      %v4032 = vshll.u32 %v3765, 16
      %v4034 = vrot.slane %v4032, 5
      %v4035 = vsel %vm249, %v4030, %v4034
      %v4036 = vshrl.u32 %v3765, 16
      %v4038 = vrot.slane %v4036, 4
      %v4039 = vor.u32 %v4038, %v4034
      %v4040 = vrot.slane %v4039, 4
      %v4042 = vshll.u32 %v3766, 16
      %v4044 = vrot.slane %v4042, 5
      %v4045 = vsel %vm249, %v4040, %v4044
      %v4047 = vshrl.u32 %v3767, 16
      %v4049 = vrot.slane %v4047, 4
      %v4050 = vshll.u32 %v3767, 16
      %v4052 = vrot.slane %v4050, 5
      %v4053 = vor.u32 %v4049, %v4052
      %v4054 = vrot.slane %v4053, 4
      %v4056 = vshll.u32 %v3768, 16
      %v4058 = vrot.slane %v4056, 5
      %v4059 = vsel %vm249, %v4054, %v4058
      %v4060 = vshrl.u32 %v3768, 16
      %v4062 = vrot.slane %v4060, 4
      %v4063 = vor.u32 %v4062, %v4058
      %v4064 = vrot.slane %v4063, 4
      %v4066 = vshll.u32 %v3769, 16
      %v4068 = vrot.slane %v4066, 5
      %v4069 = vsel %vm249, %v4064, %v4068
      %v4071 = vshrl.u32 %v3770, 16
      %v4073 = vrot.slane %v4071, 4
      %v4074 = vshll.u32 %v3770, 16
      %v4076 = vrot.slane %v4074, 5
      %v4077 = vor.u32 %v4073, %v4076
      %v4078 = vrot.slane %v4077, 4
      %v4080 = vshll.u32 %v3771, 16
      %v4082 = vrot.slane %v4080, 5
      %v4083 = vsel %vm249, %v4078, %v4082
      %v4084 = vshrl.u32 %v3771, 16
      %v4086 = vrot.slane %v4084, 4
      %v4087 = vor.u32 %v4086, %v4082
      %v4088 = vrot.slane %v4087, 4
      %v4090 = vshll.u32 %v3772, 16
      %v4092 = vrot.slane %v4090, 5
      %v4093 = vsel %vm249, %v4088, %v4092
      %v4095 = vshrl.u32 %v3773, 16
      %v4097 = vrot.slane %v4095, 4
      %v4098 = vshll.u32 %v3773, 16
      %v4100 = vrot.slane %v4098, 5
      %v4101 = vor.u32 %v4097, %v4100
      %v4102 = vrot.slane %v4101, 4
      %v4104 = vshll.u32 %v3774, 16
      %v4106 = vrot.slane %v4104, 5
      %v4107 = vsel %vm249, %v4102, %v4106
      %v4108 = vshrl.u32 %v3774, 16
      %v4110 = vrot.slane %v4108, 4
      %v4111 = vor.u32 %v4110, %v4106
      %v4112 = vrot.slane %v4111, 4
      %v4114 = vshll.u32 %v3775, 16
      %v4116 = vrot.slane %v4114, 5
      %v4117 = vsel %vm249, %v4112, %v4116
      %v4119 = vshrl.u32 %v3776, 16
      %v4121 = vrot.slane %v4119, 4
      %v4122 = vshll.u32 %v3776, 16
      %v4124 = vrot.slane %v4122, 5
      %v4125 = vor.u32 %v4121, %v4124
      %v4126 = vrot.slane %v4125, 4
      %v4128 = vshll.u32 %v3777, 16
      %v4130 = vrot.slane %v4128, 5
      %v4131 = vsel %vm249, %v4126, %v4130
      %v4132 = vshrl.u32 %v3777, 16
      %v4134 = vrot.slane %v4132, 4
      %v4135 = vor.u32 %v4134, %v4130
      %v4136 = vrot.slane %v4135, 4
      %v4138 = vshll.u32 %v3778, 16
      %v4140 = vrot.slane %v4138, 5
      %v4141 = vsel %vm249, %v4136, %v4140
      %v4143 = vshrl.u32 %v3779, 16
      %v4145 = vrot.slane %v4143, 4
      %v4146 = vshll.u32 %v3779, 16
      %v4148 = vrot.slane %v4146, 5
      %v4149 = vor.u32 %v4145, %v4148
      %v4150 = vrot.slane %v4149, 4
      %v4152 = vshll.u32 %v3780, 16
      %v4154 = vrot.slane %v4152, 5
      %v4155 = vsel %vm249, %v4150, %v4154
      %v4156 = vshrl.u32 %v3780, 16
      %v4158 = vrot.slane %v4156, 4
      %v4159 = vor.u32 %v4158, %v4154
      %v4160 = vrot.slane %v4159, 4
      %v4162 = vshll.u32 %v3781, 16
      %v4164 = vrot.slane %v4162, 5
      %v4165 = vsel %vm249, %v4160, %v4164
      %v4166 = vld [vmem:[%s1 + $0x1c0] sm:$0xf]
      %v4167 = vld [vmem:[%s1 + $0x1c4] sm:$0xf]
      %v4168 = vld [vmem:[%s1 + $0x1c8] sm:$0xf]
      %v4169 = vld [vmem:[%s1 + $0x1cc] sm:$0xf]
      %v4170 = vld [vmem:[%s1 + $0x1d0] sm:$0xf]
      %v4171 = vld [vmem:[%s1 + $0x1d4] sm:$0xf]
      %v4172 = vld [vmem:[%s1 + $0x1d8] sm:$0xf]
      %v4173 = vld [vmem:[%s1 + $0x1dc] sm:$0xf]
      %v4174 = vld [vmem:[%s1 + $0x1e0] sm:$0xf]
      %v4175 = vld [vmem:[%s1 + $0x1e4] sm:$0xf]
      %v4176 = vld [vmem:[%s1 + $0x1e8] sm:$0xf]
      %v4177 = vld [vmem:[%s1 + $0x1ec] sm:$0xf]
      %v4178 = vld [vmem:[%s1 + $0x1f0] sm:$0xf]
      %v4179 = vld [vmem:[%s1 + $0x1f4] sm:$0xf]
      %v4180 = vld [vmem:[%s1 + $0x1f8] sm:$0xf]
      %v4181 = vld [vmem:[%s1 + $0x1fc] sm:$0xf]
      %v4182 = vunpack.c.l.b16 %v3795
      %v4183 = vunpack.c.l.b16 %v3805
      %v4184 = vunpack.c.l.b16 %v3819
      %v4185 = vunpack.c.l.b16 %v3829
      %v4186 = vunpack.c.l.b16 %v3843
      %v4187 = vunpack.c.l.b16 %v3853
      %v4188 = vunpack.c.l.b16 %v3867
      %v4189 = vunpack.c.l.b16 %v3877
      %v4190 = vunpack.c.l.b16 %v3891
      %v4191 = vunpack.c.l.b16 %v3901
      %v4192 = vunpack.c.l.b16 %v3915
      %v4193 = vunpack.c.l.b16 %v3925
      %v4194 = vunpack.c.l.b16 %v3939
      %v4195 = vunpack.c.l.b16 %v3949
      %v4196 = vunpack.c.l.b16 %v3963
      %v4197 = vunpack.c.l.b16 %v3973
      %v4198 = vunpack.c.l.b16 %v3987
      %v4199 = vunpack.c.l.b16 %v3997
      %v4200 = vunpack.c.l.b16 %v4011
      %v4201 = vunpack.c.l.b16 %v4021
      %v4202 = vunpack.c.l.b16 %v4035
      %v4203 = vunpack.c.l.b16 %v4045
      %v4204 = vunpack.c.l.b16 %v4059
      %v4205 = vunpack.c.l.b16 %v4069
      %v4206 = vunpack.c.l.b16 %v4083
      %v4207 = vunpack.c.l.b16 %v4093
      %v4208 = vunpack.c.l.b16 %v4107
      %v4209 = vunpack.c.l.b16 %v4117
      %v4210 = vunpack.c.l.b16 %v4131
      %v4211 = vunpack.c.l.b16 %v4141
      %v4212 = vunpack.c.l.b16 %v4155
      %v4213 = vunpack.c.l.b16 %v4165
      %v4214 = vpack.c.b16 %v4183, %v4182
      %v4215 = vpack.c.b16 %v4185, %v4184
      %v4216 = vpack.c.b16 %v4187, %v4186
      %v4217 = vpack.c.b16 %v4189, %v4188
      %v4218 = vpack.c.b16 %v4191, %v4190
      %v4219 = vpack.c.b16 %v4193, %v4192
      %v4220 = vpack.c.b16 %v4195, %v4194
      %v4221 = vpack.c.b16 %v4197, %v4196
      %v4222 = vpack.c.b16 %v4199, %v4198
      %v4223 = vpack.c.b16 %v4201, %v4200
      %v4224 = vpack.c.b16 %v4203, %v4202
      %v4225 = vpack.c.b16 %v4205, %v4204
      %v4226 = vpack.c.b16 %v4207, %v4206
      %v4227 = vpack.c.b16 %v4209, %v4208
      %v4228 = vpack.c.b16 %v4211, %v4210
      %v4229 = vpack.c.b16 %v4213, %v4212
      %v4262 = vunpack.c.l.b16 %v4166
      %v4263 = vunpack.c.l.b16 %v4167
      %v4264 = vunpack.c.l.b16 %v4168
      %v4265 = vunpack.c.l.b16 %v4169
      %v4266 = vunpack.c.l.b16 %v4170
      %v4267 = vunpack.c.l.b16 %v4171
      %v4268 = vunpack.c.l.b16 %v4172
      %v4269 = vunpack.c.l.b16 %v4173
      %v4270 = vunpack.c.l.b16 %v4174
      %v4271 = vunpack.c.l.b16 %v4175
      %v4272 = vunpack.c.l.b16 %v4176
      %v4273 = vunpack.c.l.b16 %v4177
      %v4274 = vunpack.c.l.b16 %v4178
      %v4275 = vunpack.c.l.b16 %v4179
      %v4276 = vunpack.c.l.b16 %v4180
      %v4277 = vunpack.c.l.b16 %v4181
      %v4278 = vpack.c.b16 %v4263, %v4262
      %v4279 = vpack.c.b16 %v4265, %v4264
      %v4280 = vpack.c.b16 %v4267, %v4266
      %v4281 = vpack.c.b16 %v4269, %v4268
      %v4282 = vpack.c.b16 %v4271, %v4270
      %v4283 = vpack.c.b16 %v4273, %v4272
      %v4284 = vpack.c.b16 %v4275, %v4274
      %v4285 = vpack.c.b16 %v4277, %v4276
      %4294 = vmatprep.subr.bf16.mxu0 0
      %4295 = vmatpush1.bf16.msra.mxu0 %v4285
      %4296 = vmatprep.subr.bf16.mxu0 0
      %4297 = vmatpush1.bf16.msra.mxu0 %v4284
      %4298 = vmatprep.subr.bf16.mxu0 0
      %4299 = vmatpush1.bf16.msra.mxu0 %v4283
      %4300 = vmatprep.subr.bf16.mxu0 0
      %4301 = vmatpush1.bf16.msra.mxu0 %v4282
      %4302 = vmatprep.subr.bf16.mxu0 0
      %4303 = vmatpush1.bf16.msra.mxu0 %v4281
      %4304 = vmatprep.subr.bf16.mxu0 0
      %4305 = vmatpush1.bf16.msra.mxu0 %v4280
      %4306 = vmatprep.subr.bf16.mxu0 0
      %4307 = vmatpush1.bf16.msra.mxu0 %v4279
      %4308 = vmatprep.subr.bf16.mxu0 0
      %4309 = vmatpush1.bf16.msra.mxu0 %v4278
      %4310 = vmatprep.subr.bf16.mxu0 0
      %4311 = vmatpush2.bf16.msra.mxu0 0
      %4312 = vmatprep.subr.bf16.mxu0 0
      %4313 = vmatpush2.bf16.msra.mxu0 0
      %4314 = vmatprep.subr.bf16.mxu0 0
      %4315 = vmatpush2.bf16.msra.mxu0 0
      %4316 = vmatprep.subr.bf16.mxu0 0
      %4317 = vmatpush2.bf16.msra.mxu0 0
      %4318 = vmatprep.subr.bf16.mxu0 0
      %4319 = vmatpush2.bf16.msra.mxu0 0
      %4320 = vmatprep.subr.bf16.mxu0 0
      %4321 = vmatpush2.bf16.msra.mxu0 0
      %4322 = vmatprep.subr.bf16.mxu0 0
      %4323 = vmatpush2.bf16.msra.mxu0 0
      %4324 = vmatprep.subr.bf16.mxu0 0
      %4325 = vmatpush2.bf16.msra.mxu0 0
      %4326 = vmatprep.mubr.bf16.mxu0 0
      %4327 = vmatmul.mubr.bf16.gmra.mxu0 %v4214
      %v4328 = vpop.f32.mrf.mxu0
      %v4329 = vadd.f32 0.0, %v4328
      %v4330 = vpop.f32.mrf.mxu0
      %v4331 = vpop.f32.mrf.mxu0
      %v4332 = vadd.f32 0.0, %v4331
      %v4333 = vpop.f32.mrf.mxu0
      %4334 = vmatprep.mubr.bf16.mxu0 0
      %4335 = vmatmul.mubr.bf16.gmra.mxu0 %v4215
      %v4336 = vpop.f32.mrf.mxu0
      %v4337 = vadd.f32 0.0, %v4336
      %v4338 = vpop.f32.mrf.mxu0
      %v4339 = vpop.f32.mrf.mxu0
      %v4340 = vadd.f32 0.0, %v4339
      %v4341 = vpop.f32.mrf.mxu0
      %4342 = vmatprep.mubr.bf16.mxu0 0
      %4343 = vmatmul.mubr.bf16.gmra.mxu0 %v4216
      %v4344 = vpop.f32.mrf.mxu0
      %v4345 = vadd.f32 0.0, %v4344
      %v4346 = vpop.f32.mrf.mxu0
      %v4347 = vpop.f32.mrf.mxu0
      %v4348 = vadd.f32 0.0, %v4347
      %v4349 = vpop.f32.mrf.mxu0
      %4350 = vmatprep.mubr.bf16.mxu0 0
      %4351 = vmatmul.mubr.bf16.gmra.mxu0 %v4217
      %v4352 = vpop.f32.mrf.mxu0
      %v4353 = vadd.f32 0.0, %v4352
      %v4354 = vpop.f32.mrf.mxu0
      %v4355 = vpop.f32.mrf.mxu0
      %v4356 = vadd.f32 0.0, %v4355
      %v4357 = vpop.f32.mrf.mxu0
      %4358 = vmatprep.mubr.bf16.mxu0 0
      %4359 = vmatmul.mubr.bf16.gmra.mxu0 %v4218
      %v4360 = vpop.f32.mrf.mxu0
      %v4361 = vadd.f32 0.0, %v4360
      %v4362 = vpop.f32.mrf.mxu0
      %v4363 = vpop.f32.mrf.mxu0
      %v4364 = vadd.f32 0.0, %v4363
      %v4365 = vpop.f32.mrf.mxu0
      %4366 = vmatprep.mubr.bf16.mxu0 0
      %4367 = vmatmul.mubr.bf16.gmra.mxu0 %v4219
      %v4368 = vpop.f32.mrf.mxu0
      %v4369 = vadd.f32 0.0, %v4368
      %v4370 = vpop.f32.mrf.mxu0
      %v4371 = vpop.f32.mrf.mxu0
      %v4372 = vadd.f32 0.0, %v4371
      %v4373 = vpop.f32.mrf.mxu0
      %4374 = vmatprep.mubr.bf16.mxu0 0
      %4375 = vmatmul.mubr.bf16.gmra.mxu0 %v4220
      %v4376 = vpop.f32.mrf.mxu0
      %v4377 = vadd.f32 0.0, %v4376
      %v4378 = vpop.f32.mrf.mxu0
      %v4379 = vpop.f32.mrf.mxu0
      %v4380 = vadd.f32 0.0, %v4379
      %v4381 = vpop.f32.mrf.mxu0
      %4382 = vmatprep.mubr.bf16.mxu0 0
      %4383 = vmatmul.mubr.bf16.gmra.mxu0 %v4221
      %v4384 = vpop.f32.mrf.mxu0
      %v4385 = vadd.f32 0.0, %v4384
      %v4386 = vpop.f32.mrf.mxu0
      %v4387 = vpop.f32.mrf.mxu0
      %v4388 = vadd.f32 0.0, %v4387
      %v4389 = vpop.f32.mrf.mxu0
      %4390 = vmatprep.mubr.bf16.mxu0 0
      %4391 = vmatmul.mubr.bf16.gmra.mxu0 %v4222
      %v4392 = vpop.f32.mrf.mxu0
      %v4393 = vadd.f32 0.0, %v4392
      %v4394 = vpop.f32.mrf.mxu0
      %v4395 = vpop.f32.mrf.mxu0
      %v4396 = vadd.f32 0.0, %v4395
      %v4397 = vpop.f32.mrf.mxu0
      %4398 = vmatprep.mubr.bf16.mxu0 0
      %4399 = vmatmul.mubr.bf16.gmra.mxu0 %v4223
      %v4400 = vpop.f32.mrf.mxu0
      %v4401 = vadd.f32 0.0, %v4400
      %v4402 = vpop.f32.mrf.mxu0
      %v4403 = vpop.f32.mrf.mxu0
      %v4404 = vadd.f32 0.0, %v4403
      %v4405 = vpop.f32.mrf.mxu0
      %4406 = vmatprep.mubr.bf16.mxu0 0
      %4407 = vmatmul.mubr.bf16.gmra.mxu0 %v4224
      %v4408 = vpop.f32.mrf.mxu0
      %v4409 = vadd.f32 0.0, %v4408
      %v4410 = vpop.f32.mrf.mxu0
      %v4411 = vpop.f32.mrf.mxu0
      %v4412 = vadd.f32 0.0, %v4411
      %v4413 = vpop.f32.mrf.mxu0
      %4414 = vmatprep.mubr.bf16.mxu0 0
      %4415 = vmatmul.mubr.bf16.gmra.mxu0 %v4225
      %v4416 = vpop.f32.mrf.mxu0
      %v4417 = vadd.f32 0.0, %v4416
      %v4418 = vpop.f32.mrf.mxu0
      %v4419 = vpop.f32.mrf.mxu0
      %v4420 = vadd.f32 0.0, %v4419
      %v4421 = vpop.f32.mrf.mxu0
      %4422 = vmatprep.mubr.bf16.mxu0 0
      %4423 = vmatmul.mubr.bf16.gmra.mxu0 %v4226
      %v4424 = vpop.f32.mrf.mxu0
      %v4425 = vadd.f32 0.0, %v4424
      %v4426 = vpop.f32.mrf.mxu0
      %v4427 = vpop.f32.mrf.mxu0
      %v4428 = vadd.f32 0.0, %v4427
      %v4429 = vpop.f32.mrf.mxu0
      %4430 = vmatprep.mubr.bf16.mxu0 0
      %4431 = vmatmul.mubr.bf16.gmra.mxu0 %v4227
      %v4432 = vpop.f32.mrf.mxu0
      %v4433 = vadd.f32 0.0, %v4432
      %v4434 = vpop.f32.mrf.mxu0
      %v4435 = vpop.f32.mrf.mxu0
      %v4436 = vadd.f32 0.0, %v4435
      %v4437 = vpop.f32.mrf.mxu0
      %4438 = vmatprep.mubr.bf16.mxu0 0
      %4439 = vmatmul.mubr.bf16.gmra.mxu0 %v4228
      %v4440 = vpop.f32.mrf.mxu0
      %v4441 = vadd.f32 0.0, %v4440
      %v4442 = vpop.f32.mrf.mxu0
      %v4443 = vpop.f32.mrf.mxu0
      %v4444 = vadd.f32 0.0, %v4443
      %v4445 = vpop.f32.mrf.mxu0
      %4446 = vmatprep.mubr.bf16.mxu0 0
      %4447 = vmatmul.mubr.bf16.gmra.mxu0 %v4229
      %v4448 = vpop.f32.mrf.mxu0
      %v4449 = vadd.f32 0.0, %v4448
      %v4450 = vpop.f32.mrf.mxu0
      %v4451 = vpop.f32.mrf.mxu0
      %v4452 = vadd.f32 0.0, %v4451
      %v4453 = vpop.f32.mrf.mxu0
      %4454 = vdwg.mxu0
      %v4455 = vadd.f32 %v3702, %v4329
      %v4456 = vadd.f32 %v3703, %v4332
      %v4457 = vadd.f32 %v3704, %v4337
      %v4458 = vadd.f32 %v3705, %v4340
      %v4459 = vadd.f32 %v3706, %v4345
      %v4460 = vadd.f32 %v3707, %v4348
      %v4461 = vadd.f32 %v3708, %v4353
      %v4462 = vadd.f32 %v3709, %v4356
      %v4463 = vadd.f32 %v3710, %v4361
      %v4464 = vadd.f32 %v3711, %v4364
      %v4465 = vadd.f32 %v3712, %v4369
      %v4466 = vadd.f32 %v3713, %v4372
      %v4467 = vadd.f32 %v3714, %v4377
      %v4468 = vadd.f32 %v3715, %v4380
      %v4469 = vadd.f32 %v3716, %v4385
      %v4470 = vadd.f32 %v3717, %v4388
      %v4471 = vadd.f32 %v3718, %v4393
      %v4472 = vadd.f32 %v3719, %v4396
      %v4473 = vadd.f32 %v3720, %v4401
      %v4474 = vadd.f32 %v3721, %v4404
      %v4475 = vadd.f32 %v3722, %v4409
      %v4476 = vadd.f32 %v3723, %v4412
      %v4477 = vadd.f32 %v3724, %v4417
      %v4478 = vadd.f32 %v3725, %v4420
      %v4479 = vadd.f32 %v3726, %v4425
      %v4480 = vadd.f32 %v3727, %v4428
      %v4481 = vadd.f32 %v3728, %v4433
      %v4482 = vadd.f32 %v3729, %v4436
      %v4483 = vadd.f32 %v3730, %v4441
      %v4484 = vadd.f32 %v3731, %v4444
      %v4485 = vadd.f32 %v3732, %v4449
      %v4486 = vadd.f32 %v3733, %v4452
      %v4487 = vld [vmem:[%s3348] sm:$0xe]
      %v4488 = vld [vmem:[%s3348 + $0xc] sm:$0xe]
      %v4489 = vld [vmem:[%s3348 + $0x18] sm:$0xe]
      %v4490 = vld [vmem:[%s3348 + $0x24] sm:$0xe]
      %v4491 = vld [vmem:[%s3348 + $0x30] sm:$0xe]
      %v4492 = vld [vmem:[%s3348 + $0x3c] sm:$0xe]
      %v4493 = vld [vmem:[%s3348 + $0x48] sm:$0xe]
      %v4494 = vld [vmem:[%s3348 + $0x54] sm:$0xe]
      %v4495 = vld [vmem:[%s3348 + $0x60] sm:$0xe]
      %v4496 = vld [vmem:[%s3348 + $0x6c] sm:$0xe]
      %v4497 = vld [vmem:[%s3348 + $0x78] sm:$0xe]
      %v4498 = vld [vmem:[%s3348 + $0x84] sm:$0xe]
      %v4499 = vld [vmem:[%s3348 + $0x90] sm:$0xe]
      %v4500 = vld [vmem:[%s3348 + $0x9c] sm:$0xe]
      %v4501 = vld [vmem:[%s3348 + $0xa8] sm:$0xe]
      %v4502 = vld [vmem:[%s3348 + $0xb4] sm:$0xe]
      %v4551 = vrot.slane %v4487, 5
      %v4552 = vrot.slane %v4551, 4
      %v4553 = vrot.slane %v3735, 5
      %v4554 = vsel %vm1278, %v4552, %v4553
      %v4555 = vrot.slane %v4553, 4
      %v4556 = vrot.slane %v3736, 5
      %v4557 = vsel %vm1278, %v4555, %v4556
      %v4558 = vrot.slane %v4488, 5
      %v4559 = vrot.slane %v4558, 4
      %v4560 = vrot.slane %v3738, 5
      %v4561 = vsel %vm1278, %v4559, %v4560
      %v4562 = vrot.slane %v4560, 4
      %v4563 = vrot.slane %v3739, 5
      %v4564 = vsel %vm1278, %v4562, %v4563
      %v4565 = vrot.slane %v4489, 5
      %v4566 = vrot.slane %v4565, 4
      %v4567 = vrot.slane %v3741, 5
      %v4568 = vsel %vm1278, %v4566, %v4567
      %v4569 = vrot.slane %v4567, 4
      %v4570 = vrot.slane %v3742, 5
      %v4571 = vsel %vm1278, %v4569, %v4570
      %v4572 = vrot.slane %v4490, 5
      %v4573 = vrot.slane %v4572, 4
      %v4574 = vrot.slane %v3744, 5
      %v4575 = vsel %vm1278, %v4573, %v4574
      %v4576 = vrot.slane %v4574, 4
      %v4577 = vrot.slane %v3745, 5
      %v4578 = vsel %vm1278, %v4576, %v4577
      %v4579 = vrot.slane %v4491, 5
      %v4580 = vrot.slane %v4579, 4
      %v4581 = vrot.slane %v3747, 5
      %v4582 = vsel %vm1278, %v4580, %v4581
      %v4583 = vrot.slane %v4581, 4
      %v4584 = vrot.slane %v3748, 5
      %v4585 = vsel %vm1278, %v4583, %v4584
      %v4586 = vrot.slane %v4492, 5
      %v4587 = vrot.slane %v4586, 4
      %v4588 = vrot.slane %v3750, 5
      %v4589 = vsel %vm1278, %v4587, %v4588
      %v4590 = vrot.slane %v4588, 4
      %v4591 = vrot.slane %v3751, 5
      %v4592 = vsel %vm1278, %v4590, %v4591
      %v4593 = vrot.slane %v4493, 5
      %v4594 = vrot.slane %v4593, 4
      %v4595 = vrot.slane %v3753, 5
      %v4596 = vsel %vm1278, %v4594, %v4595
      %v4597 = vrot.slane %v4595, 4
      %v4598 = vrot.slane %v3754, 5
      %v4599 = vsel %vm1278, %v4597, %v4598
      %v4600 = vrot.slane %v4494, 5
      %v4601 = vrot.slane %v4600, 4
      %v4602 = vrot.slane %v3756, 5
      %v4603 = vsel %vm1278, %v4601, %v4602
      %v4604 = vrot.slane %v4602, 4
      %v4605 = vrot.slane %v3757, 5
      %v4606 = vsel %vm1278, %v4604, %v4605
      %v4607 = vrot.slane %v4495, 5
      %v4608 = vrot.slane %v4607, 4
      %v4609 = vrot.slane %v3759, 5
      %v4610 = vsel %vm1278, %v4608, %v4609
      %v4611 = vrot.slane %v4609, 4
      %v4612 = vrot.slane %v3760, 5
      %v4613 = vsel %vm1278, %v4611, %v4612
      %v4614 = vrot.slane %v4496, 5
      %v4615 = vrot.slane %v4614, 4
      %v4616 = vrot.slane %v3762, 5
      %v4617 = vsel %vm1278, %v4615, %v4616
      %v4618 = vrot.slane %v4616, 4
      %v4619 = vrot.slane %v3763, 5
      %v4620 = vsel %vm1278, %v4618, %v4619
      %v4621 = vrot.slane %v4497, 5
      %v4622 = vrot.slane %v4621, 4
      %v4623 = vrot.slane %v3765, 5
      %v4624 = vsel %vm1278, %v4622, %v4623
      %v4625 = vrot.slane %v4623, 4
      %v4626 = vrot.slane %v3766, 5
      %v4627 = vsel %vm1278, %v4625, %v4626
      %v4628 = vrot.slane %v4498, 5
      %v4629 = vrot.slane %v4628, 4
      %v4630 = vrot.slane %v3768, 5
      %v4631 = vsel %vm1278, %v4629, %v4630
      %v4632 = vrot.slane %v4630, 4
      %v4633 = vrot.slane %v3769, 5
      %v4634 = vsel %vm1278, %v4632, %v4633
      %v4635 = vrot.slane %v4499, 5
      %v4636 = vrot.slane %v4635, 4
      %v4637 = vrot.slane %v3771, 5
      %v4638 = vsel %vm1278, %v4636, %v4637
      %v4639 = vrot.slane %v4637, 4
      %v4640 = vrot.slane %v3772, 5
      %v4641 = vsel %vm1278, %v4639, %v4640
      %v4642 = vrot.slane %v4500, 5
      %v4643 = vrot.slane %v4642, 4
      %v4644 = vrot.slane %v3774, 5
      %v4645 = vsel %vm1278, %v4643, %v4644
      %v4646 = vrot.slane %v4644, 4
      %v4647 = vrot.slane %v3775, 5
      %v4648 = vsel %vm1278, %v4646, %v4647
      %v4649 = vrot.slane %v4501, 5
      %v4650 = vrot.slane %v4649, 4
      %v4651 = vrot.slane %v3777, 5
      %v4652 = vsel %vm1278, %v4650, %v4651
      %v4653 = vrot.slane %v4651, 4
      %v4654 = vrot.slane %v3778, 5
      %v4655 = vsel %vm1278, %v4653, %v4654
      %v4656 = vrot.slane %v4502, 5
      %v4657 = vrot.slane %v4656, 4
      %v4658 = vrot.slane %v3780, 5
      %v4659 = vsel %vm1278, %v4657, %v4658
      %v4660 = vrot.slane %v4658, 4
      %v4661 = vrot.slane %v3781, 5
      %v4662 = vsel %vm1278, %v4660, %v4661
      %v4663 = vld [vmem:[%s1 + $0x200] sm:$0xf]
      %v4664 = vld [vmem:[%s1 + $0x204] sm:$0xf]
      %v4665 = vld [vmem:[%s1 + $0x208] sm:$0xf]
      %v4666 = vld [vmem:[%s1 + $0x20c] sm:$0xf]
      %v4667 = vld [vmem:[%s1 + $0x210] sm:$0xf]
      %v4668 = vld [vmem:[%s1 + $0x214] sm:$0xf]
      %v4669 = vld [vmem:[%s1 + $0x218] sm:$0xf]
      %v4670 = vld [vmem:[%s1 + $0x21c] sm:$0xf]
      %v4671 = vld [vmem:[%s1 + $0x220] sm:$0xf]
      %v4672 = vld [vmem:[%s1 + $0x224] sm:$0xf]
      %v4673 = vld [vmem:[%s1 + $0x228] sm:$0xf]
      %v4674 = vld [vmem:[%s1 + $0x22c] sm:$0xf]
      %v4675 = vld [vmem:[%s1 + $0x230] sm:$0xf]
      %v4676 = vld [vmem:[%s1 + $0x234] sm:$0xf]
      %v4677 = vld [vmem:[%s1 + $0x238] sm:$0xf]
      %v4678 = vld [vmem:[%s1 + $0x23c] sm:$0xf]
      %v4679 = vunpack.c.l.b16 %v4554
      %v4680 = vunpack.c.l.b16 %v4557
      %v4681 = vunpack.c.l.b16 %v4561
      %v4682 = vunpack.c.l.b16 %v4564
      %v4683 = vunpack.c.l.b16 %v4568
      %v4684 = vunpack.c.l.b16 %v4571
      %v4685 = vunpack.c.l.b16 %v4575
      %v4686 = vunpack.c.l.b16 %v4578
      %v4687 = vunpack.c.l.b16 %v4582
      %v4688 = vunpack.c.l.b16 %v4585
      %v4689 = vunpack.c.l.b16 %v4589
      %v4690 = vunpack.c.l.b16 %v4592
      %v4691 = vunpack.c.l.b16 %v4596
      %v4692 = vunpack.c.l.b16 %v4599
      %v4693 = vunpack.c.l.b16 %v4603
      %v4694 = vunpack.c.l.b16 %v4606
      %v4695 = vunpack.c.l.b16 %v4610
      %v4696 = vunpack.c.l.b16 %v4613
      %v4697 = vunpack.c.l.b16 %v4617
      %v4698 = vunpack.c.l.b16 %v4620
      %v4699 = vunpack.c.l.b16 %v4624
      %v4700 = vunpack.c.l.b16 %v4627
      %v4701 = vunpack.c.l.b16 %v4631
      %v4702 = vunpack.c.l.b16 %v4634
      %v4703 = vunpack.c.l.b16 %v4638
      %v4704 = vunpack.c.l.b16 %v4641
      %v4705 = vunpack.c.l.b16 %v4645
      %v4706 = vunpack.c.l.b16 %v4648
      %v4707 = vunpack.c.l.b16 %v4652
      %v4708 = vunpack.c.l.b16 %v4655
      %v4709 = vunpack.c.l.b16 %v4659
      %v4710 = vunpack.c.l.b16 %v4662
      %v4711 = vpack.c.b16 %v4680, %v4679
      %v4712 = vpack.c.b16 %v4682, %v4681
      %v4713 = vpack.c.b16 %v4684, %v4683
      %v4714 = vpack.c.b16 %v4686, %v4685
      %v4715 = vpack.c.b16 %v4688, %v4687
      %v4716 = vpack.c.b16 %v4690, %v4689
      %v4717 = vpack.c.b16 %v4692, %v4691
      %v4718 = vpack.c.b16 %v4694, %v4693
      %v4719 = vpack.c.b16 %v4696, %v4695
      %v4720 = vpack.c.b16 %v4698, %v4697
      %v4721 = vpack.c.b16 %v4700, %v4699
      %v4722 = vpack.c.b16 %v4702, %v4701
      %v4723 = vpack.c.b16 %v4704, %v4703
      %v4724 = vpack.c.b16 %v4706, %v4705
      %v4725 = vpack.c.b16 %v4708, %v4707
      %v4726 = vpack.c.b16 %v4710, %v4709
      %v4759 = vunpack.c.l.b16 %v4663
      %v4760 = vunpack.c.l.b16 %v4664
      %v4761 = vunpack.c.l.b16 %v4665
      %v4762 = vunpack.c.l.b16 %v4666
      %v4763 = vunpack.c.l.b16 %v4667
      %v4764 = vunpack.c.l.b16 %v4668
      %v4765 = vunpack.c.l.b16 %v4669
      %v4766 = vunpack.c.l.b16 %v4670
      %v4767 = vunpack.c.l.b16 %v4671
      %v4768 = vunpack.c.l.b16 %v4672
      %v4769 = vunpack.c.l.b16 %v4673
      %v4770 = vunpack.c.l.b16 %v4674
      %v4771 = vunpack.c.l.b16 %v4675
      %v4772 = vunpack.c.l.b16 %v4676
      %v4773 = vunpack.c.l.b16 %v4677
      %v4774 = vunpack.c.l.b16 %v4678
      %v4775 = vpack.c.b16 %v4760, %v4759
      %v4776 = vpack.c.b16 %v4762, %v4761
      %v4777 = vpack.c.b16 %v4764, %v4763
      %v4778 = vpack.c.b16 %v4766, %v4765
      %v4779 = vpack.c.b16 %v4768, %v4767
      %v4780 = vpack.c.b16 %v4770, %v4769
      %v4781 = vpack.c.b16 %v4772, %v4771
      %v4782 = vpack.c.b16 %v4774, %v4773
      %4791 = vmatprep.subr.bf16.mxu0 0
      %4792 = vmatpush1.bf16.msra.mxu0 %v4782
      %4793 = vmatprep.subr.bf16.mxu0 0
      %4794 = vmatpush1.bf16.msra.mxu0 %v4781
      %4795 = vmatprep.subr.bf16.mxu0 0
      %4796 = vmatpush1.bf16.msra.mxu0 %v4780
      %4797 = vmatprep.subr.bf16.mxu0 0
      %4798 = vmatpush1.bf16.msra.mxu0 %v4779
      %4799 = vmatprep.subr.bf16.mxu0 0
      %4800 = vmatpush1.bf16.msra.mxu0 %v4778
      %4801 = vmatprep.subr.bf16.mxu0 0
      %4802 = vmatpush1.bf16.msra.mxu0 %v4777
      %4803 = vmatprep.subr.bf16.mxu0 0
      %4804 = vmatpush1.bf16.msra.mxu0 %v4776
      %4805 = vmatprep.subr.bf16.mxu0 0
      %4806 = vmatpush1.bf16.msra.mxu0 %v4775
      %4807 = vmatprep.subr.bf16.mxu0 0
      %4808 = vmatpush2.bf16.msra.mxu0 0
      %4809 = vmatprep.subr.bf16.mxu0 0
      %4810 = vmatpush2.bf16.msra.mxu0 0
      %4811 = vmatprep.subr.bf16.mxu0 0
      %4812 = vmatpush2.bf16.msra.mxu0 0
      %4813 = vmatprep.subr.bf16.mxu0 0
      %4814 = vmatpush2.bf16.msra.mxu0 0
      %4815 = vmatprep.subr.bf16.mxu0 0
      %4816 = vmatpush2.bf16.msra.mxu0 0
      %4817 = vmatprep.subr.bf16.mxu0 0
      %4818 = vmatpush2.bf16.msra.mxu0 0
      %4819 = vmatprep.subr.bf16.mxu0 0
      %4820 = vmatpush2.bf16.msra.mxu0 0
      %4821 = vmatprep.subr.bf16.mxu0 0
      %4822 = vmatpush2.bf16.msra.mxu0 0
      %4823 = vmatprep.mubr.bf16.mxu0 0
      %4824 = vmatmul.mubr.bf16.gmra.mxu0 %v4711
      %v4825 = vpop.f32.mrf.mxu0
      %v4826 = vadd.f32 0.0, %v4825
      %v4827 = vpop.f32.mrf.mxu0
      %v4828 = vpop.f32.mrf.mxu0
      %v4829 = vadd.f32 0.0, %v4828
      %v4830 = vpop.f32.mrf.mxu0
      %4831 = vmatprep.mubr.bf16.mxu0 0
      %4832 = vmatmul.mubr.bf16.gmra.mxu0 %v4712
      %v4833 = vpop.f32.mrf.mxu0
      %v4834 = vadd.f32 0.0, %v4833
      %v4835 = vpop.f32.mrf.mxu0
      %v4836 = vpop.f32.mrf.mxu0
      %v4837 = vadd.f32 0.0, %v4836
      %v4838 = vpop.f32.mrf.mxu0
      %4839 = vmatprep.mubr.bf16.mxu0 0
      %4840 = vmatmul.mubr.bf16.gmra.mxu0 %v4713
      %v4841 = vpop.f32.mrf.mxu0
      %v4842 = vadd.f32 0.0, %v4841
      %v4843 = vpop.f32.mrf.mxu0
      %v4844 = vpop.f32.mrf.mxu0
      %v4845 = vadd.f32 0.0, %v4844
      %v4846 = vpop.f32.mrf.mxu0
      %4847 = vmatprep.mubr.bf16.mxu0 0
      %4848 = vmatmul.mubr.bf16.gmra.mxu0 %v4714
      %v4849 = vpop.f32.mrf.mxu0
      %v4850 = vadd.f32 0.0, %v4849
      %v4851 = vpop.f32.mrf.mxu0
      %v4852 = vpop.f32.mrf.mxu0
      %v4853 = vadd.f32 0.0, %v4852
      %v4854 = vpop.f32.mrf.mxu0
      %4855 = vmatprep.mubr.bf16.mxu0 0
      %4856 = vmatmul.mubr.bf16.gmra.mxu0 %v4715
      %v4857 = vpop.f32.mrf.mxu0
      %v4858 = vadd.f32 0.0, %v4857
      %v4859 = vpop.f32.mrf.mxu0
      %v4860 = vpop.f32.mrf.mxu0
      %v4861 = vadd.f32 0.0, %v4860
      %v4862 = vpop.f32.mrf.mxu0
      %4863 = vmatprep.mubr.bf16.mxu0 0
      %4864 = vmatmul.mubr.bf16.gmra.mxu0 %v4716
      %v4865 = vpop.f32.mrf.mxu0
      %v4866 = vadd.f32 0.0, %v4865
      %v4867 = vpop.f32.mrf.mxu0
      %v4868 = vpop.f32.mrf.mxu0
      %v4869 = vadd.f32 0.0, %v4868
      %v4870 = vpop.f32.mrf.mxu0
      %4871 = vmatprep.mubr.bf16.mxu0 0
      %4872 = vmatmul.mubr.bf16.gmra.mxu0 %v4717
      %v4873 = vpop.f32.mrf.mxu0
      %v4874 = vadd.f32 0.0, %v4873
      %v4875 = vpop.f32.mrf.mxu0
      %v4876 = vpop.f32.mrf.mxu0
      %v4877 = vadd.f32 0.0, %v4876
      %v4878 = vpop.f32.mrf.mxu0
      %4879 = vmatprep.mubr.bf16.mxu0 0
      %4880 = vmatmul.mubr.bf16.gmra.mxu0 %v4718
      %v4881 = vpop.f32.mrf.mxu0
      %v4882 = vadd.f32 0.0, %v4881
      %v4883 = vpop.f32.mrf.mxu0
      %v4884 = vpop.f32.mrf.mxu0
      %v4885 = vadd.f32 0.0, %v4884
      %v4886 = vpop.f32.mrf.mxu0
      %4887 = vmatprep.mubr.bf16.mxu0 0
      %4888 = vmatmul.mubr.bf16.gmra.mxu0 %v4719
      %v4889 = vpop.f32.mrf.mxu0
      %v4890 = vadd.f32 0.0, %v4889
      %v4891 = vpop.f32.mrf.mxu0
      %v4892 = vpop.f32.mrf.mxu0
      %v4893 = vadd.f32 0.0, %v4892
      %v4894 = vpop.f32.mrf.mxu0
      %4895 = vmatprep.mubr.bf16.mxu0 0
      %4896 = vmatmul.mubr.bf16.gmra.mxu0 %v4720
      %v4897 = vpop.f32.mrf.mxu0
      %v4898 = vadd.f32 0.0, %v4897
      %v4899 = vpop.f32.mrf.mxu0
      %v4900 = vpop.f32.mrf.mxu0
      %v4901 = vadd.f32 0.0, %v4900
      %v4902 = vpop.f32.mrf.mxu0
      %4903 = vmatprep.mubr.bf16.mxu0 0
      %4904 = vmatmul.mubr.bf16.gmra.mxu0 %v4721
      %v4905 = vpop.f32.mrf.mxu0
      %v4906 = vadd.f32 0.0, %v4905
      %v4907 = vpop.f32.mrf.mxu0
      %v4908 = vpop.f32.mrf.mxu0
      %v4909 = vadd.f32 0.0, %v4908
      %v4910 = vpop.f32.mrf.mxu0
      %4911 = vmatprep.mubr.bf16.mxu0 0
      %4912 = vmatmul.mubr.bf16.gmra.mxu0 %v4722
      %v4913 = vpop.f32.mrf.mxu0
      %v4914 = vadd.f32 0.0, %v4913
      %v4915 = vpop.f32.mrf.mxu0
      %v4916 = vpop.f32.mrf.mxu0
      %v4917 = vadd.f32 0.0, %v4916
      %v4918 = vpop.f32.mrf.mxu0
      %4919 = vmatprep.mubr.bf16.mxu0 0
      %4920 = vmatmul.mubr.bf16.gmra.mxu0 %v4723
      %v4921 = vpop.f32.mrf.mxu0
      %v4922 = vadd.f32 0.0, %v4921
      %v4923 = vpop.f32.mrf.mxu0
      %v4924 = vpop.f32.mrf.mxu0
      %v4925 = vadd.f32 0.0, %v4924
      %v4926 = vpop.f32.mrf.mxu0
      %4927 = vmatprep.mubr.bf16.mxu0 0
      %4928 = vmatmul.mubr.bf16.gmra.mxu0 %v4724
      %v4929 = vpop.f32.mrf.mxu0
      %v4930 = vadd.f32 0.0, %v4929
      %v4931 = vpop.f32.mrf.mxu0
      %v4932 = vpop.f32.mrf.mxu0
      %v4933 = vadd.f32 0.0, %v4932
      %v4934 = vpop.f32.mrf.mxu0
      %4935 = vmatprep.mubr.bf16.mxu0 0
      %4936 = vmatmul.mubr.bf16.gmra.mxu0 %v4725
      %v4937 = vpop.f32.mrf.mxu0
      %v4938 = vadd.f32 0.0, %v4937
      %v4939 = vpop.f32.mrf.mxu0
      %v4940 = vpop.f32.mrf.mxu0
      %v4941 = vadd.f32 0.0, %v4940
      %v4942 = vpop.f32.mrf.mxu0
      %4943 = vmatprep.mubr.bf16.mxu0 0
      %4944 = vmatmul.mubr.bf16.gmra.mxu0 %v4726
      %v4945 = vpop.f32.mrf.mxu0
      %v4946 = vadd.f32 0.0, %v4945
      %v4947 = vpop.f32.mrf.mxu0
      %v4948 = vpop.f32.mrf.mxu0
      %v4949 = vadd.f32 0.0, %v4948
      %v4950 = vpop.f32.mrf.mxu0
      %4951 = vdwg.mxu0
      %v4952 = vadd.f32 %v4455, %v4826
      %v4953 = vadd.f32 %v4456, %v4829
      %v4954 = vadd.f32 %v4457, %v4834
      %v4955 = vadd.f32 %v4458, %v4837
      %v4956 = vadd.f32 %v4459, %v4842
      %v4957 = vadd.f32 %v4460, %v4845
      %v4958 = vadd.f32 %v4461, %v4850
      %v4959 = vadd.f32 %v4462, %v4853
      %v4960 = vadd.f32 %v4463, %v4858
      %v4961 = vadd.f32 %v4464, %v4861
      %v4962 = vadd.f32 %v4465, %v4866
      %v4963 = vadd.f32 %v4466, %v4869
      %v4964 = vadd.f32 %v4467, %v4874
      %v4965 = vadd.f32 %v4468, %v4877
      %v4966 = vadd.f32 %v4469, %v4882
      %v4967 = vadd.f32 %v4470, %v4885
      %v4968 = vadd.f32 %v4471, %v4890
      %v4969 = vadd.f32 %v4472, %v4893
      %v4970 = vadd.f32 %v4473, %v4898
      %v4971 = vadd.f32 %v4474, %v4901
      %v4972 = vadd.f32 %v4475, %v4906
      %v4973 = vadd.f32 %v4476, %v4909
      %v4974 = vadd.f32 %v4477, %v4914
      %v4975 = vadd.f32 %v4478, %v4917
      %v4976 = vadd.f32 %v4479, %v4922
      %v4977 = vadd.f32 %v4480, %v4925
      %v4978 = vadd.f32 %v4481, %v4930
      %v4979 = vadd.f32 %v4482, %v4933
      %v4980 = vadd.f32 %v4483, %v4938
      %v4981 = vadd.f32 %v4484, %v4941
      %v4982 = vadd.f32 %v4485, %v4946
      %v4983 = vadd.f32 %v4486, %v4949
      %4984 = vst [vmem:[%s177] sm:$0xff] %v4952
      %4985 = vst [vmem:[%s177 + $0x8] sm:$0xff] %v4953
      %4986 = vst [vmem:[%s177 + $0x10] sm:$0xff] %v4954
      %4987 = vst [vmem:[%s177 + $0x18] sm:$0xff] %v4955
      %4988 = vst [vmem:[%s177 + $0x20] sm:$0xff] %v4956
      %4989 = vst [vmem:[%s177 + $0x28] sm:$0xff] %v4957
      %4990 = vst [vmem:[%s177 + $0x30] sm:$0xff] %v4958
      %4991 = vst [vmem:[%s177 + $0x38] sm:$0xff] %v4959
      %4992 = vst [vmem:[%s177 + $0x40] sm:$0xff] %v4960
      %4993 = vst [vmem:[%s177 + $0x48] sm:$0xff] %v4961
      %4994 = vst [vmem:[%s177 + $0x50] sm:$0xff] %v4962
      %4995 = vst [vmem:[%s177 + $0x58] sm:$0xff] %v4963
      %4996 = vst [vmem:[%s177 + $0x60] sm:$0xff] %v4964
      %4997 = vst [vmem:[%s177 + $0x68] sm:$0xff] %v4965
      %4998 = vst [vmem:[%s177 + $0x70] sm:$0xff] %v4966
      %4999 = vst [vmem:[%s177 + $0x78] sm:$0xff] %v4967
      %5000 = vst [vmem:[%s177 + $0x80] sm:$0xff] %v4968
      %5001 = vst [vmem:[%s177 + $0x88] sm:$0xff] %v4969
      %5002 = vst [vmem:[%s177 + $0x90] sm:$0xff] %v4970
      %5003 = vst [vmem:[%s177 + $0x98] sm:$0xff] %v4971
      %5004 = vst [vmem:[%s177 + $0xa0] sm:$0xff] %v4972
      %5005 = vst [vmem:[%s177 + $0xa8] sm:$0xff] %v4973
      %5006 = vst [vmem:[%s177 + $0xb0] sm:$0xff] %v4974
      %5007 = vst [vmem:[%s177 + $0xb8] sm:$0xff] %v4975
      %5008 = vst [vmem:[%s177 + $0xc0] sm:$0xff] %v4976
      %5009 = vst [vmem:[%s177 + $0xc8] sm:$0xff] %v4977
      %5010 = vst [vmem:[%s177 + $0xd0] sm:$0xff] %v4978
      %5011 = vst [vmem:[%s177 + $0xd8] sm:$0xff] %v4979
      %5012 = vst [vmem:[%s177 + $0xe0] sm:$0xff] %v4980
      %5013 = vst [vmem:[%s177 + $0xe8] sm:$0xff] %v4981
      %5014 = vst [vmem:[%s177 + $0xf0] sm:$0xff] %v4982
      %5015 = vst [vmem:[%s177 + $0xf8] sm:$0xff] %v4983
      %v5016 = vadd.f32 %v4952, %v4953
      %v5017 = vadd.f32 %v5016, %v4954
      %v5018 = vadd.f32 %v5017, %v4955
      %v5019 = vadd.f32 %v5018, %v4956
      %v5020 = vadd.f32 %v5019, %v4957
      %v5021 = vadd.f32 %v5020, %v4958
      %v5022 = vadd.f32 %v5021, %v4959
      %v5023 = vadd.f32 %v5022, %v4960
      %v5024 = vadd.f32 %v5023, %v4961
      %v5025 = vadd.f32 %v5024, %v4962
      %v5026 = vadd.f32 %v5025, %v4963
      %v5027 = vadd.f32 %v5026, %v4964
      %v5028 = vadd.f32 %v5027, %v4965
      %v5029 = vadd.f32 %v5028, %v4966
      %v5030 = vadd.f32 %v5029, %v4967
      %v5031 = vadd.f32 %v5030, %v4968
      %v5032 = vadd.f32 %v5031, %v4969
      %v5033 = vadd.f32 %v5032, %v4970
      %v5034 = vadd.f32 %v5033, %v4971
      %v5035 = vadd.f32 %v5034, %v4972
      %v5036 = vadd.f32 %v5035, %v4973
      %v5037 = vadd.f32 %v5036, %v4974
      %v5038 = vadd.f32 %v5037, %v4975
      %v5039 = vadd.f32 %v5038, %v4976
      %v5040 = vadd.f32 %v5039, %v4977
      %v5041 = vadd.f32 %v5040, %v4978
      %v5042 = vadd.f32 %v5041, %v4979
      %v5043 = vadd.f32 %v5042, %v4980
      %v5044 = vadd.f32 %v5043, %v4981
      %v5045 = vadd.f32 %v5044, %v4982
      %v5046 = vadd.f32 %v5045, %v4983
      %v5047 = vrot.slane %v5046, 4
      %v5048 = vadd.f32 %v5046, %v5047
      %v5049 = vrot.slane %v5048, 2
      %v5050 = vadd.f32 %v5048, %v5049
      %v5051 = vrot.slane %v5050, 1
      %v5052 = vadd.f32 %v5050, %v5051
      %5053 = vst [vmem:[%s181] sm:$0x1] %v5052
      %v5054 = vmul.f32 %v4952, %v4952
      %v5055 = vmul.f32 %v4953, %v4953
      %v5056 = vmul.f32 %v4954, %v4954
      %v5057 = vmul.f32 %v4955, %v4955
      %v5058 = vmul.f32 %v4956, %v4956
      %v5059 = vmul.f32 %v4957, %v4957
      %v5060 = vmul.f32 %v4958, %v4958
      %v5061 = vmul.f32 %v4959, %v4959
      %v5062 = vmul.f32 %v4960, %v4960
      %v5063 = vmul.f32 %v4961, %v4961
      %v5064 = vmul.f32 %v4962, %v4962
      %v5065 = vmul.f32 %v4963, %v4963
      %v5066 = vmul.f32 %v4964, %v4964
      %v5067 = vmul.f32 %v4965, %v4965
      %v5068 = vmul.f32 %v4966, %v4966
      %v5069 = vmul.f32 %v4967, %v4967
      %v5070 = vmul.f32 %v4968, %v4968
      %v5071 = vmul.f32 %v4969, %v4969
      %v5072 = vmul.f32 %v4970, %v4970
      %v5073 = vmul.f32 %v4971, %v4971
      %v5074 = vmul.f32 %v4972, %v4972
      %v5075 = vmul.f32 %v4973, %v4973
      %v5076 = vmul.f32 %v4974, %v4974
      %v5077 = vmul.f32 %v4975, %v4975
      %v5078 = vmul.f32 %v4976, %v4976
      %v5079 = vmul.f32 %v4977, %v4977
      %v5080 = vmul.f32 %v4978, %v4978
      %v5081 = vmul.f32 %v4979, %v4979
      %v5082 = vmul.f32 %v4980, %v4980
      %v5083 = vmul.f32 %v4981, %v4981
      %v5084 = vmul.f32 %v4982, %v4982
      %v5085 = vmul.f32 %v4983, %v4983
      %v5086 = vadd.f32 %v5054, %v5055
      %v5087 = vadd.f32 %v5086, %v5056
      %v5088 = vadd.f32 %v5087, %v5057
      %v5089 = vadd.f32 %v5088, %v5058
      %v5090 = vadd.f32 %v5089, %v5059
      %v5091 = vadd.f32 %v5090, %v5060
      %v5092 = vadd.f32 %v5091, %v5061
      %v5093 = vadd.f32 %v5092, %v5062
      %v5094 = vadd.f32 %v5093, %v5063
      %v5095 = vadd.f32 %v5094, %v5064
      %v5096 = vadd.f32 %v5095, %v5065
      %v5097 = vadd.f32 %v5096, %v5066
      %v5098 = vadd.f32 %v5097, %v5067
      %v5099 = vadd.f32 %v5098, %v5068
      %v5100 = vadd.f32 %v5099, %v5069
      %v5101 = vadd.f32 %v5100, %v5070
      %v5102 = vadd.f32 %v5101, %v5071
      %v5103 = vadd.f32 %v5102, %v5072
      %v5104 = vadd.f32 %v5103, %v5073
      %v5105 = vadd.f32 %v5104, %v5074
      %v5106 = vadd.f32 %v5105, %v5075
      %v5107 = vadd.f32 %v5106, %v5076
      %v5108 = vadd.f32 %v5107, %v5077
      %v5109 = vadd.f32 %v5108, %v5078
      %v5110 = vadd.f32 %v5109, %v5079
      %v5111 = vadd.f32 %v5110, %v5080
      %v5112 = vadd.f32 %v5111, %v5081
      %v5113 = vadd.f32 %v5112, %v5082
      %v5114 = vadd.f32 %v5113, %v5083
      %v5115 = vadd.f32 %v5114, %v5084
      %v5116 = vadd.f32 %v5115, %v5085
      %v5117 = vrot.slane %v5116, 4
      %v5118 = vadd.f32 %v5116, %v5117
      %v5119 = vrot.slane %v5118, 2
      %v5120 = vadd.f32 %v5118, %v5119
      %v5121 = vrot.slane %v5120, 1
      %v5122 = vadd.f32 %v5120, %v5121
      %5123 = vst [vmem:[%s181 + $0x1] sm:$0x1] %v5122
      %p5124 = scmp.lt.s32.totalorder %s15, 1
      %s5125 = scalar_select %p5124, %s15, 1
      %s5126 = smul.addr %s5125, 32
      %s5127 = smul.addr %s5126, 8
      %s5128 = scalar_lea.vmem %s2, %s5127
      %p5129 = scmp.lt.s32.totalorder %s15, 1
      %s5130 = scalar_select %p5129, %s15, 1
      %s5131 = smul.addr %s5130, 2
      %s5132 = scalar_lea.vmem %s3, %s5131
      // Predicated region
      $region29: #{residual_block_forward.3} parent=27 // pred_check
        %p5133 = pneg %p80
      $region30: #{residual_block_forward.3} parent=27 // pred_check_branch
        %5135 = sbr.rel (%p5133) target = $region32
      $region31: #{residual_block_forward.3} parent=27 // pred_region
        _
      $region32: #{residual_block_forward.3} parent=27 // pred_fallthru
        _
      // Predicated region
      $region33: #{residual_block_forward.3} parent=27 // pred_check
        %p5136 = pneg %p106
      $region34: #{residual_block_forward.3} parent=27 // pred_check_branch
        %5138 = sbr.rel (%p5136) target = $region36
      $region35: #{residual_block_forward.3} parent=27 // pred_region
        _
      $region36: #{residual_block_forward.3} parent=27 // pred_fallthru
        _
    $region28: #{residual_block_forward.3} parent=5 // pred_fallthru
      _
    %p5139 = scmp.le.s32.totalorder 2, %s10
    // Predicated region
    $region37: #{residual_block_forward.3} parent=5 // pred_check
      %p5140 = pneg %p5139
    $region38: #{residual_block_forward.3} parent=5 // pred_check_branch
      %5142 = sbr.rel (%p5140) target = $region40
    $region39: #{residual_block_forward.3} parent=5 // pred_region
      %s5143 = ssub.s32 %s10, 2
      // Predicated region
      $region41: #{residual_block_forward.3} parent=39 // pred_check
        %p5144 = pneg %p86
      $region42: #{residual_block_forward.3} parent=39 // pred_check_branch
        %5146 = sbr.rel (%p5144) target = $region44
      $region43: #{residual_block_forward.3} parent=39 // pred_region
        %p5147 = scmp.lt.s32.totalorder %s16, 1
        %s5148 = scalar_select %p5147, %s16, 1
        %s5149 = smul.addr %s5148, 32
        %s5150 = smul.addr %s5149, 8
        %s5151 = scalar_lea.vmem %s2, %s5150
      $region44: #{residual_block_forward.3} parent=39 // pred_fallthru
        _
      // Predicated region
      $region45: #{residual_block_forward.3} parent=39 // pred_check
        %p5152 = pneg %p112
      $region46: #{residual_block_forward.3} parent=39 // pred_check_branch
        %5154 = sbr.rel (%p5152) target = $region48
      $region47: #{residual_block_forward.3} parent=39 // pred_region
        %p5155 = scmp.lt.s32.totalorder %s16, 1
        %s5156 = scalar_select %p5155, %s16, 1
        %s5157 = smul.addr %s5156, 2
        %s5158 = scalar_lea.vmem %s3, %s5157
      $region48: #{residual_block_forward.3} parent=39 // pred_fallthru
        _
    $region40: #{residual_block_forward.3} parent=5 // pred_fallthru
      _
  $region6: #{residual_block_forward.3} parent=0 // loop_footer
    %s14 = sadd.s32 1, %s10
  $region7: #{residual_block_forward.3} parent=0 // loop_footer_branch
    %9 = sbr.rel target = $region3
  $region8: #{residual_block_forward.3} parent=0 // loop_exit
    _

// kernel: residual_block_forward.4
$region0: #{residual_block_forward.4}
  #allocation0 [shape = 'u32[]', space=smem, size = 0x4, offset = 0x4, fixed_abs, tag = 'smem constant byte address 0x4 - core index']
  #allocation1 [shape = 'u32[144,128]{1,0:T(1,128)}', space=vmem, size = 0x12000, scoped, tag = 'internal scratch']
  #allocation2 [shape = 'bf16[18,32,128]{2,1,0:T(8,128)(2,1)}', space=vmem, size = 0x24000, scoped, tag = 'scratch operand']
  %s0 = inlined_call_operand.vmem [shape: f32[2,16,16,128], index: 0, kind: input, shape index: {}]
  %s1 = inlined_call_operand.vmem [shape: f32[1,128], index: 1, kind: input, shape index: {}]
  %s2 = inlined_call_operand.vmem [shape: f32[1,128], index: 2, kind: input, shape index: {}]
  %s3 = inlined_call_operand.vmem [shape: bf16[1152,128], index: 3, kind: input, shape index: {}]
  %s4 = inlined_call_operand.vmem [shape: bf16[2,16,16,128], index: 4, kind: input, shape index: {}]
  %s5 = inlined_call_operand.vmem [shape: bf16[128,128], index: 5, kind: input, shape index: {}]
  %s6 = inlined_call_operand.vmem [shape: f32[2,16,16,128], index: 6, kind: output, shape index: {0}]
  %s7 = inlined_call_operand.vmem [shape: f32[2,16,16,128], index: 7, kind: output, shape index: {1}]
  %s8 = inlined_call_operand.vmem [shape: f32[2,2,128], index: 8, kind: output, shape index: {2}]
  %s9 = inlined_call_operand.vmem [shape: f32[2,2,128], index: 9, kind: output, shape index: {3}]
  %10 = xla_tuple %s6, %s7, %s8, %s9
  %s11 = sld [smem:[#allocation0]]
  $region81: #{residual_block_forward.4} parent=0
    _
  %s13 = ssub.s32 1, %s11
  %s14 = scalar_select 0, %s13, %s11
  loop: start=0, step=1, limit=4
  $region2: #{residual_block_forward.4} parent=0 // loop_pre_header
    _
  $region3: #{residual_block_forward.4} parent=0 // loop_header
    %s16 = sphi 0, %s20
    %p17 = scmp.ge.s32.totalorder %s16, 4
    %s26 = sphi 0, %s28
    %s29 = sphi 0, %s26
    %s30 = sphi 0, %s29
    %s46 = sphi 0, %s30
    %s50 = sphi 0, %s50
    %s52 = sphi 0, %s50
    %s53 = sphi 0, %s52
    %s67 = sphi 0, %s53
    %s71 = sphi 0, %s71
    %s73 = sphi 0, %s71
    %s74 = sphi 0, %s73
    %s88 = sphi 0, %s74
    %s92 = sphi 0, %s92
    %s94 = sphi 0, %s92
    %s95 = sphi 0, %s94
    %s109 = sphi 0, %s95
    %s115 = sphi 0, %s117
    %s118 = sphi 0, %s115
    %s119 = sphi 0, %s118
    %s135 = sphi 0, %s119
    %s139 = sphi 0, %s139
    %s141 = sphi 0, %s139
    %s142 = sphi 0, %s141
    %s156 = sphi 0, %s142
    %s162 = sphi 0, %s164
    %s165 = sphi 0, %s162
    %s166 = sphi 0, %s165
    %s182 = sphi 0, %s166
    %s188 = sphi 0, %s190
    %s191 = sphi 0, %s188
    %s192 = sphi 0, %s191
    %s208 = sphi 0, %s192
    %s214 = sphi 0, %s216
    %s217 = sphi 0, %s214
    %s218 = sphi 0, %s217
    %s234 = sphi 0, %s218
    %s240 = sphi 0, %s242
    %s243 = sphi 0, %s240
    %s244 = sphi 0, %s243
    %s260 = sphi 0, %s244
  $region4: #{residual_block_forward.4} parent=0 // loop_header_branch
    %19 = sbr.rel (%p17) target = $region8
  $region5: #{residual_block_forward.4} parent=0 // loop_body
    %s21 = ssub.s32 %s16, 1
    %s22 = ssub.s32 %s16, 2
    %s23 = sadd.s32 %s16, 1
    %s24 = ssub.s32 %s16, %s23
    %p25 = scmp.eq.s32.totalorder %s24, 0
    %s27 = sadd.s32 %s26, 1
    %s28 = scalar_select %p25, %s26, %s27
    %p31 = pneg %p25
    %p32 = scmp.eq.s32.totalorder %s16, 1
    %p33 = por %p31, %p32
    %p34 = scmp.ne.s32.totalorder %s26, %s29
    %p35 = scmp.eq.s32.totalorder %s16, 0
    %p36 = por %p34, %p35
    %p37 = scmp.ne.s32.totalorder %s26, %s29
    %p38 = scmp.eq.s32.totalorder %s21, 1
    %p39 = por %p37, %p38
    %p40 = scmp.ne.s32.totalorder %s29, %s30
    %p41 = scmp.eq.s32.totalorder %s21, 0
    %p42 = por %p40, %p41
    %p43 = scmp.ne.s32.totalorder %s29, %s30
    %p44 = scmp.eq.s32.totalorder %s22, 1
    %p45 = por %p43, %p44
    %p47 = scmp.ne.s32.totalorder %s30, %s46
    %p48 = scmp.eq.s32.totalorder %s22, 0
    %p49 = por %p47, %p48
    %s51 = sadd.s32 %s50, 1
    %p54 = scmp.eq.s32.totalorder %s16, 1
    %p55 = scmp.ne.s32.totalorder %s50, %s52
    %p56 = scmp.eq.s32.totalorder %s16, 0
    %p57 = por %p55, %p56
    %p58 = scmp.ne.s32.totalorder %s50, %s52
    %p59 = scmp.eq.s32.totalorder %s21, 1
    %p60 = por %p58, %p59
    %p61 = scmp.ne.s32.totalorder %s52, %s53
    %p62 = scmp.eq.s32.totalorder %s21, 0
    %p63 = por %p61, %p62
    %p64 = scmp.ne.s32.totalorder %s52, %s53
    %p65 = scmp.eq.s32.totalorder %s22, 1
    %p66 = por %p64, %p65
    %p68 = scmp.ne.s32.totalorder %s53, %s67
    %p69 = scmp.eq.s32.totalorder %s22, 0
    %p70 = por %p68, %p69
    %s72 = sadd.s32 %s71, 1
    %p75 = scmp.eq.s32.totalorder %s16, 1
    %p76 = scmp.ne.s32.totalorder %s71, %s73
    %p77 = scmp.eq.s32.totalorder %s16, 0
    %p78 = por %p76, %p77
    %p79 = scmp.ne.s32.totalorder %s71, %s73
    %p80 = scmp.eq.s32.totalorder %s21, 1
    %p81 = por %p79, %p80
    %p82 = scmp.ne.s32.totalorder %s73, %s74
    %p83 = scmp.eq.s32.totalorder %s21, 0
    %p84 = por %p82, %p83
    %p85 = scmp.ne.s32.totalorder %s73, %s74
    %p86 = scmp.eq.s32.totalorder %s22, 1
    %p87 = por %p85, %p86
    %p89 = scmp.ne.s32.totalorder %s74, %s88
    %p90 = scmp.eq.s32.totalorder %s22, 0
    %p91 = por %p89, %p90
    %s93 = sadd.s32 %s92, 1
    %p96 = scmp.eq.s32.totalorder %s16, 1
    %p97 = scmp.ne.s32.totalorder %s92, %s94
    %p98 = scmp.eq.s32.totalorder %s16, 0
    %p99 = por %p97, %p98
    %p100 = scmp.ne.s32.totalorder %s92, %s94
    %p101 = scmp.eq.s32.totalorder %s21, 1
    %p102 = por %p100, %p101
    %p103 = scmp.ne.s32.totalorder %s94, %s95
    %p104 = scmp.eq.s32.totalorder %s21, 0
    %p105 = por %p103, %p104
    %p106 = scmp.ne.s32.totalorder %s94, %s95
    %p107 = scmp.eq.s32.totalorder %s22, 1
    %p108 = por %p106, %p107
    %p110 = scmp.ne.s32.totalorder %s95, %s109
    %p111 = scmp.eq.s32.totalorder %s22, 0
    %p112 = por %p110, %p111
    %s113 = ssub.s32 %s16, %s23
    %p114 = scmp.eq.s32.totalorder %s113, 0
    %s116 = sadd.s32 %s115, 1
    %s117 = scalar_select %p114, %s115, %s116
    %p120 = pneg %p114
    %p121 = scmp.eq.s32.totalorder %s16, 1
    %p122 = por %p120, %p121
    %p123 = scmp.ne.s32.totalorder %s115, %s118
    %p124 = scmp.eq.s32.totalorder %s16, 0
    %p125 = por %p123, %p124
    %p126 = scmp.ne.s32.totalorder %s115, %s118
    %p127 = scmp.eq.s32.totalorder %s21, 1
    %p128 = por %p126, %p127
    %p129 = scmp.ne.s32.totalorder %s118, %s119
    %p130 = scmp.eq.s32.totalorder %s21, 0
    %p131 = por %p129, %p130
    %p132 = scmp.ne.s32.totalorder %s118, %s119
    %p133 = scmp.eq.s32.totalorder %s22, 1
    %p134 = por %p132, %p133
    %p136 = scmp.ne.s32.totalorder %s119, %s135
    %p137 = scmp.eq.s32.totalorder %s22, 0
    %p138 = por %p136, %p137
    %s140 = sadd.s32 %s139, 1
    %p143 = scmp.eq.s32.totalorder %s16, 1
    %p144 = scmp.ne.s32.totalorder %s139, %s141
    %p145 = scmp.eq.s32.totalorder %s16, 0
    %p146 = por %p144, %p145
    %p147 = scmp.ne.s32.totalorder %s139, %s141
    %p148 = scmp.eq.s32.totalorder %s21, 1
    %p149 = por %p147, %p148
    %p150 = scmp.ne.s32.totalorder %s141, %s142
    %p151 = scmp.eq.s32.totalorder %s21, 0
    %p152 = por %p150, %p151
    %p153 = scmp.ne.s32.totalorder %s141, %s142
    %p154 = scmp.eq.s32.totalorder %s22, 1
    %p155 = por %p153, %p154
    %p157 = scmp.ne.s32.totalorder %s142, %s156
    %p158 = scmp.eq.s32.totalorder %s22, 0
    %p159 = por %p157, %p158
    %s160 = ssub.s32 %s16, %s23
    %p161 = scmp.eq.s32.totalorder %s160, 0
    %s163 = sadd.s32 %s162, 1
    %s164 = scalar_select %p161, %s162, %s163
    %p167 = pneg %p161
    %p168 = scmp.eq.s32.totalorder %s16, 1
    %p169 = por %p167, %p168
    %p170 = scmp.ne.s32.totalorder %s162, %s165
    %p171 = scmp.eq.s32.totalorder %s16, 0
    %p172 = por %p170, %p171
    %p173 = scmp.ne.s32.totalorder %s162, %s165
    %p174 = scmp.eq.s32.totalorder %s21, 1
    %p175 = por %p173, %p174
    %p176 = scmp.ne.s32.totalorder %s165, %s166
    %p177 = scmp.eq.s32.totalorder %s21, 0
    %p178 = por %p176, %p177
    %p179 = scmp.ne.s32.totalorder %s165, %s166
    %p180 = scmp.eq.s32.totalorder %s22, 1
    %p181 = por %p179, %p180
    %p183 = scmp.ne.s32.totalorder %s166, %s182
    %p184 = scmp.eq.s32.totalorder %s22, 0
    %p185 = por %p183, %p184
    %s186 = ssub.s32 %s16, %s23
    %p187 = scmp.eq.s32.totalorder %s186, 0
    %s189 = sadd.s32 %s188, 1
    %s190 = scalar_select %p187, %s188, %s189
    %p193 = pneg %p187
    %p194 = scmp.eq.s32.totalorder %s16, 1
    %p195 = por %p193, %p194
    %p196 = scmp.ne.s32.totalorder %s188, %s191
    %p197 = scmp.eq.s32.totalorder %s16, 0
    %p198 = por %p196, %p197
    %p199 = scmp.ne.s32.totalorder %s188, %s191
    %p200 = scmp.eq.s32.totalorder %s21, 1
    %p201 = por %p199, %p200
    %p202 = scmp.ne.s32.totalorder %s191, %s192
    %p203 = scmp.eq.s32.totalorder %s21, 0
    %p204 = por %p202, %p203
    %p205 = scmp.ne.s32.totalorder %s191, %s192
    %p206 = scmp.eq.s32.totalorder %s22, 1
    %p207 = por %p205, %p206
    %p209 = scmp.ne.s32.totalorder %s192, %s208
    %p210 = scmp.eq.s32.totalorder %s22, 0
    %p211 = por %p209, %p210
    %s212 = ssub.s32 %s16, %s23
    %p213 = scmp.eq.s32.totalorder %s212, 0
    %s215 = sadd.s32 %s214, 1
    %s216 = scalar_select %p213, %s214, %s215
    %p219 = pneg %p213
    %p220 = scmp.eq.s32.totalorder %s16, 1
    %p221 = por %p219, %p220
    %p222 = scmp.ne.s32.totalorder %s214, %s217
    %p223 = scmp.eq.s32.totalorder %s16, 0
    %p224 = por %p222, %p223
    %p225 = scmp.ne.s32.totalorder %s214, %s217
    %p226 = scmp.eq.s32.totalorder %s21, 1
    %p227 = por %p225, %p226
    %p228 = scmp.ne.s32.totalorder %s217, %s218
    %p229 = scmp.eq.s32.totalorder %s21, 0
    %p230 = por %p228, %p229
    %p231 = scmp.ne.s32.totalorder %s217, %s218
    %p232 = scmp.eq.s32.totalorder %s22, 1
    %p233 = por %p231, %p232
    %p235 = scmp.ne.s32.totalorder %s218, %s234
    %p236 = scmp.eq.s32.totalorder %s22, 0
    %p237 = por %p235, %p236
    %s238 = ssub.s32 %s16, %s23
    %p239 = scmp.eq.s32.totalorder %s238, 0
    %s241 = sadd.s32 %s240, 1
    %s242 = scalar_select %p239, %s240, %s241
    %p245 = pneg %p239
    %p246 = scmp.eq.s32.totalorder %s16, 1
    %p247 = por %p245, %p246
    %p248 = scmp.ne.s32.totalorder %s240, %s243
    %p249 = scmp.eq.s32.totalorder %s16, 0
    %p250 = por %p248, %p249
    %p251 = scmp.ne.s32.totalorder %s240, %s243
    %p252 = scmp.eq.s32.totalorder %s21, 1
    %p253 = por %p251, %p252
    %p254 = scmp.ne.s32.totalorder %s243, %s244
    %p255 = scmp.eq.s32.totalorder %s21, 0
    %p256 = por %p254, %p255
    %p257 = scmp.ne.s32.totalorder %s243, %s244
    %p258 = scmp.eq.s32.totalorder %s22, 1
    %p259 = por %p257, %p258
    %p261 = scmp.ne.s32.totalorder %s244, %s260
    %p262 = scmp.eq.s32.totalorder %s22, 0
    %p263 = por %p261, %p262
    %p264 = scmp.le.s32.totalorder 1, %s16
    %p265 = scmp.lt.s32.totalorder %s16, 3
    %p266 = pnand %p264, %p265
    %p267 = pneg %p266
    // Predicated region
    $region9: #{residual_block_forward.4} parent=5 // pred_check
      _
    $region10: #{residual_block_forward.4} parent=5 // pred_check_branch
      %269 = sbr.rel (%p266) target = $region12
    $region11: #{residual_block_forward.4} parent=5 // pred_region
      %s270 = ssub.s32 %s16, 1
      // Predicated region
      $region13: #{residual_block_forward.4} parent=11 // pred_check
        %p271 = pneg %p63
      $region14: #{residual_block_forward.4} parent=11 // pred_check_branch
        %273 = sbr.rel (%p271) target = $region16
      $region15: #{residual_block_forward.4} parent=11 // pred_region
        _
      $region16: #{residual_block_forward.4} parent=11 // pred_fallthru
        _
      // Predicated region
      $region17: #{residual_block_forward.4} parent=11 // pred_check
        %p274 = pneg %p84
      $region18: #{residual_block_forward.4} parent=11 // pred_check_branch
        %276 = sbr.rel (%p274) target = $region20
      $region19: #{residual_block_forward.4} parent=11 // pred_region
        _
      $region20: #{residual_block_forward.4} parent=11 // pred_fallthru
        _
      // Predicated region
      $region21: #{residual_block_forward.4} parent=11 // pred_check
        %p277 = pneg %p105
      $region22: #{residual_block_forward.4} parent=11 // pred_check_branch
        %279 = sbr.rel (%p277) target = $region24
      $region23: #{residual_block_forward.4} parent=11 // pred_region
        _
      $region24: #{residual_block_forward.4} parent=11 // pred_fallthru
        _
      // Predicated region
      $region25: #{residual_block_forward.4} parent=11 // pred_check
        %p280 = pneg %p152
      $region26: #{residual_block_forward.4} parent=11 // pred_check_branch
        %282 = sbr.rel (%p280) target = $region28
      $region27: #{residual_block_forward.4} parent=11 // pred_region
        _
      $region28: #{residual_block_forward.4} parent=11 // pred_fallthru
        _
    $region12: #{residual_block_forward.4} parent=5 // pred_fallthru
      _
    %p283 = scmp.lt.s32.totalorder %s16, 2
    // Predicated region
    $region29: #{residual_block_forward.4} parent=5 // pred_check
      %p284 = pneg %p283
    $region30: #{residual_block_forward.4} parent=5 // pred_check_branch
      %286 = sbr.rel (%p284) target = $region32
    $region31: #{residual_block_forward.4} parent=5 // pred_region
      // Predicated region
      $region33: #{residual_block_forward.4} parent=31 // pred_check
        %p287 = pneg %p36
      $region34: #{residual_block_forward.4} parent=31 // pred_check_branch
        %289 = sbr.rel (%p287) target = $region36
      $region35: #{residual_block_forward.4} parent=31 // pred_region
        %p290 = scmp.lt.s32.totalorder %s16, 1
        %s291 = scalar_select %p290, %s16, 1
        %s292 = smul.addr %s291, 32
        %s293 = smul.addr %s292, 8
        %s294 = scalar_lea.vmem %s0, %s293
      $region36: #{residual_block_forward.4} parent=31 // pred_fallthru
        _
      // Predicated region
      $region37: #{residual_block_forward.4} parent=31 // pred_check
        %p295 = pneg %p125
      $region38: #{residual_block_forward.4} parent=31 // pred_check_branch
        %297 = sbr.rel (%p295) target = $region40
      $region39: #{residual_block_forward.4} parent=31 // pred_region
        %p298 = scmp.lt.s32.totalorder %s16, 1
        %s299 = scalar_select %p298, %s16, 1
        %s300 = smul.addr %s299, 32
        %s301 = smul.addr %s300, 4
        %s302 = scalar_lea.vmem %s4, %s301
      $region40: #{residual_block_forward.4} parent=31 // pred_fallthru
        _
    $region32: #{residual_block_forward.4} parent=5 // pred_fallthru
      _
    %p303 = scmp.le.s32.totalorder 1, %s16
    %p304 = scmp.lt.s32.totalorder %s16, 3
    %p305 = pnand %p303, %p304
    %p306 = pneg %p305
    // Predicated region
    $region41: #{residual_block_forward.4} parent=5 // pred_check
      _
    $region42: #{residual_block_forward.4} parent=5 // pred_check_branch
      %308 = sbr.rel (%p305) target = $region44
    $region43: #{residual_block_forward.4} parent=5 // pred_region
      %s309 = ssub.s32 %s16, 1
      %p310 = scmp.lt.s32.totalorder %s21, 1
      %s311 = scalar_select %p310, %s21, 1
      %s312 = smul.addr %s311, 32
      %s313 = smul.addr %s312, 8
      %s314 = scalar_lea.vmem %s0, %s313
      %p315 = pneg %p42
      %p316 = pneg %p39
      %p317 = pneg %p63
      %p318 = pneg %p60
      %p319 = pneg %p84
      %p320 = pneg %p81
      %p321 = pneg %p105
      %p322 = pneg %p102
      %p323 = scmp.lt.s32.totalorder %s21, 1
      %s324 = scalar_select %p323, %s21, 1
      %s325 = smul.addr %s324, 32
      %s326 = smul.addr %s325, 4
      %s327 = scalar_lea.vmem %s4, %s326
      %p328 = pneg %p131
      %p329 = pneg %p128
      %p330 = pneg %p152
      %p331 = pneg %p149
      %p332 = pneg %p178
      %p333 = pneg %p175
      %p334 = scmp.lt.s32.totalorder %s21, 1
      %s335 = scalar_select %p334, %s21, 1
      %s336 = smul.addr %s335, 32
      %s337 = smul.addr %s336, 8
      %s338 = scalar_lea.vmem %s6, %s337
      %p339 = pneg %p204
      %p340 = pneg %p201
      %p341 = scmp.lt.s32.totalorder %s21, 1
      %s342 = scalar_select %p341, %s21, 1
      %s343 = smul.addr %s342, 32
      %s344 = smul.addr %s343, 8
      %s345 = scalar_lea.vmem %s7, %s344
      %p346 = pneg %p230
      %p347 = pneg %p227
      %p348 = scmp.lt.s32.totalorder %s21, 1
      %s349 = scalar_select %p348, %s21, 1
      %s350 = smul.addr %s349, 2
      %s351 = scalar_lea.vmem %s8, %s350
      %p352 = pneg %p256
      %p353 = pneg %p253
      %p354 = scmp.lt.s32.totalorder %s21, 1
      %s355 = scalar_select %p354, %s21, 1
      %s356 = smul.addr %s355, 2
      %s357 = scalar_lea.vmem %s9, %s356
      %p358 = scmp.lt.s32.totalorder %s21, 1
      %s359 = scalar_select %p358, %s21, 1
      %s360 = smul.addr %s359, 32
      %s361 = smul.addr %s360, 8
      %s362 = scalar_lea.vmem %s0, %s361
      %p363 = scmp.lt.s32.totalorder %s21, 1
      %s364 = scalar_select %p363, %s21, 1
      %s365 = smul.addr %s364, 32
      %s366 = smul.addr %s365, 4
      %s367 = scalar_lea.vmem %s4, %s366
      %p368 = scmp.lt.s32.totalorder %s21, 1
      %s369 = scalar_select %p368, %s21, 1
      %s370 = smul.addr %s369, 32
      %s371 = smul.addr %s370, 8
      %s372 = scalar_lea.vmem %s6, %s371
      %p373 = scmp.lt.s32.totalorder %s21, 1
      %s374 = scalar_select %p373, %s21, 1
      %s375 = smul.addr %s374, 32
      %s376 = smul.addr %s375, 8
      %s377 = scalar_lea.vmem %s7, %s376
      %p378 = scmp.lt.s32.totalorder %s21, 1
      %s379 = scalar_select %p378, %s21, 1
      %s380 = smul.addr %s379, 2
      %s381 = scalar_lea.vmem %s8, %s380
      %p382 = scmp.lt.s32.totalorder %s21, 1
      %s383 = scalar_select %p382, %s21, 1
      %s384 = smul.addr %s383, 2
      %s385 = scalar_lea.vmem %s9, %s384
      %v387 = vld [vmem:[%s362] sm:$0xff]
      %v388 = vld [vmem:[%s362 + $0x8] sm:$0xff]
      %v389 = vld [vmem:[%s362 + $0x10] sm:$0xff]
      %v390 = vld [vmem:[%s362 + $0x18] sm:$0xff]
      %v391 = vld [vmem:[%s362 + $0x20] sm:$0xff]
      %v392 = vld [vmem:[%s362 + $0x28] sm:$0xff]
      %v393 = vld [vmem:[%s362 + $0x30] sm:$0xff]
      %v394 = vld [vmem:[%s362 + $0x38] sm:$0xff]
      %v395 = vld [vmem:[%s362 + $0x40] sm:$0xff]
      %v396 = vld [vmem:[%s362 + $0x48] sm:$0xff]
      %v397 = vld [vmem:[%s362 + $0x50] sm:$0xff]
      %v398 = vld [vmem:[%s362 + $0x58] sm:$0xff]
      %v399 = vld [vmem:[%s362 + $0x60] sm:$0xff]
      %v400 = vld [vmem:[%s362 + $0x68] sm:$0xff]
      %v401 = vld [vmem:[%s362 + $0x70] sm:$0xff]
      %v402 = vld [vmem:[%s362 + $0x78] sm:$0xff]
      %v403 = vld [vmem:[%s362 + $0x80] sm:$0xff]
      %v404 = vld [vmem:[%s362 + $0x88] sm:$0xff]
      %v405 = vld [vmem:[%s362 + $0x90] sm:$0xff]
      %v406 = vld [vmem:[%s362 + $0x98] sm:$0xff]
      %v407 = vld [vmem:[%s362 + $0xa0] sm:$0xff]
      %v408 = vld [vmem:[%s362 + $0xa8] sm:$0xff]
      %v409 = vld [vmem:[%s362 + $0xb0] sm:$0xff]
      %v410 = vld [vmem:[%s362 + $0xb8] sm:$0xff]
      %v411 = vld [vmem:[%s362 + $0xc0] sm:$0xff]
      %v412 = vld [vmem:[%s362 + $0xc8] sm:$0xff]
      %v413 = vld [vmem:[%s362 + $0xd0] sm:$0xff]
      %v414 = vld [vmem:[%s362 + $0xd8] sm:$0xff]
      %v415 = vld [vmem:[%s362 + $0xe0] sm:$0xff]
      %v416 = vld [vmem:[%s362 + $0xe8] sm:$0xff]
      %v417 = vld [vmem:[%s362 + $0xf0] sm:$0xff]
      %v418 = vld [vmem:[%s362 + $0xf8] sm:$0xff]
      %v419 = vld [vmem:[%s1] sm:$0x1]
      %v421 = vlaneseq
      %v422 = vshrl.u32 %v421, 7
      %v423 = vsub.s32 0, %v422
      %v424 = vrot.slane %v419, %v423
      %v426 = vmul.f32 %v387, %v424
      %v427 = vmul.f32 %v388, %v424
      %v428 = vmul.f32 %v389, %v424
      %v429 = vmul.f32 %v390, %v424
      %v430 = vmul.f32 %v391, %v424
      %v431 = vmul.f32 %v392, %v424
      %v432 = vmul.f32 %v393, %v424
      %v433 = vmul.f32 %v394, %v424
      %v434 = vmul.f32 %v395, %v424
      %v435 = vmul.f32 %v396, %v424
      %v436 = vmul.f32 %v397, %v424
      %v437 = vmul.f32 %v398, %v424
      %v438 = vmul.f32 %v399, %v424
      %v439 = vmul.f32 %v400, %v424
      %v440 = vmul.f32 %v401, %v424
      %v441 = vmul.f32 %v402, %v424
      %v442 = vmul.f32 %v403, %v424
      %v443 = vmul.f32 %v404, %v424
      %v444 = vmul.f32 %v405, %v424
      %v445 = vmul.f32 %v406, %v424
      %v446 = vmul.f32 %v407, %v424
      %v447 = vmul.f32 %v408, %v424
      %v448 = vmul.f32 %v409, %v424
      %v449 = vmul.f32 %v410, %v424
      %v450 = vmul.f32 %v411, %v424
      %v451 = vmul.f32 %v412, %v424
      %v452 = vmul.f32 %v413, %v424
      %v453 = vmul.f32 %v414, %v424
      %v454 = vmul.f32 %v415, %v424
      %v455 = vmul.f32 %v416, %v424
      %v456 = vmul.f32 %v417, %v424
      %v457 = vmul.f32 %v418, %v424
      %v458 = vld [vmem:[%s2] sm:$0x1]
      %v460 = vlaneseq
      %v461 = vshrl.u32 %v460, 7
      %v462 = vsub.s32 0, %v461
      %v463 = vrot.slane %v458, %v462
      %v465 = vadd.f32 %v426, %v463
      %v466 = vadd.f32 %v427, %v463
      %v467 = vadd.f32 %v428, %v463
      %v468 = vadd.f32 %v429, %v463
      %v469 = vadd.f32 %v430, %v463
      %v470 = vadd.f32 %v431, %v463
      %v471 = vadd.f32 %v432, %v463
      %v472 = vadd.f32 %v433, %v463
      %v473 = vadd.f32 %v434, %v463
      %v474 = vadd.f32 %v435, %v463
      %v475 = vadd.f32 %v436, %v463
      %v476 = vadd.f32 %v437, %v463
      %v477 = vadd.f32 %v438, %v463
      %v478 = vadd.f32 %v439, %v463
      %v479 = vadd.f32 %v440, %v463
      %v480 = vadd.f32 %v441, %v463
      %v481 = vadd.f32 %v442, %v463
      %v482 = vadd.f32 %v443, %v463
      %v483 = vadd.f32 %v444, %v463
      %v484 = vadd.f32 %v445, %v463
      %v485 = vadd.f32 %v446, %v463
      %v486 = vadd.f32 %v447, %v463
      %v487 = vadd.f32 %v448, %v463
      %v488 = vadd.f32 %v449, %v463
      %v489 = vadd.f32 %v450, %v463
      %v490 = vadd.f32 %v451, %v463
      %v491 = vadd.f32 %v452, %v463
      %v492 = vadd.f32 %v453, %v463
      %v493 = vadd.f32 %v454, %v463
      %v494 = vadd.f32 %v455, %v463
      %v495 = vadd.f32 %v456, %v463
      %v496 = vadd.f32 %v457, %v463
      %v497 = vmax.f32 %v465, 0.0
      %v498 = vmax.f32 %v466, 0.0
      %v499 = vmax.f32 %v467, 0.0
      %v500 = vmax.f32 %v468, 0.0
      %v501 = vmax.f32 %v469, 0.0
      %v502 = vmax.f32 %v470, 0.0
      %v503 = vmax.f32 %v471, 0.0
      %v504 = vmax.f32 %v472, 0.0
      %v505 = vmax.f32 %v473, 0.0
      %v506 = vmax.f32 %v474, 0.0
      %v507 = vmax.f32 %v475, 0.0
      %v508 = vmax.f32 %v476, 0.0
      %v509 = vmax.f32 %v477, 0.0
      %v510 = vmax.f32 %v478, 0.0
      %v511 = vmax.f32 %v479, 0.0
      %v512 = vmax.f32 %v480, 0.0
      %v513 = vmax.f32 %v481, 0.0
      %v514 = vmax.f32 %v482, 0.0
      %v515 = vmax.f32 %v483, 0.0
      %v516 = vmax.f32 %v484, 0.0
      %v517 = vmax.f32 %v485, 0.0
      %v518 = vmax.f32 %v486, 0.0
      %v519 = vmax.f32 %v487, 0.0
      %v520 = vmax.f32 %v488, 0.0
      %v521 = vmax.f32 %v489, 0.0
      %v522 = vmax.f32 %v490, 0.0
      %v523 = vmax.f32 %v491, 0.0
      %v524 = vmax.f32 %v492, 0.0
      %v525 = vmax.f32 %v493, 0.0
      %v526 = vmax.f32 %v494, 0.0
      %v527 = vmax.f32 %v495, 0.0
      %v528 = vmax.f32 %v496, 0.0
      %v529 = vpack.c.bf16 %v498, %v497
      %v530 = vpack.c.bf16 %v500, %v499
      %v531 = vpack.c.bf16 %v502, %v501
      %v532 = vpack.c.bf16 %v504, %v503
      %v533 = vpack.c.bf16 %v506, %v505
      %v534 = vpack.c.bf16 %v508, %v507
      %v535 = vpack.c.bf16 %v510, %v509
      %v536 = vpack.c.bf16 %v512, %v511
      %v537 = vpack.c.bf16 %v514, %v513
      %v538 = vpack.c.bf16 %v516, %v515
      %v539 = vpack.c.bf16 %v518, %v517
      %v540 = vpack.c.bf16 %v520, %v519
      %v541 = vpack.c.bf16 %v522, %v521
      %v542 = vpack.c.bf16 %v524, %v523
      %v543 = vpack.c.bf16 %v526, %v525
      %v544 = vpack.c.bf16 %v528, %v527
      %545 = vst [vmem:[#allocation2] sm:$0xf] 0
      %546 = vst [vmem:[#allocation2 + $0x4] sm:$0xf] 0
      %547 = vst [vmem:[#allocation2 + $0x8] sm:$0xf] 0
      %548 = vst [vmem:[#allocation2 + $0xc] sm:$0xf] 0
      %549 = vst [vmem:[#allocation2 + $0x10] sm:$0xf] 0
      %550 = vst [vmem:[#allocation2 + $0x14] sm:$0xf] 0
      %551 = vst [vmem:[#allocation2 + $0x18] sm:$0xf] 0
      %552 = vst [vmem:[#allocation2 + $0x1c] sm:$0xf] 0
      %553 = vst [vmem:[#allocation2 + $0x20] sm:$0xf] 0
      %554 = vst [vmem:[#allocation2 + $0x24] sm:$0xf] 0
      %555 = vst [vmem:[#allocation2 + $0x28] sm:$0xf] 0
      %556 = vst [vmem:[#allocation2 + $0x2c] sm:$0xf] 0
      %557 = vst [vmem:[#allocation2 + $0x30] sm:$0xf] 0
      %558 = vst [vmem:[#allocation2 + $0x34] sm:$0xf] 0
      %559 = vst [vmem:[#allocation2 + $0x38] sm:$0xf] 0
      %560 = vst [vmem:[#allocation2 + $0x3c] sm:$0xf] 0
      %561 = vst [vmem:[#allocation2 + $0x40] sm:$0xf] 0
      %562 = vst [vmem:[#allocation2 + $0x44] sm:$0xf] 0
      %563 = vst [vmem:[#allocation2 + $0x48] sm:$0xf] 0
      %564 = vst [vmem:[#allocation2 + $0x4c] sm:$0xf] 0
      %565 = vst [vmem:[#allocation2 + $0x50] sm:$0xf] 0
      %566 = vst [vmem:[#allocation2 + $0x54] sm:$0xf] 0
      %567 = vst [vmem:[#allocation2 + $0x58] sm:$0xf] 0
      %568 = vst [vmem:[#allocation2 + $0x5c] sm:$0xf] 0
      %569 = vst [vmem:[#allocation2 + $0x60] sm:$0xf] 0
      %570 = vst [vmem:[#allocation2 + $0x64] sm:$0xf] 0
      %571 = vst [vmem:[#allocation2 + $0x68] sm:$0xf] 0
      %572 = vst [vmem:[#allocation2 + $0x6c] sm:$0xf] 0
      %573 = vst [vmem:[#allocation2 + $0x70] sm:$0xf] 0
      %574 = vst [vmem:[#allocation2 + $0x74] sm:$0xf] 0
      %575 = vst [vmem:[#allocation2 + $0x78] sm:$0xf] 0
      %576 = vst [vmem:[#allocation2 + $0x7c] sm:$0xf] 0
      %577 = vst [vmem:[#allocation2 + $0x80] sm:$0xf] 0
      %578 = vst [vmem:[#allocation2 + $0x84] sm:$0xf] 0
      %579 = vst [vmem:[#allocation2 + $0x88] sm:$0xf] 0
      %580 = vst [vmem:[#allocation2 + $0x8c] sm:$0xf] 0
      %581 = vst [vmem:[#allocation2 + $0x90] sm:$0xf] 0
      %582 = vst [vmem:[#allocation2 + $0x94] sm:$0xf] 0
      %583 = vst [vmem:[#allocation2 + $0x98] sm:$0xf] 0
      %584 = vst [vmem:[#allocation2 + $0x9c] sm:$0xf] 0
      %585 = vst [vmem:[#allocation2 + $0xa0] sm:$0xf] 0
      %586 = vst [vmem:[#allocation2 + $0xa4] sm:$0xf] 0
      %587 = vst [vmem:[#allocation2 + $0xa8] sm:$0xf] 0
      %588 = vst [vmem:[#allocation2 + $0xac] sm:$0xf] 0
      %589 = vst [vmem:[#allocation2 + $0xb0] sm:$0xf] 0
      %590 = vst [vmem:[#allocation2 + $0xb4] sm:$0xf] 0
      %591 = vst [vmem:[#allocation2 + $0xb8] sm:$0xf] 0
      %592 = vst [vmem:[#allocation2 + $0xbc] sm:$0xf] 0
      %593 = vst [vmem:[#allocation2 + $0xc0] sm:$0xf] 0
      %594 = vst [vmem:[#allocation2 + $0xc4] sm:$0xf] 0
      %595 = vst [vmem:[#allocation2 + $0xc8] sm:$0xf] 0
      %596 = vst [vmem:[#allocation2 + $0xcc] sm:$0xf] 0
      %597 = vst [vmem:[#allocation2 + $0xd0] sm:$0xf] 0
      %598 = vst [vmem:[#allocation2 + $0xd4] sm:$0xf] 0
      %599 = vst [vmem:[#allocation2 + $0xd8] sm:$0xf] 0
      %600 = vst [vmem:[#allocation2 + $0xdc] sm:$0xf] 0
      %601 = vst [vmem:[#allocation2 + $0xe0] sm:$0xf] 0
      %602 = vst [vmem:[#allocation2 + $0xe4] sm:$0xf] 0
      %603 = vst [vmem:[#allocation2 + $0xe8] sm:$0xf] 0
      %604 = vst [vmem:[#allocation2 + $0xec] sm:$0xf] 0
      %605 = vst [vmem:[#allocation2 + $0xf0] sm:$0xf] 0
      %606 = vst [vmem:[#allocation2 + $0xf4] sm:$0xf] 0
      %607 = vst [vmem:[#allocation2 + $0xf8] sm:$0xf] 0
      %608 = vst [vmem:[#allocation2 + $0xfc] sm:$0xf] 0
      %609 = vst [vmem:[#allocation2 + $0x100] sm:$0xf] 0
      %610 = vst [vmem:[#allocation2 + $0x104] sm:$0xf] 0
      %611 = vst [vmem:[#allocation2 + $0x108] sm:$0xf] 0
      %612 = vst [vmem:[#allocation2 + $0x10c] sm:$0xf] 0
      %613 = vst [vmem:[#allocation2 + $0x110] sm:$0xf] 0
      %614 = vst [vmem:[#allocation2 + $0x114] sm:$0xf] 0
      %615 = vst [vmem:[#allocation2 + $0x118] sm:$0xf] 0
      %616 = vst [vmem:[#allocation2 + $0x11c] sm:$0xf] 0
      %v633 = vunpack.c.l.b16 %v529
      %v634 = vunpack.c.h.b16 %v529
      %v635 = vunpack.c.l.b16 %v530
      %v636 = vunpack.c.h.b16 %v530
      %v637 = vunpack.c.l.b16 %v531
      %v638 = vunpack.c.h.b16 %v531
      %v639 = vunpack.c.l.b16 %v532
      %v640 = vunpack.c.h.b16 %v532
      %v641 = vunpack.c.l.b16 %v533
      %v642 = vunpack.c.h.b16 %v533
      %v643 = vunpack.c.l.b16 %v534
      %v644 = vunpack.c.h.b16 %v534
      %v645 = vunpack.c.l.b16 %v535
      %v646 = vunpack.c.h.b16 %v535
      %v647 = vunpack.c.l.b16 %v536
      %v648 = vunpack.c.h.b16 %v536
      %v649 = vunpack.c.l.b16 %v537
      %v650 = vunpack.c.h.b16 %v537
      %v651 = vunpack.c.l.b16 %v538
      %v652 = vunpack.c.h.b16 %v538
      %v653 = vunpack.c.l.b16 %v539
      %v654 = vunpack.c.h.b16 %v539
      %v655 = vunpack.c.l.b16 %v540
      %v656 = vunpack.c.h.b16 %v540
      %v657 = vunpack.c.l.b16 %v541
      %v658 = vunpack.c.h.b16 %v541
      %v659 = vunpack.c.l.b16 %v542
      %v660 = vunpack.c.h.b16 %v542
      %v661 = vunpack.c.l.b16 %v543
      %v662 = vunpack.c.h.b16 %v543
      %v663 = vunpack.c.l.b16 %v544
      %v664 = vunpack.c.h.b16 %v544
      %v665 = vpack.c.b16 %v633, %v633
      %v666 = vpack.c.b16 %v634, %v634
      %v667 = vpack.c.b16 %v635, %v635
      %v668 = vpack.c.b16 %v636, %v636
      %v669 = vpack.c.b16 %v637, %v637
      %v670 = vpack.c.b16 %v638, %v638
      %v671 = vpack.c.b16 %v639, %v639
      %v672 = vpack.c.b16 %v640, %v640
      %v673 = vpack.c.b16 %v641, %v641
      %v674 = vpack.c.b16 %v642, %v642
      %v675 = vpack.c.b16 %v643, %v643
      %v676 = vpack.c.b16 %v644, %v644
      %v677 = vpack.c.b16 %v645, %v645
      %v678 = vpack.c.b16 %v646, %v646
      %v679 = vpack.c.b16 %v647, %v647
      %v680 = vpack.c.b16 %v648, %v648
      %v681 = vpack.c.b16 %v649, %v649
      %v682 = vpack.c.b16 %v650, %v650
      %v683 = vpack.c.b16 %v651, %v651
      %v684 = vpack.c.b16 %v652, %v652
      %v685 = vpack.c.b16 %v653, %v653
      %v686 = vpack.c.b16 %v654, %v654
      %v687 = vpack.c.b16 %v655, %v655
      %v688 = vpack.c.b16 %v656, %v656
      %v689 = vpack.c.b16 %v657, %v657
      %v690 = vpack.c.b16 %v658, %v658
      %v691 = vpack.c.b16 %v659, %v659
      %v692 = vpack.c.b16 %v660, %v660
      %v693 = vpack.c.b16 %v661, %v661
      %v694 = vpack.c.b16 %v662, %v662
      %v695 = vpack.c.b16 %v663, %v663
      %v696 = vpack.c.b16 %v664, %v664
      %s729 = scalar_lea.vmem [#allocation2], 16
      %730 = vst [vmem:[%s729 + $0x4] sm:$0xf] %v665
      %731 = vst [vmem:[%s729 + $0x8] sm:$0xf] %v666
      %732 = vst [vmem:[%s729 + $0x14] sm:$0xf] %v667
      %733 = vst [vmem:[%s729 + $0x18] sm:$0xf] %v668
      %734 = vst [vmem:[%s729 + $0x24] sm:$0xf] %v669
      %735 = vst [vmem:[%s729 + $0x28] sm:$0xf] %v670
      %736 = vst [vmem:[%s729 + $0x34] sm:$0xf] %v671
      %737 = vst [vmem:[%s729 + $0x38] sm:$0xf] %v672
      %738 = vst [vmem:[%s729 + $0x44] sm:$0xf] %v673
      %739 = vst [vmem:[%s729 + $0x48] sm:$0xf] %v674
      %740 = vst [vmem:[%s729 + $0x54] sm:$0xf] %v675
      %741 = vst [vmem:[%s729 + $0x58] sm:$0xf] %v676
      %742 = vst [vmem:[%s729 + $0x64] sm:$0xf] %v677
      %743 = vst [vmem:[%s729 + $0x68] sm:$0xf] %v678
      %744 = vst [vmem:[%s729 + $0x74] sm:$0xf] %v679
      %745 = vst [vmem:[%s729 + $0x78] sm:$0xf] %v680
      %746 = vst [vmem:[%s729 + $0x84] sm:$0xf] %v681
      %747 = vst [vmem:[%s729 + $0x88] sm:$0xf] %v682
      %748 = vst [vmem:[%s729 + $0x94] sm:$0xf] %v683
      %749 = vst [vmem:[%s729 + $0x98] sm:$0xf] %v684
      %750 = vst [vmem:[%s729 + $0xa4] sm:$0xf] %v685
      %751 = vst [vmem:[%s729 + $0xa8] sm:$0xf] %v686
      %752 = vst [vmem:[%s729 + $0xb4] sm:$0xf] %v687
      %753 = vst [vmem:[%s729 + $0xb8] sm:$0xf] %v688
      %754 = vst [vmem:[%s729 + $0xc4] sm:$0xf] %v689
      %755 = vst [vmem:[%s729 + $0xc8] sm:$0xf] %v690
      %756 = vst [vmem:[%s729 + $0xd4] sm:$0xf] %v691
      %757 = vst [vmem:[%s729 + $0xd8] sm:$0xf] %v692
      %758 = vst [vmem:[%s729 + $0xe4] sm:$0xf] %v693
      %759 = vst [vmem:[%s729 + $0xe8] sm:$0xf] %v694
      %760 = vst [vmem:[%s729 + $0xf4] sm:$0xf] %v695
      %761 = vst [vmem:[%s729 + $0xf8] sm:$0xf] %v696
      %v762 = vld [vmem:[#allocation2] sm:$0x8]
      %v763 = vld [vmem:[#allocation2 + $0x4] sm:$0xf]
      %v764 = vld [vmem:[#allocation2 + $0x8] sm:$0xf]
      %v765 = vld [vmem:[#allocation2 + $0x10] sm:$0x8]
      %v766 = vld [vmem:[#allocation2 + $0x14] sm:$0xf]
      %v767 = vld [vmem:[#allocation2 + $0x18] sm:$0xf]
      %v768 = vld [vmem:[#allocation2 + $0x20] sm:$0x8]
      %v769 = vld [vmem:[#allocation2 + $0x24] sm:$0xf]
      %v770 = vld [vmem:[#allocation2 + $0x28] sm:$0xf]
      %v771 = vld [vmem:[#allocation2 + $0x30] sm:$0x8]
      %v772 = vld [vmem:[#allocation2 + $0x34] sm:$0xf]
      %v773 = vld [vmem:[#allocation2 + $0x38] sm:$0xf]
      %v774 = vld [vmem:[#allocation2 + $0x40] sm:$0x8]
      %v775 = vld [vmem:[#allocation2 + $0x44] sm:$0xf]
      %v776 = vld [vmem:[#allocation2 + $0x48] sm:$0xf]
      %v777 = vld [vmem:[#allocation2 + $0x50] sm:$0x8]
      %v778 = vld [vmem:[#allocation2 + $0x54] sm:$0xf]
      %v779 = vld [vmem:[#allocation2 + $0x58] sm:$0xf]
      %v780 = vld [vmem:[#allocation2 + $0x60] sm:$0x8]
      %v781 = vld [vmem:[#allocation2 + $0x64] sm:$0xf]
      %v782 = vld [vmem:[#allocation2 + $0x68] sm:$0xf]
      %v783 = vld [vmem:[#allocation2 + $0x70] sm:$0x8]
      %v784 = vld [vmem:[#allocation2 + $0x74] sm:$0xf]
      %v785 = vld [vmem:[#allocation2 + $0x78] sm:$0xf]
      %v786 = vld [vmem:[#allocation2 + $0x80] sm:$0x8]
      %v787 = vld [vmem:[#allocation2 + $0x84] sm:$0xf]
      %v788 = vld [vmem:[#allocation2 + $0x88] sm:$0xf]
      %v789 = vld [vmem:[#allocation2 + $0x90] sm:$0x8]
      %v790 = vld [vmem:[#allocation2 + $0x94] sm:$0xf]
      %v791 = vld [vmem:[#allocation2 + $0x98] sm:$0xf]
      %v792 = vld [vmem:[#allocation2 + $0xa0] sm:$0x8]
      %v793 = vld [vmem:[#allocation2 + $0xa4] sm:$0xf]
      %v794 = vld [vmem:[#allocation2 + $0xa8] sm:$0xf]
      %v795 = vld [vmem:[#allocation2 + $0xb0] sm:$0x8]
      %v796 = vld [vmem:[#allocation2 + $0xb4] sm:$0xf]
      %v797 = vld [vmem:[#allocation2 + $0xb8] sm:$0xf]
      %v798 = vld [vmem:[#allocation2 + $0xc0] sm:$0x8]
      %v799 = vld [vmem:[#allocation2 + $0xc4] sm:$0xf]
      %v800 = vld [vmem:[#allocation2 + $0xc8] sm:$0xf]
      %v801 = vld [vmem:[#allocation2 + $0xd0] sm:$0x8]
      %v802 = vld [vmem:[#allocation2 + $0xd4] sm:$0xf]
      %v803 = vld [vmem:[#allocation2 + $0xd8] sm:$0xf]
      %v804 = vld [vmem:[#allocation2 + $0xe0] sm:$0x8]
      %v805 = vld [vmem:[#allocation2 + $0xe4] sm:$0xf]
      %v806 = vld [vmem:[#allocation2 + $0xe8] sm:$0xf]
      %v807 = vld [vmem:[#allocation2 + $0xf0] sm:$0x8]
      %v808 = vld [vmem:[#allocation2 + $0xf4] sm:$0xf]
      %v809 = vld [vmem:[#allocation2 + $0xf8] sm:$0xf]
      %vm810 = vsmask.f32 256
      %vm811 = vsmask.f32 4368
      %vm812 = vmor %vm810, %vm811
      %v814 = vshrl.u32 %v762, 16
      %v816 = vrot.slane %v814, 7
      %v817 = vrot.slane %v816, 4
      %v819 = vshrl.u32 %v763, 16
      %v821 = vrot.slane %v819, 7
      %v822 = vshll.u32 %v763, 16
      %v824 = vor.u32 %v821, %v822
      %v825 = vsel %vm812, %v817, %v824
      %v826 = vrot.slane %v821, 4
      %v828 = vshrl.u32 %v764, 16
      %v830 = vrot.slane %v828, 7
      %v831 = vshll.u32 %v764, 16
      %v833 = vor.u32 %v830, %v831
      %v834 = vsel %vm812, %v826, %v833
      %v836 = vshrl.u32 %v765, 16
      %v838 = vrot.slane %v836, 7
      %v839 = vrot.slane %v838, 4
      %v841 = vshrl.u32 %v766, 16
      %v843 = vrot.slane %v841, 7
      %v844 = vshll.u32 %v766, 16
      %v846 = vor.u32 %v843, %v844
      %v847 = vsel %vm812, %v839, %v846
      %v848 = vrot.slane %v843, 4
      %v850 = vshrl.u32 %v767, 16
      %v852 = vrot.slane %v850, 7
      %v853 = vshll.u32 %v767, 16
      %v855 = vor.u32 %v852, %v853
      %v856 = vsel %vm812, %v848, %v855
      %v858 = vshrl.u32 %v768, 16
      %v860 = vrot.slane %v858, 7
      %v861 = vrot.slane %v860, 4
      %v863 = vshrl.u32 %v769, 16
      %v865 = vrot.slane %v863, 7
      %v866 = vshll.u32 %v769, 16
      %v868 = vor.u32 %v865, %v866
      %v869 = vsel %vm812, %v861, %v868
      %v870 = vrot.slane %v865, 4
      %v872 = vshrl.u32 %v770, 16
      %v874 = vrot.slane %v872, 7
      %v875 = vshll.u32 %v770, 16
      %v877 = vor.u32 %v874, %v875
      %v878 = vsel %vm812, %v870, %v877
      %v880 = vshrl.u32 %v771, 16
      %v882 = vrot.slane %v880, 7
      %v883 = vrot.slane %v882, 4
      %v885 = vshrl.u32 %v772, 16
      %v887 = vrot.slane %v885, 7
      %v888 = vshll.u32 %v772, 16
      %v890 = vor.u32 %v887, %v888
      %v891 = vsel %vm812, %v883, %v890
      %v892 = vrot.slane %v887, 4
      %v894 = vshrl.u32 %v773, 16
      %v896 = vrot.slane %v894, 7
      %v897 = vshll.u32 %v773, 16
      %v899 = vor.u32 %v896, %v897
      %v900 = vsel %vm812, %v892, %v899
      %v902 = vshrl.u32 %v774, 16
      %v904 = vrot.slane %v902, 7
      %v905 = vrot.slane %v904, 4
      %v907 = vshrl.u32 %v775, 16
      %v909 = vrot.slane %v907, 7
      %v910 = vshll.u32 %v775, 16
      %v912 = vor.u32 %v909, %v910
      %v913 = vsel %vm812, %v905, %v912
      %v914 = vrot.slane %v909, 4
      %v916 = vshrl.u32 %v776, 16
      %v918 = vrot.slane %v916, 7
      %v919 = vshll.u32 %v776, 16
      %v921 = vor.u32 %v918, %v919
      %v922 = vsel %vm812, %v914, %v921
      %v924 = vshrl.u32 %v777, 16
      %v926 = vrot.slane %v924, 7
      %v927 = vrot.slane %v926, 4
      %v929 = vshrl.u32 %v778, 16
      %v931 = vrot.slane %v929, 7
      %v932 = vshll.u32 %v778, 16
      %v934 = vor.u32 %v931, %v932
      %v935 = vsel %vm812, %v927, %v934
      %v936 = vrot.slane %v931, 4
      %v938 = vshrl.u32 %v779, 16
      %v940 = vrot.slane %v938, 7
      %v941 = vshll.u32 %v779, 16
      %v943 = vor.u32 %v940, %v941
      %v944 = vsel %vm812, %v936, %v943
      %v946 = vshrl.u32 %v780, 16
      %v948 = vrot.slane %v946, 7
      %v949 = vrot.slane %v948, 4
      %v951 = vshrl.u32 %v781, 16
      %v953 = vrot.slane %v951, 7
      %v954 = vshll.u32 %v781, 16
      %v956 = vor.u32 %v953, %v954
      %v957 = vsel %vm812, %v949, %v956
      %v958 = vrot.slane %v953, 4
      %v960 = vshrl.u32 %v782, 16
      %v962 = vrot.slane %v960, 7
      %v963 = vshll.u32 %v782, 16
      %v965 = vor.u32 %v962, %v963
      %v966 = vsel %vm812, %v958, %v965
      %v968 = vshrl.u32 %v783, 16
      %v970 = vrot.slane %v968, 7
      %v971 = vrot.slane %v970, 4
      %v973 = vshrl.u32 %v784, 16
      %v975 = vrot.slane %v973, 7
      %v976 = vshll.u32 %v784, 16
      %v978 = vor.u32 %v975, %v976
      %v979 = vsel %vm812, %v971, %v978
      %v980 = vrot.slane %v975, 4
      %v982 = vshrl.u32 %v785, 16
      %v984 = vrot.slane %v982, 7
      %v985 = vshll.u32 %v785, 16
      %v987 = vor.u32 %v984, %v985
      %v988 = vsel %vm812, %v980, %v987
      %v990 = vshrl.u32 %v786, 16
      %v992 = vrot.slane %v990, 7
      %v993 = vrot.slane %v992, 4
      %v995 = vshrl.u32 %v787, 16
      %v997 = vrot.slane %v995, 7
      %v998 = vshll.u32 %v787, 16
      %v1000 = vor.u32 %v997, %v998
      %v1001 = vsel %vm812, %v993, %v1000
      %v1002 = vrot.slane %v997, 4
      %v1004 = vshrl.u32 %v788, 16
      %v1006 = vrot.slane %v1004, 7
      %v1007 = vshll.u32 %v788, 16
      %v1009 = vor.u32 %v1006, %v1007
      %v1010 = vsel %vm812, %v1002, %v1009
      %v1012 = vshrl.u32 %v789, 16
      %v1014 = vrot.slane %v1012, 7
      %v1015 = vrot.slane %v1014, 4
      %v1017 = vshrl.u32 %v790, 16
      %v1019 = vrot.slane %v1017, 7
      %v1020 = vshll.u32 %v790, 16
      %v1022 = vor.u32 %v1019, %v1020
      %v1023 = vsel %vm812, %v1015, %v1022
      %v1024 = vrot.slane %v1019, 4
      %v1026 = vshrl.u32 %v791, 16
      %v1028 = vrot.slane %v1026, 7
      %v1029 = vshll.u32 %v791, 16
      %v1031 = vor.u32 %v1028, %v1029
      %v1032 = vsel %vm812, %v1024, %v1031
      %v1034 = vshrl.u32 %v792, 16
      %v1036 = vrot.slane %v1034, 7
      %v1037 = vrot.slane %v1036, 4
      %v1039 = vshrl.u32 %v793, 16
      %v1041 = vrot.slane %v1039, 7
      %v1042 = vshll.u32 %v793, 16
      %v1044 = vor.u32 %v1041, %v1042
      %v1045 = vsel %vm812, %v1037, %v1044
      %v1046 = vrot.slane %v1041, 4
      %v1048 = vshrl.u32 %v794, 16
      %v1050 = vrot.slane %v1048, 7
      %v1051 = vshll.u32 %v794, 16
      %v1053 = vor.u32 %v1050, %v1051
      %v1054 = vsel %vm812, %v1046, %v1053
      %v1056 = vshrl.u32 %v795, 16
      %v1058 = vrot.slane %v1056, 7
      %v1059 = vrot.slane %v1058, 4
      %v1061 = vshrl.u32 %v796, 16
      %v1063 = vrot.slane %v1061, 7
      %v1064 = vshll.u32 %v796, 16
      %v1066 = vor.u32 %v1063, %v1064
      %v1067 = vsel %vm812, %v1059, %v1066
      %v1068 = vrot.slane %v1063, 4
      %v1070 = vshrl.u32 %v797, 16
      %v1072 = vrot.slane %v1070, 7
      %v1073 = vshll.u32 %v797, 16
      %v1075 = vor.u32 %v1072, %v1073
      %v1076 = vsel %vm812, %v1068, %v1075
      %v1078 = vshrl.u32 %v798, 16
      %v1080 = vrot.slane %v1078, 7
      %v1081 = vrot.slane %v1080, 4
      %v1083 = vshrl.u32 %v799, 16
      %v1085 = vrot.slane %v1083, 7
      %v1086 = vshll.u32 %v799, 16
      %v1088 = vor.u32 %v1085, %v1086
      %v1089 = vsel %vm812, %v1081, %v1088
      %v1090 = vrot.slane %v1085, 4
      %v1092 = vshrl.u32 %v800, 16
      %v1094 = vrot.slane %v1092, 7
      %v1095 = vshll.u32 %v800, 16
      %v1097 = vor.u32 %v1094, %v1095
      %v1098 = vsel %vm812, %v1090, %v1097
      %v1100 = vshrl.u32 %v801, 16
      %v1102 = vrot.slane %v1100, 7
      %v1103 = vrot.slane %v1102, 4
      %v1105 = vshrl.u32 %v802, 16
      %v1107 = vrot.slane %v1105, 7
      %v1108 = vshll.u32 %v802, 16
      %v1110 = vor.u32 %v1107, %v1108
      %v1111 = vsel %vm812, %v1103, %v1110
      %v1112 = vrot.slane %v1107, 4
      %v1114 = vshrl.u32 %v803, 16
      %v1116 = vrot.slane %v1114, 7
      %v1117 = vshll.u32 %v803, 16
      %v1119 = vor.u32 %v1116, %v1117
      %v1120 = vsel %vm812, %v1112, %v1119
      %v1122 = vshrl.u32 %v804, 16
      %v1124 = vrot.slane %v1122, 7
      %v1125 = vrot.slane %v1124, 4
      %v1127 = vshrl.u32 %v805, 16
      %v1129 = vrot.slane %v1127, 7
      %v1130 = vshll.u32 %v805, 16
      %v1132 = vor.u32 %v1129, %v1130
      %v1133 = vsel %vm812, %v1125, %v1132
      %v1134 = vrot.slane %v1129, 4
      %v1136 = vshrl.u32 %v806, 16
      %v1138 = vrot.slane %v1136, 7
      %v1139 = vshll.u32 %v806, 16
      %v1141 = vor.u32 %v1138, %v1139
      %v1142 = vsel %vm812, %v1134, %v1141
      %v1144 = vshrl.u32 %v807, 16
      %v1146 = vrot.slane %v1144, 7
      %v1147 = vrot.slane %v1146, 4
      %v1149 = vshrl.u32 %v808, 16
      %v1151 = vrot.slane %v1149, 7
      %v1152 = vshll.u32 %v808, 16
      %v1154 = vor.u32 %v1151, %v1152
      %v1155 = vsel %vm812, %v1147, %v1154
      %v1156 = vrot.slane %v1151, 4
      %v1158 = vshrl.u32 %v809, 16
      %v1160 = vrot.slane %v1158, 7
      %v1161 = vshll.u32 %v809, 16
      %v1163 = vor.u32 %v1160, %v1161
      %v1164 = vsel %vm812, %v1156, %v1163
      %v1165 = vld [vmem:[%s3] sm:$0xf]
      %v1166 = vld [vmem:[%s3 + $0x4] sm:$0xf]
      %v1167 = vld [vmem:[%s3 + $0x8] sm:$0xf]
      %v1168 = vld [vmem:[%s3 + $0xc] sm:$0xf]
      %v1169 = vld [vmem:[%s3 + $0x10] sm:$0xf]
      %v1170 = vld [vmem:[%s3 + $0x14] sm:$0xf]
      %v1171 = vld [vmem:[%s3 + $0x18] sm:$0xf]
      %v1172 = vld [vmem:[%s3 + $0x1c] sm:$0xf]
      %v1173 = vld [vmem:[%s3 + $0x20] sm:$0xf]
      %v1174 = vld [vmem:[%s3 + $0x24] sm:$0xf]
      %v1175 = vld [vmem:[%s3 + $0x28] sm:$0xf]
      %v1176 = vld [vmem:[%s3 + $0x2c] sm:$0xf]
      %v1177 = vld [vmem:[%s3 + $0x30] sm:$0xf]
      %v1178 = vld [vmem:[%s3 + $0x34] sm:$0xf]
      %v1179 = vld [vmem:[%s3 + $0x38] sm:$0xf]
      %v1180 = vld [vmem:[%s3 + $0x3c] sm:$0xf]
      %v1181 = vld [vmem:[%s3 + $0x40] sm:$0xf]
      %v1182 = vld [vmem:[%s3 + $0x44] sm:$0xf]
      %v1183 = vld [vmem:[%s3 + $0x48] sm:$0xf]
      %v1184 = vld [vmem:[%s3 + $0x4c] sm:$0xf]
      %v1185 = vld [vmem:[%s3 + $0x50] sm:$0xf]
      %v1186 = vld [vmem:[%s3 + $0x54] sm:$0xf]
      %v1187 = vld [vmem:[%s3 + $0x58] sm:$0xf]
      %v1188 = vld [vmem:[%s3 + $0x5c] sm:$0xf]
      %v1189 = vld [vmem:[%s3 + $0x60] sm:$0xf]
      %v1190 = vld [vmem:[%s3 + $0x64] sm:$0xf]
      %v1191 = vld [vmem:[%s3 + $0x68] sm:$0xf]
      %v1192 = vld [vmem:[%s3 + $0x6c] sm:$0xf]
      %v1193 = vld [vmem:[%s3 + $0x70] sm:$0xf]
      %v1194 = vld [vmem:[%s3 + $0x74] sm:$0xf]
      %v1195 = vld [vmem:[%s3 + $0x78] sm:$0xf]
      %v1196 = vld [vmem:[%s3 + $0x7c] sm:$0xf]
      %v1229 = vunpack.c.l.b16 %v763
      %v1230 = vunpack.c.l.b16 %v764
      %v1231 = vunpack.c.l.b16 %v766
      %v1232 = vunpack.c.l.b16 %v767
      %v1233 = vunpack.c.l.b16 %v769
      %v1234 = vunpack.c.l.b16 %v770
      %v1235 = vunpack.c.l.b16 %v772
      %v1236 = vunpack.c.l.b16 %v773
      %v1237 = vunpack.c.l.b16 %v775
      %v1238 = vunpack.c.l.b16 %v776
      %v1239 = vunpack.c.l.b16 %v778
      %v1240 = vunpack.c.l.b16 %v779
      %v1241 = vunpack.c.l.b16 %v781
      %v1242 = vunpack.c.l.b16 %v782
      %v1243 = vunpack.c.l.b16 %v784
      %v1244 = vunpack.c.l.b16 %v785
      %v1245 = vunpack.c.l.b16 %v787
      %v1246 = vunpack.c.l.b16 %v788
      %v1247 = vunpack.c.l.b16 %v790
      %v1248 = vunpack.c.l.b16 %v791
      %v1249 = vunpack.c.l.b16 %v793
      %v1250 = vunpack.c.l.b16 %v794
      %v1251 = vunpack.c.l.b16 %v796
      %v1252 = vunpack.c.l.b16 %v797
      %v1253 = vunpack.c.l.b16 %v799
      %v1254 = vunpack.c.l.b16 %v800
      %v1255 = vunpack.c.l.b16 %v802
      %v1256 = vunpack.c.l.b16 %v803
      %v1257 = vunpack.c.l.b16 %v805
      %v1258 = vunpack.c.l.b16 %v806
      %v1259 = vunpack.c.l.b16 %v808
      %v1260 = vunpack.c.l.b16 %v809
      %v1261 = vpack.c.b16 %v1230, %v1229
      %v1262 = vpack.c.b16 %v1232, %v1231
      %v1263 = vpack.c.b16 %v1234, %v1233
      %v1264 = vpack.c.b16 %v1236, %v1235
      %v1265 = vpack.c.b16 %v1238, %v1237
      %v1266 = vpack.c.b16 %v1240, %v1239
      %v1267 = vpack.c.b16 %v1242, %v1241
      %v1268 = vpack.c.b16 %v1244, %v1243
      %v1269 = vpack.c.b16 %v1246, %v1245
      %v1270 = vpack.c.b16 %v1248, %v1247
      %v1271 = vpack.c.b16 %v1250, %v1249
      %v1272 = vpack.c.b16 %v1252, %v1251
      %v1273 = vpack.c.b16 %v1254, %v1253
      %v1274 = vpack.c.b16 %v1256, %v1255
      %v1275 = vpack.c.b16 %v1258, %v1257
      %v1276 = vpack.c.b16 %v1260, %v1259
      %v1309 = vunpack.c.l.b16 %v1181
      %v1310 = vunpack.c.l.b16 %v1182
      %v1311 = vunpack.c.l.b16 %v1183
      %v1312 = vunpack.c.l.b16 %v1184
      %v1313 = vunpack.c.l.b16 %v1185
      %v1314 = vunpack.c.l.b16 %v1186
      %v1315 = vunpack.c.l.b16 %v1187
      %v1316 = vunpack.c.l.b16 %v1188
      %v1317 = vunpack.c.l.b16 %v1189
      %v1318 = vunpack.c.l.b16 %v1190
      %v1319 = vunpack.c.l.b16 %v1191
      %v1320 = vunpack.c.l.b16 %v1192
      %v1321 = vunpack.c.l.b16 %v1193
      %v1322 = vunpack.c.l.b16 %v1194
      %v1323 = vunpack.c.l.b16 %v1195
      %v1324 = vunpack.c.l.b16 %v1196
      %v1325 = vpack.c.b16 %v1310, %v1309
      %v1326 = vpack.c.b16 %v1312, %v1311
      %v1327 = vpack.c.b16 %v1314, %v1313
      %v1328 = vpack.c.b16 %v1316, %v1315
      %v1329 = vpack.c.b16 %v1318, %v1317
      %v1330 = vpack.c.b16 %v1320, %v1319
      %v1331 = vpack.c.b16 %v1322, %v1321
      %v1332 = vpack.c.b16 %v1324, %v1323
      %1341 = vmatprep.subr.bf16.mxu0 0
      %1342 = vmatpush1.bf16.msra.mxu0 %v1332
      %1343 = vmatprep.subr.bf16.mxu0 0
      %1344 = vmatpush1.bf16.msra.mxu0 %v1331
      %1345 = vmatprep.subr.bf16.mxu0 0
      %1346 = vmatpush1.bf16.msra.mxu0 %v1330
      %1347 = vmatprep.subr.bf16.mxu0 0
      %1348 = vmatpush1.bf16.msra.mxu0 %v1329
      %1349 = vmatprep.subr.bf16.mxu0 0
      %1350 = vmatpush1.bf16.msra.mxu0 %v1328
      %1351 = vmatprep.subr.bf16.mxu0 0
      %1352 = vmatpush1.bf16.msra.mxu0 %v1327
      %1353 = vmatprep.subr.bf16.mxu0 0
      %1354 = vmatpush1.bf16.msra.mxu0 %v1326
      %1355 = vmatprep.subr.bf16.mxu0 0
      %1356 = vmatpush1.bf16.msra.mxu0 %v1325
      %1357 = vmatprep.subr.bf16.mxu0 0
      %1358 = vmatpush2.bf16.msra.mxu0 0
      %1359 = vmatprep.subr.bf16.mxu0 0
      %1360 = vmatpush2.bf16.msra.mxu0 0
      %1361 = vmatprep.subr.bf16.mxu0 0
      %1362 = vmatpush2.bf16.msra.mxu0 0
      %1363 = vmatprep.subr.bf16.mxu0 0
      %1364 = vmatpush2.bf16.msra.mxu0 0
      %1365 = vmatprep.subr.bf16.mxu0 0
      %1366 = vmatpush2.bf16.msra.mxu0 0
      %1367 = vmatprep.subr.bf16.mxu0 0
      %1368 = vmatpush2.bf16.msra.mxu0 0
      %1369 = vmatprep.subr.bf16.mxu0 0
      %1370 = vmatpush2.bf16.msra.mxu0 0
      %1371 = vmatprep.subr.bf16.mxu0 0
      %1372 = vmatpush2.bf16.msra.mxu0 0
      %1373 = vmatprep.mubr.bf16.mxu0 0
      %1374 = vmatmul.mubr.bf16.gmra.mxu0 %v1261
      %v1375 = vpop.f32.mrf.mxu0
      %v1376 = vadd.f32 0.0, %v1375
      %v1377 = vpop.f32.mrf.mxu0
      %v1378 = vpop.f32.mrf.mxu0
      %v1379 = vadd.f32 0.0, %v1378
      %v1380 = vpop.f32.mrf.mxu0
      %1381 = vmatprep.mubr.bf16.mxu0 0
      %1382 = vmatmul.mubr.bf16.gmra.mxu0 %v1262
      %v1383 = vpop.f32.mrf.mxu0
      %v1384 = vadd.f32 0.0, %v1383
      %v1385 = vpop.f32.mrf.mxu0
      %v1386 = vpop.f32.mrf.mxu0
      %v1387 = vadd.f32 0.0, %v1386
      %v1388 = vpop.f32.mrf.mxu0
      %1389 = vmatprep.mubr.bf16.mxu0 0
      %1390 = vmatmul.mubr.bf16.gmra.mxu0 %v1263
      %v1391 = vpop.f32.mrf.mxu0
      %v1392 = vadd.f32 0.0, %v1391
      %v1393 = vpop.f32.mrf.mxu0
      %v1394 = vpop.f32.mrf.mxu0
      %v1395 = vadd.f32 0.0, %v1394
      %v1396 = vpop.f32.mrf.mxu0
      %1397 = vmatprep.mubr.bf16.mxu0 0
      %1398 = vmatmul.mubr.bf16.gmra.mxu0 %v1264
      %v1399 = vpop.f32.mrf.mxu0
      %v1400 = vadd.f32 0.0, %v1399
      %v1401 = vpop.f32.mrf.mxu0
      %v1402 = vpop.f32.mrf.mxu0
      %v1403 = vadd.f32 0.0, %v1402
      %v1404 = vpop.f32.mrf.mxu0
      %1405 = vmatprep.mubr.bf16.mxu0 0
      %1406 = vmatmul.mubr.bf16.gmra.mxu0 %v1265
      %v1407 = vpop.f32.mrf.mxu0
      %v1408 = vadd.f32 0.0, %v1407
      %v1409 = vpop.f32.mrf.mxu0
      %v1410 = vpop.f32.mrf.mxu0
      %v1411 = vadd.f32 0.0, %v1410
      %v1412 = vpop.f32.mrf.mxu0
      %1413 = vmatprep.mubr.bf16.mxu0 0
      %1414 = vmatmul.mubr.bf16.gmra.mxu0 %v1266
      %v1415 = vpop.f32.mrf.mxu0
      %v1416 = vadd.f32 0.0, %v1415
      %v1417 = vpop.f32.mrf.mxu0
      %v1418 = vpop.f32.mrf.mxu0
      %v1419 = vadd.f32 0.0, %v1418
      %v1420 = vpop.f32.mrf.mxu0
      %1421 = vmatprep.mubr.bf16.mxu0 0
      %1422 = vmatmul.mubr.bf16.gmra.mxu0 %v1267
      %v1423 = vpop.f32.mrf.mxu0
      %v1424 = vadd.f32 0.0, %v1423
      %v1425 = vpop.f32.mrf.mxu0
      %v1426 = vpop.f32.mrf.mxu0
      %v1427 = vadd.f32 0.0, %v1426
      %v1428 = vpop.f32.mrf.mxu0
      %1429 = vmatprep.mubr.bf16.mxu0 0
      %1430 = vmatmul.mubr.bf16.gmra.mxu0 %v1268
      %v1431 = vpop.f32.mrf.mxu0
      %v1432 = vadd.f32 0.0, %v1431
      %v1433 = vpop.f32.mrf.mxu0
      %v1434 = vpop.f32.mrf.mxu0
      %v1435 = vadd.f32 0.0, %v1434
      %v1436 = vpop.f32.mrf.mxu0
      %1437 = vmatprep.mubr.bf16.mxu0 0
      %1438 = vmatmul.mubr.bf16.gmra.mxu0 %v1269
      %v1439 = vpop.f32.mrf.mxu0
      %v1440 = vadd.f32 0.0, %v1439
      %v1441 = vpop.f32.mrf.mxu0
      %v1442 = vpop.f32.mrf.mxu0
      %v1443 = vadd.f32 0.0, %v1442
      %v1444 = vpop.f32.mrf.mxu0
      %1445 = vmatprep.mubr.bf16.mxu0 0
      %1446 = vmatmul.mubr.bf16.gmra.mxu0 %v1270
      %v1447 = vpop.f32.mrf.mxu0
      %v1448 = vadd.f32 0.0, %v1447
      %v1449 = vpop.f32.mrf.mxu0
      %v1450 = vpop.f32.mrf.mxu0
      %v1451 = vadd.f32 0.0, %v1450
      %v1452 = vpop.f32.mrf.mxu0
      %1453 = vmatprep.mubr.bf16.mxu0 0
      %1454 = vmatmul.mubr.bf16.gmra.mxu0 %v1271
      %v1455 = vpop.f32.mrf.mxu0
      %v1456 = vadd.f32 0.0, %v1455
      %v1457 = vpop.f32.mrf.mxu0
      %v1458 = vpop.f32.mrf.mxu0
      %v1459 = vadd.f32 0.0, %v1458
      %v1460 = vpop.f32.mrf.mxu0
      %1461 = vmatprep.mubr.bf16.mxu0 0
      %1462 = vmatmul.mubr.bf16.gmra.mxu0 %v1272
      %v1463 = vpop.f32.mrf.mxu0
      %v1464 = vadd.f32 0.0, %v1463
      %v1465 = vpop.f32.mrf.mxu0
      %v1466 = vpop.f32.mrf.mxu0
      %v1467 = vadd.f32 0.0, %v1466
      %v1468 = vpop.f32.mrf.mxu0
      %1469 = vmatprep.mubr.bf16.mxu0 0
      %1470 = vmatmul.mubr.bf16.gmra.mxu0 %v1273
      %v1471 = vpop.f32.mrf.mxu0
      %v1472 = vadd.f32 0.0, %v1471
      %v1473 = vpop.f32.mrf.mxu0
      %v1474 = vpop.f32.mrf.mxu0
      %v1475 = vadd.f32 0.0, %v1474
      %v1476 = vpop.f32.mrf.mxu0
      %1477 = vmatprep.mubr.bf16.mxu0 0
      %1478 = vmatmul.mubr.bf16.gmra.mxu0 %v1274
      %v1479 = vpop.f32.mrf.mxu0
      %v1480 = vadd.f32 0.0, %v1479
      %v1481 = vpop.f32.mrf.mxu0
      %v1482 = vpop.f32.mrf.mxu0
      %v1483 = vadd.f32 0.0, %v1482
      %v1484 = vpop.f32.mrf.mxu0
      %1485 = vmatprep.mubr.bf16.mxu0 0
      %1486 = vmatmul.mubr.bf16.gmra.mxu0 %v1275
      %v1487 = vpop.f32.mrf.mxu0
      %v1488 = vadd.f32 0.0, %v1487
      %v1489 = vpop.f32.mrf.mxu0
      %v1490 = vpop.f32.mrf.mxu0
      %v1491 = vadd.f32 0.0, %v1490
      %v1492 = vpop.f32.mrf.mxu0
      %1493 = vmatprep.mubr.bf16.mxu0 0
      %1494 = vmatmul.mubr.bf16.gmra.mxu0 %v1276
      %v1495 = vpop.f32.mrf.mxu0
      %v1496 = vadd.f32 0.0, %v1495
      %v1497 = vpop.f32.mrf.mxu0
      %v1498 = vpop.f32.mrf.mxu0
      %v1499 = vadd.f32 0.0, %v1498
      %v1500 = vpop.f32.mrf.mxu0
      %1501 = vdwg.mxu0
      %v1502 = vunpack.c.l.b16 %v825
      %v1503 = vunpack.c.l.b16 %v834
      %v1504 = vunpack.c.l.b16 %v847
      %v1505 = vunpack.c.l.b16 %v856
      %v1506 = vunpack.c.l.b16 %v869
      %v1507 = vunpack.c.l.b16 %v878
      %v1508 = vunpack.c.l.b16 %v891
      %v1509 = vunpack.c.l.b16 %v900
      %v1510 = vunpack.c.l.b16 %v913
      %v1511 = vunpack.c.l.b16 %v922
      %v1512 = vunpack.c.l.b16 %v935
      %v1513 = vunpack.c.l.b16 %v944
      %v1514 = vunpack.c.l.b16 %v957
      %v1515 = vunpack.c.l.b16 %v966
      %v1516 = vunpack.c.l.b16 %v979
      %v1517 = vunpack.c.l.b16 %v988
      %v1518 = vunpack.c.l.b16 %v1001
      %v1519 = vunpack.c.l.b16 %v1010
      %v1520 = vunpack.c.l.b16 %v1023
      %v1521 = vunpack.c.l.b16 %v1032
      %v1522 = vunpack.c.l.b16 %v1045
      %v1523 = vunpack.c.l.b16 %v1054
      %v1524 = vunpack.c.l.b16 %v1067
      %v1525 = vunpack.c.l.b16 %v1076
      %v1526 = vunpack.c.l.b16 %v1089
      %v1527 = vunpack.c.l.b16 %v1098
      %v1528 = vunpack.c.l.b16 %v1111
      %v1529 = vunpack.c.l.b16 %v1120
      %v1530 = vunpack.c.l.b16 %v1133
      %v1531 = vunpack.c.l.b16 %v1142
      %v1532 = vunpack.c.l.b16 %v1155
      %v1533 = vunpack.c.l.b16 %v1164
      %v1534 = vpack.c.b16 %v1503, %v1502
      %v1535 = vpack.c.b16 %v1505, %v1504
      %v1536 = vpack.c.b16 %v1507, %v1506
      %v1537 = vpack.c.b16 %v1509, %v1508
      %v1538 = vpack.c.b16 %v1511, %v1510
      %v1539 = vpack.c.b16 %v1513, %v1512
      %v1540 = vpack.c.b16 %v1515, %v1514
      %v1541 = vpack.c.b16 %v1517, %v1516
      %v1542 = vpack.c.b16 %v1519, %v1518
      %v1543 = vpack.c.b16 %v1521, %v1520
      %v1544 = vpack.c.b16 %v1523, %v1522
      %v1545 = vpack.c.b16 %v1525, %v1524
      %v1546 = vpack.c.b16 %v1527, %v1526
      %v1547 = vpack.c.b16 %v1529, %v1528
      %v1548 = vpack.c.b16 %v1531, %v1530
      %v1549 = vpack.c.b16 %v1533, %v1532
      %v1582 = vunpack.c.l.b16 %v1165
      %v1583 = vunpack.c.l.b16 %v1166
      %v1584 = vunpack.c.l.b16 %v1167
      %v1585 = vunpack.c.l.b16 %v1168
      %v1586 = vunpack.c.l.b16 %v1169
      %v1587 = vunpack.c.l.b16 %v1170
      %v1588 = vunpack.c.l.b16 %v1171
      %v1589 = vunpack.c.l.b16 %v1172
      %v1590 = vunpack.c.l.b16 %v1173
      %v1591 = vunpack.c.l.b16 %v1174
      %v1592 = vunpack.c.l.b16 %v1175
      %v1593 = vunpack.c.l.b16 %v1176
      %v1594 = vunpack.c.l.b16 %v1177
      %v1595 = vunpack.c.l.b16 %v1178
      %v1596 = vunpack.c.l.b16 %v1179
      %v1597 = vunpack.c.l.b16 %v1180
      %v1598 = vpack.c.b16 %v1583, %v1582
      %v1599 = vpack.c.b16 %v1585, %v1584
      %v1600 = vpack.c.b16 %v1587, %v1586
      %v1601 = vpack.c.b16 %v1589, %v1588
      %v1602 = vpack.c.b16 %v1591, %v1590
      %v1603 = vpack.c.b16 %v1593, %v1592
      %v1604 = vpack.c.b16 %v1595, %v1594
      %v1605 = vpack.c.b16 %v1597, %v1596
      %1614 = vmatprep.subr.bf16.mxu0 0
      %1615 = vmatpush1.bf16.msra.mxu0 %v1605
      %1616 = vmatprep.subr.bf16.mxu0 0
      %1617 = vmatpush1.bf16.msra.mxu0 %v1604
      %1618 = vmatprep.subr.bf16.mxu0 0
      %1619 = vmatpush1.bf16.msra.mxu0 %v1603
      %1620 = vmatprep.subr.bf16.mxu0 0
      %1621 = vmatpush1.bf16.msra.mxu0 %v1602
      %1622 = vmatprep.subr.bf16.mxu0 0
      %1623 = vmatpush1.bf16.msra.mxu0 %v1601
      %1624 = vmatprep.subr.bf16.mxu0 0
      %1625 = vmatpush1.bf16.msra.mxu0 %v1600
      %1626 = vmatprep.subr.bf16.mxu0 0
      %1627 = vmatpush1.bf16.msra.mxu0 %v1599
      %1628 = vmatprep.subr.bf16.mxu0 0
      %1629 = vmatpush1.bf16.msra.mxu0 %v1598
      %1630 = vmatprep.subr.bf16.mxu0 0
      %1631 = vmatpush2.bf16.msra.mxu0 0
      %1632 = vmatprep.subr.bf16.mxu0 0
      %1633 = vmatpush2.bf16.msra.mxu0 0
      %1634 = vmatprep.subr.bf16.mxu0 0
      %1635 = vmatpush2.bf16.msra.mxu0 0
      %1636 = vmatprep.subr.bf16.mxu0 0
      %1637 = vmatpush2.bf16.msra.mxu0 0
      %1638 = vmatprep.subr.bf16.mxu0 0
      %1639 = vmatpush2.bf16.msra.mxu0 0
      %1640 = vmatprep.subr.bf16.mxu0 0
      %1641 = vmatpush2.bf16.msra.mxu0 0
      %1642 = vmatprep.subr.bf16.mxu0 0
      %1643 = vmatpush2.bf16.msra.mxu0 0
      %1644 = vmatprep.subr.bf16.mxu0 0
      %1645 = vmatpush2.bf16.msra.mxu0 0
      %1646 = vmatprep.mubr.bf16.mxu0 0
      %1647 = vmatmul.mubr.bf16.gmra.mxu0 %v1534
      %v1648 = vpop.f32.mrf.mxu0
      %v1649 = vadd.f32 %v1376, %v1648
      %v1650 = vpop.f32.mrf.mxu0
      %v1651 = vpop.f32.mrf.mxu0
      %v1652 = vadd.f32 %v1379, %v1651
      %v1653 = vpop.f32.mrf.mxu0
      %1654 = vmatprep.mubr.bf16.mxu0 0
      %1655 = vmatmul.mubr.bf16.gmra.mxu0 %v1535
      %v1656 = vpop.f32.mrf.mxu0
      %v1657 = vadd.f32 %v1384, %v1656
      %v1658 = vpop.f32.mrf.mxu0
      %v1659 = vpop.f32.mrf.mxu0
      %v1660 = vadd.f32 %v1387, %v1659
      %v1661 = vpop.f32.mrf.mxu0
      %1662 = vmatprep.mubr.bf16.mxu0 0
      %1663 = vmatmul.mubr.bf16.gmra.mxu0 %v1536
      %v1664 = vpop.f32.mrf.mxu0
      %v1665 = vadd.f32 %v1392, %v1664
      %v1666 = vpop.f32.mrf.mxu0
      %v1667 = vpop.f32.mrf.mxu0
      %v1668 = vadd.f32 %v1395, %v1667
      %v1669 = vpop.f32.mrf.mxu0
      %1670 = vmatprep.mubr.bf16.mxu0 0
      %1671 = vmatmul.mubr.bf16.gmra.mxu0 %v1537
      %v1672 = vpop.f32.mrf.mxu0
      %v1673 = vadd.f32 %v1400, %v1672
      %v1674 = vpop.f32.mrf.mxu0
      %v1675 = vpop.f32.mrf.mxu0
      %v1676 = vadd.f32 %v1403, %v1675
      %v1677 = vpop.f32.mrf.mxu0
      %1678 = vmatprep.mubr.bf16.mxu0 0
      %1679 = vmatmul.mubr.bf16.gmra.mxu0 %v1538
      %v1680 = vpop.f32.mrf.mxu0
      %v1681 = vadd.f32 %v1408, %v1680
      %v1682 = vpop.f32.mrf.mxu0
      %v1683 = vpop.f32.mrf.mxu0
      %v1684 = vadd.f32 %v1411, %v1683
      %v1685 = vpop.f32.mrf.mxu0
      %1686 = vmatprep.mubr.bf16.mxu0 0
      %1687 = vmatmul.mubr.bf16.gmra.mxu0 %v1539
      %v1688 = vpop.f32.mrf.mxu0
      %v1689 = vadd.f32 %v1416, %v1688
      %v1690 = vpop.f32.mrf.mxu0
      %v1691 = vpop.f32.mrf.mxu0
      %v1692 = vadd.f32 %v1419, %v1691
      %v1693 = vpop.f32.mrf.mxu0
      %1694 = vmatprep.mubr.bf16.mxu0 0
      %1695 = vmatmul.mubr.bf16.gmra.mxu0 %v1540
      %v1696 = vpop.f32.mrf.mxu0
      %v1697 = vadd.f32 %v1424, %v1696
      %v1698 = vpop.f32.mrf.mxu0
      %v1699 = vpop.f32.mrf.mxu0
      %v1700 = vadd.f32 %v1427, %v1699
      %v1701 = vpop.f32.mrf.mxu0
      %1702 = vmatprep.mubr.bf16.mxu0 0
      %1703 = vmatmul.mubr.bf16.gmra.mxu0 %v1541
      %v1704 = vpop.f32.mrf.mxu0
      %v1705 = vadd.f32 %v1432, %v1704
      %v1706 = vpop.f32.mrf.mxu0
      %v1707 = vpop.f32.mrf.mxu0
      %v1708 = vadd.f32 %v1435, %v1707
      %v1709 = vpop.f32.mrf.mxu0
      %1710 = vmatprep.mubr.bf16.mxu0 0
      %1711 = vmatmul.mubr.bf16.gmra.mxu0 %v1542
      %v1712 = vpop.f32.mrf.mxu0
      %v1713 = vadd.f32 %v1440, %v1712
      %v1714 = vpop.f32.mrf.mxu0
      %v1715 = vpop.f32.mrf.mxu0
      %v1716 = vadd.f32 %v1443, %v1715
      %v1717 = vpop.f32.mrf.mxu0
      %1718 = vmatprep.mubr.bf16.mxu0 0
      %1719 = vmatmul.mubr.bf16.gmra.mxu0 %v1543
      %v1720 = vpop.f32.mrf.mxu0
      %v1721 = vadd.f32 %v1448, %v1720
      %v1722 = vpop.f32.mrf.mxu0
      %v1723 = vpop.f32.mrf.mxu0
      %v1724 = vadd.f32 %v1451, %v1723
      %v1725 = vpop.f32.mrf.mxu0
      %1726 = vmatprep.mubr.bf16.mxu0 0
      %1727 = vmatmul.mubr.bf16.gmra.mxu0 %v1544
      %v1728 = vpop.f32.mrf.mxu0
      %v1729 = vadd.f32 %v1456, %v1728
      %v1730 = vpop.f32.mrf.mxu0
      %v1731 = vpop.f32.mrf.mxu0
      %v1732 = vadd.f32 %v1459, %v1731
      %v1733 = vpop.f32.mrf.mxu0
      %1734 = vmatprep.mubr.bf16.mxu0 0
      %1735 = vmatmul.mubr.bf16.gmra.mxu0 %v1545
      %v1736 = vpop.f32.mrf.mxu0
      %v1737 = vadd.f32 %v1464, %v1736
      %v1738 = vpop.f32.mrf.mxu0
      %v1739 = vpop.f32.mrf.mxu0
      %v1740 = vadd.f32 %v1467, %v1739
      %v1741 = vpop.f32.mrf.mxu0
      %1742 = vmatprep.mubr.bf16.mxu0 0
      %1743 = vmatmul.mubr.bf16.gmra.mxu0 %v1546
      %v1744 = vpop.f32.mrf.mxu0
      %v1745 = vadd.f32 %v1472, %v1744
      %v1746 = vpop.f32.mrf.mxu0
      %v1747 = vpop.f32.mrf.mxu0
      %v1748 = vadd.f32 %v1475, %v1747
      %v1749 = vpop.f32.mrf.mxu0
      %1750 = vmatprep.mubr.bf16.mxu0 0
      %1751 = vmatmul.mubr.bf16.gmra.mxu0 %v1547
      %v1752 = vpop.f32.mrf.mxu0
      %v1753 = vadd.f32 %v1480, %v1752
      %v1754 = vpop.f32.mrf.mxu0
      %v1755 = vpop.f32.mrf.mxu0
      %v1756 = vadd.f32 %v1483, %v1755
      %v1757 = vpop.f32.mrf.mxu0
      %1758 = vmatprep.mubr.bf16.mxu0 0
      %1759 = vmatmul.mubr.bf16.gmra.mxu0 %v1548
      %v1760 = vpop.f32.mrf.mxu0
      %v1761 = vadd.f32 %v1488, %v1760
      %v1762 = vpop.f32.mrf.mxu0
      %v1763 = vpop.f32.mrf.mxu0
      %v1764 = vadd.f32 %v1491, %v1763
      %v1765 = vpop.f32.mrf.mxu0
      %1766 = vmatprep.mubr.bf16.mxu0 0
      %1767 = vmatmul.mubr.bf16.gmra.mxu0 %v1549
      %v1768 = vpop.f32.mrf.mxu0
      %v1769 = vadd.f32 %v1496, %v1768
      %v1770 = vpop.f32.mrf.mxu0
      %v1771 = vpop.f32.mrf.mxu0
      %v1772 = vadd.f32 %v1499, %v1771
      %v1773 = vpop.f32.mrf.mxu0
      %1774 = vdwg.mxu0
      %v1775 = vld [vmem:[#allocation2 + $0x4] sm:$0xf]
      %v1776 = vld [vmem:[#allocation2 + $0x8] sm:$0xf]
      %v1777 = vld [vmem:[#allocation2 + $0xc] sm:$0x1]
      %v1778 = vld [vmem:[#allocation2 + $0x14] sm:$0xf]
      %v1779 = vld [vmem:[#allocation2 + $0x18] sm:$0xf]
      %v1780 = vld [vmem:[#allocation2 + $0x1c] sm:$0x1]
      %v1781 = vld [vmem:[#allocation2 + $0x24] sm:$0xf]
      %v1782 = vld [vmem:[#allocation2 + $0x28] sm:$0xf]
      %v1783 = vld [vmem:[#allocation2 + $0x2c] sm:$0x1]
      %v1784 = vld [vmem:[#allocation2 + $0x34] sm:$0xf]
      %v1785 = vld [vmem:[#allocation2 + $0x38] sm:$0xf]
      %v1786 = vld [vmem:[#allocation2 + $0x3c] sm:$0x1]
      %v1787 = vld [vmem:[#allocation2 + $0x44] sm:$0xf]
      %v1788 = vld [vmem:[#allocation2 + $0x48] sm:$0xf]
      %v1789 = vld [vmem:[#allocation2 + $0x4c] sm:$0x1]
      %v1790 = vld [vmem:[#allocation2 + $0x54] sm:$0xf]
      %v1791 = vld [vmem:[#allocation2 + $0x58] sm:$0xf]
      %v1792 = vld [vmem:[#allocation2 + $0x5c] sm:$0x1]
      %v1793 = vld [vmem:[#allocation2 + $0x64] sm:$0xf]
      %v1794 = vld [vmem:[#allocation2 + $0x68] sm:$0xf]
      %v1795 = vld [vmem:[#allocation2 + $0x6c] sm:$0x1]
      %v1796 = vld [vmem:[#allocation2 + $0x74] sm:$0xf]
      %v1797 = vld [vmem:[#allocation2 + $0x78] sm:$0xf]
      %v1798 = vld [vmem:[#allocation2 + $0x7c] sm:$0x1]
      %v1799 = vld [vmem:[#allocation2 + $0x84] sm:$0xf]
      %v1800 = vld [vmem:[#allocation2 + $0x88] sm:$0xf]
      %v1801 = vld [vmem:[#allocation2 + $0x8c] sm:$0x1]
      %v1802 = vld [vmem:[#allocation2 + $0x94] sm:$0xf]
      %v1803 = vld [vmem:[#allocation2 + $0x98] sm:$0xf]
      %v1804 = vld [vmem:[#allocation2 + $0x9c] sm:$0x1]
      %v1805 = vld [vmem:[#allocation2 + $0xa4] sm:$0xf]
      %v1806 = vld [vmem:[#allocation2 + $0xa8] sm:$0xf]
      %v1807 = vld [vmem:[#allocation2 + $0xac] sm:$0x1]
      %v1808 = vld [vmem:[#allocation2 + $0xb4] sm:$0xf]
      %v1809 = vld [vmem:[#allocation2 + $0xb8] sm:$0xf]
      %v1810 = vld [vmem:[#allocation2 + $0xbc] sm:$0x1]
      %v1811 = vld [vmem:[#allocation2 + $0xc4] sm:$0xf]
      %v1812 = vld [vmem:[#allocation2 + $0xc8] sm:$0xf]
      %v1813 = vld [vmem:[#allocation2 + $0xcc] sm:$0x1]
      %v1814 = vld [vmem:[#allocation2 + $0xd4] sm:$0xf]
      %v1815 = vld [vmem:[#allocation2 + $0xd8] sm:$0xf]
      %v1816 = vld [vmem:[#allocation2 + $0xdc] sm:$0x1]
      %v1817 = vld [vmem:[#allocation2 + $0xe4] sm:$0xf]
      %v1818 = vld [vmem:[#allocation2 + $0xe8] sm:$0xf]
      %v1819 = vld [vmem:[#allocation2 + $0xec] sm:$0x1]
      %v1820 = vld [vmem:[#allocation2 + $0xf4] sm:$0xf]
      %v1821 = vld [vmem:[#allocation2 + $0xf8] sm:$0xf]
      %v1822 = vld [vmem:[#allocation2 + $0xfc] sm:$0x1]
      %vm1823 = vsmask.f32 3328
      %vm1824 = vsmask.f32 7440
      %vm1825 = vmor %vm1823, %vm1824
      %v1827 = vshrl.u32 %v1775, 16
      %v1829 = vrot.slane %v1827, 4
      %v1830 = vshll.u32 %v1775, 16
      %v1832 = vrot.slane %v1830, 5
      %v1833 = vor.u32 %v1829, %v1832
      %v1834 = vrot.slane %v1833, 4
      %v1836 = vshll.u32 %v1776, 16
      %v1838 = vrot.slane %v1836, 5
      %v1839 = vsel %vm1825, %v1834, %v1838
      %v1840 = vshrl.u32 %v1776, 16
      %v1842 = vrot.slane %v1840, 4
      %v1843 = vor.u32 %v1842, %v1838
      %v1844 = vrot.slane %v1843, 4
      %v1846 = vshll.u32 %v1777, 16
      %v1848 = vrot.slane %v1846, 5
      %v1849 = vsel %vm1825, %v1844, %v1848
      %v1851 = vshrl.u32 %v1778, 16
      %v1853 = vrot.slane %v1851, 4
      %v1854 = vshll.u32 %v1778, 16
      %v1856 = vrot.slane %v1854, 5
      %v1857 = vor.u32 %v1853, %v1856
      %v1858 = vrot.slane %v1857, 4
      %v1860 = vshll.u32 %v1779, 16
      %v1862 = vrot.slane %v1860, 5
      %v1863 = vsel %vm1825, %v1858, %v1862
      %v1864 = vshrl.u32 %v1779, 16
      %v1866 = vrot.slane %v1864, 4
      %v1867 = vor.u32 %v1866, %v1862
      %v1868 = vrot.slane %v1867, 4
      %v1870 = vshll.u32 %v1780, 16
      %v1872 = vrot.slane %v1870, 5
      %v1873 = vsel %vm1825, %v1868, %v1872
      %v1875 = vshrl.u32 %v1781, 16
      %v1877 = vrot.slane %v1875, 4
      %v1878 = vshll.u32 %v1781, 16
      %v1880 = vrot.slane %v1878, 5
      %v1881 = vor.u32 %v1877, %v1880
      %v1882 = vrot.slane %v1881, 4
      %v1884 = vshll.u32 %v1782, 16
      %v1886 = vrot.slane %v1884, 5
      %v1887 = vsel %vm1825, %v1882, %v1886
      %v1888 = vshrl.u32 %v1782, 16
      %v1890 = vrot.slane %v1888, 4
      %v1891 = vor.u32 %v1890, %v1886
      %v1892 = vrot.slane %v1891, 4
      %v1894 = vshll.u32 %v1783, 16
      %v1896 = vrot.slane %v1894, 5
      %v1897 = vsel %vm1825, %v1892, %v1896
      %v1899 = vshrl.u32 %v1784, 16
      %v1901 = vrot.slane %v1899, 4
      %v1902 = vshll.u32 %v1784, 16
      %v1904 = vrot.slane %v1902, 5
      %v1905 = vor.u32 %v1901, %v1904
      %v1906 = vrot.slane %v1905, 4
      %v1908 = vshll.u32 %v1785, 16
      %v1910 = vrot.slane %v1908, 5
      %v1911 = vsel %vm1825, %v1906, %v1910
      %v1912 = vshrl.u32 %v1785, 16
      %v1914 = vrot.slane %v1912, 4
      %v1915 = vor.u32 %v1914, %v1910
      %v1916 = vrot.slane %v1915, 4
      %v1918 = vshll.u32 %v1786, 16
      %v1920 = vrot.slane %v1918, 5
      %v1921 = vsel %vm1825, %v1916, %v1920
      %v1923 = vshrl.u32 %v1787, 16
      %v1925 = vrot.slane %v1923, 4
      %v1926 = vshll.u32 %v1787, 16
      %v1928 = vrot.slane %v1926, 5
      %v1929 = vor.u32 %v1925, %v1928
      %v1930 = vrot.slane %v1929, 4
      %v1932 = vshll.u32 %v1788, 16
      %v1934 = vrot.slane %v1932, 5
      %v1935 = vsel %vm1825, %v1930, %v1934
      %v1936 = vshrl.u32 %v1788, 16
      %v1938 = vrot.slane %v1936, 4
      %v1939 = vor.u32 %v1938, %v1934
      %v1940 = vrot.slane %v1939, 4
      %v1942 = vshll.u32 %v1789, 16
      %v1944 = vrot.slane %v1942, 5
      %v1945 = vsel %vm1825, %v1940, %v1944
      %v1947 = vshrl.u32 %v1790, 16
      %v1949 = vrot.slane %v1947, 4
      %v1950 = vshll.u32 %v1790, 16
      %v1952 = vrot.slane %v1950, 5
      %v1953 = vor.u32 %v1949, %v1952
      %v1954 = vrot.slane %v1953, 4
      %v1956 = vshll.u32 %v1791, 16
      %v1958 = vrot.slane %v1956, 5
      %v1959 = vsel %vm1825, %v1954, %v1958
      %v1960 = vshrl.u32 %v1791, 16
      %v1962 = vrot.slane %v1960, 4
      %v1963 = vor.u32 %v1962, %v1958
      %v1964 = vrot.slane %v1963, 4
      %v1966 = vshll.u32 %v1792, 16
      %v1968 = vrot.slane %v1966, 5
      %v1969 = vsel %vm1825, %v1964, %v1968
      %v1971 = vshrl.u32 %v1793, 16
      %v1973 = vrot.slane %v1971, 4
      %v1974 = vshll.u32 %v1793, 16
      %v1976 = vrot.slane %v1974, 5
      %v1977 = vor.u32 %v1973, %v1976
      %v1978 = vrot.slane %v1977, 4
      %v1980 = vshll.u32 %v1794, 16
      %v1982 = vrot.slane %v1980, 5
      %v1983 = vsel %vm1825, %v1978, %v1982
      %v1984 = vshrl.u32 %v1794, 16
      %v1986 = vrot.slane %v1984, 4
      %v1987 = vor.u32 %v1986, %v1982
      %v1988 = vrot.slane %v1987, 4
      %v1990 = vshll.u32 %v1795, 16
      %v1992 = vrot.slane %v1990, 5
      %v1993 = vsel %vm1825, %v1988, %v1992
      %v1995 = vshrl.u32 %v1796, 16
      %v1997 = vrot.slane %v1995, 4
      %v1998 = vshll.u32 %v1796, 16
      %v2000 = vrot.slane %v1998, 5
      %v2001 = vor.u32 %v1997, %v2000
      %v2002 = vrot.slane %v2001, 4
      %v2004 = vshll.u32 %v1797, 16
      %v2006 = vrot.slane %v2004, 5
      %v2007 = vsel %vm1825, %v2002, %v2006
      %v2008 = vshrl.u32 %v1797, 16
      %v2010 = vrot.slane %v2008, 4
      %v2011 = vor.u32 %v2010, %v2006
      %v2012 = vrot.slane %v2011, 4
      %v2014 = vshll.u32 %v1798, 16
      %v2016 = vrot.slane %v2014, 5
      %v2017 = vsel %vm1825, %v2012, %v2016
      %v2019 = vshrl.u32 %v1799, 16
      %v2021 = vrot.slane %v2019, 4
      %v2022 = vshll.u32 %v1799, 16
      %v2024 = vrot.slane %v2022, 5
      %v2025 = vor.u32 %v2021, %v2024
      %v2026 = vrot.slane %v2025, 4
      %v2028 = vshll.u32 %v1800, 16
      %v2030 = vrot.slane %v2028, 5
      %v2031 = vsel %vm1825, %v2026, %v2030
      %v2032 = vshrl.u32 %v1800, 16
      %v2034 = vrot.slane %v2032, 4
      %v2035 = vor.u32 %v2034, %v2030
      %v2036 = vrot.slane %v2035, 4
      %v2038 = vshll.u32 %v1801, 16
      %v2040 = vrot.slane %v2038, 5
      %v2041 = vsel %vm1825, %v2036, %v2040
      %v2043 = vshrl.u32 %v1802, 16
      %v2045 = vrot.slane %v2043, 4
      %v2046 = vshll.u32 %v1802, 16
      %v2048 = vrot.slane %v2046, 5
      %v2049 = vor.u32 %v2045, %v2048
      %v2050 = vrot.slane %v2049, 4
      %v2052 = vshll.u32 %v1803, 16
      %v2054 = vrot.slane %v2052, 5
      %v2055 = vsel %vm1825, %v2050, %v2054
      %v2056 = vshrl.u32 %v1803, 16
      %v2058 = vrot.slane %v2056, 4
      %v2059 = vor.u32 %v2058, %v2054
      %v2060 = vrot.slane %v2059, 4
      %v2062 = vshll.u32 %v1804, 16
      %v2064 = vrot.slane %v2062, 5
      %v2065 = vsel %vm1825, %v2060, %v2064
      %v2067 = vshrl.u32 %v1805, 16
      %v2069 = vrot.slane %v2067, 4
      %v2070 = vshll.u32 %v1805, 16
      %v2072 = vrot.slane %v2070, 5
      %v2073 = vor.u32 %v2069, %v2072
      %v2074 = vrot.slane %v2073, 4
      %v2076 = vshll.u32 %v1806, 16
      %v2078 = vrot.slane %v2076, 5
      %v2079 = vsel %vm1825, %v2074, %v2078
      %v2080 = vshrl.u32 %v1806, 16
      %v2082 = vrot.slane %v2080, 4
      %v2083 = vor.u32 %v2082, %v2078
      %v2084 = vrot.slane %v2083, 4
      %v2086 = vshll.u32 %v1807, 16
      %v2088 = vrot.slane %v2086, 5
      %v2089 = vsel %vm1825, %v2084, %v2088
      %v2091 = vshrl.u32 %v1808, 16
      %v2093 = vrot.slane %v2091, 4
      %v2094 = vshll.u32 %v1808, 16
      %v2096 = vrot.slane %v2094, 5
      %v2097 = vor.u32 %v2093, %v2096
      %v2098 = vrot.slane %v2097, 4
      %v2100 = vshll.u32 %v1809, 16
      %v2102 = vrot.slane %v2100, 5
      %v2103 = vsel %vm1825, %v2098, %v2102
      %v2104 = vshrl.u32 %v1809, 16
      %v2106 = vrot.slane %v2104, 4
      %v2107 = vor.u32 %v2106, %v2102
      %v2108 = vrot.slane %v2107, 4
      %v2110 = vshll.u32 %v1810, 16
      %v2112 = vrot.slane %v2110, 5
      %v2113 = vsel %vm1825, %v2108, %v2112
      %v2115 = vshrl.u32 %v1811, 16
      %v2117 = vrot.slane %v2115, 4
      %v2118 = vshll.u32 %v1811, 16
      %v2120 = vrot.slane %v2118, 5
      %v2121 = vor.u32 %v2117, %v2120
      %v2122 = vrot.slane %v2121, 4
      %v2124 = vshll.u32 %v1812, 16
      %v2126 = vrot.slane %v2124, 5
      %v2127 = vsel %vm1825, %v2122, %v2126
      %v2128 = vshrl.u32 %v1812, 16
      %v2130 = vrot.slane %v2128, 4
      %v2131 = vor.u32 %v2130, %v2126
      %v2132 = vrot.slane %v2131, 4
      %v2134 = vshll.u32 %v1813, 16
      %v2136 = vrot.slane %v2134, 5
      %v2137 = vsel %vm1825, %v2132, %v2136
      %v2139 = vshrl.u32 %v1814, 16
      %v2141 = vrot.slane %v2139, 4
      %v2142 = vshll.u32 %v1814, 16
      %v2144 = vrot.slane %v2142, 5
      %v2145 = vor.u32 %v2141, %v2144
      %v2146 = vrot.slane %v2145, 4
      %v2148 = vshll.u32 %v1815, 16
      %v2150 = vrot.slane %v2148, 5
      %v2151 = vsel %vm1825, %v2146, %v2150
      %v2152 = vshrl.u32 %v1815, 16
      %v2154 = vrot.slane %v2152, 4
      %v2155 = vor.u32 %v2154, %v2150
      %v2156 = vrot.slane %v2155, 4
      %v2158 = vshll.u32 %v1816, 16
      %v2160 = vrot.slane %v2158, 5
      %v2161 = vsel %vm1825, %v2156, %v2160
      %v2163 = vshrl.u32 %v1817, 16
      %v2165 = vrot.slane %v2163, 4
      %v2166 = vshll.u32 %v1817, 16
      %v2168 = vrot.slane %v2166, 5
      %v2169 = vor.u32 %v2165, %v2168
      %v2170 = vrot.slane %v2169, 4
      %v2172 = vshll.u32 %v1818, 16
      %v2174 = vrot.slane %v2172, 5
      %v2175 = vsel %vm1825, %v2170, %v2174
      %v2176 = vshrl.u32 %v1818, 16
      %v2178 = vrot.slane %v2176, 4
      %v2179 = vor.u32 %v2178, %v2174
      %v2180 = vrot.slane %v2179, 4
      %v2182 = vshll.u32 %v1819, 16
      %v2184 = vrot.slane %v2182, 5
      %v2185 = vsel %vm1825, %v2180, %v2184
      %v2187 = vshrl.u32 %v1820, 16
      %v2189 = vrot.slane %v2187, 4
      %v2190 = vshll.u32 %v1820, 16
      %v2192 = vrot.slane %v2190, 5
      %v2193 = vor.u32 %v2189, %v2192
      %v2194 = vrot.slane %v2193, 4
      %v2196 = vshll.u32 %v1821, 16
      %v2198 = vrot.slane %v2196, 5
      %v2199 = vsel %vm1825, %v2194, %v2198
      %v2200 = vshrl.u32 %v1821, 16
      %v2202 = vrot.slane %v2200, 4
      %v2203 = vor.u32 %v2202, %v2198
      %v2204 = vrot.slane %v2203, 4
      %v2206 = vshll.u32 %v1822, 16
      %v2208 = vrot.slane %v2206, 5
      %v2209 = vsel %vm1825, %v2204, %v2208
      %v2210 = vld [vmem:[%s3 + $0x80] sm:$0xf]
      %v2211 = vld [vmem:[%s3 + $0x84] sm:$0xf]
      %v2212 = vld [vmem:[%s3 + $0x88] sm:$0xf]
      %v2213 = vld [vmem:[%s3 + $0x8c] sm:$0xf]
      %v2214 = vld [vmem:[%s3 + $0x90] sm:$0xf]
      %v2215 = vld [vmem:[%s3 + $0x94] sm:$0xf]
      %v2216 = vld [vmem:[%s3 + $0x98] sm:$0xf]
      %v2217 = vld [vmem:[%s3 + $0x9c] sm:$0xf]
      %v2218 = vld [vmem:[%s3 + $0xa0] sm:$0xf]
      %v2219 = vld [vmem:[%s3 + $0xa4] sm:$0xf]
      %v2220 = vld [vmem:[%s3 + $0xa8] sm:$0xf]
      %v2221 = vld [vmem:[%s3 + $0xac] sm:$0xf]
      %v2222 = vld [vmem:[%s3 + $0xb0] sm:$0xf]
      %v2223 = vld [vmem:[%s3 + $0xb4] sm:$0xf]
      %v2224 = vld [vmem:[%s3 + $0xb8] sm:$0xf]
      %v2225 = vld [vmem:[%s3 + $0xbc] sm:$0xf]
      %v2226 = vunpack.c.l.b16 %v1839
      %v2227 = vunpack.c.l.b16 %v1849
      %v2228 = vunpack.c.l.b16 %v1863
      %v2229 = vunpack.c.l.b16 %v1873
      %v2230 = vunpack.c.l.b16 %v1887
      %v2231 = vunpack.c.l.b16 %v1897
      %v2232 = vunpack.c.l.b16 %v1911
      %v2233 = vunpack.c.l.b16 %v1921
      %v2234 = vunpack.c.l.b16 %v1935
      %v2235 = vunpack.c.l.b16 %v1945
      %v2236 = vunpack.c.l.b16 %v1959
      %v2237 = vunpack.c.l.b16 %v1969
      %v2238 = vunpack.c.l.b16 %v1983
      %v2239 = vunpack.c.l.b16 %v1993
      %v2240 = vunpack.c.l.b16 %v2007
      %v2241 = vunpack.c.l.b16 %v2017
      %v2242 = vunpack.c.l.b16 %v2031
      %v2243 = vunpack.c.l.b16 %v2041
      %v2244 = vunpack.c.l.b16 %v2055
      %v2245 = vunpack.c.l.b16 %v2065
      %v2246 = vunpack.c.l.b16 %v2079
      %v2247 = vunpack.c.l.b16 %v2089
      %v2248 = vunpack.c.l.b16 %v2103
      %v2249 = vunpack.c.l.b16 %v2113
      %v2250 = vunpack.c.l.b16 %v2127
      %v2251 = vunpack.c.l.b16 %v2137
      %v2252 = vunpack.c.l.b16 %v2151
      %v2253 = vunpack.c.l.b16 %v2161
      %v2254 = vunpack.c.l.b16 %v2175
      %v2255 = vunpack.c.l.b16 %v2185
      %v2256 = vunpack.c.l.b16 %v2199
      %v2257 = vunpack.c.l.b16 %v2209
      %v2258 = vpack.c.b16 %v2227, %v2226
      %v2259 = vpack.c.b16 %v2229, %v2228
      %v2260 = vpack.c.b16 %v2231, %v2230
      %v2261 = vpack.c.b16 %v2233, %v2232
      %v2262 = vpack.c.b16 %v2235, %v2234
      %v2263 = vpack.c.b16 %v2237, %v2236
      %v2264 = vpack.c.b16 %v2239, %v2238
      %v2265 = vpack.c.b16 %v2241, %v2240
      %v2266 = vpack.c.b16 %v2243, %v2242
      %v2267 = vpack.c.b16 %v2245, %v2244
      %v2268 = vpack.c.b16 %v2247, %v2246
      %v2269 = vpack.c.b16 %v2249, %v2248
      %v2270 = vpack.c.b16 %v2251, %v2250
      %v2271 = vpack.c.b16 %v2253, %v2252
      %v2272 = vpack.c.b16 %v2255, %v2254
      %v2273 = vpack.c.b16 %v2257, %v2256
      %v2306 = vunpack.c.l.b16 %v2210
      %v2307 = vunpack.c.l.b16 %v2211
      %v2308 = vunpack.c.l.b16 %v2212
      %v2309 = vunpack.c.l.b16 %v2213
      %v2310 = vunpack.c.l.b16 %v2214
      %v2311 = vunpack.c.l.b16 %v2215
      %v2312 = vunpack.c.l.b16 %v2216
      %v2313 = vunpack.c.l.b16 %v2217
      %v2314 = vunpack.c.l.b16 %v2218
      %v2315 = vunpack.c.l.b16 %v2219
      %v2316 = vunpack.c.l.b16 %v2220
      %v2317 = vunpack.c.l.b16 %v2221
      %v2318 = vunpack.c.l.b16 %v2222
      %v2319 = vunpack.c.l.b16 %v2223
      %v2320 = vunpack.c.l.b16 %v2224
      %v2321 = vunpack.c.l.b16 %v2225
      %v2322 = vpack.c.b16 %v2307, %v2306
      %v2323 = vpack.c.b16 %v2309, %v2308
      %v2324 = vpack.c.b16 %v2311, %v2310
      %v2325 = vpack.c.b16 %v2313, %v2312
      %v2326 = vpack.c.b16 %v2315, %v2314
      %v2327 = vpack.c.b16 %v2317, %v2316
      %v2328 = vpack.c.b16 %v2319, %v2318
      %v2329 = vpack.c.b16 %v2321, %v2320
      %2338 = vmatprep.subr.bf16.mxu0 0
      %2339 = vmatpush1.bf16.msra.mxu0 %v2329
      %2340 = vmatprep.subr.bf16.mxu0 0
      %2341 = vmatpush1.bf16.msra.mxu0 %v2328
      %2342 = vmatprep.subr.bf16.mxu0 0
      %2343 = vmatpush1.bf16.msra.mxu0 %v2327
      %2344 = vmatprep.subr.bf16.mxu0 0
      %2345 = vmatpush1.bf16.msra.mxu0 %v2326
      %2346 = vmatprep.subr.bf16.mxu0 0
      %2347 = vmatpush1.bf16.msra.mxu0 %v2325
      %2348 = vmatprep.subr.bf16.mxu0 0
      %2349 = vmatpush1.bf16.msra.mxu0 %v2324
      %2350 = vmatprep.subr.bf16.mxu0 0
      %2351 = vmatpush1.bf16.msra.mxu0 %v2323
      %2352 = vmatprep.subr.bf16.mxu0 0
      %2353 = vmatpush1.bf16.msra.mxu0 %v2322
      %2354 = vmatprep.subr.bf16.mxu0 0
      %2355 = vmatpush2.bf16.msra.mxu0 0
      %2356 = vmatprep.subr.bf16.mxu0 0
      %2357 = vmatpush2.bf16.msra.mxu0 0
      %2358 = vmatprep.subr.bf16.mxu0 0
      %2359 = vmatpush2.bf16.msra.mxu0 0
      %2360 = vmatprep.subr.bf16.mxu0 0
      %2361 = vmatpush2.bf16.msra.mxu0 0
      %2362 = vmatprep.subr.bf16.mxu0 0
      %2363 = vmatpush2.bf16.msra.mxu0 0
      %2364 = vmatprep.subr.bf16.mxu0 0
      %2365 = vmatpush2.bf16.msra.mxu0 0
      %2366 = vmatprep.subr.bf16.mxu0 0
      %2367 = vmatpush2.bf16.msra.mxu0 0
      %2368 = vmatprep.subr.bf16.mxu0 0
      %2369 = vmatpush2.bf16.msra.mxu0 0
      %2370 = vmatprep.mubr.bf16.mxu0 0
      %2371 = vmatmul.mubr.bf16.gmra.mxu0 %v2258
      %v2372 = vpop.f32.mrf.mxu0
      %v2373 = vadd.f32 0.0, %v2372
      %v2374 = vpop.f32.mrf.mxu0
      %v2375 = vpop.f32.mrf.mxu0
      %v2376 = vadd.f32 0.0, %v2375
      %v2377 = vpop.f32.mrf.mxu0
      %2378 = vmatprep.mubr.bf16.mxu0 0
      %2379 = vmatmul.mubr.bf16.gmra.mxu0 %v2259
      %v2380 = vpop.f32.mrf.mxu0
      %v2381 = vadd.f32 0.0, %v2380
      %v2382 = vpop.f32.mrf.mxu0
      %v2383 = vpop.f32.mrf.mxu0
      %v2384 = vadd.f32 0.0, %v2383
      %v2385 = vpop.f32.mrf.mxu0
      %2386 = vmatprep.mubr.bf16.mxu0 0
      %2387 = vmatmul.mubr.bf16.gmra.mxu0 %v2260
      %v2388 = vpop.f32.mrf.mxu0
      %v2389 = vadd.f32 0.0, %v2388
      %v2390 = vpop.f32.mrf.mxu0
      %v2391 = vpop.f32.mrf.mxu0
      %v2392 = vadd.f32 0.0, %v2391
      %v2393 = vpop.f32.mrf.mxu0
      %2394 = vmatprep.mubr.bf16.mxu0 0
      %2395 = vmatmul.mubr.bf16.gmra.mxu0 %v2261
      %v2396 = vpop.f32.mrf.mxu0
      %v2397 = vadd.f32 0.0, %v2396
      %v2398 = vpop.f32.mrf.mxu0
      %v2399 = vpop.f32.mrf.mxu0
      %v2400 = vadd.f32 0.0, %v2399
      %v2401 = vpop.f32.mrf.mxu0
      %2402 = vmatprep.mubr.bf16.mxu0 0
      %2403 = vmatmul.mubr.bf16.gmra.mxu0 %v2262
      %v2404 = vpop.f32.mrf.mxu0
      %v2405 = vadd.f32 0.0, %v2404
      %v2406 = vpop.f32.mrf.mxu0
      %v2407 = vpop.f32.mrf.mxu0
      %v2408 = vadd.f32 0.0, %v2407
      %v2409 = vpop.f32.mrf.mxu0
      %2410 = vmatprep.mubr.bf16.mxu0 0
      %2411 = vmatmul.mubr.bf16.gmra.mxu0 %v2263
      %v2412 = vpop.f32.mrf.mxu0
      %v2413 = vadd.f32 0.0, %v2412
      %v2414 = vpop.f32.mrf.mxu0
      %v2415 = vpop.f32.mrf.mxu0
      %v2416 = vadd.f32 0.0, %v2415
      %v2417 = vpop.f32.mrf.mxu0
      %2418 = vmatprep.mubr.bf16.mxu0 0
      %2419 = vmatmul.mubr.bf16.gmra.mxu0 %v2264
      %v2420 = vpop.f32.mrf.mxu0
      %v2421 = vadd.f32 0.0, %v2420
      %v2422 = vpop.f32.mrf.mxu0
      %v2423 = vpop.f32.mrf.mxu0
      %v2424 = vadd.f32 0.0, %v2423
      %v2425 = vpop.f32.mrf.mxu0
      %2426 = vmatprep.mubr.bf16.mxu0 0
      %2427 = vmatmul.mubr.bf16.gmra.mxu0 %v2265
      %v2428 = vpop.f32.mrf.mxu0
      %v2429 = vadd.f32 0.0, %v2428
      %v2430 = vpop.f32.mrf.mxu0
      %v2431 = vpop.f32.mrf.mxu0
      %v2432 = vadd.f32 0.0, %v2431
      %v2433 = vpop.f32.mrf.mxu0
      %2434 = vmatprep.mubr.bf16.mxu0 0
      %2435 = vmatmul.mubr.bf16.gmra.mxu0 %v2266
      %v2436 = vpop.f32.mrf.mxu0
      %v2437 = vadd.f32 0.0, %v2436
      %v2438 = vpop.f32.mrf.mxu0
      %v2439 = vpop.f32.mrf.mxu0
      %v2440 = vadd.f32 0.0, %v2439
      %v2441 = vpop.f32.mrf.mxu0
      %2442 = vmatprep.mubr.bf16.mxu0 0
      %2443 = vmatmul.mubr.bf16.gmra.mxu0 %v2267
      %v2444 = vpop.f32.mrf.mxu0
      %v2445 = vadd.f32 0.0, %v2444
      %v2446 = vpop.f32.mrf.mxu0
      %v2447 = vpop.f32.mrf.mxu0
      %v2448 = vadd.f32 0.0, %v2447
      %v2449 = vpop.f32.mrf.mxu0
      %2450 = vmatprep.mubr.bf16.mxu0 0
      %2451 = vmatmul.mubr.bf16.gmra.mxu0 %v2268
      %v2452 = vpop.f32.mrf.mxu0
      %v2453 = vadd.f32 0.0, %v2452
      %v2454 = vpop.f32.mrf.mxu0
      %v2455 = vpop.f32.mrf.mxu0
      %v2456 = vadd.f32 0.0, %v2455
      %v2457 = vpop.f32.mrf.mxu0
      %2458 = vmatprep.mubr.bf16.mxu0 0
      %2459 = vmatmul.mubr.bf16.gmra.mxu0 %v2269
      %v2460 = vpop.f32.mrf.mxu0
      %v2461 = vadd.f32 0.0, %v2460
      %v2462 = vpop.f32.mrf.mxu0
      %v2463 = vpop.f32.mrf.mxu0
      %v2464 = vadd.f32 0.0, %v2463
      %v2465 = vpop.f32.mrf.mxu0
      %2466 = vmatprep.mubr.bf16.mxu0 0
      %2467 = vmatmul.mubr.bf16.gmra.mxu0 %v2270
      %v2468 = vpop.f32.mrf.mxu0
      %v2469 = vadd.f32 0.0, %v2468
      %v2470 = vpop.f32.mrf.mxu0
      %v2471 = vpop.f32.mrf.mxu0
      %v2472 = vadd.f32 0.0, %v2471
      %v2473 = vpop.f32.mrf.mxu0
      %2474 = vmatprep.mubr.bf16.mxu0 0
      %2475 = vmatmul.mubr.bf16.gmra.mxu0 %v2271
      %v2476 = vpop.f32.mrf.mxu0
      %v2477 = vadd.f32 0.0, %v2476
      %v2478 = vpop.f32.mrf.mxu0
      %v2479 = vpop.f32.mrf.mxu0
      %v2480 = vadd.f32 0.0, %v2479
      %v2481 = vpop.f32.mrf.mxu0
      %2482 = vmatprep.mubr.bf16.mxu0 0
      %2483 = vmatmul.mubr.bf16.gmra.mxu0 %v2272
      %v2484 = vpop.f32.mrf.mxu0
      %v2485 = vadd.f32 0.0, %v2484
      %v2486 = vpop.f32.mrf.mxu0
      %v2487 = vpop.f32.mrf.mxu0
      %v2488 = vadd.f32 0.0, %v2487
      %v2489 = vpop.f32.mrf.mxu0
      %2490 = vmatprep.mubr.bf16.mxu0 0
      %2491 = vmatmul.mubr.bf16.gmra.mxu0 %v2273
      %v2492 = vpop.f32.mrf.mxu0
      %v2493 = vadd.f32 0.0, %v2492
      %v2494 = vpop.f32.mrf.mxu0
      %v2495 = vpop.f32.mrf.mxu0
      %v2496 = vadd.f32 0.0, %v2495
      %v2497 = vpop.f32.mrf.mxu0
      %2498 = vdwg.mxu0
      %v2499 = vadd.f32 %v1649, %v2373
      %v2500 = vadd.f32 %v1652, %v2376
      %v2501 = vadd.f32 %v1657, %v2381
      %v2502 = vadd.f32 %v1660, %v2384
      %v2503 = vadd.f32 %v1665, %v2389
      %v2504 = vadd.f32 %v1668, %v2392
      %v2505 = vadd.f32 %v1673, %v2397
      %v2506 = vadd.f32 %v1676, %v2400
      %v2507 = vadd.f32 %v1681, %v2405
      %v2508 = vadd.f32 %v1684, %v2408
      %v2509 = vadd.f32 %v1689, %v2413
      %v2510 = vadd.f32 %v1692, %v2416
      %v2511 = vadd.f32 %v1697, %v2421
      %v2512 = vadd.f32 %v1700, %v2424
      %v2513 = vadd.f32 %v1705, %v2429
      %v2514 = vadd.f32 %v1708, %v2432
      %v2515 = vadd.f32 %v1713, %v2437
      %v2516 = vadd.f32 %v1716, %v2440
      %v2517 = vadd.f32 %v1721, %v2445
      %v2518 = vadd.f32 %v1724, %v2448
      %v2519 = vadd.f32 %v1729, %v2453
      %v2520 = vadd.f32 %v1732, %v2456
      %v2521 = vadd.f32 %v1737, %v2461
      %v2522 = vadd.f32 %v1740, %v2464
      %v2523 = vadd.f32 %v1745, %v2469
      %v2524 = vadd.f32 %v1748, %v2472
      %v2525 = vadd.f32 %v1753, %v2477
      %v2526 = vadd.f32 %v1756, %v2480
      %v2527 = vadd.f32 %v1761, %v2485
      %v2528 = vadd.f32 %v1764, %v2488
      %v2529 = vadd.f32 %v1769, %v2493
      %v2530 = vadd.f32 %v1772, %v2496
      %v2531 = vld [vmem:[%s729] sm:$0x8]
      %v2532 = vld [vmem:[%s729 + $0x4] sm:$0xf]
      %v2533 = vld [vmem:[%s729 + $0x8] sm:$0xf]
      %v2534 = vld [vmem:[%s729 + $0x10] sm:$0x8]
      %v2535 = vld [vmem:[%s729 + $0x14] sm:$0xf]
      %v2536 = vld [vmem:[%s729 + $0x18] sm:$0xf]
      %v2537 = vld [vmem:[%s729 + $0x20] sm:$0x8]
      %v2538 = vld [vmem:[%s729 + $0x24] sm:$0xf]
      %v2539 = vld [vmem:[%s729 + $0x28] sm:$0xf]
      %v2540 = vld [vmem:[%s729 + $0x30] sm:$0x8]
      %v2541 = vld [vmem:[%s729 + $0x34] sm:$0xf]
      %v2542 = vld [vmem:[%s729 + $0x38] sm:$0xf]
      %v2543 = vld [vmem:[%s729 + $0x40] sm:$0x8]
      %v2544 = vld [vmem:[%s729 + $0x44] sm:$0xf]
      %v2545 = vld [vmem:[%s729 + $0x48] sm:$0xf]
      %v2546 = vld [vmem:[%s729 + $0x50] sm:$0x8]
      %v2547 = vld [vmem:[%s729 + $0x54] sm:$0xf]
      %v2548 = vld [vmem:[%s729 + $0x58] sm:$0xf]
      %v2549 = vld [vmem:[%s729 + $0x60] sm:$0x8]
      %v2550 = vld [vmem:[%s729 + $0x64] sm:$0xf]
      %v2551 = vld [vmem:[%s729 + $0x68] sm:$0xf]
      %v2552 = vld [vmem:[%s729 + $0x70] sm:$0x8]
      %v2553 = vld [vmem:[%s729 + $0x74] sm:$0xf]
      %v2554 = vld [vmem:[%s729 + $0x78] sm:$0xf]
      %v2555 = vld [vmem:[%s729 + $0x80] sm:$0x8]
      %v2556 = vld [vmem:[%s729 + $0x84] sm:$0xf]
      %v2557 = vld [vmem:[%s729 + $0x88] sm:$0xf]
      %v2558 = vld [vmem:[%s729 + $0x90] sm:$0x8]
      %v2559 = vld [vmem:[%s729 + $0x94] sm:$0xf]
      %v2560 = vld [vmem:[%s729 + $0x98] sm:$0xf]
      %v2561 = vld [vmem:[%s729 + $0xa0] sm:$0x8]
      %v2562 = vld [vmem:[%s729 + $0xa4] sm:$0xf]
      %v2563 = vld [vmem:[%s729 + $0xa8] sm:$0xf]
      %v2564 = vld [vmem:[%s729 + $0xb0] sm:$0x8]
      %v2565 = vld [vmem:[%s729 + $0xb4] sm:$0xf]
      %v2566 = vld [vmem:[%s729 + $0xb8] sm:$0xf]
      %v2567 = vld [vmem:[%s729 + $0xc0] sm:$0x8]
      %v2568 = vld [vmem:[%s729 + $0xc4] sm:$0xf]
      %v2569 = vld [vmem:[%s729 + $0xc8] sm:$0xf]
      %v2570 = vld [vmem:[%s729 + $0xd0] sm:$0x8]
      %v2571 = vld [vmem:[%s729 + $0xd4] sm:$0xf]
      %v2572 = vld [vmem:[%s729 + $0xd8] sm:$0xf]
      %v2573 = vld [vmem:[%s729 + $0xe0] sm:$0x8]
      %v2574 = vld [vmem:[%s729 + $0xe4] sm:$0xf]
      %v2575 = vld [vmem:[%s729 + $0xe8] sm:$0xf]
      %v2576 = vld [vmem:[%s729 + $0xf0] sm:$0x8]
      %v2577 = vld [vmem:[%s729 + $0xf4] sm:$0xf]
      %v2578 = vld [vmem:[%s729 + $0xf8] sm:$0xf]
      %v2580 = vshrl.u32 %v2531, 16
      %v2582 = vrot.slane %v2580, 7
      %v2583 = vrot.slane %v2582, 4
      %v2585 = vshrl.u32 %v2532, 16
      %v2587 = vrot.slane %v2585, 7
      %v2588 = vshll.u32 %v2532, 16
      %v2590 = vor.u32 %v2587, %v2588
      %v2591 = vsel %vm812, %v2583, %v2590
      %v2592 = vrot.slane %v2587, 4
      %v2594 = vshrl.u32 %v2533, 16
      %v2596 = vrot.slane %v2594, 7
      %v2597 = vshll.u32 %v2533, 16
      %v2599 = vor.u32 %v2596, %v2597
      %v2600 = vsel %vm812, %v2592, %v2599
      %v2602 = vshrl.u32 %v2534, 16
      %v2604 = vrot.slane %v2602, 7
      %v2605 = vrot.slane %v2604, 4
      %v2607 = vshrl.u32 %v2535, 16
      %v2609 = vrot.slane %v2607, 7
      %v2610 = vshll.u32 %v2535, 16
      %v2612 = vor.u32 %v2609, %v2610
      %v2613 = vsel %vm812, %v2605, %v2612
      %v2614 = vrot.slane %v2609, 4
      %v2616 = vshrl.u32 %v2536, 16
      %v2618 = vrot.slane %v2616, 7
      %v2619 = vshll.u32 %v2536, 16
      %v2621 = vor.u32 %v2618, %v2619
      %v2622 = vsel %vm812, %v2614, %v2621
      %v2624 = vshrl.u32 %v2537, 16
      %v2626 = vrot.slane %v2624, 7
      %v2627 = vrot.slane %v2626, 4
      %v2629 = vshrl.u32 %v2538, 16
      %v2631 = vrot.slane %v2629, 7
      %v2632 = vshll.u32 %v2538, 16
      %v2634 = vor.u32 %v2631, %v2632
      %v2635 = vsel %vm812, %v2627, %v2634
      %v2636 = vrot.slane %v2631, 4
      %v2638 = vshrl.u32 %v2539, 16
      %v2640 = vrot.slane %v2638, 7
      %v2641 = vshll.u32 %v2539, 16
      %v2643 = vor.u32 %v2640, %v2641
      %v2644 = vsel %vm812, %v2636, %v2643
      %v2646 = vshrl.u32 %v2540, 16
      %v2648 = vrot.slane %v2646, 7
      %v2649 = vrot.slane %v2648, 4
      %v2651 = vshrl.u32 %v2541, 16
      %v2653 = vrot.slane %v2651, 7
      %v2654 = vshll.u32 %v2541, 16
      %v2656 = vor.u32 %v2653, %v2654
      %v2657 = vsel %vm812, %v2649, %v2656
      %v2658 = vrot.slane %v2653, 4
      %v2660 = vshrl.u32 %v2542, 16
      %v2662 = vrot.slane %v2660, 7
      %v2663 = vshll.u32 %v2542, 16
      %v2665 = vor.u32 %v2662, %v2663
      %v2666 = vsel %vm812, %v2658, %v2665
      %v2668 = vshrl.u32 %v2543, 16
      %v2670 = vrot.slane %v2668, 7
      %v2671 = vrot.slane %v2670, 4
      %v2673 = vshrl.u32 %v2544, 16
      %v2675 = vrot.slane %v2673, 7
      %v2676 = vshll.u32 %v2544, 16
      %v2678 = vor.u32 %v2675, %v2676
      %v2679 = vsel %vm812, %v2671, %v2678
      %v2680 = vrot.slane %v2675, 4
      %v2682 = vshrl.u32 %v2545, 16
      %v2684 = vrot.slane %v2682, 7
      %v2685 = vshll.u32 %v2545, 16
      %v2687 = vor.u32 %v2684, %v2685
      %v2688 = vsel %vm812, %v2680, %v2687
      %v2690 = vshrl.u32 %v2546, 16
      %v2692 = vrot.slane %v2690, 7
      %v2693 = vrot.slane %v2692, 4
      %v2695 = vshrl.u32 %v2547, 16
      %v2697 = vrot.slane %v2695, 7
      %v2698 = vshll.u32 %v2547, 16
      %v2700 = vor.u32 %v2697, %v2698
      %v2701 = vsel %vm812, %v2693, %v2700
      %v2702 = vrot.slane %v2697, 4
      %v2704 = vshrl.u32 %v2548, 16
      %v2706 = vrot.slane %v2704, 7
      %v2707 = vshll.u32 %v2548, 16
      %v2709 = vor.u32 %v2706, %v2707
      %v2710 = vsel %vm812, %v2702, %v2709
      %v2712 = vshrl.u32 %v2549, 16
      %v2714 = vrot.slane %v2712, 7
      %v2715 = vrot.slane %v2714, 4
      %v2717 = vshrl.u32 %v2550, 16
      %v2719 = vrot.slane %v2717, 7
      %v2720 = vshll.u32 %v2550, 16
      %v2722 = vor.u32 %v2719, %v2720
      %v2723 = vsel %vm812, %v2715, %v2722
      %v2724 = vrot.slane %v2719, 4
      %v2726 = vshrl.u32 %v2551, 16
      %v2728 = vrot.slane %v2726, 7
      %v2729 = vshll.u32 %v2551, 16
      %v2731 = vor.u32 %v2728, %v2729
      %v2732 = vsel %vm812, %v2724, %v2731
      %v2734 = vshrl.u32 %v2552, 16
      %v2736 = vrot.slane %v2734, 7
      %v2737 = vrot.slane %v2736, 4
      %v2739 = vshrl.u32 %v2553, 16
      %v2741 = vrot.slane %v2739, 7
      %v2742 = vshll.u32 %v2553, 16
      %v2744 = vor.u32 %v2741, %v2742
      %v2745 = vsel %vm812, %v2737, %v2744
      %v2746 = vrot.slane %v2741, 4
      %v2748 = vshrl.u32 %v2554, 16
      %v2750 = vrot.slane %v2748, 7
      %v2751 = vshll.u32 %v2554, 16
      %v2753 = vor.u32 %v2750, %v2751
      %v2754 = vsel %vm812, %v2746, %v2753
      %v2756 = vshrl.u32 %v2555, 16
      %v2758 = vrot.slane %v2756, 7
      %v2759 = vrot.slane %v2758, 4
      %v2761 = vshrl.u32 %v2556, 16
      %v2763 = vrot.slane %v2761, 7
      %v2764 = vshll.u32 %v2556, 16
      %v2766 = vor.u32 %v2763, %v2764
      %v2767 = vsel %vm812, %v2759, %v2766
      %v2768 = vrot.slane %v2763, 4
      %v2770 = vshrl.u32 %v2557, 16
      %v2772 = vrot.slane %v2770, 7
      %v2773 = vshll.u32 %v2557, 16
      %v2775 = vor.u32 %v2772, %v2773
      %v2776 = vsel %vm812, %v2768, %v2775
      %v2778 = vshrl.u32 %v2558, 16
      %v2780 = vrot.slane %v2778, 7
      %v2781 = vrot.slane %v2780, 4
      %v2783 = vshrl.u32 %v2559, 16
      %v2785 = vrot.slane %v2783, 7
      %v2786 = vshll.u32 %v2559, 16
      %v2788 = vor.u32 %v2785, %v2786
      %v2789 = vsel %vm812, %v2781, %v2788
      %v2790 = vrot.slane %v2785, 4
      %v2792 = vshrl.u32 %v2560, 16
      %v2794 = vrot.slane %v2792, 7
      %v2795 = vshll.u32 %v2560, 16
      %v2797 = vor.u32 %v2794, %v2795
      %v2798 = vsel %vm812, %v2790, %v2797
      %v2800 = vshrl.u32 %v2561, 16
      %v2802 = vrot.slane %v2800, 7
      %v2803 = vrot.slane %v2802, 4
      %v2805 = vshrl.u32 %v2562, 16
      %v2807 = vrot.slane %v2805, 7
      %v2808 = vshll.u32 %v2562, 16
      %v2810 = vor.u32 %v2807, %v2808
      %v2811 = vsel %vm812, %v2803, %v2810
      %v2812 = vrot.slane %v2807, 4
      %v2814 = vshrl.u32 %v2563, 16
      %v2816 = vrot.slane %v2814, 7
      %v2817 = vshll.u32 %v2563, 16
      %v2819 = vor.u32 %v2816, %v2817
      %v2820 = vsel %vm812, %v2812, %v2819
      %v2822 = vshrl.u32 %v2564, 16
      %v2824 = vrot.slane %v2822, 7
      %v2825 = vrot.slane %v2824, 4
      %v2827 = vshrl.u32 %v2565, 16
      %v2829 = vrot.slane %v2827, 7
      %v2830 = vshll.u32 %v2565, 16
      %v2832 = vor.u32 %v2829, %v2830
      %v2833 = vsel %vm812, %v2825, %v2832
      %v2834 = vrot.slane %v2829, 4
      %v2836 = vshrl.u32 %v2566, 16
      %v2838 = vrot.slane %v2836, 7
      %v2839 = vshll.u32 %v2566, 16
      %v2841 = vor.u32 %v2838, %v2839
      %v2842 = vsel %vm812, %v2834, %v2841
      %v2844 = vshrl.u32 %v2567, 16
      %v2846 = vrot.slane %v2844, 7
      %v2847 = vrot.slane %v2846, 4
      %v2849 = vshrl.u32 %v2568, 16
      %v2851 = vrot.slane %v2849, 7
      %v2852 = vshll.u32 %v2568, 16
      %v2854 = vor.u32 %v2851, %v2852
      %v2855 = vsel %vm812, %v2847, %v2854
      %v2856 = vrot.slane %v2851, 4
      %v2858 = vshrl.u32 %v2569, 16
      %v2860 = vrot.slane %v2858, 7
      %v2861 = vshll.u32 %v2569, 16
      %v2863 = vor.u32 %v2860, %v2861
      %v2864 = vsel %vm812, %v2856, %v2863
      %v2866 = vshrl.u32 %v2570, 16
      %v2868 = vrot.slane %v2866, 7
      %v2869 = vrot.slane %v2868, 4
      %v2871 = vshrl.u32 %v2571, 16
      %v2873 = vrot.slane %v2871, 7
      %v2874 = vshll.u32 %v2571, 16
      %v2876 = vor.u32 %v2873, %v2874
      %v2877 = vsel %vm812, %v2869, %v2876
      %v2878 = vrot.slane %v2873, 4
      %v2880 = vshrl.u32 %v2572, 16
      %v2882 = vrot.slane %v2880, 7
      %v2883 = vshll.u32 %v2572, 16
      %v2885 = vor.u32 %v2882, %v2883
      %v2886 = vsel %vm812, %v2878, %v2885
      %v2888 = vshrl.u32 %v2573, 16
      %v2890 = vrot.slane %v2888, 7
      %v2891 = vrot.slane %v2890, 4
      %v2893 = vshrl.u32 %v2574, 16
      %v2895 = vrot.slane %v2893, 7
      %v2896 = vshll.u32 %v2574, 16
      %v2898 = vor.u32 %v2895, %v2896
      %v2899 = vsel %vm812, %v2891, %v2898
      %v2900 = vrot.slane %v2895, 4
      %v2902 = vshrl.u32 %v2575, 16
      %v2904 = vrot.slane %v2902, 7
      %v2905 = vshll.u32 %v2575, 16
      %v2907 = vor.u32 %v2904, %v2905
      %v2908 = vsel %vm812, %v2900, %v2907
      %v2910 = vshrl.u32 %v2576, 16
      %v2912 = vrot.slane %v2910, 7
      %v2913 = vrot.slane %v2912, 4
      %v2915 = vshrl.u32 %v2577, 16
      %v2917 = vrot.slane %v2915, 7
      %v2918 = vshll.u32 %v2577, 16
      %v2920 = vor.u32 %v2917, %v2918
      %v2921 = vsel %vm812, %v2913, %v2920
      %v2922 = vrot.slane %v2917, 4
      %v2924 = vshrl.u32 %v2578, 16
      %v2926 = vrot.slane %v2924, 7
      %v2927 = vshll.u32 %v2578, 16
      %v2929 = vor.u32 %v2926, %v2927
      %v2930 = vsel %vm812, %v2922, %v2929
      %v2931 = vld [vmem:[%s3 + $0xc0] sm:$0xf]
      %v2932 = vld [vmem:[%s3 + $0xc4] sm:$0xf]
      %v2933 = vld [vmem:[%s3 + $0xc8] sm:$0xf]
      %v2934 = vld [vmem:[%s3 + $0xcc] sm:$0xf]
      %v2935 = vld [vmem:[%s3 + $0xd0] sm:$0xf]
      %v2936 = vld [vmem:[%s3 + $0xd4] sm:$0xf]
      %v2937 = vld [vmem:[%s3 + $0xd8] sm:$0xf]
      %v2938 = vld [vmem:[%s3 + $0xdc] sm:$0xf]
      %v2939 = vld [vmem:[%s3 + $0xe0] sm:$0xf]
      %v2940 = vld [vmem:[%s3 + $0xe4] sm:$0xf]
      %v2941 = vld [vmem:[%s3 + $0xe8] sm:$0xf]
      %v2942 = vld [vmem:[%s3 + $0xec] sm:$0xf]
      %v2943 = vld [vmem:[%s3 + $0xf0] sm:$0xf]
      %v2944 = vld [vmem:[%s3 + $0xf4] sm:$0xf]
      %v2945 = vld [vmem:[%s3 + $0xf8] sm:$0xf]
      %v2946 = vld [vmem:[%s3 + $0xfc] sm:$0xf]
      %v2947 = vunpack.c.l.b16 %v2591
      %v2948 = vunpack.c.l.b16 %v2600
      %v2949 = vunpack.c.l.b16 %v2613
      %v2950 = vunpack.c.l.b16 %v2622
      %v2951 = vunpack.c.l.b16 %v2635
      %v2952 = vunpack.c.l.b16 %v2644
      %v2953 = vunpack.c.l.b16 %v2657
      %v2954 = vunpack.c.l.b16 %v2666
      %v2955 = vunpack.c.l.b16 %v2679
      %v2956 = vunpack.c.l.b16 %v2688
      %v2957 = vunpack.c.l.b16 %v2701
      %v2958 = vunpack.c.l.b16 %v2710
      %v2959 = vunpack.c.l.b16 %v2723
      %v2960 = vunpack.c.l.b16 %v2732
      %v2961 = vunpack.c.l.b16 %v2745
      %v2962 = vunpack.c.l.b16 %v2754
      %v2963 = vunpack.c.l.b16 %v2767
      %v2964 = vunpack.c.l.b16 %v2776
      %v2965 = vunpack.c.l.b16 %v2789
      %v2966 = vunpack.c.l.b16 %v2798
      %v2967 = vunpack.c.l.b16 %v2811
      %v2968 = vunpack.c.l.b16 %v2820
      %v2969 = vunpack.c.l.b16 %v2833
      %v2970 = vunpack.c.l.b16 %v2842
      %v2971 = vunpack.c.l.b16 %v2855
      %v2972 = vunpack.c.l.b16 %v2864
      %v2973 = vunpack.c.l.b16 %v2877
      %v2974 = vunpack.c.l.b16 %v2886
      %v2975 = vunpack.c.l.b16 %v2899
      %v2976 = vunpack.c.l.b16 %v2908
      %v2977 = vunpack.c.l.b16 %v2921
      %v2978 = vunpack.c.l.b16 %v2930
      %v2979 = vpack.c.b16 %v2948, %v2947
      %v2980 = vpack.c.b16 %v2950, %v2949
      %v2981 = vpack.c.b16 %v2952, %v2951
      %v2982 = vpack.c.b16 %v2954, %v2953
      %v2983 = vpack.c.b16 %v2956, %v2955
      %v2984 = vpack.c.b16 %v2958, %v2957
      %v2985 = vpack.c.b16 %v2960, %v2959
      %v2986 = vpack.c.b16 %v2962, %v2961
      %v2987 = vpack.c.b16 %v2964, %v2963
      %v2988 = vpack.c.b16 %v2966, %v2965
      %v2989 = vpack.c.b16 %v2968, %v2967
      %v2990 = vpack.c.b16 %v2970, %v2969
      %v2991 = vpack.c.b16 %v2972, %v2971
      %v2992 = vpack.c.b16 %v2974, %v2973
      %v2993 = vpack.c.b16 %v2976, %v2975
      %v2994 = vpack.c.b16 %v2978, %v2977
      %v3027 = vunpack.c.l.b16 %v2931
      %v3028 = vunpack.c.l.b16 %v2932
      %v3029 = vunpack.c.l.b16 %v2933
      %v3030 = vunpack.c.l.b16 %v2934
      %v3031 = vunpack.c.l.b16 %v2935
      %v3032 = vunpack.c.l.b16 %v2936
      %v3033 = vunpack.c.l.b16 %v2937
      %v3034 = vunpack.c.l.b16 %v2938
      %v3035 = vunpack.c.l.b16 %v2939
      %v3036 = vunpack.c.l.b16 %v2940
      %v3037 = vunpack.c.l.b16 %v2941
      %v3038 = vunpack.c.l.b16 %v2942
      %v3039 = vunpack.c.l.b16 %v2943
      %v3040 = vunpack.c.l.b16 %v2944
      %v3041 = vunpack.c.l.b16 %v2945
      %v3042 = vunpack.c.l.b16 %v2946
      %v3043 = vpack.c.b16 %v3028, %v3027
      %v3044 = vpack.c.b16 %v3030, %v3029
      %v3045 = vpack.c.b16 %v3032, %v3031
      %v3046 = vpack.c.b16 %v3034, %v3033
      %v3047 = vpack.c.b16 %v3036, %v3035
      %v3048 = vpack.c.b16 %v3038, %v3037
      %v3049 = vpack.c.b16 %v3040, %v3039
      %v3050 = vpack.c.b16 %v3042, %v3041
      %3059 = vmatprep.subr.bf16.mxu0 0
      %3060 = vmatpush1.bf16.msra.mxu0 %v3050
      %3061 = vmatprep.subr.bf16.mxu0 0
      %3062 = vmatpush1.bf16.msra.mxu0 %v3049
      %3063 = vmatprep.subr.bf16.mxu0 0
      %3064 = vmatpush1.bf16.msra.mxu0 %v3048
      %3065 = vmatprep.subr.bf16.mxu0 0
      %3066 = vmatpush1.bf16.msra.mxu0 %v3047
      %3067 = vmatprep.subr.bf16.mxu0 0
      %3068 = vmatpush1.bf16.msra.mxu0 %v3046
      %3069 = vmatprep.subr.bf16.mxu0 0
      %3070 = vmatpush1.bf16.msra.mxu0 %v3045
      %3071 = vmatprep.subr.bf16.mxu0 0
      %3072 = vmatpush1.bf16.msra.mxu0 %v3044
      %3073 = vmatprep.subr.bf16.mxu0 0
      %3074 = vmatpush1.bf16.msra.mxu0 %v3043
      %3075 = vmatprep.subr.bf16.mxu0 0
      %3076 = vmatpush2.bf16.msra.mxu0 0
      %3077 = vmatprep.subr.bf16.mxu0 0
      %3078 = vmatpush2.bf16.msra.mxu0 0
      %3079 = vmatprep.subr.bf16.mxu0 0
      %3080 = vmatpush2.bf16.msra.mxu0 0
      %3081 = vmatprep.subr.bf16.mxu0 0
      %3082 = vmatpush2.bf16.msra.mxu0 0
      %3083 = vmatprep.subr.bf16.mxu0 0
      %3084 = vmatpush2.bf16.msra.mxu0 0
      %3085 = vmatprep.subr.bf16.mxu0 0
      %3086 = vmatpush2.bf16.msra.mxu0 0
      %3087 = vmatprep.subr.bf16.mxu0 0
      %3088 = vmatpush2.bf16.msra.mxu0 0
      %3089 = vmatprep.subr.bf16.mxu0 0
      %3090 = vmatpush2.bf16.msra.mxu0 0
      %3091 = vmatprep.mubr.bf16.mxu0 0
      %3092 = vmatmul.mubr.bf16.gmra.mxu0 %v2979
      %v3093 = vpop.f32.mrf.mxu0
      %v3094 = vadd.f32 0.0, %v3093
      %v3095 = vpop.f32.mrf.mxu0
      %v3096 = vpop.f32.mrf.mxu0
      %v3097 = vadd.f32 0.0, %v3096
      %v3098 = vpop.f32.mrf.mxu0
      %3099 = vmatprep.mubr.bf16.mxu0 0
      %3100 = vmatmul.mubr.bf16.gmra.mxu0 %v2980
      %v3101 = vpop.f32.mrf.mxu0
      %v3102 = vadd.f32 0.0, %v3101
      %v3103 = vpop.f32.mrf.mxu0
      %v3104 = vpop.f32.mrf.mxu0
      %v3105 = vadd.f32 0.0, %v3104
      %v3106 = vpop.f32.mrf.mxu0
      %3107 = vmatprep.mubr.bf16.mxu0 0
      %3108 = vmatmul.mubr.bf16.gmra.mxu0 %v2981
      %v3109 = vpop.f32.mrf.mxu0
      %v3110 = vadd.f32 0.0, %v3109
      %v3111 = vpop.f32.mrf.mxu0
      %v3112 = vpop.f32.mrf.mxu0
      %v3113 = vadd.f32 0.0, %v3112
      %v3114 = vpop.f32.mrf.mxu0
      %3115 = vmatprep.mubr.bf16.mxu0 0
      %3116 = vmatmul.mubr.bf16.gmra.mxu0 %v2982
      %v3117 = vpop.f32.mrf.mxu0
      %v3118 = vadd.f32 0.0, %v3117
      %v3119 = vpop.f32.mrf.mxu0
      %v3120 = vpop.f32.mrf.mxu0
      %v3121 = vadd.f32 0.0, %v3120
      %v3122 = vpop.f32.mrf.mxu0
      %3123 = vmatprep.mubr.bf16.mxu0 0
      %3124 = vmatmul.mubr.bf16.gmra.mxu0 %v2983
      %v3125 = vpop.f32.mrf.mxu0
      %v3126 = vadd.f32 0.0, %v3125
      %v3127 = vpop.f32.mrf.mxu0
      %v3128 = vpop.f32.mrf.mxu0
      %v3129 = vadd.f32 0.0, %v3128
      %v3130 = vpop.f32.mrf.mxu0
      %3131 = vmatprep.mubr.bf16.mxu0 0
      %3132 = vmatmul.mubr.bf16.gmra.mxu0 %v2984
      %v3133 = vpop.f32.mrf.mxu0
      %v3134 = vadd.f32 0.0, %v3133
      %v3135 = vpop.f32.mrf.mxu0
      %v3136 = vpop.f32.mrf.mxu0
      %v3137 = vadd.f32 0.0, %v3136
      %v3138 = vpop.f32.mrf.mxu0
      %3139 = vmatprep.mubr.bf16.mxu0 0
      %3140 = vmatmul.mubr.bf16.gmra.mxu0 %v2985
      %v3141 = vpop.f32.mrf.mxu0
      %v3142 = vadd.f32 0.0, %v3141
      %v3143 = vpop.f32.mrf.mxu0
      %v3144 = vpop.f32.mrf.mxu0
      %v3145 = vadd.f32 0.0, %v3144
      %v3146 = vpop.f32.mrf.mxu0
      %3147 = vmatprep.mubr.bf16.mxu0 0
      %3148 = vmatmul.mubr.bf16.gmra.mxu0 %v2986
      %v3149 = vpop.f32.mrf.mxu0
      %v3150 = vadd.f32 0.0, %v3149
      %v3151 = vpop.f32.mrf.mxu0
      %v3152 = vpop.f32.mrf.mxu0
      %v3153 = vadd.f32 0.0, %v3152
      %v3154 = vpop.f32.mrf.mxu0
      %3155 = vmatprep.mubr.bf16.mxu0 0
      %3156 = vmatmul.mubr.bf16.gmra.mxu0 %v2987
      %v3157 = vpop.f32.mrf.mxu0
      %v3158 = vadd.f32 0.0, %v3157
      %v3159 = vpop.f32.mrf.mxu0
      %v3160 = vpop.f32.mrf.mxu0
      %v3161 = vadd.f32 0.0, %v3160
      %v3162 = vpop.f32.mrf.mxu0
      %3163 = vmatprep.mubr.bf16.mxu0 0
      %3164 = vmatmul.mubr.bf16.gmra.mxu0 %v2988
      %v3165 = vpop.f32.mrf.mxu0
      %v3166 = vadd.f32 0.0, %v3165
      %v3167 = vpop.f32.mrf.mxu0
      %v3168 = vpop.f32.mrf.mxu0
      %v3169 = vadd.f32 0.0, %v3168
      %v3170 = vpop.f32.mrf.mxu0
      %3171 = vmatprep.mubr.bf16.mxu0 0
      %3172 = vmatmul.mubr.bf16.gmra.mxu0 %v2989
      %v3173 = vpop.f32.mrf.mxu0
      %v3174 = vadd.f32 0.0, %v3173
      %v3175 = vpop.f32.mrf.mxu0
      %v3176 = vpop.f32.mrf.mxu0
      %v3177 = vadd.f32 0.0, %v3176
      %v3178 = vpop.f32.mrf.mxu0
      %3179 = vmatprep.mubr.bf16.mxu0 0
      %3180 = vmatmul.mubr.bf16.gmra.mxu0 %v2990
      %v3181 = vpop.f32.mrf.mxu0
      %v3182 = vadd.f32 0.0, %v3181
      %v3183 = vpop.f32.mrf.mxu0
      %v3184 = vpop.f32.mrf.mxu0
      %v3185 = vadd.f32 0.0, %v3184
      %v3186 = vpop.f32.mrf.mxu0
      %3187 = vmatprep.mubr.bf16.mxu0 0
      %3188 = vmatmul.mubr.bf16.gmra.mxu0 %v2991
      %v3189 = vpop.f32.mrf.mxu0
      %v3190 = vadd.f32 0.0, %v3189
      %v3191 = vpop.f32.mrf.mxu0
      %v3192 = vpop.f32.mrf.mxu0
      %v3193 = vadd.f32 0.0, %v3192
      %v3194 = vpop.f32.mrf.mxu0
      %3195 = vmatprep.mubr.bf16.mxu0 0
      %3196 = vmatmul.mubr.bf16.gmra.mxu0 %v2992
      %v3197 = vpop.f32.mrf.mxu0
      %v3198 = vadd.f32 0.0, %v3197
      %v3199 = vpop.f32.mrf.mxu0
      %v3200 = vpop.f32.mrf.mxu0
      %v3201 = vadd.f32 0.0, %v3200
      %v3202 = vpop.f32.mrf.mxu0
      %3203 = vmatprep.mubr.bf16.mxu0 0
      %3204 = vmatmul.mubr.bf16.gmra.mxu0 %v2993
      %v3205 = vpop.f32.mrf.mxu0
      %v3206 = vadd.f32 0.0, %v3205
      %v3207 = vpop.f32.mrf.mxu0
      %v3208 = vpop.f32.mrf.mxu0
      %v3209 = vadd.f32 0.0, %v3208
      %v3210 = vpop.f32.mrf.mxu0
      %3211 = vmatprep.mubr.bf16.mxu0 0
      %3212 = vmatmul.mubr.bf16.gmra.mxu0 %v2994
      %v3213 = vpop.f32.mrf.mxu0
      %v3214 = vadd.f32 0.0, %v3213
      %v3215 = vpop.f32.mrf.mxu0
      %v3216 = vpop.f32.mrf.mxu0
      %v3217 = vadd.f32 0.0, %v3216
      %v3218 = vpop.f32.mrf.mxu0
      %3219 = vdwg.mxu0
      %v3220 = vadd.f32 %v2499, %v3094
      %v3221 = vadd.f32 %v2500, %v3097
      %v3222 = vadd.f32 %v2501, %v3102
      %v3223 = vadd.f32 %v2502, %v3105
      %v3224 = vadd.f32 %v2503, %v3110
      %v3225 = vadd.f32 %v2504, %v3113
      %v3226 = vadd.f32 %v2505, %v3118
      %v3227 = vadd.f32 %v2506, %v3121
      %v3228 = vadd.f32 %v2507, %v3126
      %v3229 = vadd.f32 %v2508, %v3129
      %v3230 = vadd.f32 %v2509, %v3134
      %v3231 = vadd.f32 %v2510, %v3137
      %v3232 = vadd.f32 %v2511, %v3142
      %v3233 = vadd.f32 %v2512, %v3145
      %v3234 = vadd.f32 %v2513, %v3150
      %v3235 = vadd.f32 %v2514, %v3153
      %v3236 = vadd.f32 %v2515, %v3158
      %v3237 = vadd.f32 %v2516, %v3161
      %v3238 = vadd.f32 %v2517, %v3166
      %v3239 = vadd.f32 %v2518, %v3169
      %v3240 = vadd.f32 %v2519, %v3174
      %v3241 = vadd.f32 %v2520, %v3177
      %v3242 = vadd.f32 %v2521, %v3182
      %v3243 = vadd.f32 %v2522, %v3185
      %v3244 = vadd.f32 %v2523, %v3190
      %v3245 = vadd.f32 %v2524, %v3193
      %v3246 = vadd.f32 %v2525, %v3198
      %v3247 = vadd.f32 %v2526, %v3201
      %v3248 = vadd.f32 %v2527, %v3206
      %v3249 = vadd.f32 %v2528, %v3209
      %v3250 = vadd.f32 %v2529, %v3214
      %v3251 = vadd.f32 %v2530, %v3217
      %v3252 = vld [vmem:[%s3 + $0x100] sm:$0xf]
      %v3253 = vld [vmem:[%s3 + $0x104] sm:$0xf]
      %v3254 = vld [vmem:[%s3 + $0x108] sm:$0xf]
      %v3255 = vld [vmem:[%s3 + $0x10c] sm:$0xf]
      %v3256 = vld [vmem:[%s3 + $0x110] sm:$0xf]
      %v3257 = vld [vmem:[%s3 + $0x114] sm:$0xf]
      %v3258 = vld [vmem:[%s3 + $0x118] sm:$0xf]
      %v3259 = vld [vmem:[%s3 + $0x11c] sm:$0xf]
      %v3260 = vld [vmem:[%s3 + $0x120] sm:$0xf]
      %v3261 = vld [vmem:[%s3 + $0x124] sm:$0xf]
      %v3262 = vld [vmem:[%s3 + $0x128] sm:$0xf]
      %v3263 = vld [vmem:[%s3 + $0x12c] sm:$0xf]
      %v3264 = vld [vmem:[%s3 + $0x130] sm:$0xf]
      %v3265 = vld [vmem:[%s3 + $0x134] sm:$0xf]
      %v3266 = vld [vmem:[%s3 + $0x138] sm:$0xf]
      %v3267 = vld [vmem:[%s3 + $0x13c] sm:$0xf]
      %v3300 = vunpack.c.l.b16 %v2532
      %v3301 = vunpack.c.l.b16 %v2533
      %v3302 = vunpack.c.l.b16 %v2535
      %v3303 = vunpack.c.l.b16 %v2536
      %v3304 = vunpack.c.l.b16 %v2538
      %v3305 = vunpack.c.l.b16 %v2539
      %v3306 = vunpack.c.l.b16 %v2541
      %v3307 = vunpack.c.l.b16 %v2542
      %v3308 = vunpack.c.l.b16 %v2544
      %v3309 = vunpack.c.l.b16 %v2545
      %v3310 = vunpack.c.l.b16 %v2547
      %v3311 = vunpack.c.l.b16 %v2548
      %v3312 = vunpack.c.l.b16 %v2550
      %v3313 = vunpack.c.l.b16 %v2551
      %v3314 = vunpack.c.l.b16 %v2553
      %v3315 = vunpack.c.l.b16 %v2554
      %v3316 = vunpack.c.l.b16 %v2556
      %v3317 = vunpack.c.l.b16 %v2557
      %v3318 = vunpack.c.l.b16 %v2559
      %v3319 = vunpack.c.l.b16 %v2560
      %v3320 = vunpack.c.l.b16 %v2562
      %v3321 = vunpack.c.l.b16 %v2563
      %v3322 = vunpack.c.l.b16 %v2565
      %v3323 = vunpack.c.l.b16 %v2566
      %v3324 = vunpack.c.l.b16 %v2568
      %v3325 = vunpack.c.l.b16 %v2569
      %v3326 = vunpack.c.l.b16 %v2571
      %v3327 = vunpack.c.l.b16 %v2572
      %v3328 = vunpack.c.l.b16 %v2574
      %v3329 = vunpack.c.l.b16 %v2575
      %v3330 = vunpack.c.l.b16 %v2577
      %v3331 = vunpack.c.l.b16 %v2578
      %v3332 = vpack.c.b16 %v3301, %v3300
      %v3333 = vpack.c.b16 %v3303, %v3302
      %v3334 = vpack.c.b16 %v3305, %v3304
      %v3335 = vpack.c.b16 %v3307, %v3306
      %v3336 = vpack.c.b16 %v3309, %v3308
      %v3337 = vpack.c.b16 %v3311, %v3310
      %v3338 = vpack.c.b16 %v3313, %v3312
      %v3339 = vpack.c.b16 %v3315, %v3314
      %v3340 = vpack.c.b16 %v3317, %v3316
      %v3341 = vpack.c.b16 %v3319, %v3318
      %v3342 = vpack.c.b16 %v3321, %v3320
      %v3343 = vpack.c.b16 %v3323, %v3322
      %v3344 = vpack.c.b16 %v3325, %v3324
      %v3345 = vpack.c.b16 %v3327, %v3326
      %v3346 = vpack.c.b16 %v3329, %v3328
      %v3347 = vpack.c.b16 %v3331, %v3330
      %v3380 = vunpack.c.l.b16 %v3252
      %v3381 = vunpack.c.l.b16 %v3253
      %v3382 = vunpack.c.l.b16 %v3254
      %v3383 = vunpack.c.l.b16 %v3255
      %v3384 = vunpack.c.l.b16 %v3256
      %v3385 = vunpack.c.l.b16 %v3257
      %v3386 = vunpack.c.l.b16 %v3258
      %v3387 = vunpack.c.l.b16 %v3259
      %v3388 = vunpack.c.l.b16 %v3260
      %v3389 = vunpack.c.l.b16 %v3261
      %v3390 = vunpack.c.l.b16 %v3262
      %v3391 = vunpack.c.l.b16 %v3263
      %v3392 = vunpack.c.l.b16 %v3264
      %v3393 = vunpack.c.l.b16 %v3265
      %v3394 = vunpack.c.l.b16 %v3266
      %v3395 = vunpack.c.l.b16 %v3267
      %v3396 = vpack.c.b16 %v3381, %v3380
      %v3397 = vpack.c.b16 %v3383, %v3382
      %v3398 = vpack.c.b16 %v3385, %v3384
      %v3399 = vpack.c.b16 %v3387, %v3386
      %v3400 = vpack.c.b16 %v3389, %v3388
      %v3401 = vpack.c.b16 %v3391, %v3390
      %v3402 = vpack.c.b16 %v3393, %v3392
      %v3403 = vpack.c.b16 %v3395, %v3394
      %3412 = vmatprep.subr.bf16.mxu0 0
      %3413 = vmatpush1.bf16.msra.mxu0 %v3403
      %3414 = vmatprep.subr.bf16.mxu0 0
      %3415 = vmatpush1.bf16.msra.mxu0 %v3402
      %3416 = vmatprep.subr.bf16.mxu0 0
      %3417 = vmatpush1.bf16.msra.mxu0 %v3401
      %3418 = vmatprep.subr.bf16.mxu0 0
      %3419 = vmatpush1.bf16.msra.mxu0 %v3400
      %3420 = vmatprep.subr.bf16.mxu0 0
      %3421 = vmatpush1.bf16.msra.mxu0 %v3399
      %3422 = vmatprep.subr.bf16.mxu0 0
      %3423 = vmatpush1.bf16.msra.mxu0 %v3398
      %3424 = vmatprep.subr.bf16.mxu0 0
      %3425 = vmatpush1.bf16.msra.mxu0 %v3397
      %3426 = vmatprep.subr.bf16.mxu0 0
      %3427 = vmatpush1.bf16.msra.mxu0 %v3396
      %3428 = vmatprep.subr.bf16.mxu0 0
      %3429 = vmatpush2.bf16.msra.mxu0 0
      %3430 = vmatprep.subr.bf16.mxu0 0
      %3431 = vmatpush2.bf16.msra.mxu0 0
      %3432 = vmatprep.subr.bf16.mxu0 0
      %3433 = vmatpush2.bf16.msra.mxu0 0
      %3434 = vmatprep.subr.bf16.mxu0 0
      %3435 = vmatpush2.bf16.msra.mxu0 0
      %3436 = vmatprep.subr.bf16.mxu0 0
      %3437 = vmatpush2.bf16.msra.mxu0 0
      %3438 = vmatprep.subr.bf16.mxu0 0
      %3439 = vmatpush2.bf16.msra.mxu0 0
      %3440 = vmatprep.subr.bf16.mxu0 0
      %3441 = vmatpush2.bf16.msra.mxu0 0
      %3442 = vmatprep.subr.bf16.mxu0 0
      %3443 = vmatpush2.bf16.msra.mxu0 0
      %3444 = vmatprep.mubr.bf16.mxu0 0
      %3445 = vmatmul.mubr.bf16.gmra.mxu0 %v3332
      %v3446 = vpop.f32.mrf.mxu0
      %v3447 = vadd.f32 0.0, %v3446
      %v3448 = vpop.f32.mrf.mxu0
      %v3449 = vpop.f32.mrf.mxu0
      %v3450 = vadd.f32 0.0, %v3449
      %v3451 = vpop.f32.mrf.mxu0
      %3452 = vmatprep.mubr.bf16.mxu0 0
      %3453 = vmatmul.mubr.bf16.gmra.mxu0 %v3333
      %v3454 = vpop.f32.mrf.mxu0
      %v3455 = vadd.f32 0.0, %v3454
      %v3456 = vpop.f32.mrf.mxu0
      %v3457 = vpop.f32.mrf.mxu0
      %v3458 = vadd.f32 0.0, %v3457
      %v3459 = vpop.f32.mrf.mxu0
      %3460 = vmatprep.mubr.bf16.mxu0 0
      %3461 = vmatmul.mubr.bf16.gmra.mxu0 %v3334
      %v3462 = vpop.f32.mrf.mxu0
      %v3463 = vadd.f32 0.0, %v3462
      %v3464 = vpop.f32.mrf.mxu0
      %v3465 = vpop.f32.mrf.mxu0
      %v3466 = vadd.f32 0.0, %v3465
      %v3467 = vpop.f32.mrf.mxu0
      %3468 = vmatprep.mubr.bf16.mxu0 0
      %3469 = vmatmul.mubr.bf16.gmra.mxu0 %v3335
      %v3470 = vpop.f32.mrf.mxu0
      %v3471 = vadd.f32 0.0, %v3470
      %v3472 = vpop.f32.mrf.mxu0
      %v3473 = vpop.f32.mrf.mxu0
      %v3474 = vadd.f32 0.0, %v3473
      %v3475 = vpop.f32.mrf.mxu0
      %3476 = vmatprep.mubr.bf16.mxu0 0
      %3477 = vmatmul.mubr.bf16.gmra.mxu0 %v3336
      %v3478 = vpop.f32.mrf.mxu0
      %v3479 = vadd.f32 0.0, %v3478
      %v3480 = vpop.f32.mrf.mxu0
      %v3481 = vpop.f32.mrf.mxu0
      %v3482 = vadd.f32 0.0, %v3481
      %v3483 = vpop.f32.mrf.mxu0
      %3484 = vmatprep.mubr.bf16.mxu0 0
      %3485 = vmatmul.mubr.bf16.gmra.mxu0 %v3337
      %v3486 = vpop.f32.mrf.mxu0
      %v3487 = vadd.f32 0.0, %v3486
      %v3488 = vpop.f32.mrf.mxu0
      %v3489 = vpop.f32.mrf.mxu0
      %v3490 = vadd.f32 0.0, %v3489
      %v3491 = vpop.f32.mrf.mxu0
      %3492 = vmatprep.mubr.bf16.mxu0 0
      %3493 = vmatmul.mubr.bf16.gmra.mxu0 %v3338
      %v3494 = vpop.f32.mrf.mxu0
      %v3495 = vadd.f32 0.0, %v3494
      %v3496 = vpop.f32.mrf.mxu0
      %v3497 = vpop.f32.mrf.mxu0
      %v3498 = vadd.f32 0.0, %v3497
      %v3499 = vpop.f32.mrf.mxu0
      %3500 = vmatprep.mubr.bf16.mxu0 0
      %3501 = vmatmul.mubr.bf16.gmra.mxu0 %v3339
      %v3502 = vpop.f32.mrf.mxu0
      %v3503 = vadd.f32 0.0, %v3502
      %v3504 = vpop.f32.mrf.mxu0
      %v3505 = vpop.f32.mrf.mxu0
      %v3506 = vadd.f32 0.0, %v3505
      %v3507 = vpop.f32.mrf.mxu0
      %3508 = vmatprep.mubr.bf16.mxu0 0
      %3509 = vmatmul.mubr.bf16.gmra.mxu0 %v3340
      %v3510 = vpop.f32.mrf.mxu0
      %v3511 = vadd.f32 0.0, %v3510
      %v3512 = vpop.f32.mrf.mxu0
      %v3513 = vpop.f32.mrf.mxu0
      %v3514 = vadd.f32 0.0, %v3513
      %v3515 = vpop.f32.mrf.mxu0
      %3516 = vmatprep.mubr.bf16.mxu0 0
      %3517 = vmatmul.mubr.bf16.gmra.mxu0 %v3341
      %v3518 = vpop.f32.mrf.mxu0
      %v3519 = vadd.f32 0.0, %v3518
      %v3520 = vpop.f32.mrf.mxu0
      %v3521 = vpop.f32.mrf.mxu0
      %v3522 = vadd.f32 0.0, %v3521
      %v3523 = vpop.f32.mrf.mxu0
      %3524 = vmatprep.mubr.bf16.mxu0 0
      %3525 = vmatmul.mubr.bf16.gmra.mxu0 %v3342
      %v3526 = vpop.f32.mrf.mxu0
      %v3527 = vadd.f32 0.0, %v3526
      %v3528 = vpop.f32.mrf.mxu0
      %v3529 = vpop.f32.mrf.mxu0
      %v3530 = vadd.f32 0.0, %v3529
      %v3531 = vpop.f32.mrf.mxu0
      %3532 = vmatprep.mubr.bf16.mxu0 0
      %3533 = vmatmul.mubr.bf16.gmra.mxu0 %v3343
      %v3534 = vpop.f32.mrf.mxu0
      %v3535 = vadd.f32 0.0, %v3534
      %v3536 = vpop.f32.mrf.mxu0
      %v3537 = vpop.f32.mrf.mxu0
      %v3538 = vadd.f32 0.0, %v3537
      %v3539 = vpop.f32.mrf.mxu0
      %3540 = vmatprep.mubr.bf16.mxu0 0
      %3541 = vmatmul.mubr.bf16.gmra.mxu0 %v3344
      %v3542 = vpop.f32.mrf.mxu0
      %v3543 = vadd.f32 0.0, %v3542
      %v3544 = vpop.f32.mrf.mxu0
      %v3545 = vpop.f32.mrf.mxu0
      %v3546 = vadd.f32 0.0, %v3545
      %v3547 = vpop.f32.mrf.mxu0
      %3548 = vmatprep.mubr.bf16.mxu0 0
      %3549 = vmatmul.mubr.bf16.gmra.mxu0 %v3345
      %v3550 = vpop.f32.mrf.mxu0
      %v3551 = vadd.f32 0.0, %v3550
      %v3552 = vpop.f32.mrf.mxu0
      %v3553 = vpop.f32.mrf.mxu0
      %v3554 = vadd.f32 0.0, %v3553
      %v3555 = vpop.f32.mrf.mxu0
      %3556 = vmatprep.mubr.bf16.mxu0 0
      %3557 = vmatmul.mubr.bf16.gmra.mxu0 %v3346
      %v3558 = vpop.f32.mrf.mxu0
      %v3559 = vadd.f32 0.0, %v3558
      %v3560 = vpop.f32.mrf.mxu0
      %v3561 = vpop.f32.mrf.mxu0
      %v3562 = vadd.f32 0.0, %v3561
      %v3563 = vpop.f32.mrf.mxu0
      %3564 = vmatprep.mubr.bf16.mxu0 0
      %3565 = vmatmul.mubr.bf16.gmra.mxu0 %v3347
      %v3566 = vpop.f32.mrf.mxu0
      %v3567 = vadd.f32 0.0, %v3566
      %v3568 = vpop.f32.mrf.mxu0
      %v3569 = vpop.f32.mrf.mxu0
      %v3570 = vadd.f32 0.0, %v3569
      %v3571 = vpop.f32.mrf.mxu0
      %3572 = vdwg.mxu0
      %v3573 = vadd.f32 %v3220, %v3447
      %v3574 = vadd.f32 %v3221, %v3450
      %v3575 = vadd.f32 %v3222, %v3455
      %v3576 = vadd.f32 %v3223, %v3458
      %v3577 = vadd.f32 %v3224, %v3463
      %v3578 = vadd.f32 %v3225, %v3466
      %v3579 = vadd.f32 %v3226, %v3471
      %v3580 = vadd.f32 %v3227, %v3474
      %v3581 = vadd.f32 %v3228, %v3479
      %v3582 = vadd.f32 %v3229, %v3482
      %v3583 = vadd.f32 %v3230, %v3487
      %v3584 = vadd.f32 %v3231, %v3490
      %v3585 = vadd.f32 %v3232, %v3495
      %v3586 = vadd.f32 %v3233, %v3498
      %v3587 = vadd.f32 %v3234, %v3503
      %v3588 = vadd.f32 %v3235, %v3506
      %v3589 = vadd.f32 %v3236, %v3511
      %v3590 = vadd.f32 %v3237, %v3514
      %v3591 = vadd.f32 %v3238, %v3519
      %v3592 = vadd.f32 %v3239, %v3522
      %v3593 = vadd.f32 %v3240, %v3527
      %v3594 = vadd.f32 %v3241, %v3530
      %v3595 = vadd.f32 %v3242, %v3535
      %v3596 = vadd.f32 %v3243, %v3538
      %v3597 = vadd.f32 %v3244, %v3543
      %v3598 = vadd.f32 %v3245, %v3546
      %v3599 = vadd.f32 %v3246, %v3551
      %v3600 = vadd.f32 %v3247, %v3554
      %v3601 = vadd.f32 %v3248, %v3559
      %v3602 = vadd.f32 %v3249, %v3562
      %v3603 = vadd.f32 %v3250, %v3567
      %v3604 = vadd.f32 %v3251, %v3570
      %v3605 = vld [vmem:[%s729 + $0x4] sm:$0xf]
      %v3606 = vld [vmem:[%s729 + $0x8] sm:$0xf]
      %v3607 = vld [vmem:[%s729 + $0xc] sm:$0x1]
      %v3608 = vld [vmem:[%s729 + $0x14] sm:$0xf]
      %v3609 = vld [vmem:[%s729 + $0x18] sm:$0xf]
      %v3610 = vld [vmem:[%s729 + $0x1c] sm:$0x1]
      %v3611 = vld [vmem:[%s729 + $0x24] sm:$0xf]
      %v3612 = vld [vmem:[%s729 + $0x28] sm:$0xf]
      %v3613 = vld [vmem:[%s729 + $0x2c] sm:$0x1]
      %v3614 = vld [vmem:[%s729 + $0x34] sm:$0xf]
      %v3615 = vld [vmem:[%s729 + $0x38] sm:$0xf]
      %v3616 = vld [vmem:[%s729 + $0x3c] sm:$0x1]
      %v3617 = vld [vmem:[%s729 + $0x44] sm:$0xf]
      %v3618 = vld [vmem:[%s729 + $0x48] sm:$0xf]
      %v3619 = vld [vmem:[%s729 + $0x4c] sm:$0x1]
      %v3620 = vld [vmem:[%s729 + $0x54] sm:$0xf]
      %v3621 = vld [vmem:[%s729 + $0x58] sm:$0xf]
      %v3622 = vld [vmem:[%s729 + $0x5c] sm:$0x1]
      %v3623 = vld [vmem:[%s729 + $0x64] sm:$0xf]
      %v3624 = vld [vmem:[%s729 + $0x68] sm:$0xf]
      %v3625 = vld [vmem:[%s729 + $0x6c] sm:$0x1]
      %v3626 = vld [vmem:[%s729 + $0x74] sm:$0xf]
      %v3627 = vld [vmem:[%s729 + $0x78] sm:$0xf]
      %v3628 = vld [vmem:[%s729 + $0x7c] sm:$0x1]
      %v3629 = vld [vmem:[%s729 + $0x84] sm:$0xf]
      %v3630 = vld [vmem:[%s729 + $0x88] sm:$0xf]
      %v3631 = vld [vmem:[%s729 + $0x8c] sm:$0x1]
      %v3632 = vld [vmem:[%s729 + $0x94] sm:$0xf]
      %v3633 = vld [vmem:[%s729 + $0x98] sm:$0xf]
      %v3634 = vld [vmem:[%s729 + $0x9c] sm:$0x1]
      %v3635 = vld [vmem:[%s729 + $0xa4] sm:$0xf]
      %v3636 = vld [vmem:[%s729 + $0xa8] sm:$0xf]
      %v3637 = vld [vmem:[%s729 + $0xac] sm:$0x1]
      %v3638 = vld [vmem:[%s729 + $0xb4] sm:$0xf]
      %v3639 = vld [vmem:[%s729 + $0xb8] sm:$0xf]
      %v3640 = vld [vmem:[%s729 + $0xbc] sm:$0x1]
      %v3641 = vld [vmem:[%s729 + $0xc4] sm:$0xf]
      %v3642 = vld [vmem:[%s729 + $0xc8] sm:$0xf]
      %v3643 = vld [vmem:[%s729 + $0xcc] sm:$0x1]
      %v3644 = vld [vmem:[%s729 + $0xd4] sm:$0xf]
      %v3645 = vld [vmem:[%s729 + $0xd8] sm:$0xf]
      %v3646 = vld [vmem:[%s729 + $0xdc] sm:$0x1]
      %v3647 = vld [vmem:[%s729 + $0xe4] sm:$0xf]
      %v3648 = vld [vmem:[%s729 + $0xe8] sm:$0xf]
      %v3649 = vld [vmem:[%s729 + $0xec] sm:$0x1]
      %v3650 = vld [vmem:[%s729 + $0xf4] sm:$0xf]
      %v3651 = vld [vmem:[%s729 + $0xf8] sm:$0xf]
      %v3652 = vld [vmem:[%s729 + $0xfc] sm:$0x1]
      %v3654 = vshrl.u32 %v3605, 16
      %v3656 = vrot.slane %v3654, 4
      %v3657 = vshll.u32 %v3605, 16
      %v3659 = vrot.slane %v3657, 5
      %v3660 = vor.u32 %v3656, %v3659
      %v3661 = vrot.slane %v3660, 4
      %v3663 = vshll.u32 %v3606, 16
      %v3665 = vrot.slane %v3663, 5
      %v3666 = vsel %vm1825, %v3661, %v3665
      %v3667 = vshrl.u32 %v3606, 16
      %v3669 = vrot.slane %v3667, 4
      %v3670 = vor.u32 %v3669, %v3665
      %v3671 = vrot.slane %v3670, 4
      %v3673 = vshll.u32 %v3607, 16
      %v3675 = vrot.slane %v3673, 5
      %v3676 = vsel %vm1825, %v3671, %v3675
      %v3678 = vshrl.u32 %v3608, 16
      %v3680 = vrot.slane %v3678, 4
      %v3681 = vshll.u32 %v3608, 16
      %v3683 = vrot.slane %v3681, 5
      %v3684 = vor.u32 %v3680, %v3683
      %v3685 = vrot.slane %v3684, 4
      %v3687 = vshll.u32 %v3609, 16
      %v3689 = vrot.slane %v3687, 5
      %v3690 = vsel %vm1825, %v3685, %v3689
      %v3691 = vshrl.u32 %v3609, 16
      %v3693 = vrot.slane %v3691, 4
      %v3694 = vor.u32 %v3693, %v3689
      %v3695 = vrot.slane %v3694, 4
      %v3697 = vshll.u32 %v3610, 16
      %v3699 = vrot.slane %v3697, 5
      %v3700 = vsel %vm1825, %v3695, %v3699
      %v3702 = vshrl.u32 %v3611, 16
      %v3704 = vrot.slane %v3702, 4
      %v3705 = vshll.u32 %v3611, 16
      %v3707 = vrot.slane %v3705, 5
      %v3708 = vor.u32 %v3704, %v3707
      %v3709 = vrot.slane %v3708, 4
      %v3711 = vshll.u32 %v3612, 16
      %v3713 = vrot.slane %v3711, 5
      %v3714 = vsel %vm1825, %v3709, %v3713
      %v3715 = vshrl.u32 %v3612, 16
      %v3717 = vrot.slane %v3715, 4
      %v3718 = vor.u32 %v3717, %v3713
      %v3719 = vrot.slane %v3718, 4
      %v3721 = vshll.u32 %v3613, 16
      %v3723 = vrot.slane %v3721, 5
      %v3724 = vsel %vm1825, %v3719, %v3723
      %v3726 = vshrl.u32 %v3614, 16
      %v3728 = vrot.slane %v3726, 4
      %v3729 = vshll.u32 %v3614, 16
      %v3731 = vrot.slane %v3729, 5
      %v3732 = vor.u32 %v3728, %v3731
      %v3733 = vrot.slane %v3732, 4
      %v3735 = vshll.u32 %v3615, 16
      %v3737 = vrot.slane %v3735, 5
      %v3738 = vsel %vm1825, %v3733, %v3737
      %v3739 = vshrl.u32 %v3615, 16
      %v3741 = vrot.slane %v3739, 4
      %v3742 = vor.u32 %v3741, %v3737
      %v3743 = vrot.slane %v3742, 4
      %v3745 = vshll.u32 %v3616, 16
      %v3747 = vrot.slane %v3745, 5
      %v3748 = vsel %vm1825, %v3743, %v3747
      %v3750 = vshrl.u32 %v3617, 16
      %v3752 = vrot.slane %v3750, 4
      %v3753 = vshll.u32 %v3617, 16
      %v3755 = vrot.slane %v3753, 5
      %v3756 = vor.u32 %v3752, %v3755
      %v3757 = vrot.slane %v3756, 4
      %v3759 = vshll.u32 %v3618, 16
      %v3761 = vrot.slane %v3759, 5
      %v3762 = vsel %vm1825, %v3757, %v3761
      %v3763 = vshrl.u32 %v3618, 16
      %v3765 = vrot.slane %v3763, 4
      %v3766 = vor.u32 %v3765, %v3761
      %v3767 = vrot.slane %v3766, 4
      %v3769 = vshll.u32 %v3619, 16
      %v3771 = vrot.slane %v3769, 5
      %v3772 = vsel %vm1825, %v3767, %v3771
      %v3774 = vshrl.u32 %v3620, 16
      %v3776 = vrot.slane %v3774, 4
      %v3777 = vshll.u32 %v3620, 16
      %v3779 = vrot.slane %v3777, 5
      %v3780 = vor.u32 %v3776, %v3779
      %v3781 = vrot.slane %v3780, 4
      %v3783 = vshll.u32 %v3621, 16
      %v3785 = vrot.slane %v3783, 5
      %v3786 = vsel %vm1825, %v3781, %v3785
      %v3787 = vshrl.u32 %v3621, 16
      %v3789 = vrot.slane %v3787, 4
      %v3790 = vor.u32 %v3789, %v3785
      %v3791 = vrot.slane %v3790, 4
      %v3793 = vshll.u32 %v3622, 16
      %v3795 = vrot.slane %v3793, 5
      %v3796 = vsel %vm1825, %v3791, %v3795
      %v3798 = vshrl.u32 %v3623, 16
      %v3800 = vrot.slane %v3798, 4
      %v3801 = vshll.u32 %v3623, 16
      %v3803 = vrot.slane %v3801, 5
      %v3804 = vor.u32 %v3800, %v3803
      %v3805 = vrot.slane %v3804, 4
      %v3807 = vshll.u32 %v3624, 16
      %v3809 = vrot.slane %v3807, 5
      %v3810 = vsel %vm1825, %v3805, %v3809
      %v3811 = vshrl.u32 %v3624, 16
      %v3813 = vrot.slane %v3811, 4
      %v3814 = vor.u32 %v3813, %v3809
      %v3815 = vrot.slane %v3814, 4
      %v3817 = vshll.u32 %v3625, 16
      %v3819 = vrot.slane %v3817, 5
      %v3820 = vsel %vm1825, %v3815, %v3819
      %v3822 = vshrl.u32 %v3626, 16
      %v3824 = vrot.slane %v3822, 4
      %v3825 = vshll.u32 %v3626, 16
      %v3827 = vrot.slane %v3825, 5
      %v3828 = vor.u32 %v3824, %v3827
      %v3829 = vrot.slane %v3828, 4
      %v3831 = vshll.u32 %v3627, 16
      %v3833 = vrot.slane %v3831, 5
      %v3834 = vsel %vm1825, %v3829, %v3833
      %v3835 = vshrl.u32 %v3627, 16
      %v3837 = vrot.slane %v3835, 4
      %v3838 = vor.u32 %v3837, %v3833
      %v3839 = vrot.slane %v3838, 4
      %v3841 = vshll.u32 %v3628, 16
      %v3843 = vrot.slane %v3841, 5
      %v3844 = vsel %vm1825, %v3839, %v3843
      %v3846 = vshrl.u32 %v3629, 16
      %v3848 = vrot.slane %v3846, 4
      %v3849 = vshll.u32 %v3629, 16
      %v3851 = vrot.slane %v3849, 5
      %v3852 = vor.u32 %v3848, %v3851
      %v3853 = vrot.slane %v3852, 4
      %v3855 = vshll.u32 %v3630, 16
      %v3857 = vrot.slane %v3855, 5
      %v3858 = vsel %vm1825, %v3853, %v3857
      %v3859 = vshrl.u32 %v3630, 16
      %v3861 = vrot.slane %v3859, 4
      %v3862 = vor.u32 %v3861, %v3857
      %v3863 = vrot.slane %v3862, 4
      %v3865 = vshll.u32 %v3631, 16
      %v3867 = vrot.slane %v3865, 5
      %v3868 = vsel %vm1825, %v3863, %v3867
      %v3870 = vshrl.u32 %v3632, 16
      %v3872 = vrot.slane %v3870, 4
      %v3873 = vshll.u32 %v3632, 16
      %v3875 = vrot.slane %v3873, 5
      %v3876 = vor.u32 %v3872, %v3875
      %v3877 = vrot.slane %v3876, 4
      %v3879 = vshll.u32 %v3633, 16
      %v3881 = vrot.slane %v3879, 5
      %v3882 = vsel %vm1825, %v3877, %v3881
      %v3883 = vshrl.u32 %v3633, 16
      %v3885 = vrot.slane %v3883, 4
      %v3886 = vor.u32 %v3885, %v3881
      %v3887 = vrot.slane %v3886, 4
      %v3889 = vshll.u32 %v3634, 16
      %v3891 = vrot.slane %v3889, 5
      %v3892 = vsel %vm1825, %v3887, %v3891
      %v3894 = vshrl.u32 %v3635, 16
      %v3896 = vrot.slane %v3894, 4
      %v3897 = vshll.u32 %v3635, 16
      %v3899 = vrot.slane %v3897, 5
      %v3900 = vor.u32 %v3896, %v3899
      %v3901 = vrot.slane %v3900, 4
      %v3903 = vshll.u32 %v3636, 16
      %v3905 = vrot.slane %v3903, 5
      %v3906 = vsel %vm1825, %v3901, %v3905
      %v3907 = vshrl.u32 %v3636, 16
      %v3909 = vrot.slane %v3907, 4
      %v3910 = vor.u32 %v3909, %v3905
      %v3911 = vrot.slane %v3910, 4
      %v3913 = vshll.u32 %v3637, 16
      %v3915 = vrot.slane %v3913, 5
      %v3916 = vsel %vm1825, %v3911, %v3915
      %v3918 = vshrl.u32 %v3638, 16
      %v3920 = vrot.slane %v3918, 4
      %v3921 = vshll.u32 %v3638, 16
      %v3923 = vrot.slane %v3921, 5
      %v3924 = vor.u32 %v3920, %v3923
      %v3925 = vrot.slane %v3924, 4
      %v3927 = vshll.u32 %v3639, 16
      %v3929 = vrot.slane %v3927, 5
      %v3930 = vsel %vm1825, %v3925, %v3929
      %v3931 = vshrl.u32 %v3639, 16
      %v3933 = vrot.slane %v3931, 4
      %v3934 = vor.u32 %v3933, %v3929
      %v3935 = vrot.slane %v3934, 4
      %v3937 = vshll.u32 %v3640, 16
      %v3939 = vrot.slane %v3937, 5
      %v3940 = vsel %vm1825, %v3935, %v3939
      %v3942 = vshrl.u32 %v3641, 16
      %v3944 = vrot.slane %v3942, 4
      %v3945 = vshll.u32 %v3641, 16
      %v3947 = vrot.slane %v3945, 5
      %v3948 = vor.u32 %v3944, %v3947
      %v3949 = vrot.slane %v3948, 4
      %v3951 = vshll.u32 %v3642, 16
      %v3953 = vrot.slane %v3951, 5
      %v3954 = vsel %vm1825, %v3949, %v3953
      %v3955 = vshrl.u32 %v3642, 16
      %v3957 = vrot.slane %v3955, 4
      %v3958 = vor.u32 %v3957, %v3953
      %v3959 = vrot.slane %v3958, 4
      %v3961 = vshll.u32 %v3643, 16
      %v3963 = vrot.slane %v3961, 5
      %v3964 = vsel %vm1825, %v3959, %v3963
      %v3966 = vshrl.u32 %v3644, 16
      %v3968 = vrot.slane %v3966, 4
      %v3969 = vshll.u32 %v3644, 16
      %v3971 = vrot.slane %v3969, 5
      %v3972 = vor.u32 %v3968, %v3971
      %v3973 = vrot.slane %v3972, 4
      %v3975 = vshll.u32 %v3645, 16
      %v3977 = vrot.slane %v3975, 5
      %v3978 = vsel %vm1825, %v3973, %v3977
      %v3979 = vshrl.u32 %v3645, 16
      %v3981 = vrot.slane %v3979, 4
      %v3982 = vor.u32 %v3981, %v3977
      %v3983 = vrot.slane %v3982, 4
      %v3985 = vshll.u32 %v3646, 16
      %v3987 = vrot.slane %v3985, 5
      %v3988 = vsel %vm1825, %v3983, %v3987
      %v3990 = vshrl.u32 %v3647, 16
      %v3992 = vrot.slane %v3990, 4
      %v3993 = vshll.u32 %v3647, 16
      %v3995 = vrot.slane %v3993, 5
      %v3996 = vor.u32 %v3992, %v3995
      %v3997 = vrot.slane %v3996, 4
      %v3999 = vshll.u32 %v3648, 16
      %v4001 = vrot.slane %v3999, 5
      %v4002 = vsel %vm1825, %v3997, %v4001
      %v4003 = vshrl.u32 %v3648, 16
      %v4005 = vrot.slane %v4003, 4
      %v4006 = vor.u32 %v4005, %v4001
      %v4007 = vrot.slane %v4006, 4
      %v4009 = vshll.u32 %v3649, 16
      %v4011 = vrot.slane %v4009, 5
      %v4012 = vsel %vm1825, %v4007, %v4011
      %v4014 = vshrl.u32 %v3650, 16
      %v4016 = vrot.slane %v4014, 4
      %v4017 = vshll.u32 %v3650, 16
      %v4019 = vrot.slane %v4017, 5
      %v4020 = vor.u32 %v4016, %v4019
      %v4021 = vrot.slane %v4020, 4
      %v4023 = vshll.u32 %v3651, 16
      %v4025 = vrot.slane %v4023, 5
      %v4026 = vsel %vm1825, %v4021, %v4025
      %v4027 = vshrl.u32 %v3651, 16
      %v4029 = vrot.slane %v4027, 4
      %v4030 = vor.u32 %v4029, %v4025
      %v4031 = vrot.slane %v4030, 4
      %v4033 = vshll.u32 %v3652, 16
      %v4035 = vrot.slane %v4033, 5
      %v4036 = vsel %vm1825, %v4031, %v4035
      %v4037 = vld [vmem:[%s3 + $0x140] sm:$0xf]
      %v4038 = vld [vmem:[%s3 + $0x144] sm:$0xf]
      %v4039 = vld [vmem:[%s3 + $0x148] sm:$0xf]
      %v4040 = vld [vmem:[%s3 + $0x14c] sm:$0xf]
      %v4041 = vld [vmem:[%s3 + $0x150] sm:$0xf]
      %v4042 = vld [vmem:[%s3 + $0x154] sm:$0xf]
      %v4043 = vld [vmem:[%s3 + $0x158] sm:$0xf]
      %v4044 = vld [vmem:[%s3 + $0x15c] sm:$0xf]
      %v4045 = vld [vmem:[%s3 + $0x160] sm:$0xf]
      %v4046 = vld [vmem:[%s3 + $0x164] sm:$0xf]
      %v4047 = vld [vmem:[%s3 + $0x168] sm:$0xf]
      %v4048 = vld [vmem:[%s3 + $0x16c] sm:$0xf]
      %v4049 = vld [vmem:[%s3 + $0x170] sm:$0xf]
      %v4050 = vld [vmem:[%s3 + $0x174] sm:$0xf]
      %v4051 = vld [vmem:[%s3 + $0x178] sm:$0xf]
      %v4052 = vld [vmem:[%s3 + $0x17c] sm:$0xf]
      %v4053 = vunpack.c.l.b16 %v3666
      %v4054 = vunpack.c.l.b16 %v3676
      %v4055 = vunpack.c.l.b16 %v3690
      %v4056 = vunpack.c.l.b16 %v3700
      %v4057 = vunpack.c.l.b16 %v3714
      %v4058 = vunpack.c.l.b16 %v3724
      %v4059 = vunpack.c.l.b16 %v3738
      %v4060 = vunpack.c.l.b16 %v3748
      %v4061 = vunpack.c.l.b16 %v3762
      %v4062 = vunpack.c.l.b16 %v3772
      %v4063 = vunpack.c.l.b16 %v3786
      %v4064 = vunpack.c.l.b16 %v3796
      %v4065 = vunpack.c.l.b16 %v3810
      %v4066 = vunpack.c.l.b16 %v3820
      %v4067 = vunpack.c.l.b16 %v3834
      %v4068 = vunpack.c.l.b16 %v3844
      %v4069 = vunpack.c.l.b16 %v3858
      %v4070 = vunpack.c.l.b16 %v3868
      %v4071 = vunpack.c.l.b16 %v3882
      %v4072 = vunpack.c.l.b16 %v3892
      %v4073 = vunpack.c.l.b16 %v3906
      %v4074 = vunpack.c.l.b16 %v3916
      %v4075 = vunpack.c.l.b16 %v3930
      %v4076 = vunpack.c.l.b16 %v3940
      %v4077 = vunpack.c.l.b16 %v3954
      %v4078 = vunpack.c.l.b16 %v3964
      %v4079 = vunpack.c.l.b16 %v3978
      %v4080 = vunpack.c.l.b16 %v3988
      %v4081 = vunpack.c.l.b16 %v4002
      %v4082 = vunpack.c.l.b16 %v4012
      %v4083 = vunpack.c.l.b16 %v4026
      %v4084 = vunpack.c.l.b16 %v4036
      %v4085 = vpack.c.b16 %v4054, %v4053
      %v4086 = vpack.c.b16 %v4056, %v4055
      %v4087 = vpack.c.b16 %v4058, %v4057
      %v4088 = vpack.c.b16 %v4060, %v4059
      %v4089 = vpack.c.b16 %v4062, %v4061
      %v4090 = vpack.c.b16 %v4064, %v4063
      %v4091 = vpack.c.b16 %v4066, %v4065
      %v4092 = vpack.c.b16 %v4068, %v4067
      %v4093 = vpack.c.b16 %v4070, %v4069
      %v4094 = vpack.c.b16 %v4072, %v4071
      %v4095 = vpack.c.b16 %v4074, %v4073
      %v4096 = vpack.c.b16 %v4076, %v4075
      %v4097 = vpack.c.b16 %v4078, %v4077
      %v4098 = vpack.c.b16 %v4080, %v4079
      %v4099 = vpack.c.b16 %v4082, %v4081
      %v4100 = vpack.c.b16 %v4084, %v4083
      %v4133 = vunpack.c.l.b16 %v4037
      %v4134 = vunpack.c.l.b16 %v4038
      %v4135 = vunpack.c.l.b16 %v4039
      %v4136 = vunpack.c.l.b16 %v4040
      %v4137 = vunpack.c.l.b16 %v4041
      %v4138 = vunpack.c.l.b16 %v4042
      %v4139 = vunpack.c.l.b16 %v4043
      %v4140 = vunpack.c.l.b16 %v4044
      %v4141 = vunpack.c.l.b16 %v4045
      %v4142 = vunpack.c.l.b16 %v4046
      %v4143 = vunpack.c.l.b16 %v4047
      %v4144 = vunpack.c.l.b16 %v4048
      %v4145 = vunpack.c.l.b16 %v4049
      %v4146 = vunpack.c.l.b16 %v4050
      %v4147 = vunpack.c.l.b16 %v4051
      %v4148 = vunpack.c.l.b16 %v4052
      %v4149 = vpack.c.b16 %v4134, %v4133
      %v4150 = vpack.c.b16 %v4136, %v4135
      %v4151 = vpack.c.b16 %v4138, %v4137
      %v4152 = vpack.c.b16 %v4140, %v4139
      %v4153 = vpack.c.b16 %v4142, %v4141
      %v4154 = vpack.c.b16 %v4144, %v4143
      %v4155 = vpack.c.b16 %v4146, %v4145
      %v4156 = vpack.c.b16 %v4148, %v4147
      %4165 = vmatprep.subr.bf16.mxu0 0
      %4166 = vmatpush1.bf16.msra.mxu0 %v4156
      %4167 = vmatprep.subr.bf16.mxu0 0
      %4168 = vmatpush1.bf16.msra.mxu0 %v4155
      %4169 = vmatprep.subr.bf16.mxu0 0
      %4170 = vmatpush1.bf16.msra.mxu0 %v4154
      %4171 = vmatprep.subr.bf16.mxu0 0
      %4172 = vmatpush1.bf16.msra.mxu0 %v4153
      %4173 = vmatprep.subr.bf16.mxu0 0
      %4174 = vmatpush1.bf16.msra.mxu0 %v4152
      %4175 = vmatprep.subr.bf16.mxu0 0
      %4176 = vmatpush1.bf16.msra.mxu0 %v4151
      %4177 = vmatprep.subr.bf16.mxu0 0
      %4178 = vmatpush1.bf16.msra.mxu0 %v4150
      %4179 = vmatprep.subr.bf16.mxu0 0
      %4180 = vmatpush1.bf16.msra.mxu0 %v4149
      %4181 = vmatprep.subr.bf16.mxu0 0
      %4182 = vmatpush2.bf16.msra.mxu0 0
      %4183 = vmatprep.subr.bf16.mxu0 0
      %4184 = vmatpush2.bf16.msra.mxu0 0
      %4185 = vmatprep.subr.bf16.mxu0 0
      %4186 = vmatpush2.bf16.msra.mxu0 0
      %4187 = vmatprep.subr.bf16.mxu0 0
      %4188 = vmatpush2.bf16.msra.mxu0 0
      %4189 = vmatprep.subr.bf16.mxu0 0
      %4190 = vmatpush2.bf16.msra.mxu0 0
      %4191 = vmatprep.subr.bf16.mxu0 0
      %4192 = vmatpush2.bf16.msra.mxu0 0
      %4193 = vmatprep.subr.bf16.mxu0 0
      %4194 = vmatpush2.bf16.msra.mxu0 0
      %4195 = vmatprep.subr.bf16.mxu0 0
      %4196 = vmatpush2.bf16.msra.mxu0 0
      %4197 = vmatprep.mubr.bf16.mxu0 0
      %4198 = vmatmul.mubr.bf16.gmra.mxu0 %v4085
      %v4199 = vpop.f32.mrf.mxu0
      %v4200 = vadd.f32 0.0, %v4199
      %v4201 = vpop.f32.mrf.mxu0
      %v4202 = vpop.f32.mrf.mxu0
      %v4203 = vadd.f32 0.0, %v4202
      %v4204 = vpop.f32.mrf.mxu0
      %4205 = vmatprep.mubr.bf16.mxu0 0
      %4206 = vmatmul.mubr.bf16.gmra.mxu0 %v4086
      %v4207 = vpop.f32.mrf.mxu0
      %v4208 = vadd.f32 0.0, %v4207
      %v4209 = vpop.f32.mrf.mxu0
      %v4210 = vpop.f32.mrf.mxu0
      %v4211 = vadd.f32 0.0, %v4210
      %v4212 = vpop.f32.mrf.mxu0
      %4213 = vmatprep.mubr.bf16.mxu0 0
      %4214 = vmatmul.mubr.bf16.gmra.mxu0 %v4087
      %v4215 = vpop.f32.mrf.mxu0
      %v4216 = vadd.f32 0.0, %v4215
      %v4217 = vpop.f32.mrf.mxu0
      %v4218 = vpop.f32.mrf.mxu0
      %v4219 = vadd.f32 0.0, %v4218
      %v4220 = vpop.f32.mrf.mxu0
      %4221 = vmatprep.mubr.bf16.mxu0 0
      %4222 = vmatmul.mubr.bf16.gmra.mxu0 %v4088
      %v4223 = vpop.f32.mrf.mxu0
      %v4224 = vadd.f32 0.0, %v4223
      %v4225 = vpop.f32.mrf.mxu0
      %v4226 = vpop.f32.mrf.mxu0
      %v4227 = vadd.f32 0.0, %v4226
      %v4228 = vpop.f32.mrf.mxu0
      %4229 = vmatprep.mubr.bf16.mxu0 0
      %4230 = vmatmul.mubr.bf16.gmra.mxu0 %v4089
      %v4231 = vpop.f32.mrf.mxu0
      %v4232 = vadd.f32 0.0, %v4231
      %v4233 = vpop.f32.mrf.mxu0
      %v4234 = vpop.f32.mrf.mxu0
      %v4235 = vadd.f32 0.0, %v4234
      %v4236 = vpop.f32.mrf.mxu0
      %4237 = vmatprep.mubr.bf16.mxu0 0
      %4238 = vmatmul.mubr.bf16.gmra.mxu0 %v4090
      %v4239 = vpop.f32.mrf.mxu0
      %v4240 = vadd.f32 0.0, %v4239
      %v4241 = vpop.f32.mrf.mxu0
      %v4242 = vpop.f32.mrf.mxu0
      %v4243 = vadd.f32 0.0, %v4242
      %v4244 = vpop.f32.mrf.mxu0
      %4245 = vmatprep.mubr.bf16.mxu0 0
      %4246 = vmatmul.mubr.bf16.gmra.mxu0 %v4091
      %v4247 = vpop.f32.mrf.mxu0
      %v4248 = vadd.f32 0.0, %v4247
      %v4249 = vpop.f32.mrf.mxu0
      %v4250 = vpop.f32.mrf.mxu0
      %v4251 = vadd.f32 0.0, %v4250
      %v4252 = vpop.f32.mrf.mxu0
      %4253 = vmatprep.mubr.bf16.mxu0 0
      %4254 = vmatmul.mubr.bf16.gmra.mxu0 %v4092
      %v4255 = vpop.f32.mrf.mxu0
      %v4256 = vadd.f32 0.0, %v4255
      %v4257 = vpop.f32.mrf.mxu0
      %v4258 = vpop.f32.mrf.mxu0
      %v4259 = vadd.f32 0.0, %v4258
      %v4260 = vpop.f32.mrf.mxu0
      %4261 = vmatprep.mubr.bf16.mxu0 0
      %4262 = vmatmul.mubr.bf16.gmra.mxu0 %v4093
      %v4263 = vpop.f32.mrf.mxu0
      %v4264 = vadd.f32 0.0, %v4263
      %v4265 = vpop.f32.mrf.mxu0
      %v4266 = vpop.f32.mrf.mxu0
      %v4267 = vadd.f32 0.0, %v4266
      %v4268 = vpop.f32.mrf.mxu0
      %4269 = vmatprep.mubr.bf16.mxu0 0
      %4270 = vmatmul.mubr.bf16.gmra.mxu0 %v4094
      %v4271 = vpop.f32.mrf.mxu0
      %v4272 = vadd.f32 0.0, %v4271
      %v4273 = vpop.f32.mrf.mxu0
      %v4274 = vpop.f32.mrf.mxu0
      %v4275 = vadd.f32 0.0, %v4274
      %v4276 = vpop.f32.mrf.mxu0
      %4277 = vmatprep.mubr.bf16.mxu0 0
      %4278 = vmatmul.mubr.bf16.gmra.mxu0 %v4095
      %v4279 = vpop.f32.mrf.mxu0
      %v4280 = vadd.f32 0.0, %v4279
      %v4281 = vpop.f32.mrf.mxu0
      %v4282 = vpop.f32.mrf.mxu0
      %v4283 = vadd.f32 0.0, %v4282
      %v4284 = vpop.f32.mrf.mxu0
      %4285 = vmatprep.mubr.bf16.mxu0 0
      %4286 = vmatmul.mubr.bf16.gmra.mxu0 %v4096
      %v4287 = vpop.f32.mrf.mxu0
      %v4288 = vadd.f32 0.0, %v4287
      %v4289 = vpop.f32.mrf.mxu0
      %v4290 = vpop.f32.mrf.mxu0
      %v4291 = vadd.f32 0.0, %v4290
      %v4292 = vpop.f32.mrf.mxu0
      %4293 = vmatprep.mubr.bf16.mxu0 0
      %4294 = vmatmul.mubr.bf16.gmra.mxu0 %v4097
      %v4295 = vpop.f32.mrf.mxu0
      %v4296 = vadd.f32 0.0, %v4295
      %v4297 = vpop.f32.mrf.mxu0
      %v4298 = vpop.f32.mrf.mxu0
      %v4299 = vadd.f32 0.0, %v4298
      %v4300 = vpop.f32.mrf.mxu0
      %4301 = vmatprep.mubr.bf16.mxu0 0
      %4302 = vmatmul.mubr.bf16.gmra.mxu0 %v4098
      %v4303 = vpop.f32.mrf.mxu0
      %v4304 = vadd.f32 0.0, %v4303
      %v4305 = vpop.f32.mrf.mxu0
      %v4306 = vpop.f32.mrf.mxu0
      %v4307 = vadd.f32 0.0, %v4306
      %v4308 = vpop.f32.mrf.mxu0
      %4309 = vmatprep.mubr.bf16.mxu0 0
      %4310 = vmatmul.mubr.bf16.gmra.mxu0 %v4099
      %v4311 = vpop.f32.mrf.mxu0
      %v4312 = vadd.f32 0.0, %v4311
      %v4313 = vpop.f32.mrf.mxu0
      %v4314 = vpop.f32.mrf.mxu0
      %v4315 = vadd.f32 0.0, %v4314
      %v4316 = vpop.f32.mrf.mxu0
      %4317 = vmatprep.mubr.bf16.mxu0 0
      %4318 = vmatmul.mubr.bf16.gmra.mxu0 %v4100
      %v4319 = vpop.f32.mrf.mxu0
      %v4320 = vadd.f32 0.0, %v4319
      %v4321 = vpop.f32.mrf.mxu0
      %v4322 = vpop.f32.mrf.mxu0
      %v4323 = vadd.f32 0.0, %v4322
      %v4324 = vpop.f32.mrf.mxu0
      %4325 = vdwg.mxu0
      %v4326 = vadd.f32 %v3573, %v4200
      %v4327 = vadd.f32 %v3574, %v4203
      %v4328 = vadd.f32 %v3575, %v4208
      %v4329 = vadd.f32 %v3576, %v4211
      %v4330 = vadd.f32 %v3577, %v4216
      %v4331 = vadd.f32 %v3578, %v4219
      %v4332 = vadd.f32 %v3579, %v4224
      %v4333 = vadd.f32 %v3580, %v4227
      %v4334 = vadd.f32 %v3581, %v4232
      %v4335 = vadd.f32 %v3582, %v4235
      %v4336 = vadd.f32 %v3583, %v4240
      %v4337 = vadd.f32 %v3584, %v4243
      %v4338 = vadd.f32 %v3585, %v4248
      %v4339 = vadd.f32 %v3586, %v4251
      %v4340 = vadd.f32 %v3587, %v4256
      %v4341 = vadd.f32 %v3588, %v4259
      %v4342 = vadd.f32 %v3589, %v4264
      %v4343 = vadd.f32 %v3590, %v4267
      %v4344 = vadd.f32 %v3591, %v4272
      %v4345 = vadd.f32 %v3592, %v4275
      %v4346 = vadd.f32 %v3593, %v4280
      %v4347 = vadd.f32 %v3594, %v4283
      %v4348 = vadd.f32 %v3595, %v4288
      %v4349 = vadd.f32 %v3596, %v4291
      %v4350 = vadd.f32 %v3597, %v4296
      %v4351 = vadd.f32 %v3598, %v4299
      %v4352 = vadd.f32 %v3599, %v4304
      %v4353 = vadd.f32 %v3600, %v4307
      %v4354 = vadd.f32 %v3601, %v4312
      %v4355 = vadd.f32 %v3602, %v4315
      %v4356 = vadd.f32 %v3603, %v4320
      %v4357 = vadd.f32 %v3604, %v4323
      %s4358 = scalar_lea.vmem [#allocation2], 32
      %v4359 = vld [vmem:[%s4358] sm:$0x8]
      %v4360 = vld [vmem:[%s4358 + $0x4] sm:$0xf]
      %v4361 = vld [vmem:[%s4358 + $0x8] sm:$0xf]
      %v4362 = vld [vmem:[%s4358 + $0x10] sm:$0x8]
      %v4363 = vld [vmem:[%s4358 + $0x14] sm:$0xf]
      %v4364 = vld [vmem:[%s4358 + $0x18] sm:$0xf]
      %v4365 = vld [vmem:[%s4358 + $0x20] sm:$0x8]
      %v4366 = vld [vmem:[%s4358 + $0x24] sm:$0xf]
      %v4367 = vld [vmem:[%s4358 + $0x28] sm:$0xf]
      %v4368 = vld [vmem:[%s4358 + $0x30] sm:$0x8]
      %v4369 = vld [vmem:[%s4358 + $0x34] sm:$0xf]
      %v4370 = vld [vmem:[%s4358 + $0x38] sm:$0xf]
      %v4371 = vld [vmem:[%s4358 + $0x40] sm:$0x8]
      %v4372 = vld [vmem:[%s4358 + $0x44] sm:$0xf]
      %v4373 = vld [vmem:[%s4358 + $0x48] sm:$0xf]
      %v4374 = vld [vmem:[%s4358 + $0x50] sm:$0x8]
      %v4375 = vld [vmem:[%s4358 + $0x54] sm:$0xf]
      %v4376 = vld [vmem:[%s4358 + $0x58] sm:$0xf]
      %v4377 = vld [vmem:[%s4358 + $0x60] sm:$0x8]
      %v4378 = vld [vmem:[%s4358 + $0x64] sm:$0xf]
      %v4379 = vld [vmem:[%s4358 + $0x68] sm:$0xf]
      %v4380 = vld [vmem:[%s4358 + $0x70] sm:$0x8]
      %v4381 = vld [vmem:[%s4358 + $0x74] sm:$0xf]
      %v4382 = vld [vmem:[%s4358 + $0x78] sm:$0xf]
      %v4383 = vld [vmem:[%s4358 + $0x80] sm:$0x8]
      %v4384 = vld [vmem:[%s4358 + $0x84] sm:$0xf]
      %v4385 = vld [vmem:[%s4358 + $0x88] sm:$0xf]
      %v4386 = vld [vmem:[%s4358 + $0x90] sm:$0x8]
      %v4387 = vld [vmem:[%s4358 + $0x94] sm:$0xf]
      %v4388 = vld [vmem:[%s4358 + $0x98] sm:$0xf]
      %v4389 = vld [vmem:[%s4358 + $0xa0] sm:$0x8]
      %v4390 = vld [vmem:[%s4358 + $0xa4] sm:$0xf]
      %v4391 = vld [vmem:[%s4358 + $0xa8] sm:$0xf]
      %v4392 = vld [vmem:[%s4358 + $0xb0] sm:$0x8]
      %v4393 = vld [vmem:[%s4358 + $0xb4] sm:$0xf]
      %v4394 = vld [vmem:[%s4358 + $0xb8] sm:$0xf]
      %v4395 = vld [vmem:[%s4358 + $0xc0] sm:$0x8]
      %v4396 = vld [vmem:[%s4358 + $0xc4] sm:$0xf]
      %v4397 = vld [vmem:[%s4358 + $0xc8] sm:$0xf]
      %v4398 = vld [vmem:[%s4358 + $0xd0] sm:$0x8]
      %v4399 = vld [vmem:[%s4358 + $0xd4] sm:$0xf]
      %v4400 = vld [vmem:[%s4358 + $0xd8] sm:$0xf]
      %v4401 = vld [vmem:[%s4358 + $0xe0] sm:$0x8]
      %v4402 = vld [vmem:[%s4358 + $0xe4] sm:$0xf]
      %v4403 = vld [vmem:[%s4358 + $0xe8] sm:$0xf]
      %v4404 = vld [vmem:[%s4358 + $0xf0] sm:$0x8]
      %v4405 = vld [vmem:[%s4358 + $0xf4] sm:$0xf]
      %v4406 = vld [vmem:[%s4358 + $0xf8] sm:$0xf]
      %v4408 = vshrl.u32 %v4359, 16
      %v4410 = vrot.slane %v4408, 7
      %v4411 = vrot.slane %v4410, 4
      %v4413 = vshrl.u32 %v4360, 16
      %v4415 = vrot.slane %v4413, 7
      %v4416 = vshll.u32 %v4360, 16
      %v4418 = vor.u32 %v4415, %v4416
      %v4419 = vsel %vm812, %v4411, %v4418
      %v4420 = vrot.slane %v4415, 4
      %v4422 = vshrl.u32 %v4361, 16
      %v4424 = vrot.slane %v4422, 7
      %v4425 = vshll.u32 %v4361, 16
      %v4427 = vor.u32 %v4424, %v4425
      %v4428 = vsel %vm812, %v4420, %v4427
      %v4430 = vshrl.u32 %v4362, 16
      %v4432 = vrot.slane %v4430, 7
      %v4433 = vrot.slane %v4432, 4
      %v4435 = vshrl.u32 %v4363, 16
      %v4437 = vrot.slane %v4435, 7
      %v4438 = vshll.u32 %v4363, 16
      %v4440 = vor.u32 %v4437, %v4438
      %v4441 = vsel %vm812, %v4433, %v4440
      %v4442 = vrot.slane %v4437, 4
      %v4444 = vshrl.u32 %v4364, 16
      %v4446 = vrot.slane %v4444, 7
      %v4447 = vshll.u32 %v4364, 16
      %v4449 = vor.u32 %v4446, %v4447
      %v4450 = vsel %vm812, %v4442, %v4449
      %v4452 = vshrl.u32 %v4365, 16
      %v4454 = vrot.slane %v4452, 7
      %v4455 = vrot.slane %v4454, 4
      %v4457 = vshrl.u32 %v4366, 16
      %v4459 = vrot.slane %v4457, 7
      %v4460 = vshll.u32 %v4366, 16
      %v4462 = vor.u32 %v4459, %v4460
      %v4463 = vsel %vm812, %v4455, %v4462
      %v4464 = vrot.slane %v4459, 4
      %v4466 = vshrl.u32 %v4367, 16
      %v4468 = vrot.slane %v4466, 7
      %v4469 = vshll.u32 %v4367, 16
      %v4471 = vor.u32 %v4468, %v4469
      %v4472 = vsel %vm812, %v4464, %v4471
      %v4474 = vshrl.u32 %v4368, 16
      %v4476 = vrot.slane %v4474, 7
      %v4477 = vrot.slane %v4476, 4
      %v4479 = vshrl.u32 %v4369, 16
      %v4481 = vrot.slane %v4479, 7
      %v4482 = vshll.u32 %v4369, 16
      %v4484 = vor.u32 %v4481, %v4482
      %v4485 = vsel %vm812, %v4477, %v4484
      %v4486 = vrot.slane %v4481, 4
      %v4488 = vshrl.u32 %v4370, 16
      %v4490 = vrot.slane %v4488, 7
      %v4491 = vshll.u32 %v4370, 16
      %v4493 = vor.u32 %v4490, %v4491
      %v4494 = vsel %vm812, %v4486, %v4493
      %v4496 = vshrl.u32 %v4371, 16
      %v4498 = vrot.slane %v4496, 7
      %v4499 = vrot.slane %v4498, 4
      %v4501 = vshrl.u32 %v4372, 16
      %v4503 = vrot.slane %v4501, 7
      %v4504 = vshll.u32 %v4372, 16
      %v4506 = vor.u32 %v4503, %v4504
      %v4507 = vsel %vm812, %v4499, %v4506
      %v4508 = vrot.slane %v4503, 4
      %v4510 = vshrl.u32 %v4373, 16
      %v4512 = vrot.slane %v4510, 7
      %v4513 = vshll.u32 %v4373, 16
      %v4515 = vor.u32 %v4512, %v4513
      %v4516 = vsel %vm812, %v4508, %v4515
      %v4518 = vshrl.u32 %v4374, 16
      %v4520 = vrot.slane %v4518, 7
      %v4521 = vrot.slane %v4520, 4
      %v4523 = vshrl.u32 %v4375, 16
      %v4525 = vrot.slane %v4523, 7
      %v4526 = vshll.u32 %v4375, 16
      %v4528 = vor.u32 %v4525, %v4526
      %v4529 = vsel %vm812, %v4521, %v4528
      %v4530 = vrot.slane %v4525, 4
      %v4532 = vshrl.u32 %v4376, 16
      %v4534 = vrot.slane %v4532, 7
      %v4535 = vshll.u32 %v4376, 16
      %v4537 = vor.u32 %v4534, %v4535
      %v4538 = vsel %vm812, %v4530, %v4537
      %v4540 = vshrl.u32 %v4377, 16
      %v4542 = vrot.slane %v4540, 7
      %v4543 = vrot.slane %v4542, 4
      %v4545 = vshrl.u32 %v4378, 16
      %v4547 = vrot.slane %v4545, 7
      %v4548 = vshll.u32 %v4378, 16
      %v4550 = vor.u32 %v4547, %v4548
      %v4551 = vsel %vm812, %v4543, %v4550
      %v4552 = vrot.slane %v4547, 4
      %v4554 = vshrl.u32 %v4379, 16
      %v4556 = vrot.slane %v4554, 7
      %v4557 = vshll.u32 %v4379, 16
      %v4559 = vor.u32 %v4556, %v4557
      %v4560 = vsel %vm812, %v4552, %v4559
      %v4562 = vshrl.u32 %v4380, 16
      %v4564 = vrot.slane %v4562, 7
      %v4565 = vrot.slane %v4564, 4
      %v4567 = vshrl.u32 %v4381, 16
      %v4569 = vrot.slane %v4567, 7
      %v4570 = vshll.u32 %v4381, 16
      %v4572 = vor.u32 %v4569, %v4570
      %v4573 = vsel %vm812, %v4565, %v4572
      %v4574 = vrot.slane %v4569, 4
      %v4576 = vshrl.u32 %v4382, 16
      %v4578 = vrot.slane %v4576, 7
      %v4579 = vshll.u32 %v4382, 16
      %v4581 = vor.u32 %v4578, %v4579
      %v4582 = vsel %vm812, %v4574, %v4581
      %v4584 = vshrl.u32 %v4383, 16
      %v4586 = vrot.slane %v4584, 7
      %v4587 = vrot.slane %v4586, 4
      %v4589 = vshrl.u32 %v4384, 16
      %v4591 = vrot.slane %v4589, 7
      %v4592 = vshll.u32 %v4384, 16
      %v4594 = vor.u32 %v4591, %v4592
      %v4595 = vsel %vm812, %v4587, %v4594
      %v4596 = vrot.slane %v4591, 4
      %v4598 = vshrl.u32 %v4385, 16
      %v4600 = vrot.slane %v4598, 7
      %v4601 = vshll.u32 %v4385, 16
      %v4603 = vor.u32 %v4600, %v4601
      %v4604 = vsel %vm812, %v4596, %v4603
      %v4606 = vshrl.u32 %v4386, 16
      %v4608 = vrot.slane %v4606, 7
      %v4609 = vrot.slane %v4608, 4
      %v4611 = vshrl.u32 %v4387, 16
      %v4613 = vrot.slane %v4611, 7
      %v4614 = vshll.u32 %v4387, 16
      %v4616 = vor.u32 %v4613, %v4614
      %v4617 = vsel %vm812, %v4609, %v4616
      %v4618 = vrot.slane %v4613, 4
      %v4620 = vshrl.u32 %v4388, 16
      %v4622 = vrot.slane %v4620, 7
      %v4623 = vshll.u32 %v4388, 16
      %v4625 = vor.u32 %v4622, %v4623
      %v4626 = vsel %vm812, %v4618, %v4625
      %v4628 = vshrl.u32 %v4389, 16
      %v4630 = vrot.slane %v4628, 7
      %v4631 = vrot.slane %v4630, 4
      %v4633 = vshrl.u32 %v4390, 16
      %v4635 = vrot.slane %v4633, 7
      %v4636 = vshll.u32 %v4390, 16
      %v4638 = vor.u32 %v4635, %v4636
      %v4639 = vsel %vm812, %v4631, %v4638
      %v4640 = vrot.slane %v4635, 4
      %v4642 = vshrl.u32 %v4391, 16
      %v4644 = vrot.slane %v4642, 7
      %v4645 = vshll.u32 %v4391, 16
      %v4647 = vor.u32 %v4644, %v4645
      %v4648 = vsel %vm812, %v4640, %v4647
      %v4650 = vshrl.u32 %v4392, 16
      %v4652 = vrot.slane %v4650, 7
      %v4653 = vrot.slane %v4652, 4
      %v4655 = vshrl.u32 %v4393, 16
      %v4657 = vrot.slane %v4655, 7
      %v4658 = vshll.u32 %v4393, 16
      %v4660 = vor.u32 %v4657, %v4658
      %v4661 = vsel %vm812, %v4653, %v4660
      %v4662 = vrot.slane %v4657, 4
      %v4664 = vshrl.u32 %v4394, 16
      %v4666 = vrot.slane %v4664, 7
      %v4667 = vshll.u32 %v4394, 16
      %v4669 = vor.u32 %v4666, %v4667
      %v4670 = vsel %vm812, %v4662, %v4669
      %v4672 = vshrl.u32 %v4395, 16
      %v4674 = vrot.slane %v4672, 7
      %v4675 = vrot.slane %v4674, 4
      %v4677 = vshrl.u32 %v4396, 16
      %v4679 = vrot.slane %v4677, 7
      %v4680 = vshll.u32 %v4396, 16
      %v4682 = vor.u32 %v4679, %v4680
      %v4683 = vsel %vm812, %v4675, %v4682
      %v4684 = vrot.slane %v4679, 4
      %v4686 = vshrl.u32 %v4397, 16
      %v4688 = vrot.slane %v4686, 7
      %v4689 = vshll.u32 %v4397, 16
      %v4691 = vor.u32 %v4688, %v4689
      %v4692 = vsel %vm812, %v4684, %v4691
      %v4694 = vshrl.u32 %v4398, 16
      %v4696 = vrot.slane %v4694, 7
      %v4697 = vrot.slane %v4696, 4
      %v4699 = vshrl.u32 %v4399, 16
      %v4701 = vrot.slane %v4699, 7
      %v4702 = vshll.u32 %v4399, 16
      %v4704 = vor.u32 %v4701, %v4702
      %v4705 = vsel %vm812, %v4697, %v4704
      %v4706 = vrot.slane %v4701, 4
      %v4708 = vshrl.u32 %v4400, 16
      %v4710 = vrot.slane %v4708, 7
      %v4711 = vshll.u32 %v4400, 16
      %v4713 = vor.u32 %v4710, %v4711
      %v4714 = vsel %vm812, %v4706, %v4713
      %v4716 = vshrl.u32 %v4401, 16
      %v4718 = vrot.slane %v4716, 7
      %v4719 = vrot.slane %v4718, 4
      %v4721 = vshrl.u32 %v4402, 16
      %v4723 = vrot.slane %v4721, 7
      %v4724 = vshll.u32 %v4402, 16
      %v4726 = vor.u32 %v4723, %v4724
      %v4727 = vsel %vm812, %v4719, %v4726
      %v4728 = vrot.slane %v4723, 4
      %v4730 = vshrl.u32 %v4403, 16
      %v4732 = vrot.slane %v4730, 7
      %v4733 = vshll.u32 %v4403, 16
      %v4735 = vor.u32 %v4732, %v4733
      %v4736 = vsel %vm812, %v4728, %v4735
      %v4738 = vshrl.u32 %v4404, 16
      %v4740 = vrot.slane %v4738, 7
      %v4741 = vrot.slane %v4740, 4
      %v4743 = vshrl.u32 %v4405, 16
      %v4745 = vrot.slane %v4743, 7
      %v4746 = vshll.u32 %v4405, 16
      %v4748 = vor.u32 %v4745, %v4746
      %v4749 = vsel %vm812, %v4741, %v4748
      %v4750 = vrot.slane %v4745, 4
      %v4752 = vshrl.u32 %v4406, 16
      %v4754 = vrot.slane %v4752, 7
      %v4755 = vshll.u32 %v4406, 16
      %v4757 = vor.u32 %v4754, %v4755
      %v4758 = vsel %vm812, %v4750, %v4757
      %v4759 = vld [vmem:[%s3 + $0x180] sm:$0xf]
      %v4760 = vld [vmem:[%s3 + $0x184] sm:$0xf]
      %v4761 = vld [vmem:[%s3 + $0x188] sm:$0xf]
      %v4762 = vld [vmem:[%s3 + $0x18c] sm:$0xf]
      %v4763 = vld [vmem:[%s3 + $0x190] sm:$0xf]
      %v4764 = vld [vmem:[%s3 + $0x194] sm:$0xf]
      %v4765 = vld [vmem:[%s3 + $0x198] sm:$0xf]
      %v4766 = vld [vmem:[%s3 + $0x19c] sm:$0xf]
      %v4767 = vld [vmem:[%s3 + $0x1a0] sm:$0xf]
      %v4768 = vld [vmem:[%s3 + $0x1a4] sm:$0xf]
      %v4769 = vld [vmem:[%s3 + $0x1a8] sm:$0xf]
      %v4770 = vld [vmem:[%s3 + $0x1ac] sm:$0xf]
      %v4771 = vld [vmem:[%s3 + $0x1b0] sm:$0xf]
      %v4772 = vld [vmem:[%s3 + $0x1b4] sm:$0xf]
      %v4773 = vld [vmem:[%s3 + $0x1b8] sm:$0xf]
      %v4774 = vld [vmem:[%s3 + $0x1bc] sm:$0xf]
      %v4775 = vunpack.c.l.b16 %v4419
      %v4776 = vunpack.c.l.b16 %v4428
      %v4777 = vunpack.c.l.b16 %v4441
      %v4778 = vunpack.c.l.b16 %v4450
      %v4779 = vunpack.c.l.b16 %v4463
      %v4780 = vunpack.c.l.b16 %v4472
      %v4781 = vunpack.c.l.b16 %v4485
      %v4782 = vunpack.c.l.b16 %v4494
      %v4783 = vunpack.c.l.b16 %v4507
      %v4784 = vunpack.c.l.b16 %v4516
      %v4785 = vunpack.c.l.b16 %v4529
      %v4786 = vunpack.c.l.b16 %v4538
      %v4787 = vunpack.c.l.b16 %v4551
      %v4788 = vunpack.c.l.b16 %v4560
      %v4789 = vunpack.c.l.b16 %v4573
      %v4790 = vunpack.c.l.b16 %v4582
      %v4791 = vunpack.c.l.b16 %v4595
      %v4792 = vunpack.c.l.b16 %v4604
      %v4793 = vunpack.c.l.b16 %v4617
      %v4794 = vunpack.c.l.b16 %v4626
      %v4795 = vunpack.c.l.b16 %v4639
      %v4796 = vunpack.c.l.b16 %v4648
      %v4797 = vunpack.c.l.b16 %v4661
      %v4798 = vunpack.c.l.b16 %v4670
      %v4799 = vunpack.c.l.b16 %v4683
      %v4800 = vunpack.c.l.b16 %v4692
      %v4801 = vunpack.c.l.b16 %v4705
      %v4802 = vunpack.c.l.b16 %v4714
      %v4803 = vunpack.c.l.b16 %v4727
      %v4804 = vunpack.c.l.b16 %v4736
      %v4805 = vunpack.c.l.b16 %v4749
      %v4806 = vunpack.c.l.b16 %v4758
      %v4807 = vpack.c.b16 %v4776, %v4775
      %v4808 = vpack.c.b16 %v4778, %v4777
      %v4809 = vpack.c.b16 %v4780, %v4779
      %v4810 = vpack.c.b16 %v4782, %v4781
      %v4811 = vpack.c.b16 %v4784, %v4783
      %v4812 = vpack.c.b16 %v4786, %v4785
      %v4813 = vpack.c.b16 %v4788, %v4787
      %v4814 = vpack.c.b16 %v4790, %v4789
      %v4815 = vpack.c.b16 %v4792, %v4791
      %v4816 = vpack.c.b16 %v4794, %v4793
      %v4817 = vpack.c.b16 %v4796, %v4795
      %v4818 = vpack.c.b16 %v4798, %v4797
      %v4819 = vpack.c.b16 %v4800, %v4799
      %v4820 = vpack.c.b16 %v4802, %v4801
      %v4821 = vpack.c.b16 %v4804, %v4803
      %v4822 = vpack.c.b16 %v4806, %v4805
      %v4855 = vunpack.c.l.b16 %v4759
      %v4856 = vunpack.c.l.b16 %v4760
      %v4857 = vunpack.c.l.b16 %v4761
      %v4858 = vunpack.c.l.b16 %v4762
      %v4859 = vunpack.c.l.b16 %v4763
      %v4860 = vunpack.c.l.b16 %v4764
      %v4861 = vunpack.c.l.b16 %v4765
      %v4862 = vunpack.c.l.b16 %v4766
      %v4863 = vunpack.c.l.b16 %v4767
      %v4864 = vunpack.c.l.b16 %v4768
      %v4865 = vunpack.c.l.b16 %v4769
      %v4866 = vunpack.c.l.b16 %v4770
      %v4867 = vunpack.c.l.b16 %v4771
      %v4868 = vunpack.c.l.b16 %v4772
      %v4869 = vunpack.c.l.b16 %v4773
      %v4870 = vunpack.c.l.b16 %v4774
      %v4871 = vpack.c.b16 %v4856, %v4855
      %v4872 = vpack.c.b16 %v4858, %v4857
      %v4873 = vpack.c.b16 %v4860, %v4859
      %v4874 = vpack.c.b16 %v4862, %v4861
      %v4875 = vpack.c.b16 %v4864, %v4863
      %v4876 = vpack.c.b16 %v4866, %v4865
      %v4877 = vpack.c.b16 %v4868, %v4867
      %v4878 = vpack.c.b16 %v4870, %v4869
      %4887 = vmatprep.subr.bf16.mxu0 0
      %4888 = vmatpush1.bf16.msra.mxu0 %v4878
      %4889 = vmatprep.subr.bf16.mxu0 0
      %4890 = vmatpush1.bf16.msra.mxu0 %v4877
      %4891 = vmatprep.subr.bf16.mxu0 0
      %4892 = vmatpush1.bf16.msra.mxu0 %v4876
      %4893 = vmatprep.subr.bf16.mxu0 0
      %4894 = vmatpush1.bf16.msra.mxu0 %v4875
      %4895 = vmatprep.subr.bf16.mxu0 0
      %4896 = vmatpush1.bf16.msra.mxu0 %v4874
      %4897 = vmatprep.subr.bf16.mxu0 0
      %4898 = vmatpush1.bf16.msra.mxu0 %v4873
      %4899 = vmatprep.subr.bf16.mxu0 0
      %4900 = vmatpush1.bf16.msra.mxu0 %v4872
      %4901 = vmatprep.subr.bf16.mxu0 0
      %4902 = vmatpush1.bf16.msra.mxu0 %v4871
      %4903 = vmatprep.subr.bf16.mxu0 0
      %4904 = vmatpush2.bf16.msra.mxu0 0
      %4905 = vmatprep.subr.bf16.mxu0 0
      %4906 = vmatpush2.bf16.msra.mxu0 0
      %4907 = vmatprep.subr.bf16.mxu0 0
      %4908 = vmatpush2.bf16.msra.mxu0 0
      %4909 = vmatprep.subr.bf16.mxu0 0
      %4910 = vmatpush2.bf16.msra.mxu0 0
      %4911 = vmatprep.subr.bf16.mxu0 0
      %4912 = vmatpush2.bf16.msra.mxu0 0
      %4913 = vmatprep.subr.bf16.mxu0 0
      %4914 = vmatpush2.bf16.msra.mxu0 0
      %4915 = vmatprep.subr.bf16.mxu0 0
      %4916 = vmatpush2.bf16.msra.mxu0 0
      %4917 = vmatprep.subr.bf16.mxu0 0
      %4918 = vmatpush2.bf16.msra.mxu0 0
      %4919 = vmatprep.mubr.bf16.mxu0 0
      %4920 = vmatmul.mubr.bf16.gmra.mxu0 %v4807
      %v4921 = vpop.f32.mrf.mxu0
      %v4922 = vadd.f32 0.0, %v4921
      %v4923 = vpop.f32.mrf.mxu0
      %v4924 = vpop.f32.mrf.mxu0
      %v4925 = vadd.f32 0.0, %v4924
      %v4926 = vpop.f32.mrf.mxu0
      %4927 = vmatprep.mubr.bf16.mxu0 0
      %4928 = vmatmul.mubr.bf16.gmra.mxu0 %v4808
      %v4929 = vpop.f32.mrf.mxu0
      %v4930 = vadd.f32 0.0, %v4929
      %v4931 = vpop.f32.mrf.mxu0
      %v4932 = vpop.f32.mrf.mxu0
      %v4933 = vadd.f32 0.0, %v4932
      %v4934 = vpop.f32.mrf.mxu0
      %4935 = vmatprep.mubr.bf16.mxu0 0
      %4936 = vmatmul.mubr.bf16.gmra.mxu0 %v4809
      %v4937 = vpop.f32.mrf.mxu0
      %v4938 = vadd.f32 0.0, %v4937
      %v4939 = vpop.f32.mrf.mxu0
      %v4940 = vpop.f32.mrf.mxu0
      %v4941 = vadd.f32 0.0, %v4940
      %v4942 = vpop.f32.mrf.mxu0
      %4943 = vmatprep.mubr.bf16.mxu0 0
      %4944 = vmatmul.mubr.bf16.gmra.mxu0 %v4810
      %v4945 = vpop.f32.mrf.mxu0
      %v4946 = vadd.f32 0.0, %v4945
      %v4947 = vpop.f32.mrf.mxu0
      %v4948 = vpop.f32.mrf.mxu0
      %v4949 = vadd.f32 0.0, %v4948
      %v4950 = vpop.f32.mrf.mxu0
      %4951 = vmatprep.mubr.bf16.mxu0 0
      %4952 = vmatmul.mubr.bf16.gmra.mxu0 %v4811
      %v4953 = vpop.f32.mrf.mxu0
      %v4954 = vadd.f32 0.0, %v4953
      %v4955 = vpop.f32.mrf.mxu0
      %v4956 = vpop.f32.mrf.mxu0
      %v4957 = vadd.f32 0.0, %v4956
      %v4958 = vpop.f32.mrf.mxu0
      %4959 = vmatprep.mubr.bf16.mxu0 0
      %4960 = vmatmul.mubr.bf16.gmra.mxu0 %v4812
      %v4961 = vpop.f32.mrf.mxu0
      %v4962 = vadd.f32 0.0, %v4961
      %v4963 = vpop.f32.mrf.mxu0
      %v4964 = vpop.f32.mrf.mxu0
      %v4965 = vadd.f32 0.0, %v4964
      %v4966 = vpop.f32.mrf.mxu0
      %4967 = vmatprep.mubr.bf16.mxu0 0
      %4968 = vmatmul.mubr.bf16.gmra.mxu0 %v4813
      %v4969 = vpop.f32.mrf.mxu0
      %v4970 = vadd.f32 0.0, %v4969
      %v4971 = vpop.f32.mrf.mxu0
      %v4972 = vpop.f32.mrf.mxu0
      %v4973 = vadd.f32 0.0, %v4972
      %v4974 = vpop.f32.mrf.mxu0
      %4975 = vmatprep.mubr.bf16.mxu0 0
      %4976 = vmatmul.mubr.bf16.gmra.mxu0 %v4814
      %v4977 = vpop.f32.mrf.mxu0
      %v4978 = vadd.f32 0.0, %v4977
      %v4979 = vpop.f32.mrf.mxu0
      %v4980 = vpop.f32.mrf.mxu0
      %v4981 = vadd.f32 0.0, %v4980
      %v4982 = vpop.f32.mrf.mxu0
      %4983 = vmatprep.mubr.bf16.mxu0 0
      %4984 = vmatmul.mubr.bf16.gmra.mxu0 %v4815
      %v4985 = vpop.f32.mrf.mxu0
      %v4986 = vadd.f32 0.0, %v4985
      %v4987 = vpop.f32.mrf.mxu0
      %v4988 = vpop.f32.mrf.mxu0
      %v4989 = vadd.f32 0.0, %v4988
      %v4990 = vpop.f32.mrf.mxu0
      %4991 = vmatprep.mubr.bf16.mxu0 0
      %4992 = vmatmul.mubr.bf16.gmra.mxu0 %v4816
      %v4993 = vpop.f32.mrf.mxu0
      %v4994 = vadd.f32 0.0, %v4993
      %v4995 = vpop.f32.mrf.mxu0
      %v4996 = vpop.f32.mrf.mxu0
      %v4997 = vadd.f32 0.0, %v4996
      %v4998 = vpop.f32.mrf.mxu0
      %4999 = vmatprep.mubr.bf16.mxu0 0
      %5000 = vmatmul.mubr.bf16.gmra.mxu0 %v4817
      %v5001 = vpop.f32.mrf.mxu0
      %v5002 = vadd.f32 0.0, %v5001
      %v5003 = vpop.f32.mrf.mxu0
      %v5004 = vpop.f32.mrf.mxu0
      %v5005 = vadd.f32 0.0, %v5004
      %v5006 = vpop.f32.mrf.mxu0
      %5007 = vmatprep.mubr.bf16.mxu0 0
      %5008 = vmatmul.mubr.bf16.gmra.mxu0 %v4818
      %v5009 = vpop.f32.mrf.mxu0
      %v5010 = vadd.f32 0.0, %v5009
      %v5011 = vpop.f32.mrf.mxu0
      %v5012 = vpop.f32.mrf.mxu0
      %v5013 = vadd.f32 0.0, %v5012
      %v5014 = vpop.f32.mrf.mxu0
      %5015 = vmatprep.mubr.bf16.mxu0 0
      %5016 = vmatmul.mubr.bf16.gmra.mxu0 %v4819
      %v5017 = vpop.f32.mrf.mxu0
      %v5018 = vadd.f32 0.0, %v5017
      %v5019 = vpop.f32.mrf.mxu0
      %v5020 = vpop.f32.mrf.mxu0
      %v5021 = vadd.f32 0.0, %v5020
      %v5022 = vpop.f32.mrf.mxu0
      %5023 = vmatprep.mubr.bf16.mxu0 0
      %5024 = vmatmul.mubr.bf16.gmra.mxu0 %v4820
      %v5025 = vpop.f32.mrf.mxu0
      %v5026 = vadd.f32 0.0, %v5025
      %v5027 = vpop.f32.mrf.mxu0
      %v5028 = vpop.f32.mrf.mxu0
      %v5029 = vadd.f32 0.0, %v5028
      %v5030 = vpop.f32.mrf.mxu0
      %5031 = vmatprep.mubr.bf16.mxu0 0
      %5032 = vmatmul.mubr.bf16.gmra.mxu0 %v4821
      %v5033 = vpop.f32.mrf.mxu0
      %v5034 = vadd.f32 0.0, %v5033
      %v5035 = vpop.f32.mrf.mxu0
      %v5036 = vpop.f32.mrf.mxu0
      %v5037 = vadd.f32 0.0, %v5036
      %v5038 = vpop.f32.mrf.mxu0
      %5039 = vmatprep.mubr.bf16.mxu0 0
      %5040 = vmatmul.mubr.bf16.gmra.mxu0 %v4822
      %v5041 = vpop.f32.mrf.mxu0
      %v5042 = vadd.f32 0.0, %v5041
      %v5043 = vpop.f32.mrf.mxu0
      %v5044 = vpop.f32.mrf.mxu0
      %v5045 = vadd.f32 0.0, %v5044
      %v5046 = vpop.f32.mrf.mxu0
      %5047 = vdwg.mxu0
      %v5048 = vadd.f32 %v4326, %v4922
      %v5049 = vadd.f32 %v4327, %v4925
      %v5050 = vadd.f32 %v4328, %v4930
      %v5051 = vadd.f32 %v4329, %v4933
      %v5052 = vadd.f32 %v4330, %v4938
      %v5053 = vadd.f32 %v4331, %v4941
      %v5054 = vadd.f32 %v4332, %v4946
      %v5055 = vadd.f32 %v4333, %v4949
      %v5056 = vadd.f32 %v4334, %v4954
      %v5057 = vadd.f32 %v4335, %v4957
      %v5058 = vadd.f32 %v4336, %v4962
      %v5059 = vadd.f32 %v4337, %v4965
      %v5060 = vadd.f32 %v4338, %v4970
      %v5061 = vadd.f32 %v4339, %v4973
      %v5062 = vadd.f32 %v4340, %v4978
      %v5063 = vadd.f32 %v4341, %v4981
      %v5064 = vadd.f32 %v4342, %v4986
      %v5065 = vadd.f32 %v4343, %v4989
      %v5066 = vadd.f32 %v4344, %v4994
      %v5067 = vadd.f32 %v4345, %v4997
      %v5068 = vadd.f32 %v4346, %v5002
      %v5069 = vadd.f32 %v4347, %v5005
      %v5070 = vadd.f32 %v4348, %v5010
      %v5071 = vadd.f32 %v4349, %v5013
      %v5072 = vadd.f32 %v4350, %v5018
      %v5073 = vadd.f32 %v4351, %v5021
      %v5074 = vadd.f32 %v4352, %v5026
      %v5075 = vadd.f32 %v4353, %v5029
      %v5076 = vadd.f32 %v4354, %v5034
      %v5077 = vadd.f32 %v4355, %v5037
      %v5078 = vadd.f32 %v4356, %v5042
      %v5079 = vadd.f32 %v4357, %v5045
      %v5080 = vld [vmem:[%s3 + $0x1c0] sm:$0xf]
      %v5081 = vld [vmem:[%s3 + $0x1c4] sm:$0xf]
      %v5082 = vld [vmem:[%s3 + $0x1c8] sm:$0xf]
      %v5083 = vld [vmem:[%s3 + $0x1cc] sm:$0xf]
      %v5084 = vld [vmem:[%s3 + $0x1d0] sm:$0xf]
      %v5085 = vld [vmem:[%s3 + $0x1d4] sm:$0xf]
      %v5086 = vld [vmem:[%s3 + $0x1d8] sm:$0xf]
      %v5087 = vld [vmem:[%s3 + $0x1dc] sm:$0xf]
      %v5088 = vld [vmem:[%s3 + $0x1e0] sm:$0xf]
      %v5089 = vld [vmem:[%s3 + $0x1e4] sm:$0xf]
      %v5090 = vld [vmem:[%s3 + $0x1e8] sm:$0xf]
      %v5091 = vld [vmem:[%s3 + $0x1ec] sm:$0xf]
      %v5092 = vld [vmem:[%s3 + $0x1f0] sm:$0xf]
      %v5093 = vld [vmem:[%s3 + $0x1f4] sm:$0xf]
      %v5094 = vld [vmem:[%s3 + $0x1f8] sm:$0xf]
      %v5095 = vld [vmem:[%s3 + $0x1fc] sm:$0xf]
      %v5128 = vunpack.c.l.b16 %v4360
      %v5129 = vunpack.c.l.b16 %v4361
      %v5130 = vunpack.c.l.b16 %v4363
      %v5131 = vunpack.c.l.b16 %v4364
      %v5132 = vunpack.c.l.b16 %v4366
      %v5133 = vunpack.c.l.b16 %v4367
      %v5134 = vunpack.c.l.b16 %v4369
      %v5135 = vunpack.c.l.b16 %v4370
      %v5136 = vunpack.c.l.b16 %v4372
      %v5137 = vunpack.c.l.b16 %v4373
      %v5138 = vunpack.c.l.b16 %v4375
      %v5139 = vunpack.c.l.b16 %v4376
      %v5140 = vunpack.c.l.b16 %v4378
      %v5141 = vunpack.c.l.b16 %v4379
      %v5142 = vunpack.c.l.b16 %v4381
      %v5143 = vunpack.c.l.b16 %v4382
      %v5144 = vunpack.c.l.b16 %v4384
      %v5145 = vunpack.c.l.b16 %v4385
      %v5146 = vunpack.c.l.b16 %v4387
      %v5147 = vunpack.c.l.b16 %v4388
      %v5148 = vunpack.c.l.b16 %v4390
      %v5149 = vunpack.c.l.b16 %v4391
      %v5150 = vunpack.c.l.b16 %v4393
      %v5151 = vunpack.c.l.b16 %v4394
      %v5152 = vunpack.c.l.b16 %v4396
      %v5153 = vunpack.c.l.b16 %v4397
      %v5154 = vunpack.c.l.b16 %v4399
      %v5155 = vunpack.c.l.b16 %v4400
      %v5156 = vunpack.c.l.b16 %v4402
      %v5157 = vunpack.c.l.b16 %v4403
      %v5158 = vunpack.c.l.b16 %v4405
      %v5159 = vunpack.c.l.b16 %v4406
      %v5160 = vpack.c.b16 %v5129, %v5128
      %v5161 = vpack.c.b16 %v5131, %v5130
      %v5162 = vpack.c.b16 %v5133, %v5132
      %v5163 = vpack.c.b16 %v5135, %v5134
      %v5164 = vpack.c.b16 %v5137, %v5136
      %v5165 = vpack.c.b16 %v5139, %v5138
      %v5166 = vpack.c.b16 %v5141, %v5140
      %v5167 = vpack.c.b16 %v5143, %v5142
      %v5168 = vpack.c.b16 %v5145, %v5144
      %v5169 = vpack.c.b16 %v5147, %v5146
      %v5170 = vpack.c.b16 %v5149, %v5148
      %v5171 = vpack.c.b16 %v5151, %v5150
      %v5172 = vpack.c.b16 %v5153, %v5152
      %v5173 = vpack.c.b16 %v5155, %v5154
      %v5174 = vpack.c.b16 %v5157, %v5156
      %v5175 = vpack.c.b16 %v5159, %v5158
      %v5208 = vunpack.c.l.b16 %v5080
      %v5209 = vunpack.c.l.b16 %v5081
      %v5210 = vunpack.c.l.b16 %v5082
      %v5211 = vunpack.c.l.b16 %v5083
      %v5212 = vunpack.c.l.b16 %v5084
      %v5213 = vunpack.c.l.b16 %v5085
      %v5214 = vunpack.c.l.b16 %v5086
      %v5215 = vunpack.c.l.b16 %v5087
      %v5216 = vunpack.c.l.b16 %v5088
      %v5217 = vunpack.c.l.b16 %v5089
      %v5218 = vunpack.c.l.b16 %v5090
      %v5219 = vunpack.c.l.b16 %v5091
      %v5220 = vunpack.c.l.b16 %v5092
      %v5221 = vunpack.c.l.b16 %v5093
      %v5222 = vunpack.c.l.b16 %v5094
      %v5223 = vunpack.c.l.b16 %v5095
      %v5224 = vpack.c.b16 %v5209, %v5208
      %v5225 = vpack.c.b16 %v5211, %v5210
      %v5226 = vpack.c.b16 %v5213, %v5212
      %v5227 = vpack.c.b16 %v5215, %v5214
      %v5228 = vpack.c.b16 %v5217, %v5216
      %v5229 = vpack.c.b16 %v5219, %v5218
      %v5230 = vpack.c.b16 %v5221, %v5220
      %v5231 = vpack.c.b16 %v5223, %v5222
      %5240 = vmatprep.subr.bf16.mxu0 0
      %5241 = vmatpush1.bf16.msra.mxu0 %v5231
      %5242 = vmatprep.subr.bf16.mxu0 0
      %5243 = vmatpush1.bf16.msra.mxu0 %v5230
      %5244 = vmatprep.subr.bf16.mxu0 0
      %5245 = vmatpush1.bf16.msra.mxu0 %v5229
      %5246 = vmatprep.subr.bf16.mxu0 0
      %5247 = vmatpush1.bf16.msra.mxu0 %v5228
      %5248 = vmatprep.subr.bf16.mxu0 0
      %5249 = vmatpush1.bf16.msra.mxu0 %v5227
      %5250 = vmatprep.subr.bf16.mxu0 0
      %5251 = vmatpush1.bf16.msra.mxu0 %v5226
      %5252 = vmatprep.subr.bf16.mxu0 0
      %5253 = vmatpush1.bf16.msra.mxu0 %v5225
      %5254 = vmatprep.subr.bf16.mxu0 0
      %5255 = vmatpush1.bf16.msra.mxu0 %v5224
      %5256 = vmatprep.subr.bf16.mxu0 0
      %5257 = vmatpush2.bf16.msra.mxu0 0
      %5258 = vmatprep.subr.bf16.mxu0 0
      %5259 = vmatpush2.bf16.msra.mxu0 0
      %5260 = vmatprep.subr.bf16.mxu0 0
      %5261 = vmatpush2.bf16.msra.mxu0 0
      %5262 = vmatprep.subr.bf16.mxu0 0
      %5263 = vmatpush2.bf16.msra.mxu0 0
      %5264 = vmatprep.subr.bf16.mxu0 0
      %5265 = vmatpush2.bf16.msra.mxu0 0
      %5266 = vmatprep.subr.bf16.mxu0 0
      %5267 = vmatpush2.bf16.msra.mxu0 0
      %5268 = vmatprep.subr.bf16.mxu0 0
      %5269 = vmatpush2.bf16.msra.mxu0 0
      %5270 = vmatprep.subr.bf16.mxu0 0
      %5271 = vmatpush2.bf16.msra.mxu0 0
      %5272 = vmatprep.mubr.bf16.mxu0 0
      %5273 = vmatmul.mubr.bf16.gmra.mxu0 %v5160
      %v5274 = vpop.f32.mrf.mxu0
      %v5275 = vadd.f32 0.0, %v5274
      %v5276 = vpop.f32.mrf.mxu0
      %v5277 = vpop.f32.mrf.mxu0
      %v5278 = vadd.f32 0.0, %v5277
      %v5279 = vpop.f32.mrf.mxu0
      %5280 = vmatprep.mubr.bf16.mxu0 0
      %5281 = vmatmul.mubr.bf16.gmra.mxu0 %v5161
      %v5282 = vpop.f32.mrf.mxu0
      %v5283 = vadd.f32 0.0, %v5282
      %v5284 = vpop.f32.mrf.mxu0
      %v5285 = vpop.f32.mrf.mxu0
      %v5286 = vadd.f32 0.0, %v5285
      %v5287 = vpop.f32.mrf.mxu0
      %5288 = vmatprep.mubr.bf16.mxu0 0
      %5289 = vmatmul.mubr.bf16.gmra.mxu0 %v5162
      %v5290 = vpop.f32.mrf.mxu0
      %v5291 = vadd.f32 0.0, %v5290
      %v5292 = vpop.f32.mrf.mxu0
      %v5293 = vpop.f32.mrf.mxu0
      %v5294 = vadd.f32 0.0, %v5293
      %v5295 = vpop.f32.mrf.mxu0
      %5296 = vmatprep.mubr.bf16.mxu0 0
      %5297 = vmatmul.mubr.bf16.gmra.mxu0 %v5163
      %v5298 = vpop.f32.mrf.mxu0
      %v5299 = vadd.f32 0.0, %v5298
      %v5300 = vpop.f32.mrf.mxu0
      %v5301 = vpop.f32.mrf.mxu0
      %v5302 = vadd.f32 0.0, %v5301
      %v5303 = vpop.f32.mrf.mxu0
      %5304 = vmatprep.mubr.bf16.mxu0 0
      %5305 = vmatmul.mubr.bf16.gmra.mxu0 %v5164
      %v5306 = vpop.f32.mrf.mxu0
      %v5307 = vadd.f32 0.0, %v5306
      %v5308 = vpop.f32.mrf.mxu0
      %v5309 = vpop.f32.mrf.mxu0
      %v5310 = vadd.f32 0.0, %v5309
      %v5311 = vpop.f32.mrf.mxu0
      %5312 = vmatprep.mubr.bf16.mxu0 0
      %5313 = vmatmul.mubr.bf16.gmra.mxu0 %v5165
      %v5314 = vpop.f32.mrf.mxu0
      %v5315 = vadd.f32 0.0, %v5314
      %v5316 = vpop.f32.mrf.mxu0
      %v5317 = vpop.f32.mrf.mxu0
      %v5318 = vadd.f32 0.0, %v5317
      %v5319 = vpop.f32.mrf.mxu0
      %5320 = vmatprep.mubr.bf16.mxu0 0
      %5321 = vmatmul.mubr.bf16.gmra.mxu0 %v5166
      %v5322 = vpop.f32.mrf.mxu0
      %v5323 = vadd.f32 0.0, %v5322
      %v5324 = vpop.f32.mrf.mxu0
      %v5325 = vpop.f32.mrf.mxu0
      %v5326 = vadd.f32 0.0, %v5325
      %v5327 = vpop.f32.mrf.mxu0
      %5328 = vmatprep.mubr.bf16.mxu0 0
      %5329 = vmatmul.mubr.bf16.gmra.mxu0 %v5167
      %v5330 = vpop.f32.mrf.mxu0
      %v5331 = vadd.f32 0.0, %v5330
      %v5332 = vpop.f32.mrf.mxu0
      %v5333 = vpop.f32.mrf.mxu0
      %v5334 = vadd.f32 0.0, %v5333
      %v5335 = vpop.f32.mrf.mxu0
      %5336 = vmatprep.mubr.bf16.mxu0 0
      %5337 = vmatmul.mubr.bf16.gmra.mxu0 %v5168
      %v5338 = vpop.f32.mrf.mxu0
      %v5339 = vadd.f32 0.0, %v5338
      %v5340 = vpop.f32.mrf.mxu0
      %v5341 = vpop.f32.mrf.mxu0
      %v5342 = vadd.f32 0.0, %v5341
      %v5343 = vpop.f32.mrf.mxu0
      %5344 = vmatprep.mubr.bf16.mxu0 0
      %5345 = vmatmul.mubr.bf16.gmra.mxu0 %v5169
      %v5346 = vpop.f32.mrf.mxu0
      %v5347 = vadd.f32 0.0, %v5346
      %v5348 = vpop.f32.mrf.mxu0
      %v5349 = vpop.f32.mrf.mxu0
      %v5350 = vadd.f32 0.0, %v5349
      %v5351 = vpop.f32.mrf.mxu0
      %5352 = vmatprep.mubr.bf16.mxu0 0
      %5353 = vmatmul.mubr.bf16.gmra.mxu0 %v5170
      %v5354 = vpop.f32.mrf.mxu0
      %v5355 = vadd.f32 0.0, %v5354
      %v5356 = vpop.f32.mrf.mxu0
      %v5357 = vpop.f32.mrf.mxu0
      %v5358 = vadd.f32 0.0, %v5357
      %v5359 = vpop.f32.mrf.mxu0
      %5360 = vmatprep.mubr.bf16.mxu0 0
      %5361 = vmatmul.mubr.bf16.gmra.mxu0 %v5171
      %v5362 = vpop.f32.mrf.mxu0
      %v5363 = vadd.f32 0.0, %v5362
      %v5364 = vpop.f32.mrf.mxu0
      %v5365 = vpop.f32.mrf.mxu0
      %v5366 = vadd.f32 0.0, %v5365
      %v5367 = vpop.f32.mrf.mxu0
      %5368 = vmatprep.mubr.bf16.mxu0 0
      %5369 = vmatmul.mubr.bf16.gmra.mxu0 %v5172
      %v5370 = vpop.f32.mrf.mxu0
      %v5371 = vadd.f32 0.0, %v5370
      %v5372 = vpop.f32.mrf.mxu0
      %v5373 = vpop.f32.mrf.mxu0
      %v5374 = vadd.f32 0.0, %v5373
      %v5375 = vpop.f32.mrf.mxu0
      %5376 = vmatprep.mubr.bf16.mxu0 0
      %5377 = vmatmul.mubr.bf16.gmra.mxu0 %v5173
      %v5378 = vpop.f32.mrf.mxu0
      %v5379 = vadd.f32 0.0, %v5378
      %v5380 = vpop.f32.mrf.mxu0
      %v5381 = vpop.f32.mrf.mxu0
      %v5382 = vadd.f32 0.0, %v5381
      %v5383 = vpop.f32.mrf.mxu0
      %5384 = vmatprep.mubr.bf16.mxu0 0
      %5385 = vmatmul.mubr.bf16.gmra.mxu0 %v5174
      %v5386 = vpop.f32.mrf.mxu0
      %v5387 = vadd.f32 0.0, %v5386
      %v5388 = vpop.f32.mrf.mxu0
      %v5389 = vpop.f32.mrf.mxu0
      %v5390 = vadd.f32 0.0, %v5389
      %v5391 = vpop.f32.mrf.mxu0
      %5392 = vmatprep.mubr.bf16.mxu0 0
      %5393 = vmatmul.mubr.bf16.gmra.mxu0 %v5175
      %v5394 = vpop.f32.mrf.mxu0
      %v5395 = vadd.f32 0.0, %v5394
      %v5396 = vpop.f32.mrf.mxu0
      %v5397 = vpop.f32.mrf.mxu0
      %v5398 = vadd.f32 0.0, %v5397
      %v5399 = vpop.f32.mrf.mxu0
      %5400 = vdwg.mxu0
      %v5401 = vadd.f32 %v5048, %v5275
      %v5402 = vadd.f32 %v5049, %v5278
      %v5403 = vadd.f32 %v5050, %v5283
      %v5404 = vadd.f32 %v5051, %v5286
      %v5405 = vadd.f32 %v5052, %v5291
      %v5406 = vadd.f32 %v5053, %v5294
      %v5407 = vadd.f32 %v5054, %v5299
      %v5408 = vadd.f32 %v5055, %v5302
      %v5409 = vadd.f32 %v5056, %v5307
      %v5410 = vadd.f32 %v5057, %v5310
      %v5411 = vadd.f32 %v5058, %v5315
      %v5412 = vadd.f32 %v5059, %v5318
      %v5413 = vadd.f32 %v5060, %v5323
      %v5414 = vadd.f32 %v5061, %v5326
      %v5415 = vadd.f32 %v5062, %v5331
      %v5416 = vadd.f32 %v5063, %v5334
      %v5417 = vadd.f32 %v5064, %v5339
      %v5418 = vadd.f32 %v5065, %v5342
      %v5419 = vadd.f32 %v5066, %v5347
      %v5420 = vadd.f32 %v5067, %v5350
      %v5421 = vadd.f32 %v5068, %v5355
      %v5422 = vadd.f32 %v5069, %v5358
      %v5423 = vadd.f32 %v5070, %v5363
      %v5424 = vadd.f32 %v5071, %v5366
      %v5425 = vadd.f32 %v5072, %v5371
      %v5426 = vadd.f32 %v5073, %v5374
      %v5427 = vadd.f32 %v5074, %v5379
      %v5428 = vadd.f32 %v5075, %v5382
      %v5429 = vadd.f32 %v5076, %v5387
      %v5430 = vadd.f32 %v5077, %v5390
      %v5431 = vadd.f32 %v5078, %v5395
      %v5432 = vadd.f32 %v5079, %v5398
      %v5433 = vld [vmem:[%s4358 + $0x4] sm:$0xf]
      %v5434 = vld [vmem:[%s4358 + $0x8] sm:$0xf]
      %v5435 = vld [vmem:[%s4358 + $0xc] sm:$0x1]
      %v5436 = vld [vmem:[%s4358 + $0x14] sm:$0xf]
      %v5437 = vld [vmem:[%s4358 + $0x18] sm:$0xf]
      %v5438 = vld [vmem:[%s4358 + $0x1c] sm:$0x1]
      %v5439 = vld [vmem:[%s4358 + $0x24] sm:$0xf]
      %v5440 = vld [vmem:[%s4358 + $0x28] sm:$0xf]
      %v5441 = vld [vmem:[%s4358 + $0x2c] sm:$0x1]
      %v5442 = vld [vmem:[%s4358 + $0x34] sm:$0xf]
      %v5443 = vld [vmem:[%s4358 + $0x38] sm:$0xf]
      %v5444 = vld [vmem:[%s4358 + $0x3c] sm:$0x1]
      %v5445 = vld [vmem:[%s4358 + $0x44] sm:$0xf]
      %v5446 = vld [vmem:[%s4358 + $0x48] sm:$0xf]
      %v5447 = vld [vmem:[%s4358 + $0x4c] sm:$0x1]
      %v5448 = vld [vmem:[%s4358 + $0x54] sm:$0xf]
      %v5449 = vld [vmem:[%s4358 + $0x58] sm:$0xf]
      %v5450 = vld [vmem:[%s4358 + $0x5c] sm:$0x1]
      %v5451 = vld [vmem:[%s4358 + $0x64] sm:$0xf]
      %v5452 = vld [vmem:[%s4358 + $0x68] sm:$0xf]
      %v5453 = vld [vmem:[%s4358 + $0x6c] sm:$0x1]
      %v5454 = vld [vmem:[%s4358 + $0x74] sm:$0xf]
      %v5455 = vld [vmem:[%s4358 + $0x78] sm:$0xf]
      %v5456 = vld [vmem:[%s4358 + $0x7c] sm:$0x1]
      %v5457 = vld [vmem:[%s4358 + $0x84] sm:$0xf]
      %v5458 = vld [vmem:[%s4358 + $0x88] sm:$0xf]
      %v5459 = vld [vmem:[%s4358 + $0x8c] sm:$0x1]
      %v5460 = vld [vmem:[%s4358 + $0x94] sm:$0xf]
      %v5461 = vld [vmem:[%s4358 + $0x98] sm:$0xf]
      %v5462 = vld [vmem:[%s4358 + $0x9c] sm:$0x1]
      %v5463 = vld [vmem:[%s4358 + $0xa4] sm:$0xf]
      %v5464 = vld [vmem:[%s4358 + $0xa8] sm:$0xf]
      %v5465 = vld [vmem:[%s4358 + $0xac] sm:$0x1]
      %v5466 = vld [vmem:[%s4358 + $0xb4] sm:$0xf]
      %v5467 = vld [vmem:[%s4358 + $0xb8] sm:$0xf]
      %v5468 = vld [vmem:[%s4358 + $0xbc] sm:$0x1]
      %v5469 = vld [vmem:[%s4358 + $0xc4] sm:$0xf]
      %v5470 = vld [vmem:[%s4358 + $0xc8] sm:$0xf]
      %v5471 = vld [vmem:[%s4358 + $0xcc] sm:$0x1]
      %v5472 = vld [vmem:[%s4358 + $0xd4] sm:$0xf]
      %v5473 = vld [vmem:[%s4358 + $0xd8] sm:$0xf]
      %v5474 = vld [vmem:[%s4358 + $0xdc] sm:$0x1]
      %v5475 = vld [vmem:[%s4358 + $0xe4] sm:$0xf]
      %v5476 = vld [vmem:[%s4358 + $0xe8] sm:$0xf]
      %v5477 = vld [vmem:[%s4358 + $0xec] sm:$0x1]
      %v5478 = vld [vmem:[%s4358 + $0xf4] sm:$0xf]
      %v5479 = vld [vmem:[%s4358 + $0xf8] sm:$0xf]
      %v5480 = vld [vmem:[%s4358 + $0xfc] sm:$0x1]
      %v5482 = vshrl.u32 %v5433, 16
      %v5484 = vrot.slane %v5482, 4
      %v5485 = vshll.u32 %v5433, 16
      %v5487 = vrot.slane %v5485, 5
      %v5488 = vor.u32 %v5484, %v5487
      %v5489 = vrot.slane %v5488, 4
      %v5491 = vshll.u32 %v5434, 16
      %v5493 = vrot.slane %v5491, 5
      %v5494 = vsel %vm1825, %v5489, %v5493
      %v5495 = vshrl.u32 %v5434, 16
      %v5497 = vrot.slane %v5495, 4
      %v5498 = vor.u32 %v5497, %v5493
      %v5499 = vrot.slane %v5498, 4
      %v5501 = vshll.u32 %v5435, 16
      %v5503 = vrot.slane %v5501, 5
      %v5504 = vsel %vm1825, %v5499, %v5503
      %v5506 = vshrl.u32 %v5436, 16
      %v5508 = vrot.slane %v5506, 4
      %v5509 = vshll.u32 %v5436, 16
      %v5511 = vrot.slane %v5509, 5
      %v5512 = vor.u32 %v5508, %v5511
      %v5513 = vrot.slane %v5512, 4
      %v5515 = vshll.u32 %v5437, 16
      %v5517 = vrot.slane %v5515, 5
      %v5518 = vsel %vm1825, %v5513, %v5517
      %v5519 = vshrl.u32 %v5437, 16
      %v5521 = vrot.slane %v5519, 4
      %v5522 = vor.u32 %v5521, %v5517
      %v5523 = vrot.slane %v5522, 4
      %v5525 = vshll.u32 %v5438, 16
      %v5527 = vrot.slane %v5525, 5
      %v5528 = vsel %vm1825, %v5523, %v5527
      %v5530 = vshrl.u32 %v5439, 16
      %v5532 = vrot.slane %v5530, 4
      %v5533 = vshll.u32 %v5439, 16
      %v5535 = vrot.slane %v5533, 5
      %v5536 = vor.u32 %v5532, %v5535
      %v5537 = vrot.slane %v5536, 4
      %v5539 = vshll.u32 %v5440, 16
      %v5541 = vrot.slane %v5539, 5
      %v5542 = vsel %vm1825, %v5537, %v5541
      %v5543 = vshrl.u32 %v5440, 16
      %v5545 = vrot.slane %v5543, 4
      %v5546 = vor.u32 %v5545, %v5541
      %v5547 = vrot.slane %v5546, 4
      %v5549 = vshll.u32 %v5441, 16
      %v5551 = vrot.slane %v5549, 5
      %v5552 = vsel %vm1825, %v5547, %v5551
      %v5554 = vshrl.u32 %v5442, 16
      %v5556 = vrot.slane %v5554, 4
      %v5557 = vshll.u32 %v5442, 16
      %v5559 = vrot.slane %v5557, 5
      %v5560 = vor.u32 %v5556, %v5559
      %v5561 = vrot.slane %v5560, 4
      %v5563 = vshll.u32 %v5443, 16
      %v5565 = vrot.slane %v5563, 5
      %v5566 = vsel %vm1825, %v5561, %v5565
      %v5567 = vshrl.u32 %v5443, 16
      %v5569 = vrot.slane %v5567, 4
      %v5570 = vor.u32 %v5569, %v5565
      %v5571 = vrot.slane %v5570, 4
      %v5573 = vshll.u32 %v5444, 16
      %v5575 = vrot.slane %v5573, 5
      %v5576 = vsel %vm1825, %v5571, %v5575
      %v5578 = vshrl.u32 %v5445, 16
      %v5580 = vrot.slane %v5578, 4
      %v5581 = vshll.u32 %v5445, 16
      %v5583 = vrot.slane %v5581, 5
      %v5584 = vor.u32 %v5580, %v5583
      %v5585 = vrot.slane %v5584, 4
      %v5587 = vshll.u32 %v5446, 16
      %v5589 = vrot.slane %v5587, 5
      %v5590 = vsel %vm1825, %v5585, %v5589
      %v5591 = vshrl.u32 %v5446, 16
      %v5593 = vrot.slane %v5591, 4
      %v5594 = vor.u32 %v5593, %v5589
      %v5595 = vrot.slane %v5594, 4
      %v5597 = vshll.u32 %v5447, 16
      %v5599 = vrot.slane %v5597, 5
      %v5600 = vsel %vm1825, %v5595, %v5599
      %v5602 = vshrl.u32 %v5448, 16
      %v5604 = vrot.slane %v5602, 4
      %v5605 = vshll.u32 %v5448, 16
      %v5607 = vrot.slane %v5605, 5
      %v5608 = vor.u32 %v5604, %v5607
      %v5609 = vrot.slane %v5608, 4
      %v5611 = vshll.u32 %v5449, 16
      %v5613 = vrot.slane %v5611, 5
      %v5614 = vsel %vm1825, %v5609, %v5613
      %v5615 = vshrl.u32 %v5449, 16
      %v5617 = vrot.slane %v5615, 4
      %v5618 = vor.u32 %v5617, %v5613
      %v5619 = vrot.slane %v5618, 4
      %v5621 = vshll.u32 %v5450, 16
      %v5623 = vrot.slane %v5621, 5
      %v5624 = vsel %vm1825, %v5619, %v5623
      %v5626 = vshrl.u32 %v5451, 16
      %v5628 = vrot.slane %v5626, 4
      %v5629 = vshll.u32 %v5451, 16
      %v5631 = vrot.slane %v5629, 5
      %v5632 = vor.u32 %v5628, %v5631
      %v5633 = vrot.slane %v5632, 4
      %v5635 = vshll.u32 %v5452, 16
      %v5637 = vrot.slane %v5635, 5
      %v5638 = vsel %vm1825, %v5633, %v5637
      %v5639 = vshrl.u32 %v5452, 16
      %v5641 = vrot.slane %v5639, 4
      %v5642 = vor.u32 %v5641, %v5637
      %v5643 = vrot.slane %v5642, 4
      %v5645 = vshll.u32 %v5453, 16
      %v5647 = vrot.slane %v5645, 5
      %v5648 = vsel %vm1825, %v5643, %v5647
      %v5650 = vshrl.u32 %v5454, 16
      %v5652 = vrot.slane %v5650, 4
      %v5653 = vshll.u32 %v5454, 16
      %v5655 = vrot.slane %v5653, 5
      %v5656 = vor.u32 %v5652, %v5655
      %v5657 = vrot.slane %v5656, 4
      %v5659 = vshll.u32 %v5455, 16
      %v5661 = vrot.slane %v5659, 5
      %v5662 = vsel %vm1825, %v5657, %v5661
      %v5663 = vshrl.u32 %v5455, 16
      %v5665 = vrot.slane %v5663, 4
      %v5666 = vor.u32 %v5665, %v5661
      %v5667 = vrot.slane %v5666, 4
      %v5669 = vshll.u32 %v5456, 16
      %v5671 = vrot.slane %v5669, 5
      %v5672 = vsel %vm1825, %v5667, %v5671
      %v5674 = vshrl.u32 %v5457, 16
      %v5676 = vrot.slane %v5674, 4
      %v5677 = vshll.u32 %v5457, 16
      %v5679 = vrot.slane %v5677, 5
      %v5680 = vor.u32 %v5676, %v5679
      %v5681 = vrot.slane %v5680, 4
      %v5683 = vshll.u32 %v5458, 16
      %v5685 = vrot.slane %v5683, 5
      %v5686 = vsel %vm1825, %v5681, %v5685
      %v5687 = vshrl.u32 %v5458, 16
      %v5689 = vrot.slane %v5687, 4
      %v5690 = vor.u32 %v5689, %v5685
      %v5691 = vrot.slane %v5690, 4
      %v5693 = vshll.u32 %v5459, 16
      %v5695 = vrot.slane %v5693, 5
      %v5696 = vsel %vm1825, %v5691, %v5695
      %v5698 = vshrl.u32 %v5460, 16
      %v5700 = vrot.slane %v5698, 4
      %v5701 = vshll.u32 %v5460, 16
      %v5703 = vrot.slane %v5701, 5
      %v5704 = vor.u32 %v5700, %v5703
      %v5705 = vrot.slane %v5704, 4
      %v5707 = vshll.u32 %v5461, 16
      %v5709 = vrot.slane %v5707, 5
      %v5710 = vsel %vm1825, %v5705, %v5709
      %v5711 = vshrl.u32 %v5461, 16
      %v5713 = vrot.slane %v5711, 4
      %v5714 = vor.u32 %v5713, %v5709
      %v5715 = vrot.slane %v5714, 4
      %v5717 = vshll.u32 %v5462, 16
      %v5719 = vrot.slane %v5717, 5
      %v5720 = vsel %vm1825, %v5715, %v5719
      %v5722 = vshrl.u32 %v5463, 16
      %v5724 = vrot.slane %v5722, 4
      %v5725 = vshll.u32 %v5463, 16
      %v5727 = vrot.slane %v5725, 5
      %v5728 = vor.u32 %v5724, %v5727
      %v5729 = vrot.slane %v5728, 4
      %v5731 = vshll.u32 %v5464, 16
      %v5733 = vrot.slane %v5731, 5
      %v5734 = vsel %vm1825, %v5729, %v5733
      %v5735 = vshrl.u32 %v5464, 16
      %v5737 = vrot.slane %v5735, 4
      %v5738 = vor.u32 %v5737, %v5733
      %v5739 = vrot.slane %v5738, 4
      %v5741 = vshll.u32 %v5465, 16
      %v5743 = vrot.slane %v5741, 5
      %v5744 = vsel %vm1825, %v5739, %v5743
      %v5746 = vshrl.u32 %v5466, 16
      %v5748 = vrot.slane %v5746, 4
      %v5749 = vshll.u32 %v5466, 16
      %v5751 = vrot.slane %v5749, 5
      %v5752 = vor.u32 %v5748, %v5751
      %v5753 = vrot.slane %v5752, 4
      %v5755 = vshll.u32 %v5467, 16
      %v5757 = vrot.slane %v5755, 5
      %v5758 = vsel %vm1825, %v5753, %v5757
      %v5759 = vshrl.u32 %v5467, 16
      %v5761 = vrot.slane %v5759, 4
      %v5762 = vor.u32 %v5761, %v5757
      %v5763 = vrot.slane %v5762, 4
      %v5765 = vshll.u32 %v5468, 16
      %v5767 = vrot.slane %v5765, 5
      %v5768 = vsel %vm1825, %v5763, %v5767
      %v5770 = vshrl.u32 %v5469, 16
      %v5772 = vrot.slane %v5770, 4
      %v5773 = vshll.u32 %v5469, 16
      %v5775 = vrot.slane %v5773, 5
      %v5776 = vor.u32 %v5772, %v5775
      %v5777 = vrot.slane %v5776, 4
      %v5779 = vshll.u32 %v5470, 16
      %v5781 = vrot.slane %v5779, 5
      %v5782 = vsel %vm1825, %v5777, %v5781
      %v5783 = vshrl.u32 %v5470, 16
      %v5785 = vrot.slane %v5783, 4
      %v5786 = vor.u32 %v5785, %v5781
      %v5787 = vrot.slane %v5786, 4
      %v5789 = vshll.u32 %v5471, 16
      %v5791 = vrot.slane %v5789, 5
      %v5792 = vsel %vm1825, %v5787, %v5791
      %v5794 = vshrl.u32 %v5472, 16
      %v5796 = vrot.slane %v5794, 4
      %v5797 = vshll.u32 %v5472, 16
      %v5799 = vrot.slane %v5797, 5
      %v5800 = vor.u32 %v5796, %v5799
      %v5801 = vrot.slane %v5800, 4
      %v5803 = vshll.u32 %v5473, 16
      %v5805 = vrot.slane %v5803, 5
      %v5806 = vsel %vm1825, %v5801, %v5805
      %v5807 = vshrl.u32 %v5473, 16
      %v5809 = vrot.slane %v5807, 4
      %v5810 = vor.u32 %v5809, %v5805
      %v5811 = vrot.slane %v5810, 4
      %v5813 = vshll.u32 %v5474, 16
      %v5815 = vrot.slane %v5813, 5
      %v5816 = vsel %vm1825, %v5811, %v5815
      %v5818 = vshrl.u32 %v5475, 16
      %v5820 = vrot.slane %v5818, 4
      %v5821 = vshll.u32 %v5475, 16
      %v5823 = vrot.slane %v5821, 5
      %v5824 = vor.u32 %v5820, %v5823
      %v5825 = vrot.slane %v5824, 4
      %v5827 = vshll.u32 %v5476, 16
      %v5829 = vrot.slane %v5827, 5
      %v5830 = vsel %vm1825, %v5825, %v5829
      %v5831 = vshrl.u32 %v5476, 16
      %v5833 = vrot.slane %v5831, 4
      %v5834 = vor.u32 %v5833, %v5829
      %v5835 = vrot.slane %v5834, 4
      %v5837 = vshll.u32 %v5477, 16
      %v5839 = vrot.slane %v5837, 5
      %v5840 = vsel %vm1825, %v5835, %v5839
      %v5842 = vshrl.u32 %v5478, 16
      %v5844 = vrot.slane %v5842, 4
      %v5845 = vshll.u32 %v5478, 16
      %v5847 = vrot.slane %v5845, 5
      %v5848 = vor.u32 %v5844, %v5847
      %v5849 = vrot.slane %v5848, 4
      %v5851 = vshll.u32 %v5479, 16
      %v5853 = vrot.slane %v5851, 5
      %v5854 = vsel %vm1825, %v5849, %v5853
      %v5855 = vshrl.u32 %v5479, 16
      %v5857 = vrot.slane %v5855, 4
      %v5858 = vor.u32 %v5857, %v5853
      %v5859 = vrot.slane %v5858, 4
      %v5861 = vshll.u32 %v5480, 16
      %v5863 = vrot.slane %v5861, 5
      %v5864 = vsel %vm1825, %v5859, %v5863
      %v5865 = vld [vmem:[%s3 + $0x200] sm:$0xf]
      %v5866 = vld [vmem:[%s3 + $0x204] sm:$0xf]
      %v5867 = vld [vmem:[%s3 + $0x208] sm:$0xf]
      %v5868 = vld [vmem:[%s3 + $0x20c] sm:$0xf]
      %v5869 = vld [vmem:[%s3 + $0x210] sm:$0xf]
      %v5870 = vld [vmem:[%s3 + $0x214] sm:$0xf]
      %v5871 = vld [vmem:[%s3 + $0x218] sm:$0xf]
      %v5872 = vld [vmem:[%s3 + $0x21c] sm:$0xf]
      %v5873 = vld [vmem:[%s3 + $0x220] sm:$0xf]
      %v5874 = vld [vmem:[%s3 + $0x224] sm:$0xf]
      %v5875 = vld [vmem:[%s3 + $0x228] sm:$0xf]
      %v5876 = vld [vmem:[%s3 + $0x22c] sm:$0xf]
      %v5877 = vld [vmem:[%s3 + $0x230] sm:$0xf]
      %v5878 = vld [vmem:[%s3 + $0x234] sm:$0xf]
      %v5879 = vld [vmem:[%s3 + $0x238] sm:$0xf]
      %v5880 = vld [vmem:[%s3 + $0x23c] sm:$0xf]
      %v5881 = vunpack.c.l.b16 %v5494
      %v5882 = vunpack.c.l.b16 %v5504
      %v5883 = vunpack.c.l.b16 %v5518
      %v5884 = vunpack.c.l.b16 %v5528
      %v5885 = vunpack.c.l.b16 %v5542
      %v5886 = vunpack.c.l.b16 %v5552
      %v5887 = vunpack.c.l.b16 %v5566
      %v5888 = vunpack.c.l.b16 %v5576
      %v5889 = vunpack.c.l.b16 %v5590
      %v5890 = vunpack.c.l.b16 %v5600
      %v5891 = vunpack.c.l.b16 %v5614
      %v5892 = vunpack.c.l.b16 %v5624
      %v5893 = vunpack.c.l.b16 %v5638
      %v5894 = vunpack.c.l.b16 %v5648
      %v5895 = vunpack.c.l.b16 %v5662
      %v5896 = vunpack.c.l.b16 %v5672
      %v5897 = vunpack.c.l.b16 %v5686
      %v5898 = vunpack.c.l.b16 %v5696
      %v5899 = vunpack.c.l.b16 %v5710
      %v5900 = vunpack.c.l.b16 %v5720
      %v5901 = vunpack.c.l.b16 %v5734
      %v5902 = vunpack.c.l.b16 %v5744
      %v5903 = vunpack.c.l.b16 %v5758
      %v5904 = vunpack.c.l.b16 %v5768
      %v5905 = vunpack.c.l.b16 %v5782
      %v5906 = vunpack.c.l.b16 %v5792
      %v5907 = vunpack.c.l.b16 %v5806
      %v5908 = vunpack.c.l.b16 %v5816
      %v5909 = vunpack.c.l.b16 %v5830
      %v5910 = vunpack.c.l.b16 %v5840
      %v5911 = vunpack.c.l.b16 %v5854
      %v5912 = vunpack.c.l.b16 %v5864
      %v5913 = vpack.c.b16 %v5882, %v5881
      %v5914 = vpack.c.b16 %v5884, %v5883
      %v5915 = vpack.c.b16 %v5886, %v5885
      %v5916 = vpack.c.b16 %v5888, %v5887
      %v5917 = vpack.c.b16 %v5890, %v5889
      %v5918 = vpack.c.b16 %v5892, %v5891
      %v5919 = vpack.c.b16 %v5894, %v5893
      %v5920 = vpack.c.b16 %v5896, %v5895
      %v5921 = vpack.c.b16 %v5898, %v5897
      %v5922 = vpack.c.b16 %v5900, %v5899
      %v5923 = vpack.c.b16 %v5902, %v5901
      %v5924 = vpack.c.b16 %v5904, %v5903
      %v5925 = vpack.c.b16 %v5906, %v5905
      %v5926 = vpack.c.b16 %v5908, %v5907
      %v5927 = vpack.c.b16 %v5910, %v5909
      %v5928 = vpack.c.b16 %v5912, %v5911
      %v5961 = vunpack.c.l.b16 %v5865
      %v5962 = vunpack.c.l.b16 %v5866
      %v5963 = vunpack.c.l.b16 %v5867
      %v5964 = vunpack.c.l.b16 %v5868
      %v5965 = vunpack.c.l.b16 %v5869
      %v5966 = vunpack.c.l.b16 %v5870
      %v5967 = vunpack.c.l.b16 %v5871
      %v5968 = vunpack.c.l.b16 %v5872
      %v5969 = vunpack.c.l.b16 %v5873
      %v5970 = vunpack.c.l.b16 %v5874
      %v5971 = vunpack.c.l.b16 %v5875
      %v5972 = vunpack.c.l.b16 %v5876
      %v5973 = vunpack.c.l.b16 %v5877
      %v5974 = vunpack.c.l.b16 %v5878
      %v5975 = vunpack.c.l.b16 %v5879
      %v5976 = vunpack.c.l.b16 %v5880
      %v5977 = vpack.c.b16 %v5962, %v5961
      %v5978 = vpack.c.b16 %v5964, %v5963
      %v5979 = vpack.c.b16 %v5966, %v5965
      %v5980 = vpack.c.b16 %v5968, %v5967
      %v5981 = vpack.c.b16 %v5970, %v5969
      %v5982 = vpack.c.b16 %v5972, %v5971
      %v5983 = vpack.c.b16 %v5974, %v5973
      %v5984 = vpack.c.b16 %v5976, %v5975
      %5993 = vmatprep.subr.bf16.mxu0 0
      %5994 = vmatpush1.bf16.msra.mxu0 %v5984
      %5995 = vmatprep.subr.bf16.mxu0 0
      %5996 = vmatpush1.bf16.msra.mxu0 %v5983
      %5997 = vmatprep.subr.bf16.mxu0 0
      %5998 = vmatpush1.bf16.msra.mxu0 %v5982
      %5999 = vmatprep.subr.bf16.mxu0 0
      %6000 = vmatpush1.bf16.msra.mxu0 %v5981
      %6001 = vmatprep.subr.bf16.mxu0 0
      %6002 = vmatpush1.bf16.msra.mxu0 %v5980
      %6003 = vmatprep.subr.bf16.mxu0 0
      %6004 = vmatpush1.bf16.msra.mxu0 %v5979
      %6005 = vmatprep.subr.bf16.mxu0 0
      %6006 = vmatpush1.bf16.msra.mxu0 %v5978
      %6007 = vmatprep.subr.bf16.mxu0 0
      %6008 = vmatpush1.bf16.msra.mxu0 %v5977
      %6009 = vmatprep.subr.bf16.mxu0 0
      %6010 = vmatpush2.bf16.msra.mxu0 0
      %6011 = vmatprep.subr.bf16.mxu0 0
      %6012 = vmatpush2.bf16.msra.mxu0 0
      %6013 = vmatprep.subr.bf16.mxu0 0
      %6014 = vmatpush2.bf16.msra.mxu0 0
      %6015 = vmatprep.subr.bf16.mxu0 0
      %6016 = vmatpush2.bf16.msra.mxu0 0
      %6017 = vmatprep.subr.bf16.mxu0 0
      %6018 = vmatpush2.bf16.msra.mxu0 0
      %6019 = vmatprep.subr.bf16.mxu0 0
      %6020 = vmatpush2.bf16.msra.mxu0 0
      %6021 = vmatprep.subr.bf16.mxu0 0
      %6022 = vmatpush2.bf16.msra.mxu0 0
      %6023 = vmatprep.subr.bf16.mxu0 0
      %6024 = vmatpush2.bf16.msra.mxu0 0
      %6025 = vmatprep.mubr.bf16.mxu0 0
      %6026 = vmatmul.mubr.bf16.gmra.mxu0 %v5913
      %v6027 = vpop.f32.mrf.mxu0
      %v6028 = vadd.f32 0.0, %v6027
      %v6029 = vpop.f32.mrf.mxu0
      %v6030 = vpop.f32.mrf.mxu0
      %v6031 = vadd.f32 0.0, %v6030
      %v6032 = vpop.f32.mrf.mxu0
      %6033 = vmatprep.mubr.bf16.mxu0 0
      %6034 = vmatmul.mubr.bf16.gmra.mxu0 %v5914
      %v6035 = vpop.f32.mrf.mxu0
      %v6036 = vadd.f32 0.0, %v6035
      %v6037 = vpop.f32.mrf.mxu0
      %v6038 = vpop.f32.mrf.mxu0
      %v6039 = vadd.f32 0.0, %v6038
      %v6040 = vpop.f32.mrf.mxu0
      %6041 = vmatprep.mubr.bf16.mxu0 0
      %6042 = vmatmul.mubr.bf16.gmra.mxu0 %v5915
      %v6043 = vpop.f32.mrf.mxu0
      %v6044 = vadd.f32 0.0, %v6043
      %v6045 = vpop.f32.mrf.mxu0
      %v6046 = vpop.f32.mrf.mxu0
      %v6047 = vadd.f32 0.0, %v6046
      %v6048 = vpop.f32.mrf.mxu0
      %6049 = vmatprep.mubr.bf16.mxu0 0
      %6050 = vmatmul.mubr.bf16.gmra.mxu0 %v5916
      %v6051 = vpop.f32.mrf.mxu0
      %v6052 = vadd.f32 0.0, %v6051
      %v6053 = vpop.f32.mrf.mxu0
      %v6054 = vpop.f32.mrf.mxu0
      %v6055 = vadd.f32 0.0, %v6054
      %v6056 = vpop.f32.mrf.mxu0
      %6057 = vmatprep.mubr.bf16.mxu0 0
      %6058 = vmatmul.mubr.bf16.gmra.mxu0 %v5917
      %v6059 = vpop.f32.mrf.mxu0
      %v6060 = vadd.f32 0.0, %v6059
      %v6061 = vpop.f32.mrf.mxu0
      %v6062 = vpop.f32.mrf.mxu0
      %v6063 = vadd.f32 0.0, %v6062
      %v6064 = vpop.f32.mrf.mxu0
      %6065 = vmatprep.mubr.bf16.mxu0 0
      %6066 = vmatmul.mubr.bf16.gmra.mxu0 %v5918
      %v6067 = vpop.f32.mrf.mxu0
      %v6068 = vadd.f32 0.0, %v6067
      %v6069 = vpop.f32.mrf.mxu0
      %v6070 = vpop.f32.mrf.mxu0
      %v6071 = vadd.f32 0.0, %v6070
      %v6072 = vpop.f32.mrf.mxu0
      %6073 = vmatprep.mubr.bf16.mxu0 0
      %6074 = vmatmul.mubr.bf16.gmra.mxu0 %v5919
      %v6075 = vpop.f32.mrf.mxu0
      %v6076 = vadd.f32 0.0, %v6075
      %v6077 = vpop.f32.mrf.mxu0
      %v6078 = vpop.f32.mrf.mxu0
      %v6079 = vadd.f32 0.0, %v6078
      %v6080 = vpop.f32.mrf.mxu0
      %6081 = vmatprep.mubr.bf16.mxu0 0
      %6082 = vmatmul.mubr.bf16.gmra.mxu0 %v5920
      %v6083 = vpop.f32.mrf.mxu0
      %v6084 = vadd.f32 0.0, %v6083
      %v6085 = vpop.f32.mrf.mxu0
      %v6086 = vpop.f32.mrf.mxu0
      %v6087 = vadd.f32 0.0, %v6086
      %v6088 = vpop.f32.mrf.mxu0
      %6089 = vmatprep.mubr.bf16.mxu0 0
      %6090 = vmatmul.mubr.bf16.gmra.mxu0 %v5921
      %v6091 = vpop.f32.mrf.mxu0
      %v6092 = vadd.f32 0.0, %v6091
      %v6093 = vpop.f32.mrf.mxu0
      %v6094 = vpop.f32.mrf.mxu0
      %v6095 = vadd.f32 0.0, %v6094
      %v6096 = vpop.f32.mrf.mxu0
      %6097 = vmatprep.mubr.bf16.mxu0 0
      %6098 = vmatmul.mubr.bf16.gmra.mxu0 %v5922
      %v6099 = vpop.f32.mrf.mxu0
      %v6100 = vadd.f32 0.0, %v6099
      %v6101 = vpop.f32.mrf.mxu0
      %v6102 = vpop.f32.mrf.mxu0
      %v6103 = vadd.f32 0.0, %v6102
      %v6104 = vpop.f32.mrf.mxu0
      %6105 = vmatprep.mubr.bf16.mxu0 0
      %6106 = vmatmul.mubr.bf16.gmra.mxu0 %v5923
      %v6107 = vpop.f32.mrf.mxu0
      %v6108 = vadd.f32 0.0, %v6107
      %v6109 = vpop.f32.mrf.mxu0
      %v6110 = vpop.f32.mrf.mxu0
      %v6111 = vadd.f32 0.0, %v6110
      %v6112 = vpop.f32.mrf.mxu0
      %6113 = vmatprep.mubr.bf16.mxu0 0
      %6114 = vmatmul.mubr.bf16.gmra.mxu0 %v5924
      %v6115 = vpop.f32.mrf.mxu0
      %v6116 = vadd.f32 0.0, %v6115
      %v6117 = vpop.f32.mrf.mxu0
      %v6118 = vpop.f32.mrf.mxu0
      %v6119 = vadd.f32 0.0, %v6118
      %v6120 = vpop.f32.mrf.mxu0
      %6121 = vmatprep.mubr.bf16.mxu0 0
      %6122 = vmatmul.mubr.bf16.gmra.mxu0 %v5925
      %v6123 = vpop.f32.mrf.mxu0
      %v6124 = vadd.f32 0.0, %v6123
      %v6125 = vpop.f32.mrf.mxu0
      %v6126 = vpop.f32.mrf.mxu0
      %v6127 = vadd.f32 0.0, %v6126
      %v6128 = vpop.f32.mrf.mxu0
      %6129 = vmatprep.mubr.bf16.mxu0 0
      %6130 = vmatmul.mubr.bf16.gmra.mxu0 %v5926
      %v6131 = vpop.f32.mrf.mxu0
      %v6132 = vadd.f32 0.0, %v6131
      %v6133 = vpop.f32.mrf.mxu0
      %v6134 = vpop.f32.mrf.mxu0
      %v6135 = vadd.f32 0.0, %v6134
      %v6136 = vpop.f32.mrf.mxu0
      %6137 = vmatprep.mubr.bf16.mxu0 0
      %6138 = vmatmul.mubr.bf16.gmra.mxu0 %v5927
      %v6139 = vpop.f32.mrf.mxu0
      %v6140 = vadd.f32 0.0, %v6139
      %v6141 = vpop.f32.mrf.mxu0
      %v6142 = vpop.f32.mrf.mxu0
      %v6143 = vadd.f32 0.0, %v6142
      %v6144 = vpop.f32.mrf.mxu0
      %6145 = vmatprep.mubr.bf16.mxu0 0
      %6146 = vmatmul.mubr.bf16.gmra.mxu0 %v5928
      %v6147 = vpop.f32.mrf.mxu0
      %v6148 = vadd.f32 0.0, %v6147
      %v6149 = vpop.f32.mrf.mxu0
      %v6150 = vpop.f32.mrf.mxu0
      %v6151 = vadd.f32 0.0, %v6150
      %v6152 = vpop.f32.mrf.mxu0
      %6153 = vdwg.mxu0
      %v6154 = vadd.f32 %v5401, %v6028
      %v6155 = vadd.f32 %v5402, %v6031
      %v6156 = vadd.f32 %v5403, %v6036
      %v6157 = vadd.f32 %v5404, %v6039
      %v6158 = vadd.f32 %v5405, %v6044
      %v6159 = vadd.f32 %v5406, %v6047
      %v6160 = vadd.f32 %v5407, %v6052
      %v6161 = vadd.f32 %v5408, %v6055
      %v6162 = vadd.f32 %v5409, %v6060
      %v6163 = vadd.f32 %v5410, %v6063
      %v6164 = vadd.f32 %v5411, %v6068
      %v6165 = vadd.f32 %v5412, %v6071
      %v6166 = vadd.f32 %v5413, %v6076
      %v6167 = vadd.f32 %v5414, %v6079
      %v6168 = vadd.f32 %v5415, %v6084
      %v6169 = vadd.f32 %v5416, %v6087
      %v6170 = vadd.f32 %v5417, %v6092
      %v6171 = vadd.f32 %v5418, %v6095
      %v6172 = vadd.f32 %v5419, %v6100
      %v6173 = vadd.f32 %v5420, %v6103
      %v6174 = vadd.f32 %v5421, %v6108
      %v6175 = vadd.f32 %v5422, %v6111
      %v6176 = vadd.f32 %v5423, %v6116
      %v6177 = vadd.f32 %v5424, %v6119
      %v6178 = vadd.f32 %v5425, %v6124
      %v6179 = vadd.f32 %v5426, %v6127
      %v6180 = vadd.f32 %v5427, %v6132
      %v6181 = vadd.f32 %v5428, %v6135
      %v6182 = vadd.f32 %v5429, %v6140
      %v6183 = vadd.f32 %v5430, %v6143
      %v6184 = vadd.f32 %v5431, %v6148
      %v6185 = vadd.f32 %v5432, %v6151
      %6186 = vst [vmem:[%s372] sm:$0xff] %v6154
      %6187 = vst [vmem:[%s372 + $0x8] sm:$0xff] %v6155
      %6188 = vst [vmem:[%s372 + $0x10] sm:$0xff] %v6156
      %6189 = vst [vmem:[%s372 + $0x18] sm:$0xff] %v6157
      %6190 = vst [vmem:[%s372 + $0x20] sm:$0xff] %v6158
      %6191 = vst [vmem:[%s372 + $0x28] sm:$0xff] %v6159
      %6192 = vst [vmem:[%s372 + $0x30] sm:$0xff] %v6160
      %6193 = vst [vmem:[%s372 + $0x38] sm:$0xff] %v6161
      %6194 = vst [vmem:[%s372 + $0x40] sm:$0xff] %v6162
      %6195 = vst [vmem:[%s372 + $0x48] sm:$0xff] %v6163
      %6196 = vst [vmem:[%s372 + $0x50] sm:$0xff] %v6164
      %6197 = vst [vmem:[%s372 + $0x58] sm:$0xff] %v6165
      %6198 = vst [vmem:[%s372 + $0x60] sm:$0xff] %v6166
      %6199 = vst [vmem:[%s372 + $0x68] sm:$0xff] %v6167
      %6200 = vst [vmem:[%s372 + $0x70] sm:$0xff] %v6168
      %6201 = vst [vmem:[%s372 + $0x78] sm:$0xff] %v6169
      %6202 = vst [vmem:[%s372 + $0x80] sm:$0xff] %v6170
      %6203 = vst [vmem:[%s372 + $0x88] sm:$0xff] %v6171
      %6204 = vst [vmem:[%s372 + $0x90] sm:$0xff] %v6172
      %6205 = vst [vmem:[%s372 + $0x98] sm:$0xff] %v6173
      %6206 = vst [vmem:[%s372 + $0xa0] sm:$0xff] %v6174
      %6207 = vst [vmem:[%s372 + $0xa8] sm:$0xff] %v6175
      %6208 = vst [vmem:[%s372 + $0xb0] sm:$0xff] %v6176
      %6209 = vst [vmem:[%s372 + $0xb8] sm:$0xff] %v6177
      %6210 = vst [vmem:[%s372 + $0xc0] sm:$0xff] %v6178
      %6211 = vst [vmem:[%s372 + $0xc8] sm:$0xff] %v6179
      %6212 = vst [vmem:[%s372 + $0xd0] sm:$0xff] %v6180
      %6213 = vst [vmem:[%s372 + $0xd8] sm:$0xff] %v6181
      %6214 = vst [vmem:[%s372 + $0xe0] sm:$0xff] %v6182
      %6215 = vst [vmem:[%s372 + $0xe8] sm:$0xff] %v6183
      %6216 = vst [vmem:[%s372 + $0xf0] sm:$0xff] %v6184
      %6217 = vst [vmem:[%s372 + $0xf8] sm:$0xff] %v6185
      %v6218 = vadd.f32 %v6154, %v6155
      %v6219 = vadd.f32 %v6218, %v6156
      %v6220 = vadd.f32 %v6219, %v6157
      %v6221 = vadd.f32 %v6220, %v6158
      %v6222 = vadd.f32 %v6221, %v6159
      %v6223 = vadd.f32 %v6222, %v6160
      %v6224 = vadd.f32 %v6223, %v6161
      %v6225 = vadd.f32 %v6224, %v6162
      %v6226 = vadd.f32 %v6225, %v6163
      %v6227 = vadd.f32 %v6226, %v6164
      %v6228 = vadd.f32 %v6227, %v6165
      %v6229 = vadd.f32 %v6228, %v6166
      %v6230 = vadd.f32 %v6229, %v6167
      %v6231 = vadd.f32 %v6230, %v6168
      %v6232 = vadd.f32 %v6231, %v6169
      %v6233 = vadd.f32 %v6232, %v6170
      %v6234 = vadd.f32 %v6233, %v6171
      %v6235 = vadd.f32 %v6234, %v6172
      %v6236 = vadd.f32 %v6235, %v6173
      %v6237 = vadd.f32 %v6236, %v6174
      %v6238 = vadd.f32 %v6237, %v6175
      %v6239 = vadd.f32 %v6238, %v6176
      %v6240 = vadd.f32 %v6239, %v6177
      %v6241 = vadd.f32 %v6240, %v6178
      %v6242 = vadd.f32 %v6241, %v6179
      %v6243 = vadd.f32 %v6242, %v6180
      %v6244 = vadd.f32 %v6243, %v6181
      %v6245 = vadd.f32 %v6244, %v6182
      %v6246 = vadd.f32 %v6245, %v6183
      %v6247 = vadd.f32 %v6246, %v6184
      %v6248 = vadd.f32 %v6247, %v6185
      %v6249 = vrot.slane %v6248, 4
      %v6250 = vadd.f32 %v6248, %v6249
      %v6251 = vrot.slane %v6250, 2
      %v6252 = vadd.f32 %v6250, %v6251
      %v6253 = vrot.slane %v6252, 1
      %v6254 = vadd.f32 %v6252, %v6253
      %6255 = vst [vmem:[%s381] sm:$0x1] %v6254
      %v6256 = vmul.f32 %v6154, %v6154
      %v6257 = vmul.f32 %v6155, %v6155
      %v6258 = vmul.f32 %v6156, %v6156
      %v6259 = vmul.f32 %v6157, %v6157
      %v6260 = vmul.f32 %v6158, %v6158
      %v6261 = vmul.f32 %v6159, %v6159
      %v6262 = vmul.f32 %v6160, %v6160
      %v6263 = vmul.f32 %v6161, %v6161
      %v6264 = vmul.f32 %v6162, %v6162
      %v6265 = vmul.f32 %v6163, %v6163
      %v6266 = vmul.f32 %v6164, %v6164
      %v6267 = vmul.f32 %v6165, %v6165
      %v6268 = vmul.f32 %v6166, %v6166
      %v6269 = vmul.f32 %v6167, %v6167
      %v6270 = vmul.f32 %v6168, %v6168
      %v6271 = vmul.f32 %v6169, %v6169
      %v6272 = vmul.f32 %v6170, %v6170
      %v6273 = vmul.f32 %v6171, %v6171
      %v6274 = vmul.f32 %v6172, %v6172
      %v6275 = vmul.f32 %v6173, %v6173
      %v6276 = vmul.f32 %v6174, %v6174
      %v6277 = vmul.f32 %v6175, %v6175
      %v6278 = vmul.f32 %v6176, %v6176
      %v6279 = vmul.f32 %v6177, %v6177
      %v6280 = vmul.f32 %v6178, %v6178
      %v6281 = vmul.f32 %v6179, %v6179
      %v6282 = vmul.f32 %v6180, %v6180
      %v6283 = vmul.f32 %v6181, %v6181
      %v6284 = vmul.f32 %v6182, %v6182
      %v6285 = vmul.f32 %v6183, %v6183
      %v6286 = vmul.f32 %v6184, %v6184
      %v6287 = vmul.f32 %v6185, %v6185
      %v6288 = vadd.f32 %v6256, %v6257
      %v6289 = vadd.f32 %v6288, %v6258
      %v6290 = vadd.f32 %v6289, %v6259
      %v6291 = vadd.f32 %v6290, %v6260
      %v6292 = vadd.f32 %v6291, %v6261
      %v6293 = vadd.f32 %v6292, %v6262
      %v6294 = vadd.f32 %v6293, %v6263
      %v6295 = vadd.f32 %v6294, %v6264
      %v6296 = vadd.f32 %v6295, %v6265
      %v6297 = vadd.f32 %v6296, %v6266
      %v6298 = vadd.f32 %v6297, %v6267
      %v6299 = vadd.f32 %v6298, %v6268
      %v6300 = vadd.f32 %v6299, %v6269
      %v6301 = vadd.f32 %v6300, %v6270
      %v6302 = vadd.f32 %v6301, %v6271
      %v6303 = vadd.f32 %v6302, %v6272
      %v6304 = vadd.f32 %v6303, %v6273
      %v6305 = vadd.f32 %v6304, %v6274
      %v6306 = vadd.f32 %v6305, %v6275
      %v6307 = vadd.f32 %v6306, %v6276
      %v6308 = vadd.f32 %v6307, %v6277
      %v6309 = vadd.f32 %v6308, %v6278
      %v6310 = vadd.f32 %v6309, %v6279
      %v6311 = vadd.f32 %v6310, %v6280
      %v6312 = vadd.f32 %v6311, %v6281
      %v6313 = vadd.f32 %v6312, %v6282
      %v6314 = vadd.f32 %v6313, %v6283
      %v6315 = vadd.f32 %v6314, %v6284
      %v6316 = vadd.f32 %v6315, %v6285
      %v6317 = vadd.f32 %v6316, %v6286
      %v6318 = vadd.f32 %v6317, %v6287
      %v6319 = vrot.slane %v6318, 4
      %v6320 = vadd.f32 %v6318, %v6319
      %v6321 = vrot.slane %v6320, 2
      %v6322 = vadd.f32 %v6320, %v6321
      %v6323 = vrot.slane %v6322, 1
      %v6324 = vadd.f32 %v6322, %v6323
      %6325 = vst [vmem:[%s381 + $0x1] sm:$0x1] %v6324
      %v6326 = vld [vmem:[%s367] sm:$0xf]
      %v6327 = vld [vmem:[%s367 + $0x4] sm:$0xf]
      %v6328 = vld [vmem:[%s367 + $0x8] sm:$0xf]
      %v6329 = vld [vmem:[%s367 + $0xc] sm:$0xf]
      %v6330 = vld [vmem:[%s367 + $0x10] sm:$0xf]
      %v6331 = vld [vmem:[%s367 + $0x14] sm:$0xf]
      %v6332 = vld [vmem:[%s367 + $0x18] sm:$0xf]
      %v6333 = vld [vmem:[%s367 + $0x1c] sm:$0xf]
      %v6334 = vld [vmem:[%s367 + $0x20] sm:$0xf]
      %v6335 = vld [vmem:[%s367 + $0x24] sm:$0xf]
      %v6336 = vld [vmem:[%s367 + $0x28] sm:$0xf]
      %v6337 = vld [vmem:[%s367 + $0x2c] sm:$0xf]
      %v6338 = vld [vmem:[%s367 + $0x30] sm:$0xf]
      %v6339 = vld [vmem:[%s367 + $0x34] sm:$0xf]
      %v6340 = vld [vmem:[%s367 + $0x38] sm:$0xf]
      %v6341 = vld [vmem:[%s367 + $0x3c] sm:$0xf]
      %v6342 = vld [vmem:[%s367 + $0x40] sm:$0xf]
      %v6343 = vld [vmem:[%s367 + $0x44] sm:$0xf]
      %v6344 = vld [vmem:[%s367 + $0x48] sm:$0xf]
      %v6345 = vld [vmem:[%s367 + $0x4c] sm:$0xf]
      %v6346 = vld [vmem:[%s367 + $0x50] sm:$0xf]
      %v6347 = vld [vmem:[%s367 + $0x54] sm:$0xf]
      %v6348 = vld [vmem:[%s367 + $0x58] sm:$0xf]
      %v6349 = vld [vmem:[%s367 + $0x5c] sm:$0xf]
      %v6350 = vld [vmem:[%s367 + $0x60] sm:$0xf]
      %v6351 = vld [vmem:[%s367 + $0x64] sm:$0xf]
      %v6352 = vld [vmem:[%s367 + $0x68] sm:$0xf]
      %v6353 = vld [vmem:[%s367 + $0x6c] sm:$0xf]
      %v6354 = vld [vmem:[%s367 + $0x70] sm:$0xf]
      %v6355 = vld [vmem:[%s367 + $0x74] sm:$0xf]
      %v6356 = vld [vmem:[%s367 + $0x78] sm:$0xf]
      %v6357 = vld [vmem:[%s367 + $0x7c] sm:$0xf]
      %v6358 = vld [vmem:[%s5] sm:$0xf]
      %v6359 = vld [vmem:[%s5 + $0x4] sm:$0xf]
      %v6360 = vld [vmem:[%s5 + $0x8] sm:$0xf]
      %v6361 = vld [vmem:[%s5 + $0xc] sm:$0xf]
      %v6362 = vld [vmem:[%s5 + $0x10] sm:$0xf]
      %v6363 = vld [vmem:[%s5 + $0x14] sm:$0xf]
      %v6364 = vld [vmem:[%s5 + $0x18] sm:$0xf]
      %v6365 = vld [vmem:[%s5 + $0x1c] sm:$0xf]
      %v6366 = vld [vmem:[%s5 + $0x20] sm:$0xf]
      %v6367 = vld [vmem:[%s5 + $0x24] sm:$0xf]
      %v6368 = vld [vmem:[%s5 + $0x28] sm:$0xf]
      %v6369 = vld [vmem:[%s5 + $0x2c] sm:$0xf]
      %v6370 = vld [vmem:[%s5 + $0x30] sm:$0xf]
      %v6371 = vld [vmem:[%s5 + $0x34] sm:$0xf]
      %v6372 = vld [vmem:[%s5 + $0x38] sm:$0xf]
      %v6373 = vld [vmem:[%s5 + $0x3c] sm:$0xf]
      %v6406 = vunpack.c.l.b16 %v6326
      %v6407 = vunpack.c.l.b16 %v6327
      %v6408 = vunpack.c.l.b16 %v6328
      %v6409 = vunpack.c.l.b16 %v6329
      %v6410 = vunpack.c.l.b16 %v6330
      %v6411 = vunpack.c.l.b16 %v6331
      %v6412 = vunpack.c.l.b16 %v6332
      %v6413 = vunpack.c.l.b16 %v6333
      %v6414 = vunpack.c.l.b16 %v6334
      %v6415 = vunpack.c.l.b16 %v6335
      %v6416 = vunpack.c.l.b16 %v6336
      %v6417 = vunpack.c.l.b16 %v6337
      %v6418 = vunpack.c.l.b16 %v6338
      %v6419 = vunpack.c.l.b16 %v6339
      %v6420 = vunpack.c.l.b16 %v6340
      %v6421 = vunpack.c.l.b16 %v6341
      %v6422 = vunpack.c.l.b16 %v6342
      %v6423 = vunpack.c.l.b16 %v6343
      %v6424 = vunpack.c.l.b16 %v6344
      %v6425 = vunpack.c.l.b16 %v6345
      %v6426 = vunpack.c.l.b16 %v6346
      %v6427 = vunpack.c.l.b16 %v6347
      %v6428 = vunpack.c.l.b16 %v6348
      %v6429 = vunpack.c.l.b16 %v6349
      %v6430 = vunpack.c.l.b16 %v6350
      %v6431 = vunpack.c.l.b16 %v6351
      %v6432 = vunpack.c.l.b16 %v6352
      %v6433 = vunpack.c.l.b16 %v6353
      %v6434 = vunpack.c.l.b16 %v6354
      %v6435 = vunpack.c.l.b16 %v6355
      %v6436 = vunpack.c.l.b16 %v6356
      %v6437 = vunpack.c.l.b16 %v6357
      %v6438 = vpack.c.b16 %v6407, %v6406
      %v6439 = vpack.c.b16 %v6409, %v6408
      %v6440 = vpack.c.b16 %v6411, %v6410
      %v6441 = vpack.c.b16 %v6413, %v6412
      %v6442 = vpack.c.b16 %v6415, %v6414
      %v6443 = vpack.c.b16 %v6417, %v6416
      %v6444 = vpack.c.b16 %v6419, %v6418
      %v6445 = vpack.c.b16 %v6421, %v6420
      %v6446 = vpack.c.b16 %v6423, %v6422
      %v6447 = vpack.c.b16 %v6425, %v6424
      %v6448 = vpack.c.b16 %v6427, %v6426
      %v6449 = vpack.c.b16 %v6429, %v6428
      %v6450 = vpack.c.b16 %v6431, %v6430
      %v6451 = vpack.c.b16 %v6433, %v6432
      %v6452 = vpack.c.b16 %v6435, %v6434
      %v6453 = vpack.c.b16 %v6437, %v6436
      %v6486 = vunpack.c.l.b16 %v6358
      %v6487 = vunpack.c.l.b16 %v6359
      %v6488 = vunpack.c.l.b16 %v6360
      %v6489 = vunpack.c.l.b16 %v6361
      %v6490 = vunpack.c.l.b16 %v6362
      %v6491 = vunpack.c.l.b16 %v6363
      %v6492 = vunpack.c.l.b16 %v6364
      %v6493 = vunpack.c.l.b16 %v6365
      %v6494 = vunpack.c.l.b16 %v6366
      %v6495 = vunpack.c.l.b16 %v6367
      %v6496 = vunpack.c.l.b16 %v6368
      %v6497 = vunpack.c.l.b16 %v6369
      %v6498 = vunpack.c.l.b16 %v6370
      %v6499 = vunpack.c.l.b16 %v6371
      %v6500 = vunpack.c.l.b16 %v6372
      %v6501 = vunpack.c.l.b16 %v6373
      %v6502 = vpack.c.b16 %v6487, %v6486
      %v6503 = vpack.c.b16 %v6489, %v6488
      %v6504 = vpack.c.b16 %v6491, %v6490
      %v6505 = vpack.c.b16 %v6493, %v6492
      %v6506 = vpack.c.b16 %v6495, %v6494
      %v6507 = vpack.c.b16 %v6497, %v6496
      %v6508 = vpack.c.b16 %v6499, %v6498
      %v6509 = vpack.c.b16 %v6501, %v6500
      %6518 = vmatprep.subr.bf16.mxu0 0
      %6519 = vmatpush1.bf16.msra.mxu0 %v6509
      %6520 = vmatprep.subr.bf16.mxu0 0
      %6521 = vmatpush1.bf16.msra.mxu0 %v6508
      %6522 = vmatprep.subr.bf16.mxu0 0
      %6523 = vmatpush1.bf16.msra.mxu0 %v6507
      %6524 = vmatprep.subr.bf16.mxu0 0
      %6525 = vmatpush1.bf16.msra.mxu0 %v6506
      %6526 = vmatprep.subr.bf16.mxu0 0
      %6527 = vmatpush1.bf16.msra.mxu0 %v6505
      %6528 = vmatprep.subr.bf16.mxu0 0
      %6529 = vmatpush1.bf16.msra.mxu0 %v6504
      %6530 = vmatprep.subr.bf16.mxu0 0
      %6531 = vmatpush1.bf16.msra.mxu0 %v6503
      %6532 = vmatprep.subr.bf16.mxu0 0
      %6533 = vmatpush1.bf16.msra.mxu0 %v6502
      %6534 = vmatprep.subr.bf16.mxu0 0
      %6535 = vmatpush2.bf16.msra.mxu0 0
      %6536 = vmatprep.subr.bf16.mxu0 0
      %6537 = vmatpush2.bf16.msra.mxu0 0
      %6538 = vmatprep.subr.bf16.mxu0 0
      %6539 = vmatpush2.bf16.msra.mxu0 0
      %6540 = vmatprep.subr.bf16.mxu0 0
      %6541 = vmatpush2.bf16.msra.mxu0 0
      %6542 = vmatprep.subr.bf16.mxu0 0
      %6543 = vmatpush2.bf16.msra.mxu0 0
      %6544 = vmatprep.subr.bf16.mxu0 0
      %6545 = vmatpush2.bf16.msra.mxu0 0
      %6546 = vmatprep.subr.bf16.mxu0 0
      %6547 = vmatpush2.bf16.msra.mxu0 0
      %6548 = vmatprep.subr.bf16.mxu0 0
      %6549 = vmatpush2.bf16.msra.mxu0 0
      %6550 = vmatprep.mubr.bf16.mxu0 0
      %6551 = vmatmul.mubr.bf16.gmra.mxu0 %v6438
      %v6552 = vpop.f32.mrf.mxu0
      %v6553 = vadd.f32 0.0, %v6552
      %v6554 = vpop.f32.mrf.mxu0
      %v6555 = vpop.f32.mrf.mxu0
      %v6556 = vadd.f32 0.0, %v6555
      %v6557 = vpop.f32.mrf.mxu0
      %6558 = vmatprep.mubr.bf16.mxu0 0
      %6559 = vmatmul.mubr.bf16.gmra.mxu0 %v6439
      %v6560 = vpop.f32.mrf.mxu0
      %v6561 = vadd.f32 0.0, %v6560
      %v6562 = vpop.f32.mrf.mxu0
      %v6563 = vpop.f32.mrf.mxu0
      %v6564 = vadd.f32 0.0, %v6563
      %v6565 = vpop.f32.mrf.mxu0
      %6566 = vmatprep.mubr.bf16.mxu0 0
      %6567 = vmatmul.mubr.bf16.gmra.mxu0 %v6440
      %v6568 = vpop.f32.mrf.mxu0
      %v6569 = vadd.f32 0.0, %v6568
      %v6570 = vpop.f32.mrf.mxu0
      %v6571 = vpop.f32.mrf.mxu0
      %v6572 = vadd.f32 0.0, %v6571
      %v6573 = vpop.f32.mrf.mxu0
      %6574 = vmatprep.mubr.bf16.mxu0 0
      %6575 = vmatmul.mubr.bf16.gmra.mxu0 %v6441
      %v6576 = vpop.f32.mrf.mxu0
      %v6577 = vadd.f32 0.0, %v6576
      %v6578 = vpop.f32.mrf.mxu0
      %v6579 = vpop.f32.mrf.mxu0
      %v6580 = vadd.f32 0.0, %v6579
      %v6581 = vpop.f32.mrf.mxu0
      %6582 = vmatprep.mubr.bf16.mxu0 0
      %6583 = vmatmul.mubr.bf16.gmra.mxu0 %v6442
      %v6584 = vpop.f32.mrf.mxu0
      %v6585 = vadd.f32 0.0, %v6584
      %v6586 = vpop.f32.mrf.mxu0
      %v6587 = vpop.f32.mrf.mxu0
      %v6588 = vadd.f32 0.0, %v6587
      %v6589 = vpop.f32.mrf.mxu0
      %6590 = vmatprep.mubr.bf16.mxu0 0
      %6591 = vmatmul.mubr.bf16.gmra.mxu0 %v6443
      %v6592 = vpop.f32.mrf.mxu0
      %v6593 = vadd.f32 0.0, %v6592
      %v6594 = vpop.f32.mrf.mxu0
      %v6595 = vpop.f32.mrf.mxu0
      %v6596 = vadd.f32 0.0, %v6595
      %v6597 = vpop.f32.mrf.mxu0
      %6598 = vmatprep.mubr.bf16.mxu0 0
      %6599 = vmatmul.mubr.bf16.gmra.mxu0 %v6444
      %v6600 = vpop.f32.mrf.mxu0
      %v6601 = vadd.f32 0.0, %v6600
      %v6602 = vpop.f32.mrf.mxu0
      %v6603 = vpop.f32.mrf.mxu0
      %v6604 = vadd.f32 0.0, %v6603
      %v6605 = vpop.f32.mrf.mxu0
      %6606 = vmatprep.mubr.bf16.mxu0 0
      %6607 = vmatmul.mubr.bf16.gmra.mxu0 %v6445
      %v6608 = vpop.f32.mrf.mxu0
      %v6609 = vadd.f32 0.0, %v6608
      %v6610 = vpop.f32.mrf.mxu0
      %v6611 = vpop.f32.mrf.mxu0
      %v6612 = vadd.f32 0.0, %v6611
      %v6613 = vpop.f32.mrf.mxu0
      %6614 = vmatprep.mubr.bf16.mxu0 0
      %6615 = vmatmul.mubr.bf16.gmra.mxu0 %v6446
      %v6616 = vpop.f32.mrf.mxu0
      %v6617 = vadd.f32 0.0, %v6616
      %v6618 = vpop.f32.mrf.mxu0
      %v6619 = vpop.f32.mrf.mxu0
      %v6620 = vadd.f32 0.0, %v6619
      %v6621 = vpop.f32.mrf.mxu0
      %6622 = vmatprep.mubr.bf16.mxu0 0
      %6623 = vmatmul.mubr.bf16.gmra.mxu0 %v6447
      %v6624 = vpop.f32.mrf.mxu0
      %v6625 = vadd.f32 0.0, %v6624
      %v6626 = vpop.f32.mrf.mxu0
      %v6627 = vpop.f32.mrf.mxu0
      %v6628 = vadd.f32 0.0, %v6627
      %v6629 = vpop.f32.mrf.mxu0
      %6630 = vmatprep.mubr.bf16.mxu0 0
      %6631 = vmatmul.mubr.bf16.gmra.mxu0 %v6448
      %v6632 = vpop.f32.mrf.mxu0
      %v6633 = vadd.f32 0.0, %v6632
      %v6634 = vpop.f32.mrf.mxu0
      %v6635 = vpop.f32.mrf.mxu0
      %v6636 = vadd.f32 0.0, %v6635
      %v6637 = vpop.f32.mrf.mxu0
      %6638 = vmatprep.mubr.bf16.mxu0 0
      %6639 = vmatmul.mubr.bf16.gmra.mxu0 %v6449
      %v6640 = vpop.f32.mrf.mxu0
      %v6641 = vadd.f32 0.0, %v6640
      %v6642 = vpop.f32.mrf.mxu0
      %v6643 = vpop.f32.mrf.mxu0
      %v6644 = vadd.f32 0.0, %v6643
      %v6645 = vpop.f32.mrf.mxu0
      %6646 = vmatprep.mubr.bf16.mxu0 0
      %6647 = vmatmul.mubr.bf16.gmra.mxu0 %v6450
      %v6648 = vpop.f32.mrf.mxu0
      %v6649 = vadd.f32 0.0, %v6648
      %v6650 = vpop.f32.mrf.mxu0
      %v6651 = vpop.f32.mrf.mxu0
      %v6652 = vadd.f32 0.0, %v6651
      %v6653 = vpop.f32.mrf.mxu0
      %6654 = vmatprep.mubr.bf16.mxu0 0
      %6655 = vmatmul.mubr.bf16.gmra.mxu0 %v6451
      %v6656 = vpop.f32.mrf.mxu0
      %v6657 = vadd.f32 0.0, %v6656
      %v6658 = vpop.f32.mrf.mxu0
      %v6659 = vpop.f32.mrf.mxu0
      %v6660 = vadd.f32 0.0, %v6659
      %v6661 = vpop.f32.mrf.mxu0
      %6662 = vmatprep.mubr.bf16.mxu0 0
      %6663 = vmatmul.mubr.bf16.gmra.mxu0 %v6452
      %v6664 = vpop.f32.mrf.mxu0
      %v6665 = vadd.f32 0.0, %v6664
      %v6666 = vpop.f32.mrf.mxu0
      %v6667 = vpop.f32.mrf.mxu0
      %v6668 = vadd.f32 0.0, %v6667
      %v6669 = vpop.f32.mrf.mxu0
      %6670 = vmatprep.mubr.bf16.mxu0 0
      %6671 = vmatmul.mubr.bf16.gmra.mxu0 %v6453
      %v6672 = vpop.f32.mrf.mxu0
      %v6673 = vadd.f32 0.0, %v6672
      %v6674 = vpop.f32.mrf.mxu0
      %v6675 = vpop.f32.mrf.mxu0
      %v6676 = vadd.f32 0.0, %v6675
      %v6677 = vpop.f32.mrf.mxu0
      %6678 = vdwg.mxu0
      %6679 = vst [vmem:[%s377] sm:$0xff] %v6553
      %6680 = vst [vmem:[%s377 + $0x8] sm:$0xff] %v6556
      %6681 = vst [vmem:[%s377 + $0x10] sm:$0xff] %v6561
      %6682 = vst [vmem:[%s377 + $0x18] sm:$0xff] %v6564
      %6683 = vst [vmem:[%s377 + $0x20] sm:$0xff] %v6569
      %6684 = vst [vmem:[%s377 + $0x28] sm:$0xff] %v6572
      %6685 = vst [vmem:[%s377 + $0x30] sm:$0xff] %v6577
      %6686 = vst [vmem:[%s377 + $0x38] sm:$0xff] %v6580
      %6687 = vst [vmem:[%s377 + $0x40] sm:$0xff] %v6585
      %6688 = vst [vmem:[%s377 + $0x48] sm:$0xff] %v6588
      %6689 = vst [vmem:[%s377 + $0x50] sm:$0xff] %v6593
      %6690 = vst [vmem:[%s377 + $0x58] sm:$0xff] %v6596
      %6691 = vst [vmem:[%s377 + $0x60] sm:$0xff] %v6601
      %6692 = vst [vmem:[%s377 + $0x68] sm:$0xff] %v6604
      %6693 = vst [vmem:[%s377 + $0x70] sm:$0xff] %v6609
      %6694 = vst [vmem:[%s377 + $0x78] sm:$0xff] %v6612
      %6695 = vst [vmem:[%s377 + $0x80] sm:$0xff] %v6617
      %6696 = vst [vmem:[%s377 + $0x88] sm:$0xff] %v6620
      %6697 = vst [vmem:[%s377 + $0x90] sm:$0xff] %v6625
      %6698 = vst [vmem:[%s377 + $0x98] sm:$0xff] %v6628
      %6699 = vst [vmem:[%s377 + $0xa0] sm:$0xff] %v6633
      %6700 = vst [vmem:[%s377 + $0xa8] sm:$0xff] %v6636
      %6701 = vst [vmem:[%s377 + $0xb0] sm:$0xff] %v6641
      %6702 = vst [vmem:[%s377 + $0xb8] sm:$0xff] %v6644
      %6703 = vst [vmem:[%s377 + $0xc0] sm:$0xff] %v6649
      %6704 = vst [vmem:[%s377 + $0xc8] sm:$0xff] %v6652
      %6705 = vst [vmem:[%s377 + $0xd0] sm:$0xff] %v6657
      %6706 = vst [vmem:[%s377 + $0xd8] sm:$0xff] %v6660
      %6707 = vst [vmem:[%s377 + $0xe0] sm:$0xff] %v6665
      %6708 = vst [vmem:[%s377 + $0xe8] sm:$0xff] %v6668
      %6709 = vst [vmem:[%s377 + $0xf0] sm:$0xff] %v6673
      %6710 = vst [vmem:[%s377 + $0xf8] sm:$0xff] %v6676
      %v6711 = vadd.f32 %v6553, %v6556
      %v6712 = vadd.f32 %v6711, %v6561
      %v6713 = vadd.f32 %v6712, %v6564
      %v6714 = vadd.f32 %v6713, %v6569
      %v6715 = vadd.f32 %v6714, %v6572
      %v6716 = vadd.f32 %v6715, %v6577
      %v6717 = vadd.f32 %v6716, %v6580
      %v6718 = vadd.f32 %v6717, %v6585
      %v6719 = vadd.f32 %v6718, %v6588
      %v6720 = vadd.f32 %v6719, %v6593
      %v6721 = vadd.f32 %v6720, %v6596
      %v6722 = vadd.f32 %v6721, %v6601
      %v6723 = vadd.f32 %v6722, %v6604
      %v6724 = vadd.f32 %v6723, %v6609
      %v6725 = vadd.f32 %v6724, %v6612
      %v6726 = vadd.f32 %v6725, %v6617
      %v6727 = vadd.f32 %v6726, %v6620
      %v6728 = vadd.f32 %v6727, %v6625
      %v6729 = vadd.f32 %v6728, %v6628
      %v6730 = vadd.f32 %v6729, %v6633
      %v6731 = vadd.f32 %v6730, %v6636
      %v6732 = vadd.f32 %v6731, %v6641
      %v6733 = vadd.f32 %v6732, %v6644
      %v6734 = vadd.f32 %v6733, %v6649
      %v6735 = vadd.f32 %v6734, %v6652
      %v6736 = vadd.f32 %v6735, %v6657
      %v6737 = vadd.f32 %v6736, %v6660
      %v6738 = vadd.f32 %v6737, %v6665
      %v6739 = vadd.f32 %v6738, %v6668
      %v6740 = vadd.f32 %v6739, %v6673
      %v6741 = vadd.f32 %v6740, %v6676
      %v6742 = vrot.slane %v6741, 4
      %v6743 = vadd.f32 %v6741, %v6742
      %v6744 = vrot.slane %v6743, 2
      %v6745 = vadd.f32 %v6743, %v6744
      %v6746 = vrot.slane %v6745, 1
      %v6747 = vadd.f32 %v6745, %v6746
      %6748 = vst [vmem:[%s385] sm:$0x1] %v6747
      %v6749 = vmul.f32 %v6553, %v6553
      %v6750 = vmul.f32 %v6556, %v6556
      %v6751 = vmul.f32 %v6561, %v6561
      %v6752 = vmul.f32 %v6564, %v6564
      %v6753 = vmul.f32 %v6569, %v6569
      %v6754 = vmul.f32 %v6572, %v6572
      %v6755 = vmul.f32 %v6577, %v6577
      %v6756 = vmul.f32 %v6580, %v6580
      %v6757 = vmul.f32 %v6585, %v6585
      %v6758 = vmul.f32 %v6588, %v6588
      %v6759 = vmul.f32 %v6593, %v6593
      %v6760 = vmul.f32 %v6596, %v6596
      %v6761 = vmul.f32 %v6601, %v6601
      %v6762 = vmul.f32 %v6604, %v6604
      %v6763 = vmul.f32 %v6609, %v6609
      %v6764 = vmul.f32 %v6612, %v6612
      %v6765 = vmul.f32 %v6617, %v6617
      %v6766 = vmul.f32 %v6620, %v6620
      %v6767 = vmul.f32 %v6625, %v6625
      %v6768 = vmul.f32 %v6628, %v6628
      %v6769 = vmul.f32 %v6633, %v6633
      %v6770 = vmul.f32 %v6636, %v6636
      %v6771 = vmul.f32 %v6641, %v6641
      %v6772 = vmul.f32 %v6644, %v6644
      %v6773 = vmul.f32 %v6649, %v6649
      %v6774 = vmul.f32 %v6652, %v6652
      %v6775 = vmul.f32 %v6657, %v6657
      %v6776 = vmul.f32 %v6660, %v6660
      %v6777 = vmul.f32 %v6665, %v6665
      %v6778 = vmul.f32 %v6668, %v6668
      %v6779 = vmul.f32 %v6673, %v6673
      %v6780 = vmul.f32 %v6676, %v6676
      %v6781 = vadd.f32 %v6749, %v6750
      %v6782 = vadd.f32 %v6781, %v6751
      %v6783 = vadd.f32 %v6782, %v6752
      %v6784 = vadd.f32 %v6783, %v6753
      %v6785 = vadd.f32 %v6784, %v6754
      %v6786 = vadd.f32 %v6785, %v6755
      %v6787 = vadd.f32 %v6786, %v6756
      %v6788 = vadd.f32 %v6787, %v6757
      %v6789 = vadd.f32 %v6788, %v6758
      %v6790 = vadd.f32 %v6789, %v6759
      %v6791 = vadd.f32 %v6790, %v6760
      %v6792 = vadd.f32 %v6791, %v6761
      %v6793 = vadd.f32 %v6792, %v6762
      %v6794 = vadd.f32 %v6793, %v6763
      %v6795 = vadd.f32 %v6794, %v6764
      %v6796 = vadd.f32 %v6795, %v6765
      %v6797 = vadd.f32 %v6796, %v6766
      %v6798 = vadd.f32 %v6797, %v6767
      %v6799 = vadd.f32 %v6798, %v6768
      %v6800 = vadd.f32 %v6799, %v6769
      %v6801 = vadd.f32 %v6800, %v6770
      %v6802 = vadd.f32 %v6801, %v6771
      %v6803 = vadd.f32 %v6802, %v6772
      %v6804 = vadd.f32 %v6803, %v6773
      %v6805 = vadd.f32 %v6804, %v6774
      %v6806 = vadd.f32 %v6805, %v6775
      %v6807 = vadd.f32 %v6806, %v6776
      %v6808 = vadd.f32 %v6807, %v6777
      %v6809 = vadd.f32 %v6808, %v6778
      %v6810 = vadd.f32 %v6809, %v6779
      %v6811 = vadd.f32 %v6810, %v6780
      %v6812 = vrot.slane %v6811, 4
      %v6813 = vadd.f32 %v6811, %v6812
      %v6814 = vrot.slane %v6813, 2
      %v6815 = vadd.f32 %v6813, %v6814
      %v6816 = vrot.slane %v6815, 1
      %v6817 = vadd.f32 %v6815, %v6816
      %6818 = vst [vmem:[%s385 + $0x1] sm:$0x1] %v6817
      %p6819 = scmp.lt.s32.totalorder %s21, 1
      %s6820 = scalar_select %p6819, %s21, 1
      %s6821 = smul.addr %s6820, 32
      %s6822 = smul.addr %s6821, 8
      %s6823 = scalar_lea.vmem %s6, %s6822
      %p6824 = scmp.lt.s32.totalorder %s21, 1
      %s6825 = scalar_select %p6824, %s21, 1
      %s6826 = smul.addr %s6825, 32
      %s6827 = smul.addr %s6826, 8
      %s6828 = scalar_lea.vmem %s7, %s6827
      %p6829 = scmp.lt.s32.totalorder %s21, 1
      %s6830 = scalar_select %p6829, %s21, 1
      %s6831 = smul.addr %s6830, 2
      %s6832 = scalar_lea.vmem %s8, %s6831
      %p6833 = scmp.lt.s32.totalorder %s21, 1
      %s6834 = scalar_select %p6833, %s21, 1
      %s6835 = smul.addr %s6834, 2
      %s6836 = scalar_lea.vmem %s9, %s6835
      // Predicated region
      $region45: #{residual_block_forward.4} parent=43 // pred_check
        %p6837 = pneg %p175
      $region46: #{residual_block_forward.4} parent=43 // pred_check_branch
        %6839 = sbr.rel (%p6837) target = $region48
      $region47: #{residual_block_forward.4} parent=43 // pred_region
        _
      $region48: #{residual_block_forward.4} parent=43 // pred_fallthru
        _
      // Predicated region
      $region49: #{residual_block_forward.4} parent=43 // pred_check
        %p6840 = pneg %p201
      $region50: #{residual_block_forward.4} parent=43 // pred_check_branch
        %6842 = sbr.rel (%p6840) target = $region52
      $region51: #{residual_block_forward.4} parent=43 // pred_region
        _
      $region52: #{residual_block_forward.4} parent=43 // pred_fallthru
        _
      // Predicated region
      $region53: #{residual_block_forward.4} parent=43 // pred_check
        %p6843 = pneg %p227
      $region54: #{residual_block_forward.4} parent=43 // pred_check_branch
        %6845 = sbr.rel (%p6843) target = $region56
      $region55: #{residual_block_forward.4} parent=43 // pred_region
        _
      $region56: #{residual_block_forward.4} parent=43 // pred_fallthru
        _
      // Predicated region
      $region57: #{residual_block_forward.4} parent=43 // pred_check
        %p6846 = pneg %p253
      $region58: #{residual_block_forward.4} parent=43 // pred_check_branch
        %6848 = sbr.rel (%p6846) target = $region60
      $region59: #{residual_block_forward.4} parent=43 // pred_region
        _
      $region60: #{residual_block_forward.4} parent=43 // pred_fallthru
        _
    $region44: #{residual_block_forward.4} parent=5 // pred_fallthru
      _
    %p6849 = scmp.le.s32.totalorder 2, %s16
    // Predicated region
    $region61: #{residual_block_forward.4} parent=5 // pred_check
      %p6850 = pneg %p6849
    $region62: #{residual_block_forward.4} parent=5 // pred_check_branch
      %6852 = sbr.rel (%p6850) target = $region64
    $region63: #{residual_block_forward.4} parent=5 // pred_region
      %s6853 = ssub.s32 %s16, 2
      // Predicated region
      $region65: #{residual_block_forward.4} parent=63 // pred_check
        %p6854 = pneg %p181
      $region66: #{residual_block_forward.4} parent=63 // pred_check_branch
        %6856 = sbr.rel (%p6854) target = $region68
      $region67: #{residual_block_forward.4} parent=63 // pred_region
        %p6857 = scmp.lt.s32.totalorder %s22, 1
        %s6858 = scalar_select %p6857, %s22, 1
        %s6859 = smul.addr %s6858, 32
        %s6860 = smul.addr %s6859, 8
        %s6861 = scalar_lea.vmem %s6, %s6860
      $region68: #{residual_block_forward.4} parent=63 // pred_fallthru
        _
      // Predicated region
      $region69: #{residual_block_forward.4} parent=63 // pred_check
        %p6862 = pneg %p207
      $region70: #{residual_block_forward.4} parent=63 // pred_check_branch
        %6864 = sbr.rel (%p6862) target = $region72
      $region71: #{residual_block_forward.4} parent=63 // pred_region
        %p6865 = scmp.lt.s32.totalorder %s22, 1
        %s6866 = scalar_select %p6865, %s22, 1
        %s6867 = smul.addr %s6866, 32
        %s6868 = smul.addr %s6867, 8
        %s6869 = scalar_lea.vmem %s7, %s6868
      $region72: #{residual_block_forward.4} parent=63 // pred_fallthru
        _
      // Predicated region
      $region73: #{residual_block_forward.4} parent=63 // pred_check
        %p6870 = pneg %p233
      $region74: #{residual_block_forward.4} parent=63 // pred_check_branch
        %6872 = sbr.rel (%p6870) target = $region76
      $region75: #{residual_block_forward.4} parent=63 // pred_region
        %p6873 = scmp.lt.s32.totalorder %s22, 1
        %s6874 = scalar_select %p6873, %s22, 1
        %s6875 = smul.addr %s6874, 2
        %s6876 = scalar_lea.vmem %s8, %s6875
      $region76: #{residual_block_forward.4} parent=63 // pred_fallthru
        _
      // Predicated region
      $region77: #{residual_block_forward.4} parent=63 // pred_check
        %p6877 = pneg %p259
      $region78: #{residual_block_forward.4} parent=63 // pred_check_branch
        %6879 = sbr.rel (%p6877) target = $region80
      $region79: #{residual_block_forward.4} parent=63 // pred_region
        %p6880 = scmp.lt.s32.totalorder %s22, 1
        %s6881 = scalar_select %p6880, %s22, 1
        %s6882 = smul.addr %s6881, 2
        %s6883 = scalar_lea.vmem %s9, %s6882
      $region80: #{residual_block_forward.4} parent=63 // pred_fallthru
        _
    $region64: #{residual_block_forward.4} parent=5 // pred_fallthru
      _
  $region6: #{residual_block_forward.4} parent=0 // loop_footer
    %s20 = sadd.s32 1, %s16
  $region7: #{residual_block_forward.4} parent=0 // loop_footer_branch
    %15 = sbr.rel target = $region3
  $region8: #{residual_block_forward.4} parent=0 // loop_exit
    _

</llo_original>
